<compile_context>
chip_gen: v7x
topology: tpu7x:2x2x1
jax: 0.10.0
libtpu: 0.0.40
codegen_flags: <defaults>
</compile_context>

<pallas_src>
import functools

import jax
import jax.numpy as jnp
import numpy as np
from jax import lax
from jax.experimental import pallas as pl
from jax.experimental.pallas import tpu as pltpu


# ---------------------------------------------------------------------------
# Kernel
# ---------------------------------------------------------------------------
def _electrostatics_kernel(
    pd_ref,      # (2, TP)  f32: row 0 = kehalf*q_i*q_j, row 1 = d   (padded: 0 / 2*cutoff)
    idx_ref,     # (1, TP)  int32: idx_i                              (padded: n_pad)
    out_ref,     # (TN, 1)  f32: per-atom energy, resident accumulator for this atom tile
    ids_ref,     # (TN, TP) int32 scratch: local atom row ids (iota along sublanes)
    *,
    cutoff: float,
    cutoff_short_range: float,
    split_distance: bool,
    tn: int,
):
    a = pl.program_id(0)          # atom-tile index (parallel)
    p = pl.program_id(1)          # pair-tile index (arbitrary / reduction)

    # Start of this atom tile's pair sweep: zero the accumulator and (re)fill
    # the constant local row-id plane.  The refill is idempotent and must not
    # be gated on a == 0 because the parallel atom axis may be split across
    # TensorCores (each core has its own scratch instance).
    @pl.when(p == 0)
    def _():
        out_ref[...] = jnp.zeros_like(out_ref)
        ids_ref[...] = lax.broadcasted_iota(jnp.int32, ids_ref.shape, 0)

    qq = pd_ref[0:1, :]           # (1, TP)
    d = pd_ref[1:2, :]            # (1, TP)

    # ---- pairwise physics (lane-dense, O(TP) work) -------------------------
    inv_d = 1.0 / d                             # padded d = 2*cutoff > 0 -> finite
    d_sh = jnp.sqrt(d * d + 1.0)                # shielded distance
    inv_dsh = 1.0 / d_sh

    # Poly6 switch on the short-range cutoff:
    #   f(x) = 1 - 10 x^3 + 15 x^4 - 6 x^5  for x < 1, else 0
    x = d * (1.0 / cutoff_short_range)
    poly = 1.0 + x * x * x * (-10.0 + x * (15.0 - 6.0 * x))
    sw_off = jnp.where(x < 1.0, poly, 0.0)

    if split_distance:
        inv_c2 = 1.0 / (cutoff * cutoff)
        two_over_c = 2.0 / cutoff
        e_ord = inv_d + d * inv_c2 - two_over_c
        e_shl = inv_dsh + d_sh * inv_c2 - two_over_c
    else:
        e_ord = inv_d
        e_shl = inv_dsh

    # switch_off * e_shl + (1 - switch_off) * e_ord, rearranged:
    e = qq * (e_ord + sw_off * (e_shl - e_ord))
    e = jnp.where(d <= cutoff, e, 0.0)          # also zeroes all padded pairs

    # ---- scatter-sum over idx_i on the VPU ---------------------------------
    # Local (per-atom-tile) pair targets; padded pairs land outside [0, tn).
    idx_local = idx_ref[...] - a * tn                       # (1, TP) int32
    mask = ids_ref[...] == idx_local                        # (TN, TP), sublane bcast
    contrib = jnp.where(mask, e, 0.0)                       # e sublane-broadcast
    out_ref[...] += jnp.sum(contrib, axis=1, keepdims=True)  # lane reduce -> (TN, 1)


# ---------------------------------------------------------------------------
# Wrapper (pair gather, padding, tiling, pallas_call)
# ---------------------------------------------------------------------------
def pc_shielded_electrostatics(
    atomic_charges: jax.Array,   # (N,)
    distances: jax.Array,        # (P,)
    idx_i: jax.Array,            # (P,) int32
    idx_j: jax.Array,            # (P,) int32
    *,
    kehalf: float,
    cutoff: float,
    cutoff_short_range: float,
):
    n_atoms = atomic_charges.shape[0]
    n_pairs = distances.shape[0]
    split_distance = (
        cutoff_short_range is not None and cutoff != cutoff_short_range
    )
    csr = cutoff_short_range if split_distance else cutoff

    # --- pair-side charge gather in the wrapper (O(P), fused by XLA) --------
    q = atomic_charges.astype(jnp.float32)
    qq = (float(kehalf) * q[idx_i] * q[idx_j]).astype(jnp.float32)    # (P,)
    d = distances.astype(jnp.float32)                                 # (P,)

    # --- tile sizes (adaptive, review item 4) --------------------------------
    # Atom tile along sublanes; >= 2 tiles for larger systems so the parallel
    # grid axis can engage both v7x TensorCores.
    tn = 256 if n_atoms <= 256 else 512
    n_pad = pl.cdiv(n_atoms, tn) * tn
    # Keep the in-kernel (tn, tp) plane at <= 1M elements (4 MiB f32) so the
    # iota scratch + temporaries fit comfortably in scoped VMEM on v5e..v7x.
    E_MAX = 512 * 1024 * 2
    tp = max(512, min(4096, E_MAX // tn))
    tp = min(tp, max(128, pl.cdiv(n_pairs, 128) * 128))
    p_pad = pl.cdiv(n_pairs, tp) * tp

    pad_p = p_pad - n_pairs
    # Padded pairs: qq = 0, d > cutoff and idx = n_pad (matches no atom row).
    d_p = jnp.pad(d, (0, pad_p), constant_values=2.0 * float(cutoff))
    qq_p = jnp.pad(qq, (0, pad_p))
    idx_p = jnp.pad(idx_i.astype(jnp.int32), (0, pad_p), constant_values=n_pad)

    pd = jnp.stack([qq_p, d_p], axis=0)          # (2, p_pad) packed pair operand
    idx2 = idx_p.reshape(1, p_pad)               # (1, p_pad) int32

    n_atom_tiles = n_pad // tn
    grid = (n_atom_tiles, p_pad // tp)

    kernel = functools.partial(
        _electrostatics_kernel,
        cutoff=float(cutoff),
        cutoff_short_range=float(csr),
        split_distance=split_distance,
        tn=tn,
    )

    # Explicit VMEM budget: iota scratch + in-kernel (tn, tp) temporaries +
    # double-buffered (tiny) pair tiles + output block + headroom.
    plane_bytes = tn * tp * 4
    vmem_bytes = (
        plane_bytes                 # ids scratch
        + 4 * plane_bytes           # mask / select / reduction temporaries
        + 2 * (3 * tp * 4)          # double-buffered pd + idx tiles
        + 2 * tn * 4                # output block
        + (4 << 20)                 # headroom
    )

    cost = pl.CostEstimate(
        flops=3 * p_pad * n_pad + 30 * p_pad * n_atom_tiles,
        transcendentals=2 * p_pad * n_atom_tiles,
        bytes_accessed=12 * p_pad * n_atom_tiles + 4 * n_pad,
    )

    grid_spec = pltpu.PrefetchScalarGridSpec(
        num_scalar_prefetch=0,
        grid=grid,
        in_specs=[
            pl.BlockSpec((2, tp), lambda a, p: (0, p)),      # [qq; d]
            pl.BlockSpec((1, tp), lambda a, p: (0, p)),      # idx_i
        ],
        out_specs=pl.BlockSpec((tn, 1), lambda a, p: (a, 0)),  # resident accumulator
        scratch_shapes=[pltpu.VMEM((tn, tp), jnp.int32)],
    )

    out = pl.pallas_call(
        kernel,
        out_shape=jax.ShapeDtypeStruct((n_pad, 1), jnp.float32),
        grid_spec=grid_spec,
        compiler_params=pltpu.CompilerParams(
            dimension_semantics=("parallel", "arbitrary"),
            vmem_limit_bytes=int(vmem_bytes),
        ),
        cost_estimate=cost,
    )(pd, idx2)

    return out[:n_atoms, 0]


# ---------------------------------------------------------------------------
# float64 numpy reference (mirrors the PyTorch forward exactly)
# ---------------------------------------------------------------------------
def _reference_np(q, d, idx_i, idx_j, *, kehalf, cutoff, cutoff_short_range):
    split_distance = cutoff != cutoff_short_range
    csr = cutoff_short_range if split_distance else cutoff
    q = np.asarray(q, np.float64)
    d = np.asarray(d, np.float64)
    qi = q[idx_i]
    qj = q[idx_j]
    d_sh = np.sqrt(d * d + 1.0)
    x = d / csr
    sw_off = np.where(x < 1.0, 1.0 - 10.0 * x**3 + 15.0 * x**4 - 6.0 * x**5, 0.0)
    sw_on = 1.0 - sw_off
    if split_distance:
        e_ord = 1.0 / d + d / cutoff**2 - 2.0 / cutoff
        e_shl = 1.0 / d_sh + d_sh / cutoff**2 - 2.0 / cutoff
    else:
        e_ord = 1.0 / d
        e_shl = 1.0 / d_sh
    e = kehalf * qi * qj * (sw_off * e_shl + sw_on * e_ord)
    e = np.where(d <= cutoff, e, 0.0)
    out = np.zeros(q.shape[0], dtype=np.float64)
    np.add.at(out, np.asarray(idx_i), e)
    return out


# ---------------------------------------------------------------------------
# Main
# ---------------------------------------------------------------------------
if __name__ == "__main__":
    key = jax.random.PRNGKey(0)

    KEHALF = 7.199822675975274
    CUTOFF = 4.0
    CUTOFF_SHORT_RANGE = 2.0   # != cutoff -> split_distance branch exercised

    # 600 atoms -> n_pad = 1024, tn = 512: 2 atom tiles (exercises the parallel
    # atom axis).  8192 pairs -> tp = 2048: 4 pair steps (exercises the
    # resident-accumulator reduction).
    n_atoms = 600
    n_pairs = 8192

    k1, k2, k3, k4 = jax.random.split(key, 4)
    atomic_charges = jax.random.normal(k1, (n_atoms,), dtype=jnp.float32)
    # distances in (0.5, 1.2 * cutoff): strictly positive, some beyond cutoff
    distances = 0.5 + jax.random.uniform(k2, (n_pairs,), dtype=jnp.float32) * (
        1.2 * CUTOFF - 0.5
    )
    idx_i = jax.random.randint(k3, (n_pairs,), 0, n_atoms, dtype=jnp.int32)
    off = jax.random.randint(k4, (n_pairs,), 1, n_atoms, dtype=jnp.int32)
    idx_j = ((idx_i + off) % n_atoms).astype(jnp.int32)   # guaranteed j != i

    # Exercise both the split-distance and the plain-Coulomb branches.
    for csr in (CUTOFF_SHORT_RANGE, CUTOFF):
        energy = pc_shielded_electrostatics(
            atomic_charges,
            distances,
            idx_i,
            idx_j,
            kehalf=KEHALF,
            cutoff=CUTOFF,
            cutoff_short_range=csr,
        )
        energy = jax.block_until_ready(energy)

        ref = _reference_np(
            np.asarray(atomic_charges),
            np.asarray(distances),
            np.asarray(idx_i),
            np.asarray(idx_j),
            kehalf=KEHALF,
            cutoff=CUTOFF,
            cutoff_short_range=csr,
        )
        # atol covers f32 summation-order differences (lane-tree reduce vs
        # sequential np.add.at) on ~14 terms per atom with |term| up to ~1e2.
        np.testing.assert_allclose(
            np.asarray(energy), ref.astype(np.float32), rtol=1e-5, atol=5e-4
        )

    print("KERNEL_OK")
</pallas_src>

<mosaic_0001>
module attributes {stable_mosaic.version = 11 : i64} {
  func.func @_electrostatics_kernel(%arg0: i32, %arg1: i32, %arg2: memref<2x2048xf32, #tpu.memory_space<vmem>>, %arg3: memref<1x2048xi32, #tpu.memory_space<vmem>>, %arg4: memref<512x1xf32, #tpu.memory_space<vmem>>, %arg5: memref<512x2048xi32, #tpu.memory_space<vmem>>) attributes {dimension_semantics = [#tpu.dimension_semantics<parallel>, #tpu.dimension_semantics<arbitrary>], iteration_bounds = array<i64: 2, 4>, scalar_prefetch = 0 : i64, scratch_operands = 1 : i64, tpu.core_type = #tpu.core_type<tc>, window_params = [{transform_indices = @transform_0, window_bounds = array<i64: 2, 2048>}, {transform_indices = @transform_1, window_bounds = array<i64: 1, 2048>}, {transform_indices = @transform_2, window_bounds = array<i64: 512, 1>}]} {
    %c0_i32 = arith.constant 0 : i32
    %0 = arith.cmpi eq, %arg1, %c0_i32 : i32
    %1 = arith.extui %0 : i1 to i32
    %c0_i32_0 = arith.constant 0 : i32
    %2 = arith.cmpi ne, %1, %c0_i32_0 : i32
    scf.if %2 {
      %cst_28 = arith.constant 0.000000e+00 : f32
      %65 = vector.broadcast %cst_28 : f32 to vector<512x1xf32>
      %c0_29 = arith.constant 0 : index
      %c0_30 = arith.constant 0 : index
      %66 = vector.load %arg4[%c0_29, %c0_30] : memref<512x1xf32, #tpu.memory_space<vmem>>, vector<512x1xf32>
      tpu.vector_store %arg4[%c0_29, %c0_30], %65 {strides = array<i32>} : memref<512x1xf32, #tpu.memory_space<vmem>>, vector<512x1xf32>,
      %67 = tpu.iota {dimensions = array<i32: 0>} : vector<512x2048xi32>
      %c0_31 = arith.constant 0 : index
      %c0_32 = arith.constant 0 : index
      %68 = vector.load %arg5[%c0_31, %c0_32] : memref<512x2048xi32, #tpu.memory_space<vmem>>, vector<512x2048xi32>
      tpu.vector_store %arg5[%c0_31, %c0_32], %67 {strides = array<i32>} : memref<512x2048xi32, #tpu.memory_space<vmem>>, vector<512x2048xi32>,
    } else {
    }
    %c0 = arith.constant 0 : index
    %c0_1 = arith.constant 0 : index
    %3 = vector.load %arg2[%c0, %c0_1] : memref<2x2048xf32, #tpu.memory_space<vmem>>, vector<1x2048xf32>
    %c1 = arith.constant 1 : index
    %c0_2 = arith.constant 0 : index
    %4 = vector.load %arg2[%c1, %c0_2] : memref<2x2048xf32, #tpu.memory_space<vmem>>, vector<1x2048xf32>
    %cst = arith.constant 1.000000e+00 : f32
    %5 = vector.broadcast %cst : f32 to vector<1x2048xf32>
    %6 = arith.divf %5, %4 : vector<1x2048xf32>
    %7 = arith.mulf %4, %4 : vector<1x2048xf32>
    %cst_3 = arith.constant 1.000000e+00 : f32
    %8 = vector.broadcast %cst_3 : f32 to vector<1x2048xf32>
    %9 = arith.addf %7, %8 : vector<1x2048xf32>
    %10 = math.sqrt %9 : vector<1x2048xf32>
    %cst_4 = arith.constant 1.000000e+00 : f32
    %11 = vector.broadcast %cst_4 : f32 to vector<1x2048xf32>
    %12 = arith.divf %11, %10 : vector<1x2048xf32>
    %cst_5 = arith.constant 5.000000e-01 : f32
    %13 = vector.broadcast %cst_5 : f32 to vector<1x2048xf32>
    %14 = arith.mulf %4, %13 : vector<1x2048xf32>
    %15 = arith.mulf %14, %14 : vector<1x2048xf32>
    %16 = arith.mulf %15, %14 : vector<1x2048xf32>
    %cst_6 = arith.constant 6.000000e+00 : f32
    %17 = vector.broadcast %cst_6 : f32 to vector<1x2048xf32>
    %18 = arith.mulf %17, %14 : vector<1x2048xf32>
    %cst_7 = arith.constant 1.500000e+01 : f32
    %19 = vector.broadcast %cst_7 : f32 to vector<1x2048xf32>
    %20 = arith.subf %19, %18 : vector<1x2048xf32>
    %21 = arith.mulf %14, %20 : vector<1x2048xf32>
    %cst_8 = arith.constant -1.000000e+01 : f32
    %22 = vector.broadcast %cst_8 : f32 to vector<1x2048xf32>
    %23 = arith.addf %22, %21 : vector<1x2048xf32>
    %24 = arith.mulf %16, %23 : vector<1x2048xf32>
    %cst_9 = arith.constant 1.000000e+00 : f32
    %25 = vector.broadcast %cst_9 : f32 to vector<1x2048xf32>
    %26 = arith.addf %25, %24 : vector<1x2048xf32>
    %cst_10 = arith.constant 1.000000e+00 : f32
    %27 = vector.broadcast %cst_10 : f32 to vector<1x2048xf32>
    %28 = arith.cmpf olt, %14, %27 : vector<1x2048xf32>
    %cst_11 = arith.constant 0.000000e+00 : f32
    %29 = vector.broadcast %cst_11 : f32 to vector<1x2048xf32>
    %30 = arith.select %28, %26, %29 : vector<1x2048xi1>, vector<1x2048xf32>
    %cst_12 = arith.constant 6.250000e-02 : f32
    %31 = vector.broadcast %cst_12 : f32 to vector<1x2048xf32>
    %32 = arith.mulf %4, %31 : vector<1x2048xf32>
    %33 = arith.addf %6, %32 : vector<1x2048xf32>
    %cst_13 = arith.constant 5.000000e-01 : f32
    %34 = vector.broadcast %cst_13 : f32 to vector<1x2048xf32>
    %35 = arith.subf %33, %34 : vector<1x2048xf32>
    %cst_14 = arith.constant 6.250000e-02 : f32
    %36 = vector.broadcast %cst_14 : f32 to vector<1x2048xf32>
    %37 = arith.mulf %10, %36 : vector<1x2048xf32>
    %38 = arith.addf %12, %37 : vector<1x2048xf32>
    %cst_15 = arith.constant 5.000000e-01 : f32
    %39 = vector.broadcast %cst_15 : f32 to vector<1x2048xf32>
    %40 = arith.subf %38, %39 : vector<1x2048xf32>
    %41 = arith.subf %40, %35 : vector<1x2048xf32>
    %42 = arith.mulf %30, %41 : vector<1x2048xf32>
    %43 = arith.addf %35, %42 : vector<1x2048xf32>
    %44 = arith.mulf %3, %43 : vector<1x2048xf32>
    %cst_16 = arith.constant 4.000000e+00 : f32
    %45 = vector.broadcast %cst_16 : f32 to vector<1x2048xf32>
    %46 = arith.cmpf ole, %4, %45 : vector<1x2048xf32>
    %cst_17 = arith.constant 0.000000e+00 : f32
    %47 = vector.broadcast %cst_17 : f32 to vector<1x2048xf32>
    %48 = arith.select %46, %44, %47 : vector<1x2048xi1>, vector<1x2048xf32>
    %c0_18 = arith.constant 0 : index
    %c0_19 = arith.constant 0 : index
    %49 = vector.load %arg3[%c0_18, %c0_19] : memref<1x2048xi32, #tpu.memory_space<vmem>>, vector<1x2048xi32>
    %c512_i32 = arith.constant 512 : i32
    %50 = arith.muli %arg0, %c512_i32 : i32
    %51 = vector.broadcast %50 : i32 to vector<1x2048xi32>
    %52 = arith.subi %49, %51 : vector<1x2048xi32>
    %c0_20 = arith.constant 0 : index
    %c0_21 = arith.constant 0 : index
    %53 = vector.load %arg5[%c0_20, %c0_21] : memref<512x2048xi32, #tpu.memory_space<vmem>>, vector<512x2048xi32>
    %54 = vector.broadcast %52 : vector<1x2048xi32> to vector<512x2048xi32>
    %55 = arith.cmpi eq, %53, %54 : vector<512x2048xi32>
    %cst_22 = arith.constant 0.000000e+00 : f32
    %56 = vector.shape_cast %48 : vector<1x2048xf32> to vector<1x2048xf32>
    %57 = vector.broadcast %56 : vector<1x2048xf32> to vector<512x2048xf32>
    %58 = vector.broadcast %cst_22 : f32 to vector<512x2048xf32>
    %59 = arith.select %55, %57, %58 : vector<512x2048xi1>, vector<512x2048xf32>
    %c0_23 = arith.constant 0 : index
    %c0_24 = arith.constant 0 : index
    %60 = vector.load %arg4[%c0_23, %c0_24] : memref<512x1xf32, #tpu.memory_space<vmem>>, vector<512x1xf32>
    %cst_25 = arith.constant dense<0.000000e+00> : vector<512xf32>
    %61 = vector.multi_reduction <add>, %59, %cst_25 [1] : vector<512x2048xf32> to vector<512xf32>
    %62 = vector.shape_cast %61 : vector<512xf32> to vector<512x1xf32>
    %63 = arith.addf %60, %62 : vector<512x1xf32>
    %c0_26 = arith.constant 0 : index
    %c0_27 = arith.constant 0 : index
    %64 = vector.load %arg4[%c0_26, %c0_27] : memref<512x1xf32, #tpu.memory_space<vmem>>, vector<512x1xf32>
    tpu.vector_store %arg4[%c0_26, %c0_27], %63 {strides = array<i32>} : memref<512x1xf32, #tpu.memory_space<vmem>>, vector<512x1xf32>,
    return
  }
  func.func @transform_0(%arg0: i32, %arg1: i32) -> (i32, i32) {
    %c0_i32 = arith.constant 0 : i32
    %c0_i32_0 = arith.constant 0 : i32
    return %c0_i32, %arg1 : i32, i32
  }
  func.func @transform_1(%arg0: i32, %arg1: i32) -> (i32, i32) {
    %c0_i32 = arith.constant 0 : i32
    %c0_i32_0 = arith.constant 0 : i32
    return %c0_i32, %arg1 : i32, i32
  }
  func.func @transform_2(%arg0: i32, %arg1: i32) -> (i32, i32) {
    %c0_i32 = arith.constant 0 : i32
    %c0_i32_0 = arith.constant 0 : i32
    return %arg0, %c0_i32 : i32, i32
  }
}

</mosaic_0001>

<llo_original>
// kernel: tpu_custom_call.1
$region0: #{tpu_custom_call.1}
  #allocation0 [shape = 'u32[]', space=smem, size = 0x4, offset = 0x4, fixed_abs, tag = 'smem constant byte address 0x4 - core index']
  #allocation1 [shape = 'u32[144,128]{1,0:T(1,128)}', space=vmem, size = 0x12000, scoped, tag = 'internal scratch']
  #allocation2 [shape = 's32[512,2048]{1,0:T(8,128)}', space=vmem, size = 0x400000, scoped, tag = 'scratch operand']
  %s0 = inlined_call_operand.hbm [shape: f32[2,8192], index: 0, kind: input, shape index: {}]
  %s1 = inlined_call_operand.hbm [shape: s32[1,8192], index: 1, kind: input, shape index: {}]
  %s2 = inlined_call_operand.vmem [shape: f32[1024,1], index: 2, kind: output, shape index: {}]
  %s3 = sld [smem:[#allocation0]]
  $region53: #{tpu_custom_call.1} parent=0
    _
  %s5 = ssub.s32 1, %s3
  %s6 = scalar_select 0, %s5, %s3
  $region1: #{tpu_custom_call.1} parent=0
    #allocation3 [shape = 'u8[32768]{0}', space=vmem, size = 0x8000, scoped, tag = 'input window, operand 0']
    #allocation4 [shape = 's32[2]{0}', space=sflag, size = 0x8, scoped, tag = 'scoped memory for tpu_custom_call.1']
    #allocation5 [shape = 'u8[16384]{0}', space=vmem, size = 0x4000, scoped, tag = 'input window, operand 1']
    #allocation6 [shape = 's32[2]{0}', space=sflag, size = 0x8, scoped, tag = 'scoped memory for tpu_custom_call.1']
    %7 = vsyncpa [#allocation4], 0
    %s8 = scalar_lea.sflag [#allocation4], 1
    %9 = vsyncpa %s8, 0
    %10 = vsyncpa [#allocation6], 0
    %s11 = scalar_lea.sflag [#allocation6], 1
    %12 = vsyncpa %s11, 0
    loop: start=0, step=1, limit=10
    $region2: #{tpu_custom_call.1} parent=1 // loop_pre_header
      _
    $region3: #{tpu_custom_call.1} parent=1 // loop_header
      %s14 = sphi 0, %s18
      %p15 = scmp.ge.s32.totalorder %s14, 10
      %s21 = sphi 0, %s33
      %s22 = sphi 0, %s29
      %s23 = sphi 0, %s21
      %s24 = sphi 0, %s22
      %s25 = sphi 0, %s23
      %s26 = sphi 0, %s24
      %s36 = sphi 0, %s38
      %s39 = sphi 0, %s36
      %s40 = sphi 0, %s39
      %s56 = sphi 0, %s40
      %s62 = sphi 0, %s64
      %s65 = sphi 0, %s62
      %s66 = sphi 0, %s65
      %s82 = sphi 0, %s66
      %s88 = sphi 0, %s90
      %s91 = sphi 0, %s88
      %s92 = sphi 0, %s91
      %s108 = sphi 0, %s92
    $region4: #{tpu_custom_call.1} parent=1 // loop_header_branch
      %17 = sbr.rel (%p15) target = $region8
    $region5: #{tpu_custom_call.1} parent=1 // loop_body
      %s19 = ssub.s32 %s14, 1
      %s20 = ssub.s32 %s14, 2
      %s27 = sadd.s32 1, %s22
      %p28 = scmp.ge.s32.totalorder %s27, 4
      %s29 = scalar_select %p28, 0, %s27
      %s30 = sadd.s32 1, %s21
      %s31 = scalar_select %p28, %s30, %s21
      %p32 = scmp.ge.s32.totalorder %s31, 2
      %s33 = scalar_select %p32, 0, %s31
      %s34 = ssub.s32 %s22, %s29
      %p35 = scmp.eq.s32.totalorder %s34, 0
      %s37 = sadd.s32 %s36, 1
      %s38 = scalar_select %p35, %s36, %s37
      %p41 = pneg %p35
      %p42 = scmp.eq.s32.totalorder %s14, 7
      %p43 = por %p41, %p42
      %p44 = scmp.ne.s32.totalorder %s36, %s39
      %p45 = scmp.eq.s32.totalorder %s14, 0
      %p46 = por %p44, %p45
      %p47 = scmp.ne.s32.totalorder %s36, %s39
      %p48 = scmp.eq.s32.totalorder %s19, 7
      %p49 = por %p47, %p48
      %p50 = scmp.ne.s32.totalorder %s39, %s40
      %p51 = scmp.eq.s32.totalorder %s19, 0
      %p52 = por %p50, %p51
      %p53 = scmp.ne.s32.totalorder %s39, %s40
      %p54 = scmp.eq.s32.totalorder %s20, 7
      %p55 = por %p53, %p54
      %p57 = scmp.ne.s32.totalorder %s40, %s56
      %p58 = scmp.eq.s32.totalorder %s20, 0
      %p59 = por %p57, %p58
      %s60 = ssub.s32 %s22, %s29
      %p61 = scmp.eq.s32.totalorder %s60, 0
      %s63 = sadd.s32 %s62, 1
      %s64 = scalar_select %p61, %s62, %s63
      %p67 = pneg %p61
      %p68 = scmp.eq.s32.totalorder %s14, 7
      %p69 = por %p67, %p68
      %p70 = scmp.ne.s32.totalorder %s62, %s65
      %p71 = scmp.eq.s32.totalorder %s14, 0
      %p72 = por %p70, %p71
      %p73 = scmp.ne.s32.totalorder %s62, %s65
      %p74 = scmp.eq.s32.totalorder %s19, 7
      %p75 = por %p73, %p74
      %p76 = scmp.ne.s32.totalorder %s65, %s66
      %p77 = scmp.eq.s32.totalorder %s19, 0
      %p78 = por %p76, %p77
      %p79 = scmp.ne.s32.totalorder %s65, %s66
      %p80 = scmp.eq.s32.totalorder %s20, 7
      %p81 = por %p79, %p80
      %p83 = scmp.ne.s32.totalorder %s66, %s82
      %p84 = scmp.eq.s32.totalorder %s20, 0
      %p85 = por %p83, %p84
      %s86 = ssub.s32 %s21, %s33
      %p87 = scmp.eq.s32.totalorder %s86, 0
      %s89 = sadd.s32 %s88, 1
      %s90 = scalar_select %p87, %s88, %s89
      %p93 = pneg %p87
      %p94 = scmp.eq.s32.totalorder %s14, 7
      %p95 = por %p93, %p94
      %p96 = scmp.ne.s32.totalorder %s88, %s91
      %p97 = scmp.eq.s32.totalorder %s14, 0
      %p98 = por %p96, %p97
      %p99 = scmp.ne.s32.totalorder %s88, %s91
      %p100 = scmp.eq.s32.totalorder %s19, 7
      %p101 = por %p99, %p100
      %p102 = scmp.ne.s32.totalorder %s91, %s92
      %p103 = scmp.eq.s32.totalorder %s19, 0
      %p104 = por %p102, %p103
      %p105 = scmp.ne.s32.totalorder %s91, %s92
      %p106 = scmp.eq.s32.totalorder %s20, 7
      %p107 = por %p105, %p106
      %p109 = scmp.ne.s32.totalorder %s92, %s108
      %p110 = scmp.eq.s32.totalorder %s20, 0
      %p111 = por %p109, %p110
      %p112 = scmp.le.s32.totalorder 1, %s14
      %p113 = scmp.lt.s32.totalorder %s14, 9
      %p114 = pnand %p112, %p113
      %p115 = pneg %p114
      // Predicated region
      $region9: #{tpu_custom_call.1} parent=5 // pred_check
        _
      $region10: #{tpu_custom_call.1} parent=5 // pred_check_branch
        %117 = sbr.rel (%p114) target = $region12
      $region11: #{tpu_custom_call.1} parent=5 // pred_region
        %s118 = ssub.s32 %s14, 1
      $region12: #{tpu_custom_call.1} parent=5 // pred_fallthru
        _
      %p119 = scmp.lt.s32.totalorder %s14, 8
      // Predicated region
      $region13: #{tpu_custom_call.1} parent=5 // pred_check
        %p120 = pneg %p119
      $region14: #{tpu_custom_call.1} parent=5 // pred_check_branch
        %122 = sbr.rel (%p120) target = $region16
      $region15: #{tpu_custom_call.1} parent=5 // pred_region
        // Predicated region
        $region17: #{tpu_custom_call.1} parent=15 // pred_check
          %p123 = pneg %p46
        $region18: #{tpu_custom_call.1} parent=15 // pred_check_branch
          %125 = sbr.rel (%p123) target = $region20
        $region19: #{tpu_custom_call.1} parent=15 // pred_region
          %s126 = sand.u32 %s36, 1
          %s127 = scalar_lea.sflag [#allocation4], %s126
          %s128 = sand.u32 %s36, 1
          %s129 = smul.addr %s128, 32
          %s130 = scalar_lea.vmem [#allocation3], %s129
          %s131 = smul.u32 16, %s22
          %s133 = ssub.s32 512, 512
          %134 = vsyncadd %s127, %s133
          %s135 = smul.addr %s131, 32
          %s136 = scalar_lea.hbm %s0, %s135
          %s138 = sshll.u32 %s130, 4
          %s139 = int_to_ptr.vmem [resolvable:$true] %s138
          %141 = dma.hbm_to_vmem [thread:$0]  %s136, 512, %s139, %s127
        $region20: #{tpu_custom_call.1} parent=15 // pred_fallthru
          _
        // Predicated region
        $region21: #{tpu_custom_call.1} parent=15 // pred_check
          %p142 = pneg %p72
        $region22: #{tpu_custom_call.1} parent=15 // pred_check_branch
          %144 = sbr.rel (%p142) target = $region24
        $region23: #{tpu_custom_call.1} parent=15 // pred_region
          %s145 = sand.u32 %s62, 1
          %s146 = scalar_lea.sflag [#allocation6], %s145
          %s147 = sand.u32 %s62, 1
          %s148 = smul.addr %s147, 16
          %s149 = scalar_lea.vmem [#allocation5], %s148
          %s150 = smul.u32 16, %s22
          %s152 = ssub.s32 256, 256
          %153 = vsyncadd %s146, %s152
          %s154 = smul.addr %s150, 16
          %s155 = scalar_lea.hbm %s1, %s154
          %s157 = sshll.u32 %s149, 4
          %s158 = int_to_ptr.vmem [resolvable:$true] %s157
          %160 = dma.hbm_to_vmem [thread:$0]  %s155, 256, %s158, %s146
        $region24: #{tpu_custom_call.1} parent=15 // pred_fallthru
          _
      $region16: #{tpu_custom_call.1} parent=5 // pred_fallthru
        _
      %p161 = scmp.le.s32.totalorder 1, %s14
      %p162 = scmp.lt.s32.totalorder %s14, 9
      %p163 = pnand %p161, %p162
      %p164 = pneg %p163
      // Predicated region
      $region25: #{tpu_custom_call.1} parent=5 // pred_check
        _
      $region26: #{tpu_custom_call.1} parent=5 // pred_check_branch
        %166 = sbr.rel (%p163) target = $region28
      $region27: #{tpu_custom_call.1} parent=5 // pred_region
        %s167 = ssub.s32 %s14, 1
        %s168 = sand.u32 %s39, 1
        %s169 = scalar_lea.sflag [#allocation4], %s168
        %s170 = sand.u32 %s39, 1
        %s171 = smul.addr %s170, 32
        %s172 = scalar_lea.vmem [#allocation3], %s171
        // Predicated region
        $region29: #{tpu_custom_call.1} parent=27 // pred_check
          %p173 = pneg %p52
        $region30: #{tpu_custom_call.1} parent=27 // pred_check_branch
          %175 = sbr.rel (%p173) target = $region32
        $region31: #{tpu_custom_call.1} parent=27 // pred_region
          %176 = dma.done %s169, 512
        $region32: #{tpu_custom_call.1} parent=27 // pred_fallthru
          _
        %s177 = sand.u32 %s65, 1
        %s178 = scalar_lea.sflag [#allocation6], %s177
        %s179 = sand.u32 %s65, 1
        %s180 = smul.addr %s179, 16
        %s181 = scalar_lea.vmem [#allocation5], %s180
        // Predicated region
        $region33: #{tpu_custom_call.1} parent=27 // pred_check
          %p182 = pneg %p78
        $region34: #{tpu_custom_call.1} parent=27 // pred_check_branch
          %184 = sbr.rel (%p182) target = $region36
        $region35: #{tpu_custom_call.1} parent=27 // pred_region
          %185 = dma.done %s178, 256
        $region36: #{tpu_custom_call.1} parent=27 // pred_fallthru
          _
        %s186 = sand.u32 %s39, 1
        %s187 = scalar_lea.sflag [#allocation4], %s186
        %s188 = sand.u32 %s39, 1
        %s189 = smul.addr %s188, 32
        %s190 = scalar_lea.vmem [#allocation3], %s189
        %p191 = pneg %p52
        %p192 = pneg %p49
        %s193 = sand.u32 %s65, 1
        %s194 = scalar_lea.sflag [#allocation6], %s193
        %s195 = sand.u32 %s65, 1
        %s196 = smul.addr %s195, 16
        %s197 = scalar_lea.vmem [#allocation5], %s196
        %p198 = pneg %p78
        %p199 = pneg %p75
        %p200 = pneg %p104
        %p201 = pneg %p101
        %s202 = smul.u32 64, %s23
        %p203 = scmp.lt.s32.totalorder %s202, 127
        %s204 = scalar_select %p203, %s202, 127
        %s205 = smul.addr %s204, 8
        %s206 = scalar_lea.vmem %s2, %s205
        %s207 = smul.u32 16, %s24
        %s208 = smul.u32 16, %s24
        %s209 = smul.u32 64, %s23
        %p210 = scmp.lt.s32.totalorder %s209, 127
        %s211 = scalar_select %p210, %s209, 127
        %s212 = smul.addr %s211, 8
        %s213 = scalar_lea.vmem %s2, %s212
        %s214 = smul.u32 64, %s23
        %p215 = scmp.eq.s32.totalorder %s24, 0
        // Predicated region
        $region37: #{tpu_custom_call.1} parent=27 // pred_check
          %p216 = pneg %p215
        $region38: #{tpu_custom_call.1} parent=27 // pred_check_branch
          %218 = sbr.rel (%p216) target = $region40
        $region39: #{tpu_custom_call.1} parent=27 // pred_region
          %vm219 = vcmask 7168
          %220 = vst.msk [vmem:[%s213] sm:$0xff] %vm219, 0.0
          %221 = vst.msk [vmem:[%s213 + $0x8] sm:$0xff] %vm219, 0.0
          %222 = vst.msk [vmem:[%s213 + $0x10] sm:$0xff] %vm219, 0.0
          %223 = vst.msk [vmem:[%s213 + $0x18] sm:$0xff] %vm219, 0.0
          %224 = vst.msk [vmem:[%s213 + $0x20] sm:$0xff] %vm219, 0.0
          %225 = vst.msk [vmem:[%s213 + $0x28] sm:$0xff] %vm219, 0.0
          %226 = vst.msk [vmem:[%s213 + $0x30] sm:$0xff] %vm219, 0.0
          %227 = vst.msk [vmem:[%s213 + $0x38] sm:$0xff] %vm219, 0.0
          %228 = vst.msk [vmem:[%s213 + $0x40] sm:$0xff] %vm219, 0.0
          %229 = vst.msk [vmem:[%s213 + $0x48] sm:$0xff] %vm219, 0.0
          %230 = vst.msk [vmem:[%s213 + $0x50] sm:$0xff] %vm219, 0.0
          %231 = vst.msk [vmem:[%s213 + $0x58] sm:$0xff] %vm219, 0.0
          %232 = vst.msk [vmem:[%s213 + $0x60] sm:$0xff] %vm219, 0.0
          %233 = vst.msk [vmem:[%s213 + $0x68] sm:$0xff] %vm219, 0.0
          %234 = vst.msk [vmem:[%s213 + $0x70] sm:$0xff] %vm219, 0.0
          %235 = vst.msk [vmem:[%s213 + $0x78] sm:$0xff] %vm219, 0.0
          %236 = vst.msk [vmem:[%s213 + $0x80] sm:$0xff] %vm219, 0.0
          %237 = vst.msk [vmem:[%s213 + $0x88] sm:$0xff] %vm219, 0.0
          %238 = vst.msk [vmem:[%s213 + $0x90] sm:$0xff] %vm219, 0.0
          %239 = vst.msk [vmem:[%s213 + $0x98] sm:$0xff] %vm219, 0.0
          %240 = vst.msk [vmem:[%s213 + $0xa0] sm:$0xff] %vm219, 0.0
          %241 = vst.msk [vmem:[%s213 + $0xa8] sm:$0xff] %vm219, 0.0
          %242 = vst.msk [vmem:[%s213 + $0xb0] sm:$0xff] %vm219, 0.0
          %243 = vst.msk [vmem:[%s213 + $0xb8] sm:$0xff] %vm219, 0.0
          %244 = vst.msk [vmem:[%s213 + $0xc0] sm:$0xff] %vm219, 0.0
          %245 = vst.msk [vmem:[%s213 + $0xc8] sm:$0xff] %vm219, 0.0
          %246 = vst.msk [vmem:[%s213 + $0xd0] sm:$0xff] %vm219, 0.0
          %247 = vst.msk [vmem:[%s213 + $0xd8] sm:$0xff] %vm219, 0.0
          %248 = vst.msk [vmem:[%s213 + $0xe0] sm:$0xff] %vm219, 0.0
          %249 = vst.msk [vmem:[%s213 + $0xe8] sm:$0xff] %vm219, 0.0
          %250 = vst.msk [vmem:[%s213 + $0xf0] sm:$0xff] %vm219, 0.0
          %251 = vst.msk [vmem:[%s213 + $0xf8] sm:$0xff] %vm219, 0.0
          %252 = vst.msk [vmem:[%s213 + $0x100] sm:$0xff] %vm219, 0.0
          %253 = vst.msk [vmem:[%s213 + $0x108] sm:$0xff] %vm219, 0.0
          %254 = vst.msk [vmem:[%s213 + $0x110] sm:$0xff] %vm219, 0.0
          %255 = vst.msk [vmem:[%s213 + $0x118] sm:$0xff] %vm219, 0.0
          %256 = vst.msk [vmem:[%s213 + $0x120] sm:$0xff] %vm219, 0.0
          %257 = vst.msk [vmem:[%s213 + $0x128] sm:$0xff] %vm219, 0.0
          %258 = vst.msk [vmem:[%s213 + $0x130] sm:$0xff] %vm219, 0.0
          %259 = vst.msk [vmem:[%s213 + $0x138] sm:$0xff] %vm219, 0.0
          %260 = vst.msk [vmem:[%s213 + $0x140] sm:$0xff] %vm219, 0.0
          %261 = vst.msk [vmem:[%s213 + $0x148] sm:$0xff] %vm219, 0.0
          %262 = vst.msk [vmem:[%s213 + $0x150] sm:$0xff] %vm219, 0.0
          %263 = vst.msk [vmem:[%s213 + $0x158] sm:$0xff] %vm219, 0.0
          %264 = vst.msk [vmem:[%s213 + $0x160] sm:$0xff] %vm219, 0.0
          %265 = vst.msk [vmem:[%s213 + $0x168] sm:$0xff] %vm219, 0.0
          %266 = vst.msk [vmem:[%s213 + $0x170] sm:$0xff] %vm219, 0.0
          %267 = vst.msk [vmem:[%s213 + $0x178] sm:$0xff] %vm219, 0.0
          %268 = vst.msk [vmem:[%s213 + $0x180] sm:$0xff] %vm219, 0.0
          %269 = vst.msk [vmem:[%s213 + $0x188] sm:$0xff] %vm219, 0.0
          %270 = vst.msk [vmem:[%s213 + $0x190] sm:$0xff] %vm219, 0.0
          %271 = vst.msk [vmem:[%s213 + $0x198] sm:$0xff] %vm219, 0.0
          %272 = vst.msk [vmem:[%s213 + $0x1a0] sm:$0xff] %vm219, 0.0
          %273 = vst.msk [vmem:[%s213 + $0x1a8] sm:$0xff] %vm219, 0.0
          %274 = vst.msk [vmem:[%s213 + $0x1b0] sm:$0xff] %vm219, 0.0
          %275 = vst.msk [vmem:[%s213 + $0x1b8] sm:$0xff] %vm219, 0.0
          %276 = vst.msk [vmem:[%s213 + $0x1c0] sm:$0xff] %vm219, 0.0
          %277 = vst.msk [vmem:[%s213 + $0x1c8] sm:$0xff] %vm219, 0.0
          %278 = vst.msk [vmem:[%s213 + $0x1d0] sm:$0xff] %vm219, 0.0
          %279 = vst.msk [vmem:[%s213 + $0x1d8] sm:$0xff] %vm219, 0.0
          %280 = vst.msk [vmem:[%s213 + $0x1e0] sm:$0xff] %vm219, 0.0
          %281 = vst.msk [vmem:[%s213 + $0x1e8] sm:$0xff] %vm219, 0.0
          %282 = vst.msk [vmem:[%s213 + $0x1f0] sm:$0xff] %vm219, 0.0
          %283 = vst.msk [vmem:[%s213 + $0x1f8] sm:$0xff] %vm219, 0.0
          %v284 = vlaneseq
          %v285 = vshrl.u32 %v284, 7
          %v286 = vadd.s32 %v285, 8
          %v287 = vadd.s32 %v285, 16
          %v288 = vadd.s32 %v285, 24
          %v289 = vadd.s32 %v285, 32
          %v290 = vadd.s32 %v285, 40
          %v291 = vadd.s32 %v285, 48
          %v292 = vadd.s32 %v285, 56
          %v293 = vadd.s32 %v285, 64
          %v294 = vadd.s32 %v285, 72
          %v295 = vadd.s32 %v285, 80
          %v296 = vadd.s32 %v285, 88
          %v297 = vadd.s32 %v285, 96
          %v298 = vadd.s32 %v285, 104
          %v299 = vadd.s32 %v285, 112
          %v300 = vadd.s32 %v285, 120
          %v301 = vadd.s32 %v285, 128
          %v302 = vadd.s32 %v285, 136
          %v303 = vadd.s32 %v285, 144
          %v304 = vadd.s32 %v285, 152
          %v305 = vadd.s32 %v285, 160
          %v306 = vadd.s32 %v285, 168
          %v307 = vadd.s32 %v285, 176
          %v308 = vadd.s32 %v285, 184
          %v309 = vadd.s32 %v285, 192
          %v310 = vadd.s32 %v285, 200
          %v311 = vadd.s32 %v285, 208
          %v312 = vadd.s32 %v285, 216
          %v313 = vadd.s32 %v285, 224
          %v314 = vadd.s32 %v285, 232
          %v315 = vadd.s32 %v285, 240
          %v316 = vadd.s32 %v285, 248
          %v317 = vadd.s32 %v285, 256
          %v318 = vadd.s32 %v285, 264
          %v319 = vadd.s32 %v285, 272
          %v320 = vadd.s32 %v285, 280
          %v321 = vadd.s32 %v285, 288
          %v322 = vadd.s32 %v285, 296
          %v323 = vadd.s32 %v285, 304
          %v324 = vadd.s32 %v285, 312
          %v325 = vadd.s32 %v285, 320
          %v326 = vadd.s32 %v285, 328
          %v327 = vadd.s32 %v285, 336
          %v328 = vadd.s32 %v285, 344
          %v329 = vadd.s32 %v285, 352
          %v330 = vadd.s32 %v285, 360
          %v331 = vadd.s32 %v285, 368
          %v332 = vadd.s32 %v285, 376
          %v333 = vadd.s32 %v285, 384
          %v334 = vadd.s32 %v285, 392
          %v335 = vadd.s32 %v285, 400
          %v336 = vadd.s32 %v285, 408
          %v337 = vadd.s32 %v285, 416
          %v338 = vadd.s32 %v285, 424
          %v339 = vadd.s32 %v285, 432
          %v340 = vadd.s32 %v285, 440
          %v341 = vadd.s32 %v285, 448
          %v342 = vadd.s32 %v285, 456
          %v343 = vadd.s32 %v285, 464
          %v344 = vadd.s32 %v285, 472
          %v345 = vadd.s32 %v285, 480
          %v346 = vadd.s32 %v285, 488
          %v347 = vadd.s32 %v285, 496
          %v348 = vadd.s32 %v285, 504
          %349 = vst [vmem:[#allocation2] sm:$0xff] %v285
          %350 = vst [vmem:[#allocation2 + $0x8] sm:$0xff] %v285
          %351 = vst [vmem:[#allocation2 + $0x10] sm:$0xff] %v285
          %352 = vst [vmem:[#allocation2 + $0x18] sm:$0xff] %v285
          %353 = vst [vmem:[#allocation2 + $0x20] sm:$0xff] %v285
          %354 = vst [vmem:[#allocation2 + $0x28] sm:$0xff] %v285
          %355 = vst [vmem:[#allocation2 + $0x30] sm:$0xff] %v285
          %356 = vst [vmem:[#allocation2 + $0x38] sm:$0xff] %v285
          %357 = vst [vmem:[#allocation2 + $0x40] sm:$0xff] %v285
          %358 = vst [vmem:[#allocation2 + $0x48] sm:$0xff] %v285
          %359 = vst [vmem:[#allocation2 + $0x50] sm:$0xff] %v285
          %360 = vst [vmem:[#allocation2 + $0x58] sm:$0xff] %v285
          %361 = vst [vmem:[#allocation2 + $0x60] sm:$0xff] %v285
          %362 = vst [vmem:[#allocation2 + $0x68] sm:$0xff] %v285
          %363 = vst [vmem:[#allocation2 + $0x70] sm:$0xff] %v285
          %364 = vst [vmem:[#allocation2 + $0x78] sm:$0xff] %v285
          %365 = vst [vmem:[#allocation2 + $0x80] sm:$0xff] %v286
          %366 = vst [vmem:[#allocation2 + $0x88] sm:$0xff] %v286
          %367 = vst [vmem:[#allocation2 + $0x90] sm:$0xff] %v286
          %368 = vst [vmem:[#allocation2 + $0x98] sm:$0xff] %v286
          %369 = vst [vmem:[#allocation2 + $0xa0] sm:$0xff] %v286
          %370 = vst [vmem:[#allocation2 + $0xa8] sm:$0xff] %v286
          %371 = vst [vmem:[#allocation2 + $0xb0] sm:$0xff] %v286
          %372 = vst [vmem:[#allocation2 + $0xb8] sm:$0xff] %v286
          %373 = vst [vmem:[#allocation2 + $0xc0] sm:$0xff] %v286
          %374 = vst [vmem:[#allocation2 + $0xc8] sm:$0xff] %v286
          %375 = vst [vmem:[#allocation2 + $0xd0] sm:$0xff] %v286
          %376 = vst [vmem:[#allocation2 + $0xd8] sm:$0xff] %v286
          %377 = vst [vmem:[#allocation2 + $0xe0] sm:$0xff] %v286
          %378 = vst [vmem:[#allocation2 + $0xe8] sm:$0xff] %v286
          %379 = vst [vmem:[#allocation2 + $0xf0] sm:$0xff] %v286
          %380 = vst [vmem:[#allocation2 + $0xf8] sm:$0xff] %v286
          %381 = vst [vmem:[#allocation2 + $0x100] sm:$0xff] %v287
          %382 = vst [vmem:[#allocation2 + $0x108] sm:$0xff] %v287
          %383 = vst [vmem:[#allocation2 + $0x110] sm:$0xff] %v287
          %384 = vst [vmem:[#allocation2 + $0x118] sm:$0xff] %v287
          %385 = vst [vmem:[#allocation2 + $0x120] sm:$0xff] %v287
          %386 = vst [vmem:[#allocation2 + $0x128] sm:$0xff] %v287
          %387 = vst [vmem:[#allocation2 + $0x130] sm:$0xff] %v287
          %388 = vst [vmem:[#allocation2 + $0x138] sm:$0xff] %v287
          %389 = vst [vmem:[#allocation2 + $0x140] sm:$0xff] %v287
          %390 = vst [vmem:[#allocation2 + $0x148] sm:$0xff] %v287
          %391 = vst [vmem:[#allocation2 + $0x150] sm:$0xff] %v287
          %392 = vst [vmem:[#allocation2 + $0x158] sm:$0xff] %v287
          %393 = vst [vmem:[#allocation2 + $0x160] sm:$0xff] %v287
          %394 = vst [vmem:[#allocation2 + $0x168] sm:$0xff] %v287
          %395 = vst [vmem:[#allocation2 + $0x170] sm:$0xff] %v287
          %396 = vst [vmem:[#allocation2 + $0x178] sm:$0xff] %v287
          %397 = vst [vmem:[#allocation2 + $0x180] sm:$0xff] %v288
          %398 = vst [vmem:[#allocation2 + $0x188] sm:$0xff] %v288
          %399 = vst [vmem:[#allocation2 + $0x190] sm:$0xff] %v288
          %400 = vst [vmem:[#allocation2 + $0x198] sm:$0xff] %v288
          %401 = vst [vmem:[#allocation2 + $0x1a0] sm:$0xff] %v288
          %402 = vst [vmem:[#allocation2 + $0x1a8] sm:$0xff] %v288
          %403 = vst [vmem:[#allocation2 + $0x1b0] sm:$0xff] %v288
          %404 = vst [vmem:[#allocation2 + $0x1b8] sm:$0xff] %v288
          %405 = vst [vmem:[#allocation2 + $0x1c0] sm:$0xff] %v288
          %406 = vst [vmem:[#allocation2 + $0x1c8] sm:$0xff] %v288
          %407 = vst [vmem:[#allocation2 + $0x1d0] sm:$0xff] %v288
          %408 = vst [vmem:[#allocation2 + $0x1d8] sm:$0xff] %v288
          %409 = vst [vmem:[#allocation2 + $0x1e0] sm:$0xff] %v288
          %410 = vst [vmem:[#allocation2 + $0x1e8] sm:$0xff] %v288
          %411 = vst [vmem:[#allocation2 + $0x1f0] sm:$0xff] %v288
          %412 = vst [vmem:[#allocation2 + $0x1f8] sm:$0xff] %v288
          %413 = vst [vmem:[#allocation2 + $0x200] sm:$0xff] %v289
          %414 = vst [vmem:[#allocation2 + $0x208] sm:$0xff] %v289
          %415 = vst [vmem:[#allocation2 + $0x210] sm:$0xff] %v289
          %416 = vst [vmem:[#allocation2 + $0x218] sm:$0xff] %v289
          %417 = vst [vmem:[#allocation2 + $0x220] sm:$0xff] %v289
          %418 = vst [vmem:[#allocation2 + $0x228] sm:$0xff] %v289
          %419 = vst [vmem:[#allocation2 + $0x230] sm:$0xff] %v289
          %420 = vst [vmem:[#allocation2 + $0x238] sm:$0xff] %v289
          %421 = vst [vmem:[#allocation2 + $0x240] sm:$0xff] %v289
          %422 = vst [vmem:[#allocation2 + $0x248] sm:$0xff] %v289
          %423 = vst [vmem:[#allocation2 + $0x250] sm:$0xff] %v289
          %424 = vst [vmem:[#allocation2 + $0x258] sm:$0xff] %v289
          %425 = vst [vmem:[#allocation2 + $0x260] sm:$0xff] %v289
          %426 = vst [vmem:[#allocation2 + $0x268] sm:$0xff] %v289
          %427 = vst [vmem:[#allocation2 + $0x270] sm:$0xff] %v289
          %428 = vst [vmem:[#allocation2 + $0x278] sm:$0xff] %v289
          %429 = vst [vmem:[#allocation2 + $0x280] sm:$0xff] %v290
          %430 = vst [vmem:[#allocation2 + $0x288] sm:$0xff] %v290
          %431 = vst [vmem:[#allocation2 + $0x290] sm:$0xff] %v290
          %432 = vst [vmem:[#allocation2 + $0x298] sm:$0xff] %v290
          %433 = vst [vmem:[#allocation2 + $0x2a0] sm:$0xff] %v290
          %434 = vst [vmem:[#allocation2 + $0x2a8] sm:$0xff] %v290
          %435 = vst [vmem:[#allocation2 + $0x2b0] sm:$0xff] %v290
          %436 = vst [vmem:[#allocation2 + $0x2b8] sm:$0xff] %v290
          %437 = vst [vmem:[#allocation2 + $0x2c0] sm:$0xff] %v290
          %438 = vst [vmem:[#allocation2 + $0x2c8] sm:$0xff] %v290
          %439 = vst [vmem:[#allocation2 + $0x2d0] sm:$0xff] %v290
          %440 = vst [vmem:[#allocation2 + $0x2d8] sm:$0xff] %v290
          %441 = vst [vmem:[#allocation2 + $0x2e0] sm:$0xff] %v290
          %442 = vst [vmem:[#allocation2 + $0x2e8] sm:$0xff] %v290
          %443 = vst [vmem:[#allocation2 + $0x2f0] sm:$0xff] %v290
          %444 = vst [vmem:[#allocation2 + $0x2f8] sm:$0xff] %v290
          %445 = vst [vmem:[#allocation2 + $0x300] sm:$0xff] %v291
          %446 = vst [vmem:[#allocation2 + $0x308] sm:$0xff] %v291
          %447 = vst [vmem:[#allocation2 + $0x310] sm:$0xff] %v291
          %448 = vst [vmem:[#allocation2 + $0x318] sm:$0xff] %v291
          %449 = vst [vmem:[#allocation2 + $0x320] sm:$0xff] %v291
          %450 = vst [vmem:[#allocation2 + $0x328] sm:$0xff] %v291
          %451 = vst [vmem:[#allocation2 + $0x330] sm:$0xff] %v291
          %452 = vst [vmem:[#allocation2 + $0x338] sm:$0xff] %v291
          %453 = vst [vmem:[#allocation2 + $0x340] sm:$0xff] %v291
          %454 = vst [vmem:[#allocation2 + $0x348] sm:$0xff] %v291
          %455 = vst [vmem:[#allocation2 + $0x350] sm:$0xff] %v291
          %456 = vst [vmem:[#allocation2 + $0x358] sm:$0xff] %v291
          %457 = vst [vmem:[#allocation2 + $0x360] sm:$0xff] %v291
          %458 = vst [vmem:[#allocation2 + $0x368] sm:$0xff] %v291
          %459 = vst [vmem:[#allocation2 + $0x370] sm:$0xff] %v291
          %460 = vst [vmem:[#allocation2 + $0x378] sm:$0xff] %v291
          %461 = vst [vmem:[#allocation2 + $0x380] sm:$0xff] %v292
          %462 = vst [vmem:[#allocation2 + $0x388] sm:$0xff] %v292
          %463 = vst [vmem:[#allocation2 + $0x390] sm:$0xff] %v292
          %464 = vst [vmem:[#allocation2 + $0x398] sm:$0xff] %v292
          %465 = vst [vmem:[#allocation2 + $0x3a0] sm:$0xff] %v292
          %466 = vst [vmem:[#allocation2 + $0x3a8] sm:$0xff] %v292
          %467 = vst [vmem:[#allocation2 + $0x3b0] sm:$0xff] %v292
          %468 = vst [vmem:[#allocation2 + $0x3b8] sm:$0xff] %v292
          %469 = vst [vmem:[#allocation2 + $0x3c0] sm:$0xff] %v292
          %470 = vst [vmem:[#allocation2 + $0x3c8] sm:$0xff] %v292
          %471 = vst [vmem:[#allocation2 + $0x3d0] sm:$0xff] %v292
          %472 = vst [vmem:[#allocation2 + $0x3d8] sm:$0xff] %v292
          %473 = vst [vmem:[#allocation2 + $0x3e0] sm:$0xff] %v292
          %474 = vst [vmem:[#allocation2 + $0x3e8] sm:$0xff] %v292
          %475 = vst [vmem:[#allocation2 + $0x3f0] sm:$0xff] %v292
          %476 = vst [vmem:[#allocation2 + $0x3f8] sm:$0xff] %v292
          %477 = vst [vmem:[#allocation2 + $0x400] sm:$0xff] %v293
          %478 = vst [vmem:[#allocation2 + $0x408] sm:$0xff] %v293
          %479 = vst [vmem:[#allocation2 + $0x410] sm:$0xff] %v293
          %480 = vst [vmem:[#allocation2 + $0x418] sm:$0xff] %v293
          %481 = vst [vmem:[#allocation2 + $0x420] sm:$0xff] %v293
          %482 = vst [vmem:[#allocation2 + $0x428] sm:$0xff] %v293
          %483 = vst [vmem:[#allocation2 + $0x430] sm:$0xff] %v293
          %484 = vst [vmem:[#allocation2 + $0x438] sm:$0xff] %v293
          %485 = vst [vmem:[#allocation2 + $0x440] sm:$0xff] %v293
          %486 = vst [vmem:[#allocation2 + $0x448] sm:$0xff] %v293
          %487 = vst [vmem:[#allocation2 + $0x450] sm:$0xff] %v293
          %488 = vst [vmem:[#allocation2 + $0x458] sm:$0xff] %v293
          %489 = vst [vmem:[#allocation2 + $0x460] sm:$0xff] %v293
          %490 = vst [vmem:[#allocation2 + $0x468] sm:$0xff] %v293
          %491 = vst [vmem:[#allocation2 + $0x470] sm:$0xff] %v293
          %492 = vst [vmem:[#allocation2 + $0x478] sm:$0xff] %v293
          %493 = vst [vmem:[#allocation2 + $0x480] sm:$0xff] %v294
          %494 = vst [vmem:[#allocation2 + $0x488] sm:$0xff] %v294
          %495 = vst [vmem:[#allocation2 + $0x490] sm:$0xff] %v294
          %496 = vst [vmem:[#allocation2 + $0x498] sm:$0xff] %v294
          %497 = vst [vmem:[#allocation2 + $0x4a0] sm:$0xff] %v294
          %498 = vst [vmem:[#allocation2 + $0x4a8] sm:$0xff] %v294
          %499 = vst [vmem:[#allocation2 + $0x4b0] sm:$0xff] %v294
          %500 = vst [vmem:[#allocation2 + $0x4b8] sm:$0xff] %v294
          %501 = vst [vmem:[#allocation2 + $0x4c0] sm:$0xff] %v294
          %502 = vst [vmem:[#allocation2 + $0x4c8] sm:$0xff] %v294
          %503 = vst [vmem:[#allocation2 + $0x4d0] sm:$0xff] %v294
          %504 = vst [vmem:[#allocation2 + $0x4d8] sm:$0xff] %v294
          %505 = vst [vmem:[#allocation2 + $0x4e0] sm:$0xff] %v294
          %506 = vst [vmem:[#allocation2 + $0x4e8] sm:$0xff] %v294
          %507 = vst [vmem:[#allocation2 + $0x4f0] sm:$0xff] %v294
          %508 = vst [vmem:[#allocation2 + $0x4f8] sm:$0xff] %v294
          %509 = vst [vmem:[#allocation2 + $0x500] sm:$0xff] %v295
          %510 = vst [vmem:[#allocation2 + $0x508] sm:$0xff] %v295
          %511 = vst [vmem:[#allocation2 + $0x510] sm:$0xff] %v295
          %512 = vst [vmem:[#allocation2 + $0x518] sm:$0xff] %v295
          %513 = vst [vmem:[#allocation2 + $0x520] sm:$0xff] %v295
          %514 = vst [vmem:[#allocation2 + $0x528] sm:$0xff] %v295
          %515 = vst [vmem:[#allocation2 + $0x530] sm:$0xff] %v295
          %516 = vst [vmem:[#allocation2 + $0x538] sm:$0xff] %v295
          %517 = vst [vmem:[#allocation2 + $0x540] sm:$0xff] %v295
          %518 = vst [vmem:[#allocation2 + $0x548] sm:$0xff] %v295
          %519 = vst [vmem:[#allocation2 + $0x550] sm:$0xff] %v295
          %520 = vst [vmem:[#allocation2 + $0x558] sm:$0xff] %v295
          %521 = vst [vmem:[#allocation2 + $0x560] sm:$0xff] %v295
          %522 = vst [vmem:[#allocation2 + $0x568] sm:$0xff] %v295
          %523 = vst [vmem:[#allocation2 + $0x570] sm:$0xff] %v295
          %524 = vst [vmem:[#allocation2 + $0x578] sm:$0xff] %v295
          %525 = vst [vmem:[#allocation2 + $0x580] sm:$0xff] %v296
          %526 = vst [vmem:[#allocation2 + $0x588] sm:$0xff] %v296
          %527 = vst [vmem:[#allocation2 + $0x590] sm:$0xff] %v296
          %528 = vst [vmem:[#allocation2 + $0x598] sm:$0xff] %v296
          %529 = vst [vmem:[#allocation2 + $0x5a0] sm:$0xff] %v296
          %530 = vst [vmem:[#allocation2 + $0x5a8] sm:$0xff] %v296
          %531 = vst [vmem:[#allocation2 + $0x5b0] sm:$0xff] %v296
          %532 = vst [vmem:[#allocation2 + $0x5b8] sm:$0xff] %v296
          %533 = vst [vmem:[#allocation2 + $0x5c0] sm:$0xff] %v296
          %534 = vst [vmem:[#allocation2 + $0x5c8] sm:$0xff] %v296
          %535 = vst [vmem:[#allocation2 + $0x5d0] sm:$0xff] %v296
          %536 = vst [vmem:[#allocation2 + $0x5d8] sm:$0xff] %v296
          %537 = vst [vmem:[#allocation2 + $0x5e0] sm:$0xff] %v296
          %538 = vst [vmem:[#allocation2 + $0x5e8] sm:$0xff] %v296
          %539 = vst [vmem:[#allocation2 + $0x5f0] sm:$0xff] %v296
          %540 = vst [vmem:[#allocation2 + $0x5f8] sm:$0xff] %v296
          %541 = vst [vmem:[#allocation2 + $0x600] sm:$0xff] %v297
          %542 = vst [vmem:[#allocation2 + $0x608] sm:$0xff] %v297
          %543 = vst [vmem:[#allocation2 + $0x610] sm:$0xff] %v297
          %544 = vst [vmem:[#allocation2 + $0x618] sm:$0xff] %v297
          %545 = vst [vmem:[#allocation2 + $0x620] sm:$0xff] %v297
          %546 = vst [vmem:[#allocation2 + $0x628] sm:$0xff] %v297
          %547 = vst [vmem:[#allocation2 + $0x630] sm:$0xff] %v297
          %548 = vst [vmem:[#allocation2 + $0x638] sm:$0xff] %v297
          %549 = vst [vmem:[#allocation2 + $0x640] sm:$0xff] %v297
          %550 = vst [vmem:[#allocation2 + $0x648] sm:$0xff] %v297
          %551 = vst [vmem:[#allocation2 + $0x650] sm:$0xff] %v297
          %552 = vst [vmem:[#allocation2 + $0x658] sm:$0xff] %v297
          %553 = vst [vmem:[#allocation2 + $0x660] sm:$0xff] %v297
          %554 = vst [vmem:[#allocation2 + $0x668] sm:$0xff] %v297
          %555 = vst [vmem:[#allocation2 + $0x670] sm:$0xff] %v297
          %556 = vst [vmem:[#allocation2 + $0x678] sm:$0xff] %v297
          %557 = vst [vmem:[#allocation2 + $0x680] sm:$0xff] %v298
          %558 = vst [vmem:[#allocation2 + $0x688] sm:$0xff] %v298
          %559 = vst [vmem:[#allocation2 + $0x690] sm:$0xff] %v298
          %560 = vst [vmem:[#allocation2 + $0x698] sm:$0xff] %v298
          %561 = vst [vmem:[#allocation2 + $0x6a0] sm:$0xff] %v298
          %562 = vst [vmem:[#allocation2 + $0x6a8] sm:$0xff] %v298
          %563 = vst [vmem:[#allocation2 + $0x6b0] sm:$0xff] %v298
          %564 = vst [vmem:[#allocation2 + $0x6b8] sm:$0xff] %v298
          %565 = vst [vmem:[#allocation2 + $0x6c0] sm:$0xff] %v298
          %566 = vst [vmem:[#allocation2 + $0x6c8] sm:$0xff] %v298
          %567 = vst [vmem:[#allocation2 + $0x6d0] sm:$0xff] %v298
          %568 = vst [vmem:[#allocation2 + $0x6d8] sm:$0xff] %v298
          %569 = vst [vmem:[#allocation2 + $0x6e0] sm:$0xff] %v298
          %570 = vst [vmem:[#allocation2 + $0x6e8] sm:$0xff] %v298
          %571 = vst [vmem:[#allocation2 + $0x6f0] sm:$0xff] %v298
          %572 = vst [vmem:[#allocation2 + $0x6f8] sm:$0xff] %v298
          %573 = vst [vmem:[#allocation2 + $0x700] sm:$0xff] %v299
          %574 = vst [vmem:[#allocation2 + $0x708] sm:$0xff] %v299
          %575 = vst [vmem:[#allocation2 + $0x710] sm:$0xff] %v299
          %576 = vst [vmem:[#allocation2 + $0x718] sm:$0xff] %v299
          %577 = vst [vmem:[#allocation2 + $0x720] sm:$0xff] %v299
          %578 = vst [vmem:[#allocation2 + $0x728] sm:$0xff] %v299
          %579 = vst [vmem:[#allocation2 + $0x730] sm:$0xff] %v299
          %580 = vst [vmem:[#allocation2 + $0x738] sm:$0xff] %v299
          %581 = vst [vmem:[#allocation2 + $0x740] sm:$0xff] %v299
          %582 = vst [vmem:[#allocation2 + $0x748] sm:$0xff] %v299
          %583 = vst [vmem:[#allocation2 + $0x750] sm:$0xff] %v299
          %584 = vst [vmem:[#allocation2 + $0x758] sm:$0xff] %v299
          %585 = vst [vmem:[#allocation2 + $0x760] sm:$0xff] %v299
          %586 = vst [vmem:[#allocation2 + $0x768] sm:$0xff] %v299
          %587 = vst [vmem:[#allocation2 + $0x770] sm:$0xff] %v299
          %588 = vst [vmem:[#allocation2 + $0x778] sm:$0xff] %v299
          %589 = vst [vmem:[#allocation2 + $0x780] sm:$0xff] %v300
          %590 = vst [vmem:[#allocation2 + $0x788] sm:$0xff] %v300
          %591 = vst [vmem:[#allocation2 + $0x790] sm:$0xff] %v300
          %592 = vst [vmem:[#allocation2 + $0x798] sm:$0xff] %v300
          %593 = vst [vmem:[#allocation2 + $0x7a0] sm:$0xff] %v300
          %594 = vst [vmem:[#allocation2 + $0x7a8] sm:$0xff] %v300
          %595 = vst [vmem:[#allocation2 + $0x7b0] sm:$0xff] %v300
          %596 = vst [vmem:[#allocation2 + $0x7b8] sm:$0xff] %v300
          %597 = vst [vmem:[#allocation2 + $0x7c0] sm:$0xff] %v300
          %598 = vst [vmem:[#allocation2 + $0x7c8] sm:$0xff] %v300
          %599 = vst [vmem:[#allocation2 + $0x7d0] sm:$0xff] %v300
          %600 = vst [vmem:[#allocation2 + $0x7d8] sm:$0xff] %v300
          %601 = vst [vmem:[#allocation2 + $0x7e0] sm:$0xff] %v300
          %602 = vst [vmem:[#allocation2 + $0x7e8] sm:$0xff] %v300
          %603 = vst [vmem:[#allocation2 + $0x7f0] sm:$0xff] %v300
          %604 = vst [vmem:[#allocation2 + $0x7f8] sm:$0xff] %v300
          %605 = vst [vmem:[#allocation2 + $0x800] sm:$0xff] %v301
          %606 = vst [vmem:[#allocation2 + $0x808] sm:$0xff] %v301
          %607 = vst [vmem:[#allocation2 + $0x810] sm:$0xff] %v301
          %608 = vst [vmem:[#allocation2 + $0x818] sm:$0xff] %v301
          %609 = vst [vmem:[#allocation2 + $0x820] sm:$0xff] %v301
          %610 = vst [vmem:[#allocation2 + $0x828] sm:$0xff] %v301
          %611 = vst [vmem:[#allocation2 + $0x830] sm:$0xff] %v301
          %612 = vst [vmem:[#allocation2 + $0x838] sm:$0xff] %v301
          %613 = vst [vmem:[#allocation2 + $0x840] sm:$0xff] %v301
          %614 = vst [vmem:[#allocation2 + $0x848] sm:$0xff] %v301
          %615 = vst [vmem:[#allocation2 + $0x850] sm:$0xff] %v301
          %616 = vst [vmem:[#allocation2 + $0x858] sm:$0xff] %v301
          %617 = vst [vmem:[#allocation2 + $0x860] sm:$0xff] %v301
          %618 = vst [vmem:[#allocation2 + $0x868] sm:$0xff] %v301
          %619 = vst [vmem:[#allocation2 + $0x870] sm:$0xff] %v301
          %620 = vst [vmem:[#allocation2 + $0x878] sm:$0xff] %v301
          %621 = vst [vmem:[#allocation2 + $0x880] sm:$0xff] %v302
          %622 = vst [vmem:[#allocation2 + $0x888] sm:$0xff] %v302
          %623 = vst [vmem:[#allocation2 + $0x890] sm:$0xff] %v302
          %624 = vst [vmem:[#allocation2 + $0x898] sm:$0xff] %v302
          %625 = vst [vmem:[#allocation2 + $0x8a0] sm:$0xff] %v302
          %626 = vst [vmem:[#allocation2 + $0x8a8] sm:$0xff] %v302
          %627 = vst [vmem:[#allocation2 + $0x8b0] sm:$0xff] %v302
          %628 = vst [vmem:[#allocation2 + $0x8b8] sm:$0xff] %v302
          %629 = vst [vmem:[#allocation2 + $0x8c0] sm:$0xff] %v302
          %630 = vst [vmem:[#allocation2 + $0x8c8] sm:$0xff] %v302
          %631 = vst [vmem:[#allocation2 + $0x8d0] sm:$0xff] %v302
          %632 = vst [vmem:[#allocation2 + $0x8d8] sm:$0xff] %v302
          %633 = vst [vmem:[#allocation2 + $0x8e0] sm:$0xff] %v302
          %634 = vst [vmem:[#allocation2 + $0x8e8] sm:$0xff] %v302
          %635 = vst [vmem:[#allocation2 + $0x8f0] sm:$0xff] %v302
          %636 = vst [vmem:[#allocation2 + $0x8f8] sm:$0xff] %v302
          %637 = vst [vmem:[#allocation2 + $0x900] sm:$0xff] %v303
          %638 = vst [vmem:[#allocation2 + $0x908] sm:$0xff] %v303
          %639 = vst [vmem:[#allocation2 + $0x910] sm:$0xff] %v303
          %640 = vst [vmem:[#allocation2 + $0x918] sm:$0xff] %v303
          %641 = vst [vmem:[#allocation2 + $0x920] sm:$0xff] %v303
          %642 = vst [vmem:[#allocation2 + $0x928] sm:$0xff] %v303
          %643 = vst [vmem:[#allocation2 + $0x930] sm:$0xff] %v303
          %644 = vst [vmem:[#allocation2 + $0x938] sm:$0xff] %v303
          %645 = vst [vmem:[#allocation2 + $0x940] sm:$0xff] %v303
          %646 = vst [vmem:[#allocation2 + $0x948] sm:$0xff] %v303
          %647 = vst [vmem:[#allocation2 + $0x950] sm:$0xff] %v303
          %648 = vst [vmem:[#allocation2 + $0x958] sm:$0xff] %v303
          %649 = vst [vmem:[#allocation2 + $0x960] sm:$0xff] %v303
          %650 = vst [vmem:[#allocation2 + $0x968] sm:$0xff] %v303
          %651 = vst [vmem:[#allocation2 + $0x970] sm:$0xff] %v303
          %652 = vst [vmem:[#allocation2 + $0x978] sm:$0xff] %v303
          %653 = vst [vmem:[#allocation2 + $0x980] sm:$0xff] %v304
          %654 = vst [vmem:[#allocation2 + $0x988] sm:$0xff] %v304
          %655 = vst [vmem:[#allocation2 + $0x990] sm:$0xff] %v304
          %656 = vst [vmem:[#allocation2 + $0x998] sm:$0xff] %v304
          %657 = vst [vmem:[#allocation2 + $0x9a0] sm:$0xff] %v304
          %658 = vst [vmem:[#allocation2 + $0x9a8] sm:$0xff] %v304
          %659 = vst [vmem:[#allocation2 + $0x9b0] sm:$0xff] %v304
          %660 = vst [vmem:[#allocation2 + $0x9b8] sm:$0xff] %v304
          %661 = vst [vmem:[#allocation2 + $0x9c0] sm:$0xff] %v304
          %662 = vst [vmem:[#allocation2 + $0x9c8] sm:$0xff] %v304
          %663 = vst [vmem:[#allocation2 + $0x9d0] sm:$0xff] %v304
          %664 = vst [vmem:[#allocation2 + $0x9d8] sm:$0xff] %v304
          %665 = vst [vmem:[#allocation2 + $0x9e0] sm:$0xff] %v304
          %666 = vst [vmem:[#allocation2 + $0x9e8] sm:$0xff] %v304
          %667 = vst [vmem:[#allocation2 + $0x9f0] sm:$0xff] %v304
          %668 = vst [vmem:[#allocation2 + $0x9f8] sm:$0xff] %v304
          %669 = vst [vmem:[#allocation2 + $0xa00] sm:$0xff] %v305
          %670 = vst [vmem:[#allocation2 + $0xa08] sm:$0xff] %v305
          %671 = vst [vmem:[#allocation2 + $0xa10] sm:$0xff] %v305
          %672 = vst [vmem:[#allocation2 + $0xa18] sm:$0xff] %v305
          %673 = vst [vmem:[#allocation2 + $0xa20] sm:$0xff] %v305
          %674 = vst [vmem:[#allocation2 + $0xa28] sm:$0xff] %v305
          %675 = vst [vmem:[#allocation2 + $0xa30] sm:$0xff] %v305
          %676 = vst [vmem:[#allocation2 + $0xa38] sm:$0xff] %v305
          %677 = vst [vmem:[#allocation2 + $0xa40] sm:$0xff] %v305
          %678 = vst [vmem:[#allocation2 + $0xa48] sm:$0xff] %v305
          %679 = vst [vmem:[#allocation2 + $0xa50] sm:$0xff] %v305
          %680 = vst [vmem:[#allocation2 + $0xa58] sm:$0xff] %v305
          %681 = vst [vmem:[#allocation2 + $0xa60] sm:$0xff] %v305
          %682 = vst [vmem:[#allocation2 + $0xa68] sm:$0xff] %v305
          %683 = vst [vmem:[#allocation2 + $0xa70] sm:$0xff] %v305
          %684 = vst [vmem:[#allocation2 + $0xa78] sm:$0xff] %v305
          %685 = vst [vmem:[#allocation2 + $0xa80] sm:$0xff] %v306
          %686 = vst [vmem:[#allocation2 + $0xa88] sm:$0xff] %v306
          %687 = vst [vmem:[#allocation2 + $0xa90] sm:$0xff] %v306
          %688 = vst [vmem:[#allocation2 + $0xa98] sm:$0xff] %v306
          %689 = vst [vmem:[#allocation2 + $0xaa0] sm:$0xff] %v306
          %690 = vst [vmem:[#allocation2 + $0xaa8] sm:$0xff] %v306
          %691 = vst [vmem:[#allocation2 + $0xab0] sm:$0xff] %v306
          %692 = vst [vmem:[#allocation2 + $0xab8] sm:$0xff] %v306
          %693 = vst [vmem:[#allocation2 + $0xac0] sm:$0xff] %v306
          %694 = vst [vmem:[#allocation2 + $0xac8] sm:$0xff] %v306
          %695 = vst [vmem:[#allocation2 + $0xad0] sm:$0xff] %v306
          %696 = vst [vmem:[#allocation2 + $0xad8] sm:$0xff] %v306
          %697 = vst [vmem:[#allocation2 + $0xae0] sm:$0xff] %v306
          %698 = vst [vmem:[#allocation2 + $0xae8] sm:$0xff] %v306
          %699 = vst [vmem:[#allocation2 + $0xaf0] sm:$0xff] %v306
          %700 = vst [vmem:[#allocation2 + $0xaf8] sm:$0xff] %v306
          %701 = vst [vmem:[#allocation2 + $0xb00] sm:$0xff] %v307
          %702 = vst [vmem:[#allocation2 + $0xb08] sm:$0xff] %v307
          %703 = vst [vmem:[#allocation2 + $0xb10] sm:$0xff] %v307
          %704 = vst [vmem:[#allocation2 + $0xb18] sm:$0xff] %v307
          %705 = vst [vmem:[#allocation2 + $0xb20] sm:$0xff] %v307
          %706 = vst [vmem:[#allocation2 + $0xb28] sm:$0xff] %v307
          %707 = vst [vmem:[#allocation2 + $0xb30] sm:$0xff] %v307
          %708 = vst [vmem:[#allocation2 + $0xb38] sm:$0xff] %v307
          %709 = vst [vmem:[#allocation2 + $0xb40] sm:$0xff] %v307
          %710 = vst [vmem:[#allocation2 + $0xb48] sm:$0xff] %v307
          %711 = vst [vmem:[#allocation2 + $0xb50] sm:$0xff] %v307
          %712 = vst [vmem:[#allocation2 + $0xb58] sm:$0xff] %v307
          %713 = vst [vmem:[#allocation2 + $0xb60] sm:$0xff] %v307
          %714 = vst [vmem:[#allocation2 + $0xb68] sm:$0xff] %v307
          %715 = vst [vmem:[#allocation2 + $0xb70] sm:$0xff] %v307
          %716 = vst [vmem:[#allocation2 + $0xb78] sm:$0xff] %v307
          %717 = vst [vmem:[#allocation2 + $0xb80] sm:$0xff] %v308
          %718 = vst [vmem:[#allocation2 + $0xb88] sm:$0xff] %v308
          %719 = vst [vmem:[#allocation2 + $0xb90] sm:$0xff] %v308
          %720 = vst [vmem:[#allocation2 + $0xb98] sm:$0xff] %v308
          %721 = vst [vmem:[#allocation2 + $0xba0] sm:$0xff] %v308
          %722 = vst [vmem:[#allocation2 + $0xba8] sm:$0xff] %v308
          %723 = vst [vmem:[#allocation2 + $0xbb0] sm:$0xff] %v308
          %724 = vst [vmem:[#allocation2 + $0xbb8] sm:$0xff] %v308
          %725 = vst [vmem:[#allocation2 + $0xbc0] sm:$0xff] %v308
          %726 = vst [vmem:[#allocation2 + $0xbc8] sm:$0xff] %v308
          %727 = vst [vmem:[#allocation2 + $0xbd0] sm:$0xff] %v308
          %728 = vst [vmem:[#allocation2 + $0xbd8] sm:$0xff] %v308
          %729 = vst [vmem:[#allocation2 + $0xbe0] sm:$0xff] %v308
          %730 = vst [vmem:[#allocation2 + $0xbe8] sm:$0xff] %v308
          %731 = vst [vmem:[#allocation2 + $0xbf0] sm:$0xff] %v308
          %732 = vst [vmem:[#allocation2 + $0xbf8] sm:$0xff] %v308
          %733 = vst [vmem:[#allocation2 + $0xc00] sm:$0xff] %v309
          %734 = vst [vmem:[#allocation2 + $0xc08] sm:$0xff] %v309
          %735 = vst [vmem:[#allocation2 + $0xc10] sm:$0xff] %v309
          %736 = vst [vmem:[#allocation2 + $0xc18] sm:$0xff] %v309
          %737 = vst [vmem:[#allocation2 + $0xc20] sm:$0xff] %v309
          %738 = vst [vmem:[#allocation2 + $0xc28] sm:$0xff] %v309
          %739 = vst [vmem:[#allocation2 + $0xc30] sm:$0xff] %v309
          %740 = vst [vmem:[#allocation2 + $0xc38] sm:$0xff] %v309
          %741 = vst [vmem:[#allocation2 + $0xc40] sm:$0xff] %v309
          %742 = vst [vmem:[#allocation2 + $0xc48] sm:$0xff] %v309
          %743 = vst [vmem:[#allocation2 + $0xc50] sm:$0xff] %v309
          %744 = vst [vmem:[#allocation2 + $0xc58] sm:$0xff] %v309
          %745 = vst [vmem:[#allocation2 + $0xc60] sm:$0xff] %v309
          %746 = vst [vmem:[#allocation2 + $0xc68] sm:$0xff] %v309
          %747 = vst [vmem:[#allocation2 + $0xc70] sm:$0xff] %v309
          %748 = vst [vmem:[#allocation2 + $0xc78] sm:$0xff] %v309
          %749 = vst [vmem:[#allocation2 + $0xc80] sm:$0xff] %v310
          %750 = vst [vmem:[#allocation2 + $0xc88] sm:$0xff] %v310
          %751 = vst [vmem:[#allocation2 + $0xc90] sm:$0xff] %v310
          %752 = vst [vmem:[#allocation2 + $0xc98] sm:$0xff] %v310
          %753 = vst [vmem:[#allocation2 + $0xca0] sm:$0xff] %v310
          %754 = vst [vmem:[#allocation2 + $0xca8] sm:$0xff] %v310
          %755 = vst [vmem:[#allocation2 + $0xcb0] sm:$0xff] %v310
          %756 = vst [vmem:[#allocation2 + $0xcb8] sm:$0xff] %v310
          %757 = vst [vmem:[#allocation2 + $0xcc0] sm:$0xff] %v310
          %758 = vst [vmem:[#allocation2 + $0xcc8] sm:$0xff] %v310
          %759 = vst [vmem:[#allocation2 + $0xcd0] sm:$0xff] %v310
          %760 = vst [vmem:[#allocation2 + $0xcd8] sm:$0xff] %v310
          %761 = vst [vmem:[#allocation2 + $0xce0] sm:$0xff] %v310
          %762 = vst [vmem:[#allocation2 + $0xce8] sm:$0xff] %v310
          %763 = vst [vmem:[#allocation2 + $0xcf0] sm:$0xff] %v310
          %764 = vst [vmem:[#allocation2 + $0xcf8] sm:$0xff] %v310
          %765 = vst [vmem:[#allocation2 + $0xd00] sm:$0xff] %v311
          %766 = vst [vmem:[#allocation2 + $0xd08] sm:$0xff] %v311
          %767 = vst [vmem:[#allocation2 + $0xd10] sm:$0xff] %v311
          %768 = vst [vmem:[#allocation2 + $0xd18] sm:$0xff] %v311
          %769 = vst [vmem:[#allocation2 + $0xd20] sm:$0xff] %v311
          %770 = vst [vmem:[#allocation2 + $0xd28] sm:$0xff] %v311
          %771 = vst [vmem:[#allocation2 + $0xd30] sm:$0xff] %v311
          %772 = vst [vmem:[#allocation2 + $0xd38] sm:$0xff] %v311
          %773 = vst [vmem:[#allocation2 + $0xd40] sm:$0xff] %v311
          %774 = vst [vmem:[#allocation2 + $0xd48] sm:$0xff] %v311
          %775 = vst [vmem:[#allocation2 + $0xd50] sm:$0xff] %v311
          %776 = vst [vmem:[#allocation2 + $0xd58] sm:$0xff] %v311
          %777 = vst [vmem:[#allocation2 + $0xd60] sm:$0xff] %v311
          %778 = vst [vmem:[#allocation2 + $0xd68] sm:$0xff] %v311
          %779 = vst [vmem:[#allocation2 + $0xd70] sm:$0xff] %v311
          %780 = vst [vmem:[#allocation2 + $0xd78] sm:$0xff] %v311
          %781 = vst [vmem:[#allocation2 + $0xd80] sm:$0xff] %v312
          %782 = vst [vmem:[#allocation2 + $0xd88] sm:$0xff] %v312
          %783 = vst [vmem:[#allocation2 + $0xd90] sm:$0xff] %v312
          %784 = vst [vmem:[#allocation2 + $0xd98] sm:$0xff] %v312
          %785 = vst [vmem:[#allocation2 + $0xda0] sm:$0xff] %v312
          %786 = vst [vmem:[#allocation2 + $0xda8] sm:$0xff] %v312
          %787 = vst [vmem:[#allocation2 + $0xdb0] sm:$0xff] %v312
          %788 = vst [vmem:[#allocation2 + $0xdb8] sm:$0xff] %v312
          %789 = vst [vmem:[#allocation2 + $0xdc0] sm:$0xff] %v312
          %790 = vst [vmem:[#allocation2 + $0xdc8] sm:$0xff] %v312
          %791 = vst [vmem:[#allocation2 + $0xdd0] sm:$0xff] %v312
          %792 = vst [vmem:[#allocation2 + $0xdd8] sm:$0xff] %v312
          %793 = vst [vmem:[#allocation2 + $0xde0] sm:$0xff] %v312
          %794 = vst [vmem:[#allocation2 + $0xde8] sm:$0xff] %v312
          %795 = vst [vmem:[#allocation2 + $0xdf0] sm:$0xff] %v312
          %796 = vst [vmem:[#allocation2 + $0xdf8] sm:$0xff] %v312
          %797 = vst [vmem:[#allocation2 + $0xe00] sm:$0xff] %v313
          %798 = vst [vmem:[#allocation2 + $0xe08] sm:$0xff] %v313
          %799 = vst [vmem:[#allocation2 + $0xe10] sm:$0xff] %v313
          %800 = vst [vmem:[#allocation2 + $0xe18] sm:$0xff] %v313
          %801 = vst [vmem:[#allocation2 + $0xe20] sm:$0xff] %v313
          %802 = vst [vmem:[#allocation2 + $0xe28] sm:$0xff] %v313
          %803 = vst [vmem:[#allocation2 + $0xe30] sm:$0xff] %v313
          %804 = vst [vmem:[#allocation2 + $0xe38] sm:$0xff] %v313
          %805 = vst [vmem:[#allocation2 + $0xe40] sm:$0xff] %v313
          %806 = vst [vmem:[#allocation2 + $0xe48] sm:$0xff] %v313
          %807 = vst [vmem:[#allocation2 + $0xe50] sm:$0xff] %v313
          %808 = vst [vmem:[#allocation2 + $0xe58] sm:$0xff] %v313
          %809 = vst [vmem:[#allocation2 + $0xe60] sm:$0xff] %v313
          %810 = vst [vmem:[#allocation2 + $0xe68] sm:$0xff] %v313
          %811 = vst [vmem:[#allocation2 + $0xe70] sm:$0xff] %v313
          %812 = vst [vmem:[#allocation2 + $0xe78] sm:$0xff] %v313
          %813 = vst [vmem:[#allocation2 + $0xe80] sm:$0xff] %v314
          %814 = vst [vmem:[#allocation2 + $0xe88] sm:$0xff] %v314
          %815 = vst [vmem:[#allocation2 + $0xe90] sm:$0xff] %v314
          %816 = vst [vmem:[#allocation2 + $0xe98] sm:$0xff] %v314
          %817 = vst [vmem:[#allocation2 + $0xea0] sm:$0xff] %v314
          %818 = vst [vmem:[#allocation2 + $0xea8] sm:$0xff] %v314
          %819 = vst [vmem:[#allocation2 + $0xeb0] sm:$0xff] %v314
          %820 = vst [vmem:[#allocation2 + $0xeb8] sm:$0xff] %v314
          %821 = vst [vmem:[#allocation2 + $0xec0] sm:$0xff] %v314
          %822 = vst [vmem:[#allocation2 + $0xec8] sm:$0xff] %v314
          %823 = vst [vmem:[#allocation2 + $0xed0] sm:$0xff] %v314
          %824 = vst [vmem:[#allocation2 + $0xed8] sm:$0xff] %v314
          %825 = vst [vmem:[#allocation2 + $0xee0] sm:$0xff] %v314
          %826 = vst [vmem:[#allocation2 + $0xee8] sm:$0xff] %v314
          %827 = vst [vmem:[#allocation2 + $0xef0] sm:$0xff] %v314
          %828 = vst [vmem:[#allocation2 + $0xef8] sm:$0xff] %v314
          %829 = vst [vmem:[#allocation2 + $0xf00] sm:$0xff] %v315
          %830 = vst [vmem:[#allocation2 + $0xf08] sm:$0xff] %v315
          %831 = vst [vmem:[#allocation2 + $0xf10] sm:$0xff] %v315
          %832 = vst [vmem:[#allocation2 + $0xf18] sm:$0xff] %v315
          %833 = vst [vmem:[#allocation2 + $0xf20] sm:$0xff] %v315
          %834 = vst [vmem:[#allocation2 + $0xf28] sm:$0xff] %v315
          %835 = vst [vmem:[#allocation2 + $0xf30] sm:$0xff] %v315
          %836 = vst [vmem:[#allocation2 + $0xf38] sm:$0xff] %v315
          %837 = vst [vmem:[#allocation2 + $0xf40] sm:$0xff] %v315
          %838 = vst [vmem:[#allocation2 + $0xf48] sm:$0xff] %v315
          %839 = vst [vmem:[#allocation2 + $0xf50] sm:$0xff] %v315
          %840 = vst [vmem:[#allocation2 + $0xf58] sm:$0xff] %v315
          %841 = vst [vmem:[#allocation2 + $0xf60] sm:$0xff] %v315
          %842 = vst [vmem:[#allocation2 + $0xf68] sm:$0xff] %v315
          %843 = vst [vmem:[#allocation2 + $0xf70] sm:$0xff] %v315
          %844 = vst [vmem:[#allocation2 + $0xf78] sm:$0xff] %v315
          %845 = vst [vmem:[#allocation2 + $0xf80] sm:$0xff] %v316
          %846 = vst [vmem:[#allocation2 + $0xf88] sm:$0xff] %v316
          %847 = vst [vmem:[#allocation2 + $0xf90] sm:$0xff] %v316
          %848 = vst [vmem:[#allocation2 + $0xf98] sm:$0xff] %v316
          %849 = vst [vmem:[#allocation2 + $0xfa0] sm:$0xff] %v316
          %850 = vst [vmem:[#allocation2 + $0xfa8] sm:$0xff] %v316
          %851 = vst [vmem:[#allocation2 + $0xfb0] sm:$0xff] %v316
          %852 = vst [vmem:[#allocation2 + $0xfb8] sm:$0xff] %v316
          %853 = vst [vmem:[#allocation2 + $0xfc0] sm:$0xff] %v316
          %854 = vst [vmem:[#allocation2 + $0xfc8] sm:$0xff] %v316
          %855 = vst [vmem:[#allocation2 + $0xfd0] sm:$0xff] %v316
          %856 = vst [vmem:[#allocation2 + $0xfd8] sm:$0xff] %v316
          %857 = vst [vmem:[#allocation2 + $0xfe0] sm:$0xff] %v316
          %858 = vst [vmem:[#allocation2 + $0xfe8] sm:$0xff] %v316
          %859 = vst [vmem:[#allocation2 + $0xff0] sm:$0xff] %v316
          %860 = vst [vmem:[#allocation2 + $0xff8] sm:$0xff] %v316
          %861 = vst [vmem:[#allocation2 + $0x1000] sm:$0xff] %v317
          %862 = vst [vmem:[#allocation2 + $0x1008] sm:$0xff] %v317
          %863 = vst [vmem:[#allocation2 + $0x1010] sm:$0xff] %v317
          %864 = vst [vmem:[#allocation2 + $0x1018] sm:$0xff] %v317
          %865 = vst [vmem:[#allocation2 + $0x1020] sm:$0xff] %v317
          %866 = vst [vmem:[#allocation2 + $0x1028] sm:$0xff] %v317
          %867 = vst [vmem:[#allocation2 + $0x1030] sm:$0xff] %v317
          %868 = vst [vmem:[#allocation2 + $0x1038] sm:$0xff] %v317
          %869 = vst [vmem:[#allocation2 + $0x1040] sm:$0xff] %v317
          %870 = vst [vmem:[#allocation2 + $0x1048] sm:$0xff] %v317
          %871 = vst [vmem:[#allocation2 + $0x1050] sm:$0xff] %v317
          %872 = vst [vmem:[#allocation2 + $0x1058] sm:$0xff] %v317
          %873 = vst [vmem:[#allocation2 + $0x1060] sm:$0xff] %v317
          %874 = vst [vmem:[#allocation2 + $0x1068] sm:$0xff] %v317
          %875 = vst [vmem:[#allocation2 + $0x1070] sm:$0xff] %v317
          %876 = vst [vmem:[#allocation2 + $0x1078] sm:$0xff] %v317
          %877 = vst [vmem:[#allocation2 + $0x1080] sm:$0xff] %v318
          %878 = vst [vmem:[#allocation2 + $0x1088] sm:$0xff] %v318
          %879 = vst [vmem:[#allocation2 + $0x1090] sm:$0xff] %v318
          %880 = vst [vmem:[#allocation2 + $0x1098] sm:$0xff] %v318
          %881 = vst [vmem:[#allocation2 + $0x10a0] sm:$0xff] %v318
          %882 = vst [vmem:[#allocation2 + $0x10a8] sm:$0xff] %v318
          %883 = vst [vmem:[#allocation2 + $0x10b0] sm:$0xff] %v318
          %884 = vst [vmem:[#allocation2 + $0x10b8] sm:$0xff] %v318
          %885 = vst [vmem:[#allocation2 + $0x10c0] sm:$0xff] %v318
          %886 = vst [vmem:[#allocation2 + $0x10c8] sm:$0xff] %v318
          %887 = vst [vmem:[#allocation2 + $0x10d0] sm:$0xff] %v318
          %888 = vst [vmem:[#allocation2 + $0x10d8] sm:$0xff] %v318
          %889 = vst [vmem:[#allocation2 + $0x10e0] sm:$0xff] %v318
          %890 = vst [vmem:[#allocation2 + $0x10e8] sm:$0xff] %v318
          %891 = vst [vmem:[#allocation2 + $0x10f0] sm:$0xff] %v318
          %892 = vst [vmem:[#allocation2 + $0x10f8] sm:$0xff] %v318
          %893 = vst [vmem:[#allocation2 + $0x1100] sm:$0xff] %v319
          %894 = vst [vmem:[#allocation2 + $0x1108] sm:$0xff] %v319
          %895 = vst [vmem:[#allocation2 + $0x1110] sm:$0xff] %v319
          %896 = vst [vmem:[#allocation2 + $0x1118] sm:$0xff] %v319
          %897 = vst [vmem:[#allocation2 + $0x1120] sm:$0xff] %v319
          %898 = vst [vmem:[#allocation2 + $0x1128] sm:$0xff] %v319
          %899 = vst [vmem:[#allocation2 + $0x1130] sm:$0xff] %v319
          %900 = vst [vmem:[#allocation2 + $0x1138] sm:$0xff] %v319
          %901 = vst [vmem:[#allocation2 + $0x1140] sm:$0xff] %v319
          %902 = vst [vmem:[#allocation2 + $0x1148] sm:$0xff] %v319
          %903 = vst [vmem:[#allocation2 + $0x1150] sm:$0xff] %v319
          %904 = vst [vmem:[#allocation2 + $0x1158] sm:$0xff] %v319
          %905 = vst [vmem:[#allocation2 + $0x1160] sm:$0xff] %v319
          %906 = vst [vmem:[#allocation2 + $0x1168] sm:$0xff] %v319
          %907 = vst [vmem:[#allocation2 + $0x1170] sm:$0xff] %v319
          %908 = vst [vmem:[#allocation2 + $0x1178] sm:$0xff] %v319
          %909 = vst [vmem:[#allocation2 + $0x1180] sm:$0xff] %v320
          %910 = vst [vmem:[#allocation2 + $0x1188] sm:$0xff] %v320
          %911 = vst [vmem:[#allocation2 + $0x1190] sm:$0xff] %v320
          %912 = vst [vmem:[#allocation2 + $0x1198] sm:$0xff] %v320
          %913 = vst [vmem:[#allocation2 + $0x11a0] sm:$0xff] %v320
          %914 = vst [vmem:[#allocation2 + $0x11a8] sm:$0xff] %v320
          %915 = vst [vmem:[#allocation2 + $0x11b0] sm:$0xff] %v320
          %916 = vst [vmem:[#allocation2 + $0x11b8] sm:$0xff] %v320
          %917 = vst [vmem:[#allocation2 + $0x11c0] sm:$0xff] %v320
          %918 = vst [vmem:[#allocation2 + $0x11c8] sm:$0xff] %v320
          %919 = vst [vmem:[#allocation2 + $0x11d0] sm:$0xff] %v320
          %920 = vst [vmem:[#allocation2 + $0x11d8] sm:$0xff] %v320
          %921 = vst [vmem:[#allocation2 + $0x11e0] sm:$0xff] %v320
          %922 = vst [vmem:[#allocation2 + $0x11e8] sm:$0xff] %v320
          %923 = vst [vmem:[#allocation2 + $0x11f0] sm:$0xff] %v320
          %924 = vst [vmem:[#allocation2 + $0x11f8] sm:$0xff] %v320
          %925 = vst [vmem:[#allocation2 + $0x1200] sm:$0xff] %v321
          %926 = vst [vmem:[#allocation2 + $0x1208] sm:$0xff] %v321
          %927 = vst [vmem:[#allocation2 + $0x1210] sm:$0xff] %v321
          %928 = vst [vmem:[#allocation2 + $0x1218] sm:$0xff] %v321
          %929 = vst [vmem:[#allocation2 + $0x1220] sm:$0xff] %v321
          %930 = vst [vmem:[#allocation2 + $0x1228] sm:$0xff] %v321
          %931 = vst [vmem:[#allocation2 + $0x1230] sm:$0xff] %v321
          %932 = vst [vmem:[#allocation2 + $0x1238] sm:$0xff] %v321
          %933 = vst [vmem:[#allocation2 + $0x1240] sm:$0xff] %v321
          %934 = vst [vmem:[#allocation2 + $0x1248] sm:$0xff] %v321
          %935 = vst [vmem:[#allocation2 + $0x1250] sm:$0xff] %v321
          %936 = vst [vmem:[#allocation2 + $0x1258] sm:$0xff] %v321
          %937 = vst [vmem:[#allocation2 + $0x1260] sm:$0xff] %v321
          %938 = vst [vmem:[#allocation2 + $0x1268] sm:$0xff] %v321
          %939 = vst [vmem:[#allocation2 + $0x1270] sm:$0xff] %v321
          %940 = vst [vmem:[#allocation2 + $0x1278] sm:$0xff] %v321
          %941 = vst [vmem:[#allocation2 + $0x1280] sm:$0xff] %v322
          %942 = vst [vmem:[#allocation2 + $0x1288] sm:$0xff] %v322
          %943 = vst [vmem:[#allocation2 + $0x1290] sm:$0xff] %v322
          %944 = vst [vmem:[#allocation2 + $0x1298] sm:$0xff] %v322
          %945 = vst [vmem:[#allocation2 + $0x12a0] sm:$0xff] %v322
          %946 = vst [vmem:[#allocation2 + $0x12a8] sm:$0xff] %v322
          %947 = vst [vmem:[#allocation2 + $0x12b0] sm:$0xff] %v322
          %948 = vst [vmem:[#allocation2 + $0x12b8] sm:$0xff] %v322
          %949 = vst [vmem:[#allocation2 + $0x12c0] sm:$0xff] %v322
          %950 = vst [vmem:[#allocation2 + $0x12c8] sm:$0xff] %v322
          %951 = vst [vmem:[#allocation2 + $0x12d0] sm:$0xff] %v322
          %952 = vst [vmem:[#allocation2 + $0x12d8] sm:$0xff] %v322
          %953 = vst [vmem:[#allocation2 + $0x12e0] sm:$0xff] %v322
          %954 = vst [vmem:[#allocation2 + $0x12e8] sm:$0xff] %v322
          %955 = vst [vmem:[#allocation2 + $0x12f0] sm:$0xff] %v322
          %956 = vst [vmem:[#allocation2 + $0x12f8] sm:$0xff] %v322
          %957 = vst [vmem:[#allocation2 + $0x1300] sm:$0xff] %v323
          %958 = vst [vmem:[#allocation2 + $0x1308] sm:$0xff] %v323
          %959 = vst [vmem:[#allocation2 + $0x1310] sm:$0xff] %v323
          %960 = vst [vmem:[#allocation2 + $0x1318] sm:$0xff] %v323
          %961 = vst [vmem:[#allocation2 + $0x1320] sm:$0xff] %v323
          %962 = vst [vmem:[#allocation2 + $0x1328] sm:$0xff] %v323
          %963 = vst [vmem:[#allocation2 + $0x1330] sm:$0xff] %v323
          %964 = vst [vmem:[#allocation2 + $0x1338] sm:$0xff] %v323
          %965 = vst [vmem:[#allocation2 + $0x1340] sm:$0xff] %v323
          %966 = vst [vmem:[#allocation2 + $0x1348] sm:$0xff] %v323
          %967 = vst [vmem:[#allocation2 + $0x1350] sm:$0xff] %v323
          %968 = vst [vmem:[#allocation2 + $0x1358] sm:$0xff] %v323
          %969 = vst [vmem:[#allocation2 + $0x1360] sm:$0xff] %v323
          %970 = vst [vmem:[#allocation2 + $0x1368] sm:$0xff] %v323
          %971 = vst [vmem:[#allocation2 + $0x1370] sm:$0xff] %v323
          %972 = vst [vmem:[#allocation2 + $0x1378] sm:$0xff] %v323
          %973 = vst [vmem:[#allocation2 + $0x1380] sm:$0xff] %v324
          %974 = vst [vmem:[#allocation2 + $0x1388] sm:$0xff] %v324
          %975 = vst [vmem:[#allocation2 + $0x1390] sm:$0xff] %v324
          %976 = vst [vmem:[#allocation2 + $0x1398] sm:$0xff] %v324
          %977 = vst [vmem:[#allocation2 + $0x13a0] sm:$0xff] %v324
          %978 = vst [vmem:[#allocation2 + $0x13a8] sm:$0xff] %v324
          %979 = vst [vmem:[#allocation2 + $0x13b0] sm:$0xff] %v324
          %980 = vst [vmem:[#allocation2 + $0x13b8] sm:$0xff] %v324
          %981 = vst [vmem:[#allocation2 + $0x13c0] sm:$0xff] %v324
          %982 = vst [vmem:[#allocation2 + $0x13c8] sm:$0xff] %v324
          %983 = vst [vmem:[#allocation2 + $0x13d0] sm:$0xff] %v324
          %984 = vst [vmem:[#allocation2 + $0x13d8] sm:$0xff] %v324
          %985 = vst [vmem:[#allocation2 + $0x13e0] sm:$0xff] %v324
          %986 = vst [vmem:[#allocation2 + $0x13e8] sm:$0xff] %v324
          %987 = vst [vmem:[#allocation2 + $0x13f0] sm:$0xff] %v324
          %988 = vst [vmem:[#allocation2 + $0x13f8] sm:$0xff] %v324
          %989 = vst [vmem:[#allocation2 + $0x1400] sm:$0xff] %v325
          %990 = vst [vmem:[#allocation2 + $0x1408] sm:$0xff] %v325
          %991 = vst [vmem:[#allocation2 + $0x1410] sm:$0xff] %v325
          %992 = vst [vmem:[#allocation2 + $0x1418] sm:$0xff] %v325
          %993 = vst [vmem:[#allocation2 + $0x1420] sm:$0xff] %v325
          %994 = vst [vmem:[#allocation2 + $0x1428] sm:$0xff] %v325
          %995 = vst [vmem:[#allocation2 + $0x1430] sm:$0xff] %v325
          %996 = vst [vmem:[#allocation2 + $0x1438] sm:$0xff] %v325
          %997 = vst [vmem:[#allocation2 + $0x1440] sm:$0xff] %v325
          %998 = vst [vmem:[#allocation2 + $0x1448] sm:$0xff] %v325
          %999 = vst [vmem:[#allocation2 + $0x1450] sm:$0xff] %v325
          %1000 = vst [vmem:[#allocation2 + $0x1458] sm:$0xff] %v325
          %1001 = vst [vmem:[#allocation2 + $0x1460] sm:$0xff] %v325
          %1002 = vst [vmem:[#allocation2 + $0x1468] sm:$0xff] %v325
          %1003 = vst [vmem:[#allocation2 + $0x1470] sm:$0xff] %v325
          %1004 = vst [vmem:[#allocation2 + $0x1478] sm:$0xff] %v325
          %1005 = vst [vmem:[#allocation2 + $0x1480] sm:$0xff] %v326
          %1006 = vst [vmem:[#allocation2 + $0x1488] sm:$0xff] %v326
          %1007 = vst [vmem:[#allocation2 + $0x1490] sm:$0xff] %v326
          %1008 = vst [vmem:[#allocation2 + $0x1498] sm:$0xff] %v326
          %1009 = vst [vmem:[#allocation2 + $0x14a0] sm:$0xff] %v326
          %1010 = vst [vmem:[#allocation2 + $0x14a8] sm:$0xff] %v326
          %1011 = vst [vmem:[#allocation2 + $0x14b0] sm:$0xff] %v326
          %1012 = vst [vmem:[#allocation2 + $0x14b8] sm:$0xff] %v326
          %1013 = vst [vmem:[#allocation2 + $0x14c0] sm:$0xff] %v326
          %1014 = vst [vmem:[#allocation2 + $0x14c8] sm:$0xff] %v326
          %1015 = vst [vmem:[#allocation2 + $0x14d0] sm:$0xff] %v326
          %1016 = vst [vmem:[#allocation2 + $0x14d8] sm:$0xff] %v326
          %1017 = vst [vmem:[#allocation2 + $0x14e0] sm:$0xff] %v326
          %1018 = vst [vmem:[#allocation2 + $0x14e8] sm:$0xff] %v326
          %1019 = vst [vmem:[#allocation2 + $0x14f0] sm:$0xff] %v326
          %1020 = vst [vmem:[#allocation2 + $0x14f8] sm:$0xff] %v326
          %1021 = vst [vmem:[#allocation2 + $0x1500] sm:$0xff] %v327
          %1022 = vst [vmem:[#allocation2 + $0x1508] sm:$0xff] %v327
          %1023 = vst [vmem:[#allocation2 + $0x1510] sm:$0xff] %v327
          %1024 = vst [vmem:[#allocation2 + $0x1518] sm:$0xff] %v327
          %1025 = vst [vmem:[#allocation2 + $0x1520] sm:$0xff] %v327
          %1026 = vst [vmem:[#allocation2 + $0x1528] sm:$0xff] %v327
          %1027 = vst [vmem:[#allocation2 + $0x1530] sm:$0xff] %v327
          %1028 = vst [vmem:[#allocation2 + $0x1538] sm:$0xff] %v327
          %1029 = vst [vmem:[#allocation2 + $0x1540] sm:$0xff] %v327
          %1030 = vst [vmem:[#allocation2 + $0x1548] sm:$0xff] %v327
          %1031 = vst [vmem:[#allocation2 + $0x1550] sm:$0xff] %v327
          %1032 = vst [vmem:[#allocation2 + $0x1558] sm:$0xff] %v327
          %1033 = vst [vmem:[#allocation2 + $0x1560] sm:$0xff] %v327
          %1034 = vst [vmem:[#allocation2 + $0x1568] sm:$0xff] %v327
          %1035 = vst [vmem:[#allocation2 + $0x1570] sm:$0xff] %v327
          %1036 = vst [vmem:[#allocation2 + $0x1578] sm:$0xff] %v327
          %1037 = vst [vmem:[#allocation2 + $0x1580] sm:$0xff] %v328
          %1038 = vst [vmem:[#allocation2 + $0x1588] sm:$0xff] %v328
          %1039 = vst [vmem:[#allocation2 + $0x1590] sm:$0xff] %v328
          %1040 = vst [vmem:[#allocation2 + $0x1598] sm:$0xff] %v328
          %1041 = vst [vmem:[#allocation2 + $0x15a0] sm:$0xff] %v328
          %1042 = vst [vmem:[#allocation2 + $0x15a8] sm:$0xff] %v328
          %1043 = vst [vmem:[#allocation2 + $0x15b0] sm:$0xff] %v328
          %1044 = vst [vmem:[#allocation2 + $0x15b8] sm:$0xff] %v328
          %1045 = vst [vmem:[#allocation2 + $0x15c0] sm:$0xff] %v328
          %1046 = vst [vmem:[#allocation2 + $0x15c8] sm:$0xff] %v328
          %1047 = vst [vmem:[#allocation2 + $0x15d0] sm:$0xff] %v328
          %1048 = vst [vmem:[#allocation2 + $0x15d8] sm:$0xff] %v328
          %1049 = vst [vmem:[#allocation2 + $0x15e0] sm:$0xff] %v328
          %1050 = vst [vmem:[#allocation2 + $0x15e8] sm:$0xff] %v328
          %1051 = vst [vmem:[#allocation2 + $0x15f0] sm:$0xff] %v328
          %1052 = vst [vmem:[#allocation2 + $0x15f8] sm:$0xff] %v328
          %1053 = vst [vmem:[#allocation2 + $0x1600] sm:$0xff] %v329
          %1054 = vst [vmem:[#allocation2 + $0x1608] sm:$0xff] %v329
          %1055 = vst [vmem:[#allocation2 + $0x1610] sm:$0xff] %v329
          %1056 = vst [vmem:[#allocation2 + $0x1618] sm:$0xff] %v329
          %1057 = vst [vmem:[#allocation2 + $0x1620] sm:$0xff] %v329
          %1058 = vst [vmem:[#allocation2 + $0x1628] sm:$0xff] %v329
          %1059 = vst [vmem:[#allocation2 + $0x1630] sm:$0xff] %v329
          %1060 = vst [vmem:[#allocation2 + $0x1638] sm:$0xff] %v329
          %1061 = vst [vmem:[#allocation2 + $0x1640] sm:$0xff] %v329
          %1062 = vst [vmem:[#allocation2 + $0x1648] sm:$0xff] %v329
          %1063 = vst [vmem:[#allocation2 + $0x1650] sm:$0xff] %v329
          %1064 = vst [vmem:[#allocation2 + $0x1658] sm:$0xff] %v329
          %1065 = vst [vmem:[#allocation2 + $0x1660] sm:$0xff] %v329
          %1066 = vst [vmem:[#allocation2 + $0x1668] sm:$0xff] %v329
          %1067 = vst [vmem:[#allocation2 + $0x1670] sm:$0xff] %v329
          %1068 = vst [vmem:[#allocation2 + $0x1678] sm:$0xff] %v329
          %1069 = vst [vmem:[#allocation2 + $0x1680] sm:$0xff] %v330
          %1070 = vst [vmem:[#allocation2 + $0x1688] sm:$0xff] %v330
          %1071 = vst [vmem:[#allocation2 + $0x1690] sm:$0xff] %v330
          %1072 = vst [vmem:[#allocation2 + $0x1698] sm:$0xff] %v330
          %1073 = vst [vmem:[#allocation2 + $0x16a0] sm:$0xff] %v330
          %1074 = vst [vmem:[#allocation2 + $0x16a8] sm:$0xff] %v330
          %1075 = vst [vmem:[#allocation2 + $0x16b0] sm:$0xff] %v330
          %1076 = vst [vmem:[#allocation2 + $0x16b8] sm:$0xff] %v330
          %1077 = vst [vmem:[#allocation2 + $0x16c0] sm:$0xff] %v330
          %1078 = vst [vmem:[#allocation2 + $0x16c8] sm:$0xff] %v330
          %1079 = vst [vmem:[#allocation2 + $0x16d0] sm:$0xff] %v330
          %1080 = vst [vmem:[#allocation2 + $0x16d8] sm:$0xff] %v330
          %1081 = vst [vmem:[#allocation2 + $0x16e0] sm:$0xff] %v330
          %1082 = vst [vmem:[#allocation2 + $0x16e8] sm:$0xff] %v330
          %1083 = vst [vmem:[#allocation2 + $0x16f0] sm:$0xff] %v330
          %1084 = vst [vmem:[#allocation2 + $0x16f8] sm:$0xff] %v330
          %1085 = vst [vmem:[#allocation2 + $0x1700] sm:$0xff] %v331
          %1086 = vst [vmem:[#allocation2 + $0x1708] sm:$0xff] %v331
          %1087 = vst [vmem:[#allocation2 + $0x1710] sm:$0xff] %v331
          %1088 = vst [vmem:[#allocation2 + $0x1718] sm:$0xff] %v331
          %1089 = vst [vmem:[#allocation2 + $0x1720] sm:$0xff] %v331
          %1090 = vst [vmem:[#allocation2 + $0x1728] sm:$0xff] %v331
          %1091 = vst [vmem:[#allocation2 + $0x1730] sm:$0xff] %v331
          %1092 = vst [vmem:[#allocation2 + $0x1738] sm:$0xff] %v331
          %1093 = vst [vmem:[#allocation2 + $0x1740] sm:$0xff] %v331
          %1094 = vst [vmem:[#allocation2 + $0x1748] sm:$0xff] %v331
          %1095 = vst [vmem:[#allocation2 + $0x1750] sm:$0xff] %v331
          %1096 = vst [vmem:[#allocation2 + $0x1758] sm:$0xff] %v331
          %1097 = vst [vmem:[#allocation2 + $0x1760] sm:$0xff] %v331
          %1098 = vst [vmem:[#allocation2 + $0x1768] sm:$0xff] %v331
          %1099 = vst [vmem:[#allocation2 + $0x1770] sm:$0xff] %v331
          %1100 = vst [vmem:[#allocation2 + $0x1778] sm:$0xff] %v331
          %1101 = vst [vmem:[#allocation2 + $0x1780] sm:$0xff] %v332
          %1102 = vst [vmem:[#allocation2 + $0x1788] sm:$0xff] %v332
          %1103 = vst [vmem:[#allocation2 + $0x1790] sm:$0xff] %v332
          %1104 = vst [vmem:[#allocation2 + $0x1798] sm:$0xff] %v332
          %1105 = vst [vmem:[#allocation2 + $0x17a0] sm:$0xff] %v332
          %1106 = vst [vmem:[#allocation2 + $0x17a8] sm:$0xff] %v332
          %1107 = vst [vmem:[#allocation2 + $0x17b0] sm:$0xff] %v332
          %1108 = vst [vmem:[#allocation2 + $0x17b8] sm:$0xff] %v332
          %1109 = vst [vmem:[#allocation2 + $0x17c0] sm:$0xff] %v332
          %1110 = vst [vmem:[#allocation2 + $0x17c8] sm:$0xff] %v332
          %1111 = vst [vmem:[#allocation2 + $0x17d0] sm:$0xff] %v332
          %1112 = vst [vmem:[#allocation2 + $0x17d8] sm:$0xff] %v332
          %1113 = vst [vmem:[#allocation2 + $0x17e0] sm:$0xff] %v332
          %1114 = vst [vmem:[#allocation2 + $0x17e8] sm:$0xff] %v332
          %1115 = vst [vmem:[#allocation2 + $0x17f0] sm:$0xff] %v332
          %1116 = vst [vmem:[#allocation2 + $0x17f8] sm:$0xff] %v332
          %1117 = vst [vmem:[#allocation2 + $0x1800] sm:$0xff] %v333
          %1118 = vst [vmem:[#allocation2 + $0x1808] sm:$0xff] %v333
          %1119 = vst [vmem:[#allocation2 + $0x1810] sm:$0xff] %v333
          %1120 = vst [vmem:[#allocation2 + $0x1818] sm:$0xff] %v333
          %1121 = vst [vmem:[#allocation2 + $0x1820] sm:$0xff] %v333
          %1122 = vst [vmem:[#allocation2 + $0x1828] sm:$0xff] %v333
          %1123 = vst [vmem:[#allocation2 + $0x1830] sm:$0xff] %v333
          %1124 = vst [vmem:[#allocation2 + $0x1838] sm:$0xff] %v333
          %1125 = vst [vmem:[#allocation2 + $0x1840] sm:$0xff] %v333
          %1126 = vst [vmem:[#allocation2 + $0x1848] sm:$0xff] %v333
          %1127 = vst [vmem:[#allocation2 + $0x1850] sm:$0xff] %v333
          %1128 = vst [vmem:[#allocation2 + $0x1858] sm:$0xff] %v333
          %1129 = vst [vmem:[#allocation2 + $0x1860] sm:$0xff] %v333
          %1130 = vst [vmem:[#allocation2 + $0x1868] sm:$0xff] %v333
          %1131 = vst [vmem:[#allocation2 + $0x1870] sm:$0xff] %v333
          %1132 = vst [vmem:[#allocation2 + $0x1878] sm:$0xff] %v333
          %1133 = vst [vmem:[#allocation2 + $0x1880] sm:$0xff] %v334
          %1134 = vst [vmem:[#allocation2 + $0x1888] sm:$0xff] %v334
          %1135 = vst [vmem:[#allocation2 + $0x1890] sm:$0xff] %v334
          %1136 = vst [vmem:[#allocation2 + $0x1898] sm:$0xff] %v334
          %1137 = vst [vmem:[#allocation2 + $0x18a0] sm:$0xff] %v334
          %1138 = vst [vmem:[#allocation2 + $0x18a8] sm:$0xff] %v334
          %1139 = vst [vmem:[#allocation2 + $0x18b0] sm:$0xff] %v334
          %1140 = vst [vmem:[#allocation2 + $0x18b8] sm:$0xff] %v334
          %1141 = vst [vmem:[#allocation2 + $0x18c0] sm:$0xff] %v334
          %1142 = vst [vmem:[#allocation2 + $0x18c8] sm:$0xff] %v334
          %1143 = vst [vmem:[#allocation2 + $0x18d0] sm:$0xff] %v334
          %1144 = vst [vmem:[#allocation2 + $0x18d8] sm:$0xff] %v334
          %1145 = vst [vmem:[#allocation2 + $0x18e0] sm:$0xff] %v334
          %1146 = vst [vmem:[#allocation2 + $0x18e8] sm:$0xff] %v334
          %1147 = vst [vmem:[#allocation2 + $0x18f0] sm:$0xff] %v334
          %1148 = vst [vmem:[#allocation2 + $0x18f8] sm:$0xff] %v334
          %1149 = vst [vmem:[#allocation2 + $0x1900] sm:$0xff] %v335
          %1150 = vst [vmem:[#allocation2 + $0x1908] sm:$0xff] %v335
          %1151 = vst [vmem:[#allocation2 + $0x1910] sm:$0xff] %v335
          %1152 = vst [vmem:[#allocation2 + $0x1918] sm:$0xff] %v335
          %1153 = vst [vmem:[#allocation2 + $0x1920] sm:$0xff] %v335
          %1154 = vst [vmem:[#allocation2 + $0x1928] sm:$0xff] %v335
          %1155 = vst [vmem:[#allocation2 + $0x1930] sm:$0xff] %v335
          %1156 = vst [vmem:[#allocation2 + $0x1938] sm:$0xff] %v335
          %1157 = vst [vmem:[#allocation2 + $0x1940] sm:$0xff] %v335
          %1158 = vst [vmem:[#allocation2 + $0x1948] sm:$0xff] %v335
          %1159 = vst [vmem:[#allocation2 + $0x1950] sm:$0xff] %v335
          %1160 = vst [vmem:[#allocation2 + $0x1958] sm:$0xff] %v335
          %1161 = vst [vmem:[#allocation2 + $0x1960] sm:$0xff] %v335
          %1162 = vst [vmem:[#allocation2 + $0x1968] sm:$0xff] %v335
          %1163 = vst [vmem:[#allocation2 + $0x1970] sm:$0xff] %v335
          %1164 = vst [vmem:[#allocation2 + $0x1978] sm:$0xff] %v335
          %1165 = vst [vmem:[#allocation2 + $0x1980] sm:$0xff] %v336
          %1166 = vst [vmem:[#allocation2 + $0x1988] sm:$0xff] %v336
          %1167 = vst [vmem:[#allocation2 + $0x1990] sm:$0xff] %v336
          %1168 = vst [vmem:[#allocation2 + $0x1998] sm:$0xff] %v336
          %1169 = vst [vmem:[#allocation2 + $0x19a0] sm:$0xff] %v336
          %1170 = vst [vmem:[#allocation2 + $0x19a8] sm:$0xff] %v336
          %1171 = vst [vmem:[#allocation2 + $0x19b0] sm:$0xff] %v336
          %1172 = vst [vmem:[#allocation2 + $0x19b8] sm:$0xff] %v336
          %1173 = vst [vmem:[#allocation2 + $0x19c0] sm:$0xff] %v336
          %1174 = vst [vmem:[#allocation2 + $0x19c8] sm:$0xff] %v336
          %1175 = vst [vmem:[#allocation2 + $0x19d0] sm:$0xff] %v336
          %1176 = vst [vmem:[#allocation2 + $0x19d8] sm:$0xff] %v336
          %1177 = vst [vmem:[#allocation2 + $0x19e0] sm:$0xff] %v336
          %1178 = vst [vmem:[#allocation2 + $0x19e8] sm:$0xff] %v336
          %1179 = vst [vmem:[#allocation2 + $0x19f0] sm:$0xff] %v336
          %1180 = vst [vmem:[#allocation2 + $0x19f8] sm:$0xff] %v336
          %1181 = vst [vmem:[#allocation2 + $0x1a00] sm:$0xff] %v337
          %1182 = vst [vmem:[#allocation2 + $0x1a08] sm:$0xff] %v337
          %1183 = vst [vmem:[#allocation2 + $0x1a10] sm:$0xff] %v337
          %1184 = vst [vmem:[#allocation2 + $0x1a18] sm:$0xff] %v337
          %1185 = vst [vmem:[#allocation2 + $0x1a20] sm:$0xff] %v337
          %1186 = vst [vmem:[#allocation2 + $0x1a28] sm:$0xff] %v337
          %1187 = vst [vmem:[#allocation2 + $0x1a30] sm:$0xff] %v337
          %1188 = vst [vmem:[#allocation2 + $0x1a38] sm:$0xff] %v337
          %1189 = vst [vmem:[#allocation2 + $0x1a40] sm:$0xff] %v337
          %1190 = vst [vmem:[#allocation2 + $0x1a48] sm:$0xff] %v337
          %1191 = vst [vmem:[#allocation2 + $0x1a50] sm:$0xff] %v337
          %1192 = vst [vmem:[#allocation2 + $0x1a58] sm:$0xff] %v337
          %1193 = vst [vmem:[#allocation2 + $0x1a60] sm:$0xff] %v337
          %1194 = vst [vmem:[#allocation2 + $0x1a68] sm:$0xff] %v337
          %1195 = vst [vmem:[#allocation2 + $0x1a70] sm:$0xff] %v337
          %1196 = vst [vmem:[#allocation2 + $0x1a78] sm:$0xff] %v337
          %1197 = vst [vmem:[#allocation2 + $0x1a80] sm:$0xff] %v338
          %1198 = vst [vmem:[#allocation2 + $0x1a88] sm:$0xff] %v338
          %1199 = vst [vmem:[#allocation2 + $0x1a90] sm:$0xff] %v338
          %1200 = vst [vmem:[#allocation2 + $0x1a98] sm:$0xff] %v338
          %1201 = vst [vmem:[#allocation2 + $0x1aa0] sm:$0xff] %v338
          %1202 = vst [vmem:[#allocation2 + $0x1aa8] sm:$0xff] %v338
          %1203 = vst [vmem:[#allocation2 + $0x1ab0] sm:$0xff] %v338
          %1204 = vst [vmem:[#allocation2 + $0x1ab8] sm:$0xff] %v338
          %1205 = vst [vmem:[#allocation2 + $0x1ac0] sm:$0xff] %v338
          %1206 = vst [vmem:[#allocation2 + $0x1ac8] sm:$0xff] %v338
          %1207 = vst [vmem:[#allocation2 + $0x1ad0] sm:$0xff] %v338
          %1208 = vst [vmem:[#allocation2 + $0x1ad8] sm:$0xff] %v338
          %1209 = vst [vmem:[#allocation2 + $0x1ae0] sm:$0xff] %v338
          %1210 = vst [vmem:[#allocation2 + $0x1ae8] sm:$0xff] %v338
          %1211 = vst [vmem:[#allocation2 + $0x1af0] sm:$0xff] %v338
          %1212 = vst [vmem:[#allocation2 + $0x1af8] sm:$0xff] %v338
          %1213 = vst [vmem:[#allocation2 + $0x1b00] sm:$0xff] %v339
          %1214 = vst [vmem:[#allocation2 + $0x1b08] sm:$0xff] %v339
          %1215 = vst [vmem:[#allocation2 + $0x1b10] sm:$0xff] %v339
          %1216 = vst [vmem:[#allocation2 + $0x1b18] sm:$0xff] %v339
          %1217 = vst [vmem:[#allocation2 + $0x1b20] sm:$0xff] %v339
          %1218 = vst [vmem:[#allocation2 + $0x1b28] sm:$0xff] %v339
          %1219 = vst [vmem:[#allocation2 + $0x1b30] sm:$0xff] %v339
          %1220 = vst [vmem:[#allocation2 + $0x1b38] sm:$0xff] %v339
          %1221 = vst [vmem:[#allocation2 + $0x1b40] sm:$0xff] %v339
          %1222 = vst [vmem:[#allocation2 + $0x1b48] sm:$0xff] %v339
          %1223 = vst [vmem:[#allocation2 + $0x1b50] sm:$0xff] %v339
          %1224 = vst [vmem:[#allocation2 + $0x1b58] sm:$0xff] %v339
          %1225 = vst [vmem:[#allocation2 + $0x1b60] sm:$0xff] %v339
          %1226 = vst [vmem:[#allocation2 + $0x1b68] sm:$0xff] %v339
          %1227 = vst [vmem:[#allocation2 + $0x1b70] sm:$0xff] %v339
          %1228 = vst [vmem:[#allocation2 + $0x1b78] sm:$0xff] %v339
          %1229 = vst [vmem:[#allocation2 + $0x1b80] sm:$0xff] %v340
          %1230 = vst [vmem:[#allocation2 + $0x1b88] sm:$0xff] %v340
          %1231 = vst [vmem:[#allocation2 + $0x1b90] sm:$0xff] %v340
          %1232 = vst [vmem:[#allocation2 + $0x1b98] sm:$0xff] %v340
          %1233 = vst [vmem:[#allocation2 + $0x1ba0] sm:$0xff] %v340
          %1234 = vst [vmem:[#allocation2 + $0x1ba8] sm:$0xff] %v340
          %1235 = vst [vmem:[#allocation2 + $0x1bb0] sm:$0xff] %v340
          %1236 = vst [vmem:[#allocation2 + $0x1bb8] sm:$0xff] %v340
          %1237 = vst [vmem:[#allocation2 + $0x1bc0] sm:$0xff] %v340
          %1238 = vst [vmem:[#allocation2 + $0x1bc8] sm:$0xff] %v340
          %1239 = vst [vmem:[#allocation2 + $0x1bd0] sm:$0xff] %v340
          %1240 = vst [vmem:[#allocation2 + $0x1bd8] sm:$0xff] %v340
          %1241 = vst [vmem:[#allocation2 + $0x1be0] sm:$0xff] %v340
          %1242 = vst [vmem:[#allocation2 + $0x1be8] sm:$0xff] %v340
          %1243 = vst [vmem:[#allocation2 + $0x1bf0] sm:$0xff] %v340
          %1244 = vst [vmem:[#allocation2 + $0x1bf8] sm:$0xff] %v340
          %1245 = vst [vmem:[#allocation2 + $0x1c00] sm:$0xff] %v341
          %1246 = vst [vmem:[#allocation2 + $0x1c08] sm:$0xff] %v341
          %1247 = vst [vmem:[#allocation2 + $0x1c10] sm:$0xff] %v341
          %1248 = vst [vmem:[#allocation2 + $0x1c18] sm:$0xff] %v341
          %1249 = vst [vmem:[#allocation2 + $0x1c20] sm:$0xff] %v341
          %1250 = vst [vmem:[#allocation2 + $0x1c28] sm:$0xff] %v341
          %1251 = vst [vmem:[#allocation2 + $0x1c30] sm:$0xff] %v341
          %1252 = vst [vmem:[#allocation2 + $0x1c38] sm:$0xff] %v341
          %1253 = vst [vmem:[#allocation2 + $0x1c40] sm:$0xff] %v341
          %1254 = vst [vmem:[#allocation2 + $0x1c48] sm:$0xff] %v341
          %1255 = vst [vmem:[#allocation2 + $0x1c50] sm:$0xff] %v341
          %1256 = vst [vmem:[#allocation2 + $0x1c58] sm:$0xff] %v341
          %1257 = vst [vmem:[#allocation2 + $0x1c60] sm:$0xff] %v341
          %1258 = vst [vmem:[#allocation2 + $0x1c68] sm:$0xff] %v341
          %1259 = vst [vmem:[#allocation2 + $0x1c70] sm:$0xff] %v341
          %1260 = vst [vmem:[#allocation2 + $0x1c78] sm:$0xff] %v341
          %1261 = vst [vmem:[#allocation2 + $0x1c80] sm:$0xff] %v342
          %1262 = vst [vmem:[#allocation2 + $0x1c88] sm:$0xff] %v342
          %1263 = vst [vmem:[#allocation2 + $0x1c90] sm:$0xff] %v342
          %1264 = vst [vmem:[#allocation2 + $0x1c98] sm:$0xff] %v342
          %1265 = vst [vmem:[#allocation2 + $0x1ca0] sm:$0xff] %v342
          %1266 = vst [vmem:[#allocation2 + $0x1ca8] sm:$0xff] %v342
          %1267 = vst [vmem:[#allocation2 + $0x1cb0] sm:$0xff] %v342
          %1268 = vst [vmem:[#allocation2 + $0x1cb8] sm:$0xff] %v342
          %1269 = vst [vmem:[#allocation2 + $0x1cc0] sm:$0xff] %v342
          %1270 = vst [vmem:[#allocation2 + $0x1cc8] sm:$0xff] %v342
          %1271 = vst [vmem:[#allocation2 + $0x1cd0] sm:$0xff] %v342
          %1272 = vst [vmem:[#allocation2 + $0x1cd8] sm:$0xff] %v342
          %1273 = vst [vmem:[#allocation2 + $0x1ce0] sm:$0xff] %v342
          %1274 = vst [vmem:[#allocation2 + $0x1ce8] sm:$0xff] %v342
          %1275 = vst [vmem:[#allocation2 + $0x1cf0] sm:$0xff] %v342
          %1276 = vst [vmem:[#allocation2 + $0x1cf8] sm:$0xff] %v342
          %1277 = vst [vmem:[#allocation2 + $0x1d00] sm:$0xff] %v343
          %1278 = vst [vmem:[#allocation2 + $0x1d08] sm:$0xff] %v343
          %1279 = vst [vmem:[#allocation2 + $0x1d10] sm:$0xff] %v343
          %1280 = vst [vmem:[#allocation2 + $0x1d18] sm:$0xff] %v343
          %1281 = vst [vmem:[#allocation2 + $0x1d20] sm:$0xff] %v343
          %1282 = vst [vmem:[#allocation2 + $0x1d28] sm:$0xff] %v343
          %1283 = vst [vmem:[#allocation2 + $0x1d30] sm:$0xff] %v343
          %1284 = vst [vmem:[#allocation2 + $0x1d38] sm:$0xff] %v343
          %1285 = vst [vmem:[#allocation2 + $0x1d40] sm:$0xff] %v343
          %1286 = vst [vmem:[#allocation2 + $0x1d48] sm:$0xff] %v343
          %1287 = vst [vmem:[#allocation2 + $0x1d50] sm:$0xff] %v343
          %1288 = vst [vmem:[#allocation2 + $0x1d58] sm:$0xff] %v343
          %1289 = vst [vmem:[#allocation2 + $0x1d60] sm:$0xff] %v343
          %1290 = vst [vmem:[#allocation2 + $0x1d68] sm:$0xff] %v343
          %1291 = vst [vmem:[#allocation2 + $0x1d70] sm:$0xff] %v343
          %1292 = vst [vmem:[#allocation2 + $0x1d78] sm:$0xff] %v343
          %1293 = vst [vmem:[#allocation2 + $0x1d80] sm:$0xff] %v344
          %1294 = vst [vmem:[#allocation2 + $0x1d88] sm:$0xff] %v344
          %1295 = vst [vmem:[#allocation2 + $0x1d90] sm:$0xff] %v344
          %1296 = vst [vmem:[#allocation2 + $0x1d98] sm:$0xff] %v344
          %1297 = vst [vmem:[#allocation2 + $0x1da0] sm:$0xff] %v344
          %1298 = vst [vmem:[#allocation2 + $0x1da8] sm:$0xff] %v344
          %1299 = vst [vmem:[#allocation2 + $0x1db0] sm:$0xff] %v344
          %1300 = vst [vmem:[#allocation2 + $0x1db8] sm:$0xff] %v344
          %1301 = vst [vmem:[#allocation2 + $0x1dc0] sm:$0xff] %v344
          %1302 = vst [vmem:[#allocation2 + $0x1dc8] sm:$0xff] %v344
          %1303 = vst [vmem:[#allocation2 + $0x1dd0] sm:$0xff] %v344
          %1304 = vst [vmem:[#allocation2 + $0x1dd8] sm:$0xff] %v344
          %1305 = vst [vmem:[#allocation2 + $0x1de0] sm:$0xff] %v344
          %1306 = vst [vmem:[#allocation2 + $0x1de8] sm:$0xff] %v344
          %1307 = vst [vmem:[#allocation2 + $0x1df0] sm:$0xff] %v344
          %1308 = vst [vmem:[#allocation2 + $0x1df8] sm:$0xff] %v344
          %1309 = vst [vmem:[#allocation2 + $0x1e00] sm:$0xff] %v345
          %1310 = vst [vmem:[#allocation2 + $0x1e08] sm:$0xff] %v345
          %1311 = vst [vmem:[#allocation2 + $0x1e10] sm:$0xff] %v345
          %1312 = vst [vmem:[#allocation2 + $0x1e18] sm:$0xff] %v345
          %1313 = vst [vmem:[#allocation2 + $0x1e20] sm:$0xff] %v345
          %1314 = vst [vmem:[#allocation2 + $0x1e28] sm:$0xff] %v345
          %1315 = vst [vmem:[#allocation2 + $0x1e30] sm:$0xff] %v345
          %1316 = vst [vmem:[#allocation2 + $0x1e38] sm:$0xff] %v345
          %1317 = vst [vmem:[#allocation2 + $0x1e40] sm:$0xff] %v345
          %1318 = vst [vmem:[#allocation2 + $0x1e48] sm:$0xff] %v345
          %1319 = vst [vmem:[#allocation2 + $0x1e50] sm:$0xff] %v345
          %1320 = vst [vmem:[#allocation2 + $0x1e58] sm:$0xff] %v345
          %1321 = vst [vmem:[#allocation2 + $0x1e60] sm:$0xff] %v345
          %1322 = vst [vmem:[#allocation2 + $0x1e68] sm:$0xff] %v345
          %1323 = vst [vmem:[#allocation2 + $0x1e70] sm:$0xff] %v345
          %1324 = vst [vmem:[#allocation2 + $0x1e78] sm:$0xff] %v345
          %1325 = vst [vmem:[#allocation2 + $0x1e80] sm:$0xff] %v346
          %1326 = vst [vmem:[#allocation2 + $0x1e88] sm:$0xff] %v346
          %1327 = vst [vmem:[#allocation2 + $0x1e90] sm:$0xff] %v346
          %1328 = vst [vmem:[#allocation2 + $0x1e98] sm:$0xff] %v346
          %1329 = vst [vmem:[#allocation2 + $0x1ea0] sm:$0xff] %v346
          %1330 = vst [vmem:[#allocation2 + $0x1ea8] sm:$0xff] %v346
          %1331 = vst [vmem:[#allocation2 + $0x1eb0] sm:$0xff] %v346
          %1332 = vst [vmem:[#allocation2 + $0x1eb8] sm:$0xff] %v346
          %1333 = vst [vmem:[#allocation2 + $0x1ec0] sm:$0xff] %v346
          %1334 = vst [vmem:[#allocation2 + $0x1ec8] sm:$0xff] %v346
          %1335 = vst [vmem:[#allocation2 + $0x1ed0] sm:$0xff] %v346
          %1336 = vst [vmem:[#allocation2 + $0x1ed8] sm:$0xff] %v346
          %1337 = vst [vmem:[#allocation2 + $0x1ee0] sm:$0xff] %v346
          %1338 = vst [vmem:[#allocation2 + $0x1ee8] sm:$0xff] %v346
          %1339 = vst [vmem:[#allocation2 + $0x1ef0] sm:$0xff] %v346
          %1340 = vst [vmem:[#allocation2 + $0x1ef8] sm:$0xff] %v346
          %1341 = vst [vmem:[#allocation2 + $0x1f00] sm:$0xff] %v347
          %1342 = vst [vmem:[#allocation2 + $0x1f08] sm:$0xff] %v347
          %1343 = vst [vmem:[#allocation2 + $0x1f10] sm:$0xff] %v347
          %1344 = vst [vmem:[#allocation2 + $0x1f18] sm:$0xff] %v347
          %1345 = vst [vmem:[#allocation2 + $0x1f20] sm:$0xff] %v347
          %1346 = vst [vmem:[#allocation2 + $0x1f28] sm:$0xff] %v347
          %1347 = vst [vmem:[#allocation2 + $0x1f30] sm:$0xff] %v347
          %1348 = vst [vmem:[#allocation2 + $0x1f38] sm:$0xff] %v347
          %1349 = vst [vmem:[#allocation2 + $0x1f40] sm:$0xff] %v347
          %1350 = vst [vmem:[#allocation2 + $0x1f48] sm:$0xff] %v347
          %1351 = vst [vmem:[#allocation2 + $0x1f50] sm:$0xff] %v347
          %1352 = vst [vmem:[#allocation2 + $0x1f58] sm:$0xff] %v347
          %1353 = vst [vmem:[#allocation2 + $0x1f60] sm:$0xff] %v347
          %1354 = vst [vmem:[#allocation2 + $0x1f68] sm:$0xff] %v347
          %1355 = vst [vmem:[#allocation2 + $0x1f70] sm:$0xff] %v347
          %1356 = vst [vmem:[#allocation2 + $0x1f78] sm:$0xff] %v347
          %1357 = vst [vmem:[#allocation2 + $0x1f80] sm:$0xff] %v348
          %1358 = vst [vmem:[#allocation2 + $0x1f88] sm:$0xff] %v348
          %1359 = vst [vmem:[#allocation2 + $0x1f90] sm:$0xff] %v348
          %1360 = vst [vmem:[#allocation2 + $0x1f98] sm:$0xff] %v348
          %1361 = vst [vmem:[#allocation2 + $0x1fa0] sm:$0xff] %v348
          %1362 = vst [vmem:[#allocation2 + $0x1fa8] sm:$0xff] %v348
          %1363 = vst [vmem:[#allocation2 + $0x1fb0] sm:$0xff] %v348
          %1364 = vst [vmem:[#allocation2 + $0x1fb8] sm:$0xff] %v348
          %1365 = vst [vmem:[#allocation2 + $0x1fc0] sm:$0xff] %v348
          %1366 = vst [vmem:[#allocation2 + $0x1fc8] sm:$0xff] %v348
          %1367 = vst [vmem:[#allocation2 + $0x1fd0] sm:$0xff] %v348
          %1368 = vst [vmem:[#allocation2 + $0x1fd8] sm:$0xff] %v348
          %1369 = vst [vmem:[#allocation2 + $0x1fe0] sm:$0xff] %v348
          %1370 = vst [vmem:[#allocation2 + $0x1fe8] sm:$0xff] %v348
          %1371 = vst [vmem:[#allocation2 + $0x1ff0] sm:$0xff] %v348
          %1372 = vst [vmem:[#allocation2 + $0x1ff8] sm:$0xff] %v348
        $region40: #{tpu_custom_call.1} parent=27 // pred_fallthru
          _
        %v1373 = vld [vmem:[%s172] ss:$2 sm:$0xff]
        %s1374 = scalar_lea.vmem %s172, 16 [#allocation3]
        %v1375 = vld [vmem:[%s1374] ss:$2 sm:$0xff]
        %s1376 = scalar_lea.vmem %s172, 1 [#allocation3]
        %v1377 = vld [vmem:[%s1376] ss:$2 sm:$0xff]
        %s1378 = scalar_lea.vmem %s172, 17 [#allocation3]
        %v1379 = vld [vmem:[%s1378] ss:$2 sm:$0xff]
        %v1380 = vrcp.pop %v1377
        %v1381 = vmul.f32 1.0, %v1380
        %v1382 = vrcp.pop %v1379
        %v1383 = vmul.f32 1.0, %v1382
        %v1384 = vmul.f32 %v1377, %v1377
        %v1385 = vmul.f32 %v1379, %v1379
        %v1386 = vadd.f32 %v1384, 1.0
        %v1387 = vadd.f32 %v1385, 1.0
        %v1388 = vrsqrt.pop %v1386
        %v1389 = vmul.f32 %v1386, %v1388
        %vm1390 = vcmp.eq.f32.partialorder %v1386, inf
        %v1391 = vsel %vm1390, %v1386, %v1389
        %vm1392 = vcmp.eq.f32.partialorder %v1386, 0.0
        %v1393 = vand.u32 %v1386, 2147483648
        %v1394 = vsel %vm1392, %v1393, %v1391
        %v1395 = vrsqrt.pop %v1387
        %v1396 = vmul.f32 %v1387, %v1395
        %vm1397 = vcmp.eq.f32.partialorder %v1387, inf
        %v1398 = vsel %vm1397, %v1387, %v1396
        %vm1399 = vcmp.eq.f32.partialorder %v1387, 0.0
        %v1400 = vand.u32 %v1387, 2147483648
        %v1401 = vsel %vm1399, %v1400, %v1398
        %v1402 = vrcp.pop %v1394
        %v1403 = vmul.f32 1.0, %v1402
        %v1404 = vrcp.pop %v1401
        %v1405 = vmul.f32 1.0, %v1404
        %v1406 = vmul.f32 %v1377, 0.5
        %v1407 = vmul.f32 %v1379, 0.5
        %v1408 = vmul.f32 %v1406, %v1406
        %v1409 = vmul.f32 %v1407, %v1407
        %v1410 = vmul.f32 %v1408, %v1406
        %v1411 = vmul.f32 %v1409, %v1407
        %v1412 = vmul.f32 %v1406, 6.0
        %v1413 = vmul.f32 %v1407, 6.0
        %v1414 = vsub.f32 15.0, %v1412
        %v1415 = vsub.f32 15.0, %v1413
        %v1416 = vmul.f32 %v1406, %v1414
        %v1417 = vmul.f32 %v1407, %v1415
        %v1418 = vadd.f32 %v1416, -10.0
        %v1419 = vadd.f32 %v1417, -10.0
        %v1420 = vmul.f32 %v1410, %v1418
        %v1421 = vmul.f32 %v1411, %v1419
        %v1422 = vadd.f32 %v1420, 1.0
        %v1423 = vadd.f32 %v1421, 1.0
        %vm1424 = vcmp.lt.f32.partialorder %v1406, 1.0
        %vm1425 = vcmp.lt.f32.partialorder %v1407, 1.0
        %v1426 = vsel %vm1424, %v1422, 0.0
        %v1427 = vsel %vm1425, %v1423, 0.0
        %v1428 = vmul.f32 %v1377, 0.0625
        %v1429 = vmul.f32 %v1379, 0.0625
        %v1430 = vadd.f32 %v1381, %v1428
        %v1431 = vadd.f32 %v1383, %v1429
        %v1432 = vsub.f32 %v1430, 0.5
        %v1433 = vsub.f32 %v1431, 0.5
        %v1434 = vmul.f32 %v1394, 0.0625
        %v1435 = vmul.f32 %v1401, 0.0625
        %v1436 = vadd.f32 %v1403, %v1434
        %v1437 = vadd.f32 %v1405, %v1435
        %v1438 = vsub.f32 %v1436, 0.5
        %v1439 = vsub.f32 %v1437, 0.5
        %v1440 = vsub.f32 %v1438, %v1432
        %v1441 = vsub.f32 %v1439, %v1433
        %v1442 = vmul.f32 %v1426, %v1440
        %v1443 = vmul.f32 %v1427, %v1441
        %v1444 = vadd.f32 %v1432, %v1442
        %v1445 = vadd.f32 %v1433, %v1443
        %v1446 = vmul.f32 %v1373, %v1444
        %v1447 = vmul.f32 %v1375, %v1445
        %vm1448 = vcmp.le.f32.partialorder %v1377, 4.0
        %vm1449 = vcmp.le.f32.partialorder %v1379, 4.0
        %v1450 = vsel %vm1448, %v1446, 0.0
        %v1451 = vsel %vm1449, %v1447, 0.0
        %v1452 = vld [vmem:[%s181] sm:$0xff]
        %v1453 = vld [vmem:[%s181 + $0x8] sm:$0xff]
        %s1454 = smul.u32 %s23, 512
        %v1455 = vstv %s1454
        %v1456 = vsub.s32 %v1452, %v1455
        %v1457 = vsub.s32 %v1453, %v1455
        %v1458 = vld [vmem:[#allocation2] sm:$0xff]
        %v1459 = vld [vmem:[#allocation2 + $0x8] sm:$0xff]
        %v1460 = vld [vmem:[#allocation2 + $0x10] sm:$0xff]
        %v1461 = vld [vmem:[#allocation2 + $0x18] sm:$0xff]
        %v1462 = vld [vmem:[#allocation2 + $0x20] sm:$0xff]
        %v1463 = vld [vmem:[#allocation2 + $0x28] sm:$0xff]
        %v1464 = vld [vmem:[#allocation2 + $0x30] sm:$0xff]
        %v1465 = vld [vmem:[#allocation2 + $0x38] sm:$0xff]
        %v1466 = vld [vmem:[#allocation2 + $0x40] sm:$0xff]
        %v1467 = vld [vmem:[#allocation2 + $0x48] sm:$0xff]
        %v1468 = vld [vmem:[#allocation2 + $0x50] sm:$0xff]
        %v1469 = vld [vmem:[#allocation2 + $0x58] sm:$0xff]
        %v1470 = vld [vmem:[#allocation2 + $0x60] sm:$0xff]
        %v1471 = vld [vmem:[#allocation2 + $0x68] sm:$0xff]
        %v1472 = vld [vmem:[#allocation2 + $0x70] sm:$0xff]
        %v1473 = vld [vmem:[#allocation2 + $0x78] sm:$0xff]
        %v1474 = vld [vmem:[#allocation2 + $0x80] sm:$0xff]
        %v1475 = vld [vmem:[#allocation2 + $0x88] sm:$0xff]
        %v1476 = vld [vmem:[#allocation2 + $0x90] sm:$0xff]
        %v1477 = vld [vmem:[#allocation2 + $0x98] sm:$0xff]
        %v1478 = vld [vmem:[#allocation2 + $0xa0] sm:$0xff]
        %v1479 = vld [vmem:[#allocation2 + $0xa8] sm:$0xff]
        %v1480 = vld [vmem:[#allocation2 + $0xb0] sm:$0xff]
        %v1481 = vld [vmem:[#allocation2 + $0xb8] sm:$0xff]
        %v1482 = vld [vmem:[#allocation2 + $0xc0] sm:$0xff]
        %v1483 = vld [vmem:[#allocation2 + $0xc8] sm:$0xff]
        %v1484 = vld [vmem:[#allocation2 + $0xd0] sm:$0xff]
        %v1485 = vld [vmem:[#allocation2 + $0xd8] sm:$0xff]
        %v1486 = vld [vmem:[#allocation2 + $0xe0] sm:$0xff]
        %v1487 = vld [vmem:[#allocation2 + $0xe8] sm:$0xff]
        %v1488 = vld [vmem:[#allocation2 + $0xf0] sm:$0xff]
        %v1489 = vld [vmem:[#allocation2 + $0xf8] sm:$0xff]
        %v1490 = vld [vmem:[#allocation2 + $0x100] sm:$0xff]
        %v1491 = vld [vmem:[#allocation2 + $0x108] sm:$0xff]
        %v1492 = vld [vmem:[#allocation2 + $0x110] sm:$0xff]
        %v1493 = vld [vmem:[#allocation2 + $0x118] sm:$0xff]
        %v1494 = vld [vmem:[#allocation2 + $0x120] sm:$0xff]
        %v1495 = vld [vmem:[#allocation2 + $0x128] sm:$0xff]
        %v1496 = vld [vmem:[#allocation2 + $0x130] sm:$0xff]
        %v1497 = vld [vmem:[#allocation2 + $0x138] sm:$0xff]
        %v1498 = vld [vmem:[#allocation2 + $0x140] sm:$0xff]
        %v1499 = vld [vmem:[#allocation2 + $0x148] sm:$0xff]
        %v1500 = vld [vmem:[#allocation2 + $0x150] sm:$0xff]
        %v1501 = vld [vmem:[#allocation2 + $0x158] sm:$0xff]
        %v1502 = vld [vmem:[#allocation2 + $0x160] sm:$0xff]
        %v1503 = vld [vmem:[#allocation2 + $0x168] sm:$0xff]
        %v1504 = vld [vmem:[#allocation2 + $0x170] sm:$0xff]
        %v1505 = vld [vmem:[#allocation2 + $0x178] sm:$0xff]
        %v1506 = vld [vmem:[#allocation2 + $0x180] sm:$0xff]
        %v1507 = vld [vmem:[#allocation2 + $0x188] sm:$0xff]
        %v1508 = vld [vmem:[#allocation2 + $0x190] sm:$0xff]
        %v1509 = vld [vmem:[#allocation2 + $0x198] sm:$0xff]
        %v1510 = vld [vmem:[#allocation2 + $0x1a0] sm:$0xff]
        %v1511 = vld [vmem:[#allocation2 + $0x1a8] sm:$0xff]
        %v1512 = vld [vmem:[#allocation2 + $0x1b0] sm:$0xff]
        %v1513 = vld [vmem:[#allocation2 + $0x1b8] sm:$0xff]
        %v1514 = vld [vmem:[#allocation2 + $0x1c0] sm:$0xff]
        %v1515 = vld [vmem:[#allocation2 + $0x1c8] sm:$0xff]
        %v1516 = vld [vmem:[#allocation2 + $0x1d0] sm:$0xff]
        %v1517 = vld [vmem:[#allocation2 + $0x1d8] sm:$0xff]
        %v1518 = vld [vmem:[#allocation2 + $0x1e0] sm:$0xff]
        %v1519 = vld [vmem:[#allocation2 + $0x1e8] sm:$0xff]
        %v1520 = vld [vmem:[#allocation2 + $0x1f0] sm:$0xff]
        %v1521 = vld [vmem:[#allocation2 + $0x1f8] sm:$0xff]
        %v1522 = vld [vmem:[#allocation2 + $0x200] sm:$0xff]
        %v1523 = vld [vmem:[#allocation2 + $0x208] sm:$0xff]
        %v1524 = vld [vmem:[#allocation2 + $0x210] sm:$0xff]
        %v1525 = vld [vmem:[#allocation2 + $0x218] sm:$0xff]
        %v1526 = vld [vmem:[#allocation2 + $0x220] sm:$0xff]
        %v1527 = vld [vmem:[#allocation2 + $0x228] sm:$0xff]
        %v1528 = vld [vmem:[#allocation2 + $0x230] sm:$0xff]
        %v1529 = vld [vmem:[#allocation2 + $0x238] sm:$0xff]
        %v1530 = vld [vmem:[#allocation2 + $0x240] sm:$0xff]
        %v1531 = vld [vmem:[#allocation2 + $0x248] sm:$0xff]
        %v1532 = vld [vmem:[#allocation2 + $0x250] sm:$0xff]
        %v1533 = vld [vmem:[#allocation2 + $0x258] sm:$0xff]
        %v1534 = vld [vmem:[#allocation2 + $0x260] sm:$0xff]
        %v1535 = vld [vmem:[#allocation2 + $0x268] sm:$0xff]
        %v1536 = vld [vmem:[#allocation2 + $0x270] sm:$0xff]
        %v1537 = vld [vmem:[#allocation2 + $0x278] sm:$0xff]
        %v1538 = vld [vmem:[#allocation2 + $0x280] sm:$0xff]
        %v1539 = vld [vmem:[#allocation2 + $0x288] sm:$0xff]
        %v1540 = vld [vmem:[#allocation2 + $0x290] sm:$0xff]
        %v1541 = vld [vmem:[#allocation2 + $0x298] sm:$0xff]
        %v1542 = vld [vmem:[#allocation2 + $0x2a0] sm:$0xff]
        %v1543 = vld [vmem:[#allocation2 + $0x2a8] sm:$0xff]
        %v1544 = vld [vmem:[#allocation2 + $0x2b0] sm:$0xff]
        %v1545 = vld [vmem:[#allocation2 + $0x2b8] sm:$0xff]
        %v1546 = vld [vmem:[#allocation2 + $0x2c0] sm:$0xff]
        %v1547 = vld [vmem:[#allocation2 + $0x2c8] sm:$0xff]
        %v1548 = vld [vmem:[#allocation2 + $0x2d0] sm:$0xff]
        %v1549 = vld [vmem:[#allocation2 + $0x2d8] sm:$0xff]
        %v1550 = vld [vmem:[#allocation2 + $0x2e0] sm:$0xff]
        %v1551 = vld [vmem:[#allocation2 + $0x2e8] sm:$0xff]
        %v1552 = vld [vmem:[#allocation2 + $0x2f0] sm:$0xff]
        %v1553 = vld [vmem:[#allocation2 + $0x2f8] sm:$0xff]
        %v1554 = vld [vmem:[#allocation2 + $0x300] sm:$0xff]
        %v1555 = vld [vmem:[#allocation2 + $0x308] sm:$0xff]
        %v1556 = vld [vmem:[#allocation2 + $0x310] sm:$0xff]
        %v1557 = vld [vmem:[#allocation2 + $0x318] sm:$0xff]
        %v1558 = vld [vmem:[#allocation2 + $0x320] sm:$0xff]
        %v1559 = vld [vmem:[#allocation2 + $0x328] sm:$0xff]
        %v1560 = vld [vmem:[#allocation2 + $0x330] sm:$0xff]
        %v1561 = vld [vmem:[#allocation2 + $0x338] sm:$0xff]
        %v1562 = vld [vmem:[#allocation2 + $0x340] sm:$0xff]
        %v1563 = vld [vmem:[#allocation2 + $0x348] sm:$0xff]
        %v1564 = vld [vmem:[#allocation2 + $0x350] sm:$0xff]
        %v1565 = vld [vmem:[#allocation2 + $0x358] sm:$0xff]
        %v1566 = vld [vmem:[#allocation2 + $0x360] sm:$0xff]
        %v1567 = vld [vmem:[#allocation2 + $0x368] sm:$0xff]
        %v1568 = vld [vmem:[#allocation2 + $0x370] sm:$0xff]
        %v1569 = vld [vmem:[#allocation2 + $0x378] sm:$0xff]
        %v1570 = vld [vmem:[#allocation2 + $0x380] sm:$0xff]
        %v1571 = vld [vmem:[#allocation2 + $0x388] sm:$0xff]
        %v1572 = vld [vmem:[#allocation2 + $0x390] sm:$0xff]
        %v1573 = vld [vmem:[#allocation2 + $0x398] sm:$0xff]
        %v1574 = vld [vmem:[#allocation2 + $0x3a0] sm:$0xff]
        %v1575 = vld [vmem:[#allocation2 + $0x3a8] sm:$0xff]
        %v1576 = vld [vmem:[#allocation2 + $0x3b0] sm:$0xff]
        %v1577 = vld [vmem:[#allocation2 + $0x3b8] sm:$0xff]
        %v1578 = vld [vmem:[#allocation2 + $0x3c0] sm:$0xff]
        %v1579 = vld [vmem:[#allocation2 + $0x3c8] sm:$0xff]
        %v1580 = vld [vmem:[#allocation2 + $0x3d0] sm:$0xff]
        %v1581 = vld [vmem:[#allocation2 + $0x3d8] sm:$0xff]
        %v1582 = vld [vmem:[#allocation2 + $0x3e0] sm:$0xff]
        %v1583 = vld [vmem:[#allocation2 + $0x3e8] sm:$0xff]
        %v1584 = vld [vmem:[#allocation2 + $0x3f0] sm:$0xff]
        %v1585 = vld [vmem:[#allocation2 + $0x3f8] sm:$0xff]
        %v1586 = vld [vmem:[#allocation2 + $0x400] sm:$0xff]
        %v1587 = vld [vmem:[#allocation2 + $0x408] sm:$0xff]
        %v1588 = vld [vmem:[#allocation2 + $0x410] sm:$0xff]
        %v1589 = vld [vmem:[#allocation2 + $0x418] sm:$0xff]
        %v1590 = vld [vmem:[#allocation2 + $0x420] sm:$0xff]
        %v1591 = vld [vmem:[#allocation2 + $0x428] sm:$0xff]
        %v1592 = vld [vmem:[#allocation2 + $0x430] sm:$0xff]
        %v1593 = vld [vmem:[#allocation2 + $0x438] sm:$0xff]
        %v1594 = vld [vmem:[#allocation2 + $0x440] sm:$0xff]
        %v1595 = vld [vmem:[#allocation2 + $0x448] sm:$0xff]
        %v1596 = vld [vmem:[#allocation2 + $0x450] sm:$0xff]
        %v1597 = vld [vmem:[#allocation2 + $0x458] sm:$0xff]
        %v1598 = vld [vmem:[#allocation2 + $0x460] sm:$0xff]
        %v1599 = vld [vmem:[#allocation2 + $0x468] sm:$0xff]
        %v1600 = vld [vmem:[#allocation2 + $0x470] sm:$0xff]
        %v1601 = vld [vmem:[#allocation2 + $0x478] sm:$0xff]
        %v1602 = vld [vmem:[#allocation2 + $0x480] sm:$0xff]
        %v1603 = vld [vmem:[#allocation2 + $0x488] sm:$0xff]
        %v1604 = vld [vmem:[#allocation2 + $0x490] sm:$0xff]
        %v1605 = vld [vmem:[#allocation2 + $0x498] sm:$0xff]
        %v1606 = vld [vmem:[#allocation2 + $0x4a0] sm:$0xff]
        %v1607 = vld [vmem:[#allocation2 + $0x4a8] sm:$0xff]
        %v1608 = vld [vmem:[#allocation2 + $0x4b0] sm:$0xff]
        %v1609 = vld [vmem:[#allocation2 + $0x4b8] sm:$0xff]
        %v1610 = vld [vmem:[#allocation2 + $0x4c0] sm:$0xff]
        %v1611 = vld [vmem:[#allocation2 + $0x4c8] sm:$0xff]
        %v1612 = vld [vmem:[#allocation2 + $0x4d0] sm:$0xff]
        %v1613 = vld [vmem:[#allocation2 + $0x4d8] sm:$0xff]
        %v1614 = vld [vmem:[#allocation2 + $0x4e0] sm:$0xff]
        %v1615 = vld [vmem:[#allocation2 + $0x4e8] sm:$0xff]
        %v1616 = vld [vmem:[#allocation2 + $0x4f0] sm:$0xff]
        %v1617 = vld [vmem:[#allocation2 + $0x4f8] sm:$0xff]
        %v1618 = vld [vmem:[#allocation2 + $0x500] sm:$0xff]
        %v1619 = vld [vmem:[#allocation2 + $0x508] sm:$0xff]
        %v1620 = vld [vmem:[#allocation2 + $0x510] sm:$0xff]
        %v1621 = vld [vmem:[#allocation2 + $0x518] sm:$0xff]
        %v1622 = vld [vmem:[#allocation2 + $0x520] sm:$0xff]
        %v1623 = vld [vmem:[#allocation2 + $0x528] sm:$0xff]
        %v1624 = vld [vmem:[#allocation2 + $0x530] sm:$0xff]
        %v1625 = vld [vmem:[#allocation2 + $0x538] sm:$0xff]
        %v1626 = vld [vmem:[#allocation2 + $0x540] sm:$0xff]
        %v1627 = vld [vmem:[#allocation2 + $0x548] sm:$0xff]
        %v1628 = vld [vmem:[#allocation2 + $0x550] sm:$0xff]
        %v1629 = vld [vmem:[#allocation2 + $0x558] sm:$0xff]
        %v1630 = vld [vmem:[#allocation2 + $0x560] sm:$0xff]
        %v1631 = vld [vmem:[#allocation2 + $0x568] sm:$0xff]
        %v1632 = vld [vmem:[#allocation2 + $0x570] sm:$0xff]
        %v1633 = vld [vmem:[#allocation2 + $0x578] sm:$0xff]
        %v1634 = vld [vmem:[#allocation2 + $0x580] sm:$0xff]
        %v1635 = vld [vmem:[#allocation2 + $0x588] sm:$0xff]
        %v1636 = vld [vmem:[#allocation2 + $0x590] sm:$0xff]
        %v1637 = vld [vmem:[#allocation2 + $0x598] sm:$0xff]
        %v1638 = vld [vmem:[#allocation2 + $0x5a0] sm:$0xff]
        %v1639 = vld [vmem:[#allocation2 + $0x5a8] sm:$0xff]
        %v1640 = vld [vmem:[#allocation2 + $0x5b0] sm:$0xff]
        %v1641 = vld [vmem:[#allocation2 + $0x5b8] sm:$0xff]
        %v1642 = vld [vmem:[#allocation2 + $0x5c0] sm:$0xff]
        %v1643 = vld [vmem:[#allocation2 + $0x5c8] sm:$0xff]
        %v1644 = vld [vmem:[#allocation2 + $0x5d0] sm:$0xff]
        %v1645 = vld [vmem:[#allocation2 + $0x5d8] sm:$0xff]
        %v1646 = vld [vmem:[#allocation2 + $0x5e0] sm:$0xff]
        %v1647 = vld [vmem:[#allocation2 + $0x5e8] sm:$0xff]
        %v1648 = vld [vmem:[#allocation2 + $0x5f0] sm:$0xff]
        %v1649 = vld [vmem:[#allocation2 + $0x5f8] sm:$0xff]
        %v1650 = vld [vmem:[#allocation2 + $0x600] sm:$0xff]
        %v1651 = vld [vmem:[#allocation2 + $0x608] sm:$0xff]
        %v1652 = vld [vmem:[#allocation2 + $0x610] sm:$0xff]
        %v1653 = vld [vmem:[#allocation2 + $0x618] sm:$0xff]
        %v1654 = vld [vmem:[#allocation2 + $0x620] sm:$0xff]
        %v1655 = vld [vmem:[#allocation2 + $0x628] sm:$0xff]
        %v1656 = vld [vmem:[#allocation2 + $0x630] sm:$0xff]
        %v1657 = vld [vmem:[#allocation2 + $0x638] sm:$0xff]
        %v1658 = vld [vmem:[#allocation2 + $0x640] sm:$0xff]
        %v1659 = vld [vmem:[#allocation2 + $0x648] sm:$0xff]
        %v1660 = vld [vmem:[#allocation2 + $0x650] sm:$0xff]
        %v1661 = vld [vmem:[#allocation2 + $0x658] sm:$0xff]
        %v1662 = vld [vmem:[#allocation2 + $0x660] sm:$0xff]
        %v1663 = vld [vmem:[#allocation2 + $0x668] sm:$0xff]
        %v1664 = vld [vmem:[#allocation2 + $0x670] sm:$0xff]
        %v1665 = vld [vmem:[#allocation2 + $0x678] sm:$0xff]
        %v1666 = vld [vmem:[#allocation2 + $0x680] sm:$0xff]
        %v1667 = vld [vmem:[#allocation2 + $0x688] sm:$0xff]
        %v1668 = vld [vmem:[#allocation2 + $0x690] sm:$0xff]
        %v1669 = vld [vmem:[#allocation2 + $0x698] sm:$0xff]
        %v1670 = vld [vmem:[#allocation2 + $0x6a0] sm:$0xff]
        %v1671 = vld [vmem:[#allocation2 + $0x6a8] sm:$0xff]
        %v1672 = vld [vmem:[#allocation2 + $0x6b0] sm:$0xff]
        %v1673 = vld [vmem:[#allocation2 + $0x6b8] sm:$0xff]
        %v1674 = vld [vmem:[#allocation2 + $0x6c0] sm:$0xff]
        %v1675 = vld [vmem:[#allocation2 + $0x6c8] sm:$0xff]
        %v1676 = vld [vmem:[#allocation2 + $0x6d0] sm:$0xff]
        %v1677 = vld [vmem:[#allocation2 + $0x6d8] sm:$0xff]
        %v1678 = vld [vmem:[#allocation2 + $0x6e0] sm:$0xff]
        %v1679 = vld [vmem:[#allocation2 + $0x6e8] sm:$0xff]
        %v1680 = vld [vmem:[#allocation2 + $0x6f0] sm:$0xff]
        %v1681 = vld [vmem:[#allocation2 + $0x6f8] sm:$0xff]
        %v1682 = vld [vmem:[#allocation2 + $0x700] sm:$0xff]
        %v1683 = vld [vmem:[#allocation2 + $0x708] sm:$0xff]
        %v1684 = vld [vmem:[#allocation2 + $0x710] sm:$0xff]
        %v1685 = vld [vmem:[#allocation2 + $0x718] sm:$0xff]
        %v1686 = vld [vmem:[#allocation2 + $0x720] sm:$0xff]
        %v1687 = vld [vmem:[#allocation2 + $0x728] sm:$0xff]
        %v1688 = vld [vmem:[#allocation2 + $0x730] sm:$0xff]
        %v1689 = vld [vmem:[#allocation2 + $0x738] sm:$0xff]
        %v1690 = vld [vmem:[#allocation2 + $0x740] sm:$0xff]
        %v1691 = vld [vmem:[#allocation2 + $0x748] sm:$0xff]
        %v1692 = vld [vmem:[#allocation2 + $0x750] sm:$0xff]
        %v1693 = vld [vmem:[#allocation2 + $0x758] sm:$0xff]
        %v1694 = vld [vmem:[#allocation2 + $0x760] sm:$0xff]
        %v1695 = vld [vmem:[#allocation2 + $0x768] sm:$0xff]
        %v1696 = vld [vmem:[#allocation2 + $0x770] sm:$0xff]
        %v1697 = vld [vmem:[#allocation2 + $0x778] sm:$0xff]
        %v1698 = vld [vmem:[#allocation2 + $0x780] sm:$0xff]
        %v1699 = vld [vmem:[#allocation2 + $0x788] sm:$0xff]
        %v1700 = vld [vmem:[#allocation2 + $0x790] sm:$0xff]
        %v1701 = vld [vmem:[#allocation2 + $0x798] sm:$0xff]
        %v1702 = vld [vmem:[#allocation2 + $0x7a0] sm:$0xff]
        %v1703 = vld [vmem:[#allocation2 + $0x7a8] sm:$0xff]
        %v1704 = vld [vmem:[#allocation2 + $0x7b0] sm:$0xff]
        %v1705 = vld [vmem:[#allocation2 + $0x7b8] sm:$0xff]
        %v1706 = vld [vmem:[#allocation2 + $0x7c0] sm:$0xff]
        %v1707 = vld [vmem:[#allocation2 + $0x7c8] sm:$0xff]
        %v1708 = vld [vmem:[#allocation2 + $0x7d0] sm:$0xff]
        %v1709 = vld [vmem:[#allocation2 + $0x7d8] sm:$0xff]
        %v1710 = vld [vmem:[#allocation2 + $0x7e0] sm:$0xff]
        %v1711 = vld [vmem:[#allocation2 + $0x7e8] sm:$0xff]
        %v1712 = vld [vmem:[#allocation2 + $0x7f0] sm:$0xff]
        %v1713 = vld [vmem:[#allocation2 + $0x7f8] sm:$0xff]
        %v1714 = vld [vmem:[#allocation2 + $0x800] sm:$0xff]
        %v1715 = vld [vmem:[#allocation2 + $0x808] sm:$0xff]
        %v1716 = vld [vmem:[#allocation2 + $0x810] sm:$0xff]
        %v1717 = vld [vmem:[#allocation2 + $0x818] sm:$0xff]
        %v1718 = vld [vmem:[#allocation2 + $0x820] sm:$0xff]
        %v1719 = vld [vmem:[#allocation2 + $0x828] sm:$0xff]
        %v1720 = vld [vmem:[#allocation2 + $0x830] sm:$0xff]
        %v1721 = vld [vmem:[#allocation2 + $0x838] sm:$0xff]
        %v1722 = vld [vmem:[#allocation2 + $0x840] sm:$0xff]
        %v1723 = vld [vmem:[#allocation2 + $0x848] sm:$0xff]
        %v1724 = vld [vmem:[#allocation2 + $0x850] sm:$0xff]
        %v1725 = vld [vmem:[#allocation2 + $0x858] sm:$0xff]
        %v1726 = vld [vmem:[#allocation2 + $0x860] sm:$0xff]
        %v1727 = vld [vmem:[#allocation2 + $0x868] sm:$0xff]
        %v1728 = vld [vmem:[#allocation2 + $0x870] sm:$0xff]
        %v1729 = vld [vmem:[#allocation2 + $0x878] sm:$0xff]
        %v1730 = vld [vmem:[#allocation2 + $0x880] sm:$0xff]
        %v1731 = vld [vmem:[#allocation2 + $0x888] sm:$0xff]
        %v1732 = vld [vmem:[#allocation2 + $0x890] sm:$0xff]
        %v1733 = vld [vmem:[#allocation2 + $0x898] sm:$0xff]
        %v1734 = vld [vmem:[#allocation2 + $0x8a0] sm:$0xff]
        %v1735 = vld [vmem:[#allocation2 + $0x8a8] sm:$0xff]
        %v1736 = vld [vmem:[#allocation2 + $0x8b0] sm:$0xff]
        %v1737 = vld [vmem:[#allocation2 + $0x8b8] sm:$0xff]
        %v1738 = vld [vmem:[#allocation2 + $0x8c0] sm:$0xff]
        %v1739 = vld [vmem:[#allocation2 + $0x8c8] sm:$0xff]
        %v1740 = vld [vmem:[#allocation2 + $0x8d0] sm:$0xff]
        %v1741 = vld [vmem:[#allocation2 + $0x8d8] sm:$0xff]
        %v1742 = vld [vmem:[#allocation2 + $0x8e0] sm:$0xff]
        %v1743 = vld [vmem:[#allocation2 + $0x8e8] sm:$0xff]
        %v1744 = vld [vmem:[#allocation2 + $0x8f0] sm:$0xff]
        %v1745 = vld [vmem:[#allocation2 + $0x8f8] sm:$0xff]
        %v1746 = vld [vmem:[#allocation2 + $0x900] sm:$0xff]
        %v1747 = vld [vmem:[#allocation2 + $0x908] sm:$0xff]
        %v1748 = vld [vmem:[#allocation2 + $0x910] sm:$0xff]
        %v1749 = vld [vmem:[#allocation2 + $0x918] sm:$0xff]
        %v1750 = vld [vmem:[#allocation2 + $0x920] sm:$0xff]
        %v1751 = vld [vmem:[#allocation2 + $0x928] sm:$0xff]
        %v1752 = vld [vmem:[#allocation2 + $0x930] sm:$0xff]
        %v1753 = vld [vmem:[#allocation2 + $0x938] sm:$0xff]
        %v1754 = vld [vmem:[#allocation2 + $0x940] sm:$0xff]
        %v1755 = vld [vmem:[#allocation2 + $0x948] sm:$0xff]
        %v1756 = vld [vmem:[#allocation2 + $0x950] sm:$0xff]
        %v1757 = vld [vmem:[#allocation2 + $0x958] sm:$0xff]
        %v1758 = vld [vmem:[#allocation2 + $0x960] sm:$0xff]
        %v1759 = vld [vmem:[#allocation2 + $0x968] sm:$0xff]
        %v1760 = vld [vmem:[#allocation2 + $0x970] sm:$0xff]
        %v1761 = vld [vmem:[#allocation2 + $0x978] sm:$0xff]
        %v1762 = vld [vmem:[#allocation2 + $0x980] sm:$0xff]
        %v1763 = vld [vmem:[#allocation2 + $0x988] sm:$0xff]
        %v1764 = vld [vmem:[#allocation2 + $0x990] sm:$0xff]
        %v1765 = vld [vmem:[#allocation2 + $0x998] sm:$0xff]
        %v1766 = vld [vmem:[#allocation2 + $0x9a0] sm:$0xff]
        %v1767 = vld [vmem:[#allocation2 + $0x9a8] sm:$0xff]
        %v1768 = vld [vmem:[#allocation2 + $0x9b0] sm:$0xff]
        %v1769 = vld [vmem:[#allocation2 + $0x9b8] sm:$0xff]
        %v1770 = vld [vmem:[#allocation2 + $0x9c0] sm:$0xff]
        %v1771 = vld [vmem:[#allocation2 + $0x9c8] sm:$0xff]
        %v1772 = vld [vmem:[#allocation2 + $0x9d0] sm:$0xff]
        %v1773 = vld [vmem:[#allocation2 + $0x9d8] sm:$0xff]
        %v1774 = vld [vmem:[#allocation2 + $0x9e0] sm:$0xff]
        %v1775 = vld [vmem:[#allocation2 + $0x9e8] sm:$0xff]
        %v1776 = vld [vmem:[#allocation2 + $0x9f0] sm:$0xff]
        %v1777 = vld [vmem:[#allocation2 + $0x9f8] sm:$0xff]
        %v1778 = vld [vmem:[#allocation2 + $0xa00] sm:$0xff]
        %v1779 = vld [vmem:[#allocation2 + $0xa08] sm:$0xff]
        %v1780 = vld [vmem:[#allocation2 + $0xa10] sm:$0xff]
        %v1781 = vld [vmem:[#allocation2 + $0xa18] sm:$0xff]
        %v1782 = vld [vmem:[#allocation2 + $0xa20] sm:$0xff]
        %v1783 = vld [vmem:[#allocation2 + $0xa28] sm:$0xff]
        %v1784 = vld [vmem:[#allocation2 + $0xa30] sm:$0xff]
        %v1785 = vld [vmem:[#allocation2 + $0xa38] sm:$0xff]
        %v1786 = vld [vmem:[#allocation2 + $0xa40] sm:$0xff]
        %v1787 = vld [vmem:[#allocation2 + $0xa48] sm:$0xff]
        %v1788 = vld [vmem:[#allocation2 + $0xa50] sm:$0xff]
        %v1789 = vld [vmem:[#allocation2 + $0xa58] sm:$0xff]
        %v1790 = vld [vmem:[#allocation2 + $0xa60] sm:$0xff]
        %v1791 = vld [vmem:[#allocation2 + $0xa68] sm:$0xff]
        %v1792 = vld [vmem:[#allocation2 + $0xa70] sm:$0xff]
        %v1793 = vld [vmem:[#allocation2 + $0xa78] sm:$0xff]
        %v1794 = vld [vmem:[#allocation2 + $0xa80] sm:$0xff]
        %v1795 = vld [vmem:[#allocation2 + $0xa88] sm:$0xff]
        %v1796 = vld [vmem:[#allocation2 + $0xa90] sm:$0xff]
        %v1797 = vld [vmem:[#allocation2 + $0xa98] sm:$0xff]
        %v1798 = vld [vmem:[#allocation2 + $0xaa0] sm:$0xff]
        %v1799 = vld [vmem:[#allocation2 + $0xaa8] sm:$0xff]
        %v1800 = vld [vmem:[#allocation2 + $0xab0] sm:$0xff]
        %v1801 = vld [vmem:[#allocation2 + $0xab8] sm:$0xff]
        %v1802 = vld [vmem:[#allocation2 + $0xac0] sm:$0xff]
        %v1803 = vld [vmem:[#allocation2 + $0xac8] sm:$0xff]
        %v1804 = vld [vmem:[#allocation2 + $0xad0] sm:$0xff]
        %v1805 = vld [vmem:[#allocation2 + $0xad8] sm:$0xff]
        %v1806 = vld [vmem:[#allocation2 + $0xae0] sm:$0xff]
        %v1807 = vld [vmem:[#allocation2 + $0xae8] sm:$0xff]
        %v1808 = vld [vmem:[#allocation2 + $0xaf0] sm:$0xff]
        %v1809 = vld [vmem:[#allocation2 + $0xaf8] sm:$0xff]
        %v1810 = vld [vmem:[#allocation2 + $0xb00] sm:$0xff]
        %v1811 = vld [vmem:[#allocation2 + $0xb08] sm:$0xff]
        %v1812 = vld [vmem:[#allocation2 + $0xb10] sm:$0xff]
        %v1813 = vld [vmem:[#allocation2 + $0xb18] sm:$0xff]
        %v1814 = vld [vmem:[#allocation2 + $0xb20] sm:$0xff]
        %v1815 = vld [vmem:[#allocation2 + $0xb28] sm:$0xff]
        %v1816 = vld [vmem:[#allocation2 + $0xb30] sm:$0xff]
        %v1817 = vld [vmem:[#allocation2 + $0xb38] sm:$0xff]
        %v1818 = vld [vmem:[#allocation2 + $0xb40] sm:$0xff]
        %v1819 = vld [vmem:[#allocation2 + $0xb48] sm:$0xff]
        %v1820 = vld [vmem:[#allocation2 + $0xb50] sm:$0xff]
        %v1821 = vld [vmem:[#allocation2 + $0xb58] sm:$0xff]
        %v1822 = vld [vmem:[#allocation2 + $0xb60] sm:$0xff]
        %v1823 = vld [vmem:[#allocation2 + $0xb68] sm:$0xff]
        %v1824 = vld [vmem:[#allocation2 + $0xb70] sm:$0xff]
        %v1825 = vld [vmem:[#allocation2 + $0xb78] sm:$0xff]
        %v1826 = vld [vmem:[#allocation2 + $0xb80] sm:$0xff]
        %v1827 = vld [vmem:[#allocation2 + $0xb88] sm:$0xff]
        %v1828 = vld [vmem:[#allocation2 + $0xb90] sm:$0xff]
        %v1829 = vld [vmem:[#allocation2 + $0xb98] sm:$0xff]
        %v1830 = vld [vmem:[#allocation2 + $0xba0] sm:$0xff]
        %v1831 = vld [vmem:[#allocation2 + $0xba8] sm:$0xff]
        %v1832 = vld [vmem:[#allocation2 + $0xbb0] sm:$0xff]
        %v1833 = vld [vmem:[#allocation2 + $0xbb8] sm:$0xff]
        %v1834 = vld [vmem:[#allocation2 + $0xbc0] sm:$0xff]
        %v1835 = vld [vmem:[#allocation2 + $0xbc8] sm:$0xff]
        %v1836 = vld [vmem:[#allocation2 + $0xbd0] sm:$0xff]
        %v1837 = vld [vmem:[#allocation2 + $0xbd8] sm:$0xff]
        %v1838 = vld [vmem:[#allocation2 + $0xbe0] sm:$0xff]
        %v1839 = vld [vmem:[#allocation2 + $0xbe8] sm:$0xff]
        %v1840 = vld [vmem:[#allocation2 + $0xbf0] sm:$0xff]
        %v1841 = vld [vmem:[#allocation2 + $0xbf8] sm:$0xff]
        %v1842 = vld [vmem:[#allocation2 + $0xc00] sm:$0xff]
        %v1843 = vld [vmem:[#allocation2 + $0xc08] sm:$0xff]
        %v1844 = vld [vmem:[#allocation2 + $0xc10] sm:$0xff]
        %v1845 = vld [vmem:[#allocation2 + $0xc18] sm:$0xff]
        %v1846 = vld [vmem:[#allocation2 + $0xc20] sm:$0xff]
        %v1847 = vld [vmem:[#allocation2 + $0xc28] sm:$0xff]
        %v1848 = vld [vmem:[#allocation2 + $0xc30] sm:$0xff]
        %v1849 = vld [vmem:[#allocation2 + $0xc38] sm:$0xff]
        %v1850 = vld [vmem:[#allocation2 + $0xc40] sm:$0xff]
        %v1851 = vld [vmem:[#allocation2 + $0xc48] sm:$0xff]
        %v1852 = vld [vmem:[#allocation2 + $0xc50] sm:$0xff]
        %v1853 = vld [vmem:[#allocation2 + $0xc58] sm:$0xff]
        %v1854 = vld [vmem:[#allocation2 + $0xc60] sm:$0xff]
        %v1855 = vld [vmem:[#allocation2 + $0xc68] sm:$0xff]
        %v1856 = vld [vmem:[#allocation2 + $0xc70] sm:$0xff]
        %v1857 = vld [vmem:[#allocation2 + $0xc78] sm:$0xff]
        %v1858 = vld [vmem:[#allocation2 + $0xc80] sm:$0xff]
        %v1859 = vld [vmem:[#allocation2 + $0xc88] sm:$0xff]
        %v1860 = vld [vmem:[#allocation2 + $0xc90] sm:$0xff]
        %v1861 = vld [vmem:[#allocation2 + $0xc98] sm:$0xff]
        %v1862 = vld [vmem:[#allocation2 + $0xca0] sm:$0xff]
        %v1863 = vld [vmem:[#allocation2 + $0xca8] sm:$0xff]
        %v1864 = vld [vmem:[#allocation2 + $0xcb0] sm:$0xff]
        %v1865 = vld [vmem:[#allocation2 + $0xcb8] sm:$0xff]
        %v1866 = vld [vmem:[#allocation2 + $0xcc0] sm:$0xff]
        %v1867 = vld [vmem:[#allocation2 + $0xcc8] sm:$0xff]
        %v1868 = vld [vmem:[#allocation2 + $0xcd0] sm:$0xff]
        %v1869 = vld [vmem:[#allocation2 + $0xcd8] sm:$0xff]
        %v1870 = vld [vmem:[#allocation2 + $0xce0] sm:$0xff]
        %v1871 = vld [vmem:[#allocation2 + $0xce8] sm:$0xff]
        %v1872 = vld [vmem:[#allocation2 + $0xcf0] sm:$0xff]
        %v1873 = vld [vmem:[#allocation2 + $0xcf8] sm:$0xff]
        %v1874 = vld [vmem:[#allocation2 + $0xd00] sm:$0xff]
        %v1875 = vld [vmem:[#allocation2 + $0xd08] sm:$0xff]
        %v1876 = vld [vmem:[#allocation2 + $0xd10] sm:$0xff]
        %v1877 = vld [vmem:[#allocation2 + $0xd18] sm:$0xff]
        %v1878 = vld [vmem:[#allocation2 + $0xd20] sm:$0xff]
        %v1879 = vld [vmem:[#allocation2 + $0xd28] sm:$0xff]
        %v1880 = vld [vmem:[#allocation2 + $0xd30] sm:$0xff]
        %v1881 = vld [vmem:[#allocation2 + $0xd38] sm:$0xff]
        %v1882 = vld [vmem:[#allocation2 + $0xd40] sm:$0xff]
        %v1883 = vld [vmem:[#allocation2 + $0xd48] sm:$0xff]
        %v1884 = vld [vmem:[#allocation2 + $0xd50] sm:$0xff]
        %v1885 = vld [vmem:[#allocation2 + $0xd58] sm:$0xff]
        %v1886 = vld [vmem:[#allocation2 + $0xd60] sm:$0xff]
        %v1887 = vld [vmem:[#allocation2 + $0xd68] sm:$0xff]
        %v1888 = vld [vmem:[#allocation2 + $0xd70] sm:$0xff]
        %v1889 = vld [vmem:[#allocation2 + $0xd78] sm:$0xff]
        %v1890 = vld [vmem:[#allocation2 + $0xd80] sm:$0xff]
        %v1891 = vld [vmem:[#allocation2 + $0xd88] sm:$0xff]
        %v1892 = vld [vmem:[#allocation2 + $0xd90] sm:$0xff]
        %v1893 = vld [vmem:[#allocation2 + $0xd98] sm:$0xff]
        %v1894 = vld [vmem:[#allocation2 + $0xda0] sm:$0xff]
        %v1895 = vld [vmem:[#allocation2 + $0xda8] sm:$0xff]
        %v1896 = vld [vmem:[#allocation2 + $0xdb0] sm:$0xff]
        %v1897 = vld [vmem:[#allocation2 + $0xdb8] sm:$0xff]
        %v1898 = vld [vmem:[#allocation2 + $0xdc0] sm:$0xff]
        %v1899 = vld [vmem:[#allocation2 + $0xdc8] sm:$0xff]
        %v1900 = vld [vmem:[#allocation2 + $0xdd0] sm:$0xff]
        %v1901 = vld [vmem:[#allocation2 + $0xdd8] sm:$0xff]
        %v1902 = vld [vmem:[#allocation2 + $0xde0] sm:$0xff]
        %v1903 = vld [vmem:[#allocation2 + $0xde8] sm:$0xff]
        %v1904 = vld [vmem:[#allocation2 + $0xdf0] sm:$0xff]
        %v1905 = vld [vmem:[#allocation2 + $0xdf8] sm:$0xff]
        %v1906 = vld [vmem:[#allocation2 + $0xe00] sm:$0xff]
        %v1907 = vld [vmem:[#allocation2 + $0xe08] sm:$0xff]
        %v1908 = vld [vmem:[#allocation2 + $0xe10] sm:$0xff]
        %v1909 = vld [vmem:[#allocation2 + $0xe18] sm:$0xff]
        %v1910 = vld [vmem:[#allocation2 + $0xe20] sm:$0xff]
        %v1911 = vld [vmem:[#allocation2 + $0xe28] sm:$0xff]
        %v1912 = vld [vmem:[#allocation2 + $0xe30] sm:$0xff]
        %v1913 = vld [vmem:[#allocation2 + $0xe38] sm:$0xff]
        %v1914 = vld [vmem:[#allocation2 + $0xe40] sm:$0xff]
        %v1915 = vld [vmem:[#allocation2 + $0xe48] sm:$0xff]
        %v1916 = vld [vmem:[#allocation2 + $0xe50] sm:$0xff]
        %v1917 = vld [vmem:[#allocation2 + $0xe58] sm:$0xff]
        %v1918 = vld [vmem:[#allocation2 + $0xe60] sm:$0xff]
        %v1919 = vld [vmem:[#allocation2 + $0xe68] sm:$0xff]
        %v1920 = vld [vmem:[#allocation2 + $0xe70] sm:$0xff]
        %v1921 = vld [vmem:[#allocation2 + $0xe78] sm:$0xff]
        %v1922 = vld [vmem:[#allocation2 + $0xe80] sm:$0xff]
        %v1923 = vld [vmem:[#allocation2 + $0xe88] sm:$0xff]
        %v1924 = vld [vmem:[#allocation2 + $0xe90] sm:$0xff]
        %v1925 = vld [vmem:[#allocation2 + $0xe98] sm:$0xff]
        %v1926 = vld [vmem:[#allocation2 + $0xea0] sm:$0xff]
        %v1927 = vld [vmem:[#allocation2 + $0xea8] sm:$0xff]
        %v1928 = vld [vmem:[#allocation2 + $0xeb0] sm:$0xff]
        %v1929 = vld [vmem:[#allocation2 + $0xeb8] sm:$0xff]
        %v1930 = vld [vmem:[#allocation2 + $0xec0] sm:$0xff]
        %v1931 = vld [vmem:[#allocation2 + $0xec8] sm:$0xff]
        %v1932 = vld [vmem:[#allocation2 + $0xed0] sm:$0xff]
        %v1933 = vld [vmem:[#allocation2 + $0xed8] sm:$0xff]
        %v1934 = vld [vmem:[#allocation2 + $0xee0] sm:$0xff]
        %v1935 = vld [vmem:[#allocation2 + $0xee8] sm:$0xff]
        %v1936 = vld [vmem:[#allocation2 + $0xef0] sm:$0xff]
        %v1937 = vld [vmem:[#allocation2 + $0xef8] sm:$0xff]
        %v1938 = vld [vmem:[#allocation2 + $0xf00] sm:$0xff]
        %v1939 = vld [vmem:[#allocation2 + $0xf08] sm:$0xff]
        %v1940 = vld [vmem:[#allocation2 + $0xf10] sm:$0xff]
        %v1941 = vld [vmem:[#allocation2 + $0xf18] sm:$0xff]
        %v1942 = vld [vmem:[#allocation2 + $0xf20] sm:$0xff]
        %v1943 = vld [vmem:[#allocation2 + $0xf28] sm:$0xff]
        %v1944 = vld [vmem:[#allocation2 + $0xf30] sm:$0xff]
        %v1945 = vld [vmem:[#allocation2 + $0xf38] sm:$0xff]
        %v1946 = vld [vmem:[#allocation2 + $0xf40] sm:$0xff]
        %v1947 = vld [vmem:[#allocation2 + $0xf48] sm:$0xff]
        %v1948 = vld [vmem:[#allocation2 + $0xf50] sm:$0xff]
        %v1949 = vld [vmem:[#allocation2 + $0xf58] sm:$0xff]
        %v1950 = vld [vmem:[#allocation2 + $0xf60] sm:$0xff]
        %v1951 = vld [vmem:[#allocation2 + $0xf68] sm:$0xff]
        %v1952 = vld [vmem:[#allocation2 + $0xf70] sm:$0xff]
        %v1953 = vld [vmem:[#allocation2 + $0xf78] sm:$0xff]
        %v1954 = vld [vmem:[#allocation2 + $0xf80] sm:$0xff]
        %v1955 = vld [vmem:[#allocation2 + $0xf88] sm:$0xff]
        %v1956 = vld [vmem:[#allocation2 + $0xf90] sm:$0xff]
        %v1957 = vld [vmem:[#allocation2 + $0xf98] sm:$0xff]
        %v1958 = vld [vmem:[#allocation2 + $0xfa0] sm:$0xff]
        %v1959 = vld [vmem:[#allocation2 + $0xfa8] sm:$0xff]
        %v1960 = vld [vmem:[#allocation2 + $0xfb0] sm:$0xff]
        %v1961 = vld [vmem:[#allocation2 + $0xfb8] sm:$0xff]
        %v1962 = vld [vmem:[#allocation2 + $0xfc0] sm:$0xff]
        %v1963 = vld [vmem:[#allocation2 + $0xfc8] sm:$0xff]
        %v1964 = vld [vmem:[#allocation2 + $0xfd0] sm:$0xff]
        %v1965 = vld [vmem:[#allocation2 + $0xfd8] sm:$0xff]
        %v1966 = vld [vmem:[#allocation2 + $0xfe0] sm:$0xff]
        %v1967 = vld [vmem:[#allocation2 + $0xfe8] sm:$0xff]
        %v1968 = vld [vmem:[#allocation2 + $0xff0] sm:$0xff]
        %v1969 = vld [vmem:[#allocation2 + $0xff8] sm:$0xff]
        %v1970 = vld [vmem:[#allocation2 + $0x1000] sm:$0xff]
        %v1971 = vld [vmem:[#allocation2 + $0x1008] sm:$0xff]
        %v1972 = vld [vmem:[#allocation2 + $0x1010] sm:$0xff]
        %v1973 = vld [vmem:[#allocation2 + $0x1018] sm:$0xff]
        %v1974 = vld [vmem:[#allocation2 + $0x1020] sm:$0xff]
        %v1975 = vld [vmem:[#allocation2 + $0x1028] sm:$0xff]
        %v1976 = vld [vmem:[#allocation2 + $0x1030] sm:$0xff]
        %v1977 = vld [vmem:[#allocation2 + $0x1038] sm:$0xff]
        %v1978 = vld [vmem:[#allocation2 + $0x1040] sm:$0xff]
        %v1979 = vld [vmem:[#allocation2 + $0x1048] sm:$0xff]
        %v1980 = vld [vmem:[#allocation2 + $0x1050] sm:$0xff]
        %v1981 = vld [vmem:[#allocation2 + $0x1058] sm:$0xff]
        %v1982 = vld [vmem:[#allocation2 + $0x1060] sm:$0xff]
        %v1983 = vld [vmem:[#allocation2 + $0x1068] sm:$0xff]
        %v1984 = vld [vmem:[#allocation2 + $0x1070] sm:$0xff]
        %v1985 = vld [vmem:[#allocation2 + $0x1078] sm:$0xff]
        %v1986 = vld [vmem:[#allocation2 + $0x1080] sm:$0xff]
        %v1987 = vld [vmem:[#allocation2 + $0x1088] sm:$0xff]
        %v1988 = vld [vmem:[#allocation2 + $0x1090] sm:$0xff]
        %v1989 = vld [vmem:[#allocation2 + $0x1098] sm:$0xff]
        %v1990 = vld [vmem:[#allocation2 + $0x10a0] sm:$0xff]
        %v1991 = vld [vmem:[#allocation2 + $0x10a8] sm:$0xff]
        %v1992 = vld [vmem:[#allocation2 + $0x10b0] sm:$0xff]
        %v1993 = vld [vmem:[#allocation2 + $0x10b8] sm:$0xff]
        %v1994 = vld [vmem:[#allocation2 + $0x10c0] sm:$0xff]
        %v1995 = vld [vmem:[#allocation2 + $0x10c8] sm:$0xff]
        %v1996 = vld [vmem:[#allocation2 + $0x10d0] sm:$0xff]
        %v1997 = vld [vmem:[#allocation2 + $0x10d8] sm:$0xff]
        %v1998 = vld [vmem:[#allocation2 + $0x10e0] sm:$0xff]
        %v1999 = vld [vmem:[#allocation2 + $0x10e8] sm:$0xff]
        %v2000 = vld [vmem:[#allocation2 + $0x10f0] sm:$0xff]
        %v2001 = vld [vmem:[#allocation2 + $0x10f8] sm:$0xff]
        %v2002 = vld [vmem:[#allocation2 + $0x1100] sm:$0xff]
        %v2003 = vld [vmem:[#allocation2 + $0x1108] sm:$0xff]
        %v2004 = vld [vmem:[#allocation2 + $0x1110] sm:$0xff]
        %v2005 = vld [vmem:[#allocation2 + $0x1118] sm:$0xff]
        %v2006 = vld [vmem:[#allocation2 + $0x1120] sm:$0xff]
        %v2007 = vld [vmem:[#allocation2 + $0x1128] sm:$0xff]
        %v2008 = vld [vmem:[#allocation2 + $0x1130] sm:$0xff]
        %v2009 = vld [vmem:[#allocation2 + $0x1138] sm:$0xff]
        %v2010 = vld [vmem:[#allocation2 + $0x1140] sm:$0xff]
        %v2011 = vld [vmem:[#allocation2 + $0x1148] sm:$0xff]
        %v2012 = vld [vmem:[#allocation2 + $0x1150] sm:$0xff]
        %v2013 = vld [vmem:[#allocation2 + $0x1158] sm:$0xff]
        %v2014 = vld [vmem:[#allocation2 + $0x1160] sm:$0xff]
        %v2015 = vld [vmem:[#allocation2 + $0x1168] sm:$0xff]
        %v2016 = vld [vmem:[#allocation2 + $0x1170] sm:$0xff]
        %v2017 = vld [vmem:[#allocation2 + $0x1178] sm:$0xff]
        %v2018 = vld [vmem:[#allocation2 + $0x1180] sm:$0xff]
        %v2019 = vld [vmem:[#allocation2 + $0x1188] sm:$0xff]
        %v2020 = vld [vmem:[#allocation2 + $0x1190] sm:$0xff]
        %v2021 = vld [vmem:[#allocation2 + $0x1198] sm:$0xff]
        %v2022 = vld [vmem:[#allocation2 + $0x11a0] sm:$0xff]
        %v2023 = vld [vmem:[#allocation2 + $0x11a8] sm:$0xff]
        %v2024 = vld [vmem:[#allocation2 + $0x11b0] sm:$0xff]
        %v2025 = vld [vmem:[#allocation2 + $0x11b8] sm:$0xff]
        %v2026 = vld [vmem:[#allocation2 + $0x11c0] sm:$0xff]
        %v2027 = vld [vmem:[#allocation2 + $0x11c8] sm:$0xff]
        %v2028 = vld [vmem:[#allocation2 + $0x11d0] sm:$0xff]
        %v2029 = vld [vmem:[#allocation2 + $0x11d8] sm:$0xff]
        %v2030 = vld [vmem:[#allocation2 + $0x11e0] sm:$0xff]
        %v2031 = vld [vmem:[#allocation2 + $0x11e8] sm:$0xff]
        %v2032 = vld [vmem:[#allocation2 + $0x11f0] sm:$0xff]
        %v2033 = vld [vmem:[#allocation2 + $0x11f8] sm:$0xff]
        %v2034 = vld [vmem:[#allocation2 + $0x1200] sm:$0xff]
        %v2035 = vld [vmem:[#allocation2 + $0x1208] sm:$0xff]
        %v2036 = vld [vmem:[#allocation2 + $0x1210] sm:$0xff]
        %v2037 = vld [vmem:[#allocation2 + $0x1218] sm:$0xff]
        %v2038 = vld [vmem:[#allocation2 + $0x1220] sm:$0xff]
        %v2039 = vld [vmem:[#allocation2 + $0x1228] sm:$0xff]
        %v2040 = vld [vmem:[#allocation2 + $0x1230] sm:$0xff]
        %v2041 = vld [vmem:[#allocation2 + $0x1238] sm:$0xff]
        %v2042 = vld [vmem:[#allocation2 + $0x1240] sm:$0xff]
        %v2043 = vld [vmem:[#allocation2 + $0x1248] sm:$0xff]
        %v2044 = vld [vmem:[#allocation2 + $0x1250] sm:$0xff]
        %v2045 = vld [vmem:[#allocation2 + $0x1258] sm:$0xff]
        %v2046 = vld [vmem:[#allocation2 + $0x1260] sm:$0xff]
        %v2047 = vld [vmem:[#allocation2 + $0x1268] sm:$0xff]
        %v2048 = vld [vmem:[#allocation2 + $0x1270] sm:$0xff]
        %v2049 = vld [vmem:[#allocation2 + $0x1278] sm:$0xff]
        %v2050 = vld [vmem:[#allocation2 + $0x1280] sm:$0xff]
        %v2051 = vld [vmem:[#allocation2 + $0x1288] sm:$0xff]
        %v2052 = vld [vmem:[#allocation2 + $0x1290] sm:$0xff]
        %v2053 = vld [vmem:[#allocation2 + $0x1298] sm:$0xff]
        %v2054 = vld [vmem:[#allocation2 + $0x12a0] sm:$0xff]
        %v2055 = vld [vmem:[#allocation2 + $0x12a8] sm:$0xff]
        %v2056 = vld [vmem:[#allocation2 + $0x12b0] sm:$0xff]
        %v2057 = vld [vmem:[#allocation2 + $0x12b8] sm:$0xff]
        %v2058 = vld [vmem:[#allocation2 + $0x12c0] sm:$0xff]
        %v2059 = vld [vmem:[#allocation2 + $0x12c8] sm:$0xff]
        %v2060 = vld [vmem:[#allocation2 + $0x12d0] sm:$0xff]
        %v2061 = vld [vmem:[#allocation2 + $0x12d8] sm:$0xff]
        %v2062 = vld [vmem:[#allocation2 + $0x12e0] sm:$0xff]
        %v2063 = vld [vmem:[#allocation2 + $0x12e8] sm:$0xff]
        %v2064 = vld [vmem:[#allocation2 + $0x12f0] sm:$0xff]
        %v2065 = vld [vmem:[#allocation2 + $0x12f8] sm:$0xff]
        %v2066 = vld [vmem:[#allocation2 + $0x1300] sm:$0xff]
        %v2067 = vld [vmem:[#allocation2 + $0x1308] sm:$0xff]
        %v2068 = vld [vmem:[#allocation2 + $0x1310] sm:$0xff]
        %v2069 = vld [vmem:[#allocation2 + $0x1318] sm:$0xff]
        %v2070 = vld [vmem:[#allocation2 + $0x1320] sm:$0xff]
        %v2071 = vld [vmem:[#allocation2 + $0x1328] sm:$0xff]
        %v2072 = vld [vmem:[#allocation2 + $0x1330] sm:$0xff]
        %v2073 = vld [vmem:[#allocation2 + $0x1338] sm:$0xff]
        %v2074 = vld [vmem:[#allocation2 + $0x1340] sm:$0xff]
        %v2075 = vld [vmem:[#allocation2 + $0x1348] sm:$0xff]
        %v2076 = vld [vmem:[#allocation2 + $0x1350] sm:$0xff]
        %v2077 = vld [vmem:[#allocation2 + $0x1358] sm:$0xff]
        %v2078 = vld [vmem:[#allocation2 + $0x1360] sm:$0xff]
        %v2079 = vld [vmem:[#allocation2 + $0x1368] sm:$0xff]
        %v2080 = vld [vmem:[#allocation2 + $0x1370] sm:$0xff]
        %v2081 = vld [vmem:[#allocation2 + $0x1378] sm:$0xff]
        %v2082 = vld [vmem:[#allocation2 + $0x1380] sm:$0xff]
        %v2083 = vld [vmem:[#allocation2 + $0x1388] sm:$0xff]
        %v2084 = vld [vmem:[#allocation2 + $0x1390] sm:$0xff]
        %v2085 = vld [vmem:[#allocation2 + $0x1398] sm:$0xff]
        %v2086 = vld [vmem:[#allocation2 + $0x13a0] sm:$0xff]
        %v2087 = vld [vmem:[#allocation2 + $0x13a8] sm:$0xff]
        %v2088 = vld [vmem:[#allocation2 + $0x13b0] sm:$0xff]
        %v2089 = vld [vmem:[#allocation2 + $0x13b8] sm:$0xff]
        %v2090 = vld [vmem:[#allocation2 + $0x13c0] sm:$0xff]
        %v2091 = vld [vmem:[#allocation2 + $0x13c8] sm:$0xff]
        %v2092 = vld [vmem:[#allocation2 + $0x13d0] sm:$0xff]
        %v2093 = vld [vmem:[#allocation2 + $0x13d8] sm:$0xff]
        %v2094 = vld [vmem:[#allocation2 + $0x13e0] sm:$0xff]
        %v2095 = vld [vmem:[#allocation2 + $0x13e8] sm:$0xff]
        %v2096 = vld [vmem:[#allocation2 + $0x13f0] sm:$0xff]
        %v2097 = vld [vmem:[#allocation2 + $0x13f8] sm:$0xff]
        %v2098 = vld [vmem:[#allocation2 + $0x1400] sm:$0xff]
        %v2099 = vld [vmem:[#allocation2 + $0x1408] sm:$0xff]
        %v2100 = vld [vmem:[#allocation2 + $0x1410] sm:$0xff]
        %v2101 = vld [vmem:[#allocation2 + $0x1418] sm:$0xff]
        %v2102 = vld [vmem:[#allocation2 + $0x1420] sm:$0xff]
        %v2103 = vld [vmem:[#allocation2 + $0x1428] sm:$0xff]
        %v2104 = vld [vmem:[#allocation2 + $0x1430] sm:$0xff]
        %v2105 = vld [vmem:[#allocation2 + $0x1438] sm:$0xff]
        %v2106 = vld [vmem:[#allocation2 + $0x1440] sm:$0xff]
        %v2107 = vld [vmem:[#allocation2 + $0x1448] sm:$0xff]
        %v2108 = vld [vmem:[#allocation2 + $0x1450] sm:$0xff]
        %v2109 = vld [vmem:[#allocation2 + $0x1458] sm:$0xff]
        %v2110 = vld [vmem:[#allocation2 + $0x1460] sm:$0xff]
        %v2111 = vld [vmem:[#allocation2 + $0x1468] sm:$0xff]
        %v2112 = vld [vmem:[#allocation2 + $0x1470] sm:$0xff]
        %v2113 = vld [vmem:[#allocation2 + $0x1478] sm:$0xff]
        %v2114 = vld [vmem:[#allocation2 + $0x1480] sm:$0xff]
        %v2115 = vld [vmem:[#allocation2 + $0x1488] sm:$0xff]
        %v2116 = vld [vmem:[#allocation2 + $0x1490] sm:$0xff]
        %v2117 = vld [vmem:[#allocation2 + $0x1498] sm:$0xff]
        %v2118 = vld [vmem:[#allocation2 + $0x14a0] sm:$0xff]
        %v2119 = vld [vmem:[#allocation2 + $0x14a8] sm:$0xff]
        %v2120 = vld [vmem:[#allocation2 + $0x14b0] sm:$0xff]
        %v2121 = vld [vmem:[#allocation2 + $0x14b8] sm:$0xff]
        %v2122 = vld [vmem:[#allocation2 + $0x14c0] sm:$0xff]
        %v2123 = vld [vmem:[#allocation2 + $0x14c8] sm:$0xff]
        %v2124 = vld [vmem:[#allocation2 + $0x14d0] sm:$0xff]
        %v2125 = vld [vmem:[#allocation2 + $0x14d8] sm:$0xff]
        %v2126 = vld [vmem:[#allocation2 + $0x14e0] sm:$0xff]
        %v2127 = vld [vmem:[#allocation2 + $0x14e8] sm:$0xff]
        %v2128 = vld [vmem:[#allocation2 + $0x14f0] sm:$0xff]
        %v2129 = vld [vmem:[#allocation2 + $0x14f8] sm:$0xff]
        %v2130 = vld [vmem:[#allocation2 + $0x1500] sm:$0xff]
        %v2131 = vld [vmem:[#allocation2 + $0x1508] sm:$0xff]
        %v2132 = vld [vmem:[#allocation2 + $0x1510] sm:$0xff]
        %v2133 = vld [vmem:[#allocation2 + $0x1518] sm:$0xff]
        %v2134 = vld [vmem:[#allocation2 + $0x1520] sm:$0xff]
        %v2135 = vld [vmem:[#allocation2 + $0x1528] sm:$0xff]
        %v2136 = vld [vmem:[#allocation2 + $0x1530] sm:$0xff]
        %v2137 = vld [vmem:[#allocation2 + $0x1538] sm:$0xff]
        %v2138 = vld [vmem:[#allocation2 + $0x1540] sm:$0xff]
        %v2139 = vld [vmem:[#allocation2 + $0x1548] sm:$0xff]
        %v2140 = vld [vmem:[#allocation2 + $0x1550] sm:$0xff]
        %v2141 = vld [vmem:[#allocation2 + $0x1558] sm:$0xff]
        %v2142 = vld [vmem:[#allocation2 + $0x1560] sm:$0xff]
        %v2143 = vld [vmem:[#allocation2 + $0x1568] sm:$0xff]
        %v2144 = vld [vmem:[#allocation2 + $0x1570] sm:$0xff]
        %v2145 = vld [vmem:[#allocation2 + $0x1578] sm:$0xff]
        %v2146 = vld [vmem:[#allocation2 + $0x1580] sm:$0xff]
        %v2147 = vld [vmem:[#allocation2 + $0x1588] sm:$0xff]
        %v2148 = vld [vmem:[#allocation2 + $0x1590] sm:$0xff]
        %v2149 = vld [vmem:[#allocation2 + $0x1598] sm:$0xff]
        %v2150 = vld [vmem:[#allocation2 + $0x15a0] sm:$0xff]
        %v2151 = vld [vmem:[#allocation2 + $0x15a8] sm:$0xff]
        %v2152 = vld [vmem:[#allocation2 + $0x15b0] sm:$0xff]
        %v2153 = vld [vmem:[#allocation2 + $0x15b8] sm:$0xff]
        %v2154 = vld [vmem:[#allocation2 + $0x15c0] sm:$0xff]
        %v2155 = vld [vmem:[#allocation2 + $0x15c8] sm:$0xff]
        %v2156 = vld [vmem:[#allocation2 + $0x15d0] sm:$0xff]
        %v2157 = vld [vmem:[#allocation2 + $0x15d8] sm:$0xff]
        %v2158 = vld [vmem:[#allocation2 + $0x15e0] sm:$0xff]
        %v2159 = vld [vmem:[#allocation2 + $0x15e8] sm:$0xff]
        %v2160 = vld [vmem:[#allocation2 + $0x15f0] sm:$0xff]
        %v2161 = vld [vmem:[#allocation2 + $0x15f8] sm:$0xff]
        %v2162 = vld [vmem:[#allocation2 + $0x1600] sm:$0xff]
        %v2163 = vld [vmem:[#allocation2 + $0x1608] sm:$0xff]
        %v2164 = vld [vmem:[#allocation2 + $0x1610] sm:$0xff]
        %v2165 = vld [vmem:[#allocation2 + $0x1618] sm:$0xff]
        %v2166 = vld [vmem:[#allocation2 + $0x1620] sm:$0xff]
        %v2167 = vld [vmem:[#allocation2 + $0x1628] sm:$0xff]
        %v2168 = vld [vmem:[#allocation2 + $0x1630] sm:$0xff]
        %v2169 = vld [vmem:[#allocation2 + $0x1638] sm:$0xff]
        %v2170 = vld [vmem:[#allocation2 + $0x1640] sm:$0xff]
        %v2171 = vld [vmem:[#allocation2 + $0x1648] sm:$0xff]
        %v2172 = vld [vmem:[#allocation2 + $0x1650] sm:$0xff]
        %v2173 = vld [vmem:[#allocation2 + $0x1658] sm:$0xff]
        %v2174 = vld [vmem:[#allocation2 + $0x1660] sm:$0xff]
        %v2175 = vld [vmem:[#allocation2 + $0x1668] sm:$0xff]
        %v2176 = vld [vmem:[#allocation2 + $0x1670] sm:$0xff]
        %v2177 = vld [vmem:[#allocation2 + $0x1678] sm:$0xff]
        %v2178 = vld [vmem:[#allocation2 + $0x1680] sm:$0xff]
        %v2179 = vld [vmem:[#allocation2 + $0x1688] sm:$0xff]
        %v2180 = vld [vmem:[#allocation2 + $0x1690] sm:$0xff]
        %v2181 = vld [vmem:[#allocation2 + $0x1698] sm:$0xff]
        %v2182 = vld [vmem:[#allocation2 + $0x16a0] sm:$0xff]
        %v2183 = vld [vmem:[#allocation2 + $0x16a8] sm:$0xff]
        %v2184 = vld [vmem:[#allocation2 + $0x16b0] sm:$0xff]
        %v2185 = vld [vmem:[#allocation2 + $0x16b8] sm:$0xff]
        %v2186 = vld [vmem:[#allocation2 + $0x16c0] sm:$0xff]
        %v2187 = vld [vmem:[#allocation2 + $0x16c8] sm:$0xff]
        %v2188 = vld [vmem:[#allocation2 + $0x16d0] sm:$0xff]
        %v2189 = vld [vmem:[#allocation2 + $0x16d8] sm:$0xff]
        %v2190 = vld [vmem:[#allocation2 + $0x16e0] sm:$0xff]
        %v2191 = vld [vmem:[#allocation2 + $0x16e8] sm:$0xff]
        %v2192 = vld [vmem:[#allocation2 + $0x16f0] sm:$0xff]
        %v2193 = vld [vmem:[#allocation2 + $0x16f8] sm:$0xff]
        %v2194 = vld [vmem:[#allocation2 + $0x1700] sm:$0xff]
        %v2195 = vld [vmem:[#allocation2 + $0x1708] sm:$0xff]
        %v2196 = vld [vmem:[#allocation2 + $0x1710] sm:$0xff]
        %v2197 = vld [vmem:[#allocation2 + $0x1718] sm:$0xff]
        %v2198 = vld [vmem:[#allocation2 + $0x1720] sm:$0xff]
        %v2199 = vld [vmem:[#allocation2 + $0x1728] sm:$0xff]
        %v2200 = vld [vmem:[#allocation2 + $0x1730] sm:$0xff]
        %v2201 = vld [vmem:[#allocation2 + $0x1738] sm:$0xff]
        %v2202 = vld [vmem:[#allocation2 + $0x1740] sm:$0xff]
        %v2203 = vld [vmem:[#allocation2 + $0x1748] sm:$0xff]
        %v2204 = vld [vmem:[#allocation2 + $0x1750] sm:$0xff]
        %v2205 = vld [vmem:[#allocation2 + $0x1758] sm:$0xff]
        %v2206 = vld [vmem:[#allocation2 + $0x1760] sm:$0xff]
        %v2207 = vld [vmem:[#allocation2 + $0x1768] sm:$0xff]
        %v2208 = vld [vmem:[#allocation2 + $0x1770] sm:$0xff]
        %v2209 = vld [vmem:[#allocation2 + $0x1778] sm:$0xff]
        %v2210 = vld [vmem:[#allocation2 + $0x1780] sm:$0xff]
        %v2211 = vld [vmem:[#allocation2 + $0x1788] sm:$0xff]
        %v2212 = vld [vmem:[#allocation2 + $0x1790] sm:$0xff]
        %v2213 = vld [vmem:[#allocation2 + $0x1798] sm:$0xff]
        %v2214 = vld [vmem:[#allocation2 + $0x17a0] sm:$0xff]
        %v2215 = vld [vmem:[#allocation2 + $0x17a8] sm:$0xff]
        %v2216 = vld [vmem:[#allocation2 + $0x17b0] sm:$0xff]
        %v2217 = vld [vmem:[#allocation2 + $0x17b8] sm:$0xff]
        %v2218 = vld [vmem:[#allocation2 + $0x17c0] sm:$0xff]
        %v2219 = vld [vmem:[#allocation2 + $0x17c8] sm:$0xff]
        %v2220 = vld [vmem:[#allocation2 + $0x17d0] sm:$0xff]
        %v2221 = vld [vmem:[#allocation2 + $0x17d8] sm:$0xff]
        %v2222 = vld [vmem:[#allocation2 + $0x17e0] sm:$0xff]
        %v2223 = vld [vmem:[#allocation2 + $0x17e8] sm:$0xff]
        %v2224 = vld [vmem:[#allocation2 + $0x17f0] sm:$0xff]
        %v2225 = vld [vmem:[#allocation2 + $0x17f8] sm:$0xff]
        %v2226 = vld [vmem:[#allocation2 + $0x1800] sm:$0xff]
        %v2227 = vld [vmem:[#allocation2 + $0x1808] sm:$0xff]
        %v2228 = vld [vmem:[#allocation2 + $0x1810] sm:$0xff]
        %v2229 = vld [vmem:[#allocation2 + $0x1818] sm:$0xff]
        %v2230 = vld [vmem:[#allocation2 + $0x1820] sm:$0xff]
        %v2231 = vld [vmem:[#allocation2 + $0x1828] sm:$0xff]
        %v2232 = vld [vmem:[#allocation2 + $0x1830] sm:$0xff]
        %v2233 = vld [vmem:[#allocation2 + $0x1838] sm:$0xff]
        %v2234 = vld [vmem:[#allocation2 + $0x1840] sm:$0xff]
        %v2235 = vld [vmem:[#allocation2 + $0x1848] sm:$0xff]
        %v2236 = vld [vmem:[#allocation2 + $0x1850] sm:$0xff]
        %v2237 = vld [vmem:[#allocation2 + $0x1858] sm:$0xff]
        %v2238 = vld [vmem:[#allocation2 + $0x1860] sm:$0xff]
        %v2239 = vld [vmem:[#allocation2 + $0x1868] sm:$0xff]
        %v2240 = vld [vmem:[#allocation2 + $0x1870] sm:$0xff]
        %v2241 = vld [vmem:[#allocation2 + $0x1878] sm:$0xff]
        %v2242 = vld [vmem:[#allocation2 + $0x1880] sm:$0xff]
        %v2243 = vld [vmem:[#allocation2 + $0x1888] sm:$0xff]
        %v2244 = vld [vmem:[#allocation2 + $0x1890] sm:$0xff]
        %v2245 = vld [vmem:[#allocation2 + $0x1898] sm:$0xff]
        %v2246 = vld [vmem:[#allocation2 + $0x18a0] sm:$0xff]
        %v2247 = vld [vmem:[#allocation2 + $0x18a8] sm:$0xff]
        %v2248 = vld [vmem:[#allocation2 + $0x18b0] sm:$0xff]
        %v2249 = vld [vmem:[#allocation2 + $0x18b8] sm:$0xff]
        %v2250 = vld [vmem:[#allocation2 + $0x18c0] sm:$0xff]
        %v2251 = vld [vmem:[#allocation2 + $0x18c8] sm:$0xff]
        %v2252 = vld [vmem:[#allocation2 + $0x18d0] sm:$0xff]
        %v2253 = vld [vmem:[#allocation2 + $0x18d8] sm:$0xff]
        %v2254 = vld [vmem:[#allocation2 + $0x18e0] sm:$0xff]
        %v2255 = vld [vmem:[#allocation2 + $0x18e8] sm:$0xff]
        %v2256 = vld [vmem:[#allocation2 + $0x18f0] sm:$0xff]
        %v2257 = vld [vmem:[#allocation2 + $0x18f8] sm:$0xff]
        %v2258 = vld [vmem:[#allocation2 + $0x1900] sm:$0xff]
        %v2259 = vld [vmem:[#allocation2 + $0x1908] sm:$0xff]
        %v2260 = vld [vmem:[#allocation2 + $0x1910] sm:$0xff]
        %v2261 = vld [vmem:[#allocation2 + $0x1918] sm:$0xff]
        %v2262 = vld [vmem:[#allocation2 + $0x1920] sm:$0xff]
        %v2263 = vld [vmem:[#allocation2 + $0x1928] sm:$0xff]
        %v2264 = vld [vmem:[#allocation2 + $0x1930] sm:$0xff]
        %v2265 = vld [vmem:[#allocation2 + $0x1938] sm:$0xff]
        %v2266 = vld [vmem:[#allocation2 + $0x1940] sm:$0xff]
        %v2267 = vld [vmem:[#allocation2 + $0x1948] sm:$0xff]
        %v2268 = vld [vmem:[#allocation2 + $0x1950] sm:$0xff]
        %v2269 = vld [vmem:[#allocation2 + $0x1958] sm:$0xff]
        %v2270 = vld [vmem:[#allocation2 + $0x1960] sm:$0xff]
        %v2271 = vld [vmem:[#allocation2 + $0x1968] sm:$0xff]
        %v2272 = vld [vmem:[#allocation2 + $0x1970] sm:$0xff]
        %v2273 = vld [vmem:[#allocation2 + $0x1978] sm:$0xff]
        %v2274 = vld [vmem:[#allocation2 + $0x1980] sm:$0xff]
        %v2275 = vld [vmem:[#allocation2 + $0x1988] sm:$0xff]
        %v2276 = vld [vmem:[#allocation2 + $0x1990] sm:$0xff]
        %v2277 = vld [vmem:[#allocation2 + $0x1998] sm:$0xff]
        %v2278 = vld [vmem:[#allocation2 + $0x19a0] sm:$0xff]
        %v2279 = vld [vmem:[#allocation2 + $0x19a8] sm:$0xff]
        %v2280 = vld [vmem:[#allocation2 + $0x19b0] sm:$0xff]
        %v2281 = vld [vmem:[#allocation2 + $0x19b8] sm:$0xff]
        %v2282 = vld [vmem:[#allocation2 + $0x19c0] sm:$0xff]
        %v2283 = vld [vmem:[#allocation2 + $0x19c8] sm:$0xff]
        %v2284 = vld [vmem:[#allocation2 + $0x19d0] sm:$0xff]
        %v2285 = vld [vmem:[#allocation2 + $0x19d8] sm:$0xff]
        %v2286 = vld [vmem:[#allocation2 + $0x19e0] sm:$0xff]
        %v2287 = vld [vmem:[#allocation2 + $0x19e8] sm:$0xff]
        %v2288 = vld [vmem:[#allocation2 + $0x19f0] sm:$0xff]
        %v2289 = vld [vmem:[#allocation2 + $0x19f8] sm:$0xff]
        %v2290 = vld [vmem:[#allocation2 + $0x1a00] sm:$0xff]
        %v2291 = vld [vmem:[#allocation2 + $0x1a08] sm:$0xff]
        %v2292 = vld [vmem:[#allocation2 + $0x1a10] sm:$0xff]
        %v2293 = vld [vmem:[#allocation2 + $0x1a18] sm:$0xff]
        %v2294 = vld [vmem:[#allocation2 + $0x1a20] sm:$0xff]
        %v2295 = vld [vmem:[#allocation2 + $0x1a28] sm:$0xff]
        %v2296 = vld [vmem:[#allocation2 + $0x1a30] sm:$0xff]
        %v2297 = vld [vmem:[#allocation2 + $0x1a38] sm:$0xff]
        %v2298 = vld [vmem:[#allocation2 + $0x1a40] sm:$0xff]
        %v2299 = vld [vmem:[#allocation2 + $0x1a48] sm:$0xff]
        %v2300 = vld [vmem:[#allocation2 + $0x1a50] sm:$0xff]
        %v2301 = vld [vmem:[#allocation2 + $0x1a58] sm:$0xff]
        %v2302 = vld [vmem:[#allocation2 + $0x1a60] sm:$0xff]
        %v2303 = vld [vmem:[#allocation2 + $0x1a68] sm:$0xff]
        %v2304 = vld [vmem:[#allocation2 + $0x1a70] sm:$0xff]
        %v2305 = vld [vmem:[#allocation2 + $0x1a78] sm:$0xff]
        %v2306 = vld [vmem:[#allocation2 + $0x1a80] sm:$0xff]
        %v2307 = vld [vmem:[#allocation2 + $0x1a88] sm:$0xff]
        %v2308 = vld [vmem:[#allocation2 + $0x1a90] sm:$0xff]
        %v2309 = vld [vmem:[#allocation2 + $0x1a98] sm:$0xff]
        %v2310 = vld [vmem:[#allocation2 + $0x1aa0] sm:$0xff]
        %v2311 = vld [vmem:[#allocation2 + $0x1aa8] sm:$0xff]
        %v2312 = vld [vmem:[#allocation2 + $0x1ab0] sm:$0xff]
        %v2313 = vld [vmem:[#allocation2 + $0x1ab8] sm:$0xff]
        %v2314 = vld [vmem:[#allocation2 + $0x1ac0] sm:$0xff]
        %v2315 = vld [vmem:[#allocation2 + $0x1ac8] sm:$0xff]
        %v2316 = vld [vmem:[#allocation2 + $0x1ad0] sm:$0xff]
        %v2317 = vld [vmem:[#allocation2 + $0x1ad8] sm:$0xff]
        %v2318 = vld [vmem:[#allocation2 + $0x1ae0] sm:$0xff]
        %v2319 = vld [vmem:[#allocation2 + $0x1ae8] sm:$0xff]
        %v2320 = vld [vmem:[#allocation2 + $0x1af0] sm:$0xff]
        %v2321 = vld [vmem:[#allocation2 + $0x1af8] sm:$0xff]
        %v2322 = vld [vmem:[#allocation2 + $0x1b00] sm:$0xff]
        %v2323 = vld [vmem:[#allocation2 + $0x1b08] sm:$0xff]
        %v2324 = vld [vmem:[#allocation2 + $0x1b10] sm:$0xff]
        %v2325 = vld [vmem:[#allocation2 + $0x1b18] sm:$0xff]
        %v2326 = vld [vmem:[#allocation2 + $0x1b20] sm:$0xff]
        %v2327 = vld [vmem:[#allocation2 + $0x1b28] sm:$0xff]
        %v2328 = vld [vmem:[#allocation2 + $0x1b30] sm:$0xff]
        %v2329 = vld [vmem:[#allocation2 + $0x1b38] sm:$0xff]
        %v2330 = vld [vmem:[#allocation2 + $0x1b40] sm:$0xff]
        %v2331 = vld [vmem:[#allocation2 + $0x1b48] sm:$0xff]
        %v2332 = vld [vmem:[#allocation2 + $0x1b50] sm:$0xff]
        %v2333 = vld [vmem:[#allocation2 + $0x1b58] sm:$0xff]
        %v2334 = vld [vmem:[#allocation2 + $0x1b60] sm:$0xff]
        %v2335 = vld [vmem:[#allocation2 + $0x1b68] sm:$0xff]
        %v2336 = vld [vmem:[#allocation2 + $0x1b70] sm:$0xff]
        %v2337 = vld [vmem:[#allocation2 + $0x1b78] sm:$0xff]
        %v2338 = vld [vmem:[#allocation2 + $0x1b80] sm:$0xff]
        %v2339 = vld [vmem:[#allocation2 + $0x1b88] sm:$0xff]
        %v2340 = vld [vmem:[#allocation2 + $0x1b90] sm:$0xff]
        %v2341 = vld [vmem:[#allocation2 + $0x1b98] sm:$0xff]
        %v2342 = vld [vmem:[#allocation2 + $0x1ba0] sm:$0xff]
        %v2343 = vld [vmem:[#allocation2 + $0x1ba8] sm:$0xff]
        %v2344 = vld [vmem:[#allocation2 + $0x1bb0] sm:$0xff]
        %v2345 = vld [vmem:[#allocation2 + $0x1bb8] sm:$0xff]
        %v2346 = vld [vmem:[#allocation2 + $0x1bc0] sm:$0xff]
        %v2347 = vld [vmem:[#allocation2 + $0x1bc8] sm:$0xff]
        %v2348 = vld [vmem:[#allocation2 + $0x1bd0] sm:$0xff]
        %v2349 = vld [vmem:[#allocation2 + $0x1bd8] sm:$0xff]
        %v2350 = vld [vmem:[#allocation2 + $0x1be0] sm:$0xff]
        %v2351 = vld [vmem:[#allocation2 + $0x1be8] sm:$0xff]
        %v2352 = vld [vmem:[#allocation2 + $0x1bf0] sm:$0xff]
        %v2353 = vld [vmem:[#allocation2 + $0x1bf8] sm:$0xff]
        %v2354 = vld [vmem:[#allocation2 + $0x1c00] sm:$0xff]
        %v2355 = vld [vmem:[#allocation2 + $0x1c08] sm:$0xff]
        %v2356 = vld [vmem:[#allocation2 + $0x1c10] sm:$0xff]
        %v2357 = vld [vmem:[#allocation2 + $0x1c18] sm:$0xff]
        %v2358 = vld [vmem:[#allocation2 + $0x1c20] sm:$0xff]
        %v2359 = vld [vmem:[#allocation2 + $0x1c28] sm:$0xff]
        %v2360 = vld [vmem:[#allocation2 + $0x1c30] sm:$0xff]
        %v2361 = vld [vmem:[#allocation2 + $0x1c38] sm:$0xff]
        %v2362 = vld [vmem:[#allocation2 + $0x1c40] sm:$0xff]
        %v2363 = vld [vmem:[#allocation2 + $0x1c48] sm:$0xff]
        %v2364 = vld [vmem:[#allocation2 + $0x1c50] sm:$0xff]
        %v2365 = vld [vmem:[#allocation2 + $0x1c58] sm:$0xff]
        %v2366 = vld [vmem:[#allocation2 + $0x1c60] sm:$0xff]
        %v2367 = vld [vmem:[#allocation2 + $0x1c68] sm:$0xff]
        %v2368 = vld [vmem:[#allocation2 + $0x1c70] sm:$0xff]
        %v2369 = vld [vmem:[#allocation2 + $0x1c78] sm:$0xff]
        %v2370 = vld [vmem:[#allocation2 + $0x1c80] sm:$0xff]
        %v2371 = vld [vmem:[#allocation2 + $0x1c88] sm:$0xff]
        %v2372 = vld [vmem:[#allocation2 + $0x1c90] sm:$0xff]
        %v2373 = vld [vmem:[#allocation2 + $0x1c98] sm:$0xff]
        %v2374 = vld [vmem:[#allocation2 + $0x1ca0] sm:$0xff]
        %v2375 = vld [vmem:[#allocation2 + $0x1ca8] sm:$0xff]
        %v2376 = vld [vmem:[#allocation2 + $0x1cb0] sm:$0xff]
        %v2377 = vld [vmem:[#allocation2 + $0x1cb8] sm:$0xff]
        %v2378 = vld [vmem:[#allocation2 + $0x1cc0] sm:$0xff]
        %v2379 = vld [vmem:[#allocation2 + $0x1cc8] sm:$0xff]
        %v2380 = vld [vmem:[#allocation2 + $0x1cd0] sm:$0xff]
        %v2381 = vld [vmem:[#allocation2 + $0x1cd8] sm:$0xff]
        %v2382 = vld [vmem:[#allocation2 + $0x1ce0] sm:$0xff]
        %v2383 = vld [vmem:[#allocation2 + $0x1ce8] sm:$0xff]
        %v2384 = vld [vmem:[#allocation2 + $0x1cf0] sm:$0xff]
        %v2385 = vld [vmem:[#allocation2 + $0x1cf8] sm:$0xff]
        %v2386 = vld [vmem:[#allocation2 + $0x1d00] sm:$0xff]
        %v2387 = vld [vmem:[#allocation2 + $0x1d08] sm:$0xff]
        %v2388 = vld [vmem:[#allocation2 + $0x1d10] sm:$0xff]
        %v2389 = vld [vmem:[#allocation2 + $0x1d18] sm:$0xff]
        %v2390 = vld [vmem:[#allocation2 + $0x1d20] sm:$0xff]
        %v2391 = vld [vmem:[#allocation2 + $0x1d28] sm:$0xff]
        %v2392 = vld [vmem:[#allocation2 + $0x1d30] sm:$0xff]
        %v2393 = vld [vmem:[#allocation2 + $0x1d38] sm:$0xff]
        %v2394 = vld [vmem:[#allocation2 + $0x1d40] sm:$0xff]
        %v2395 = vld [vmem:[#allocation2 + $0x1d48] sm:$0xff]
        %v2396 = vld [vmem:[#allocation2 + $0x1d50] sm:$0xff]
        %v2397 = vld [vmem:[#allocation2 + $0x1d58] sm:$0xff]
        %v2398 = vld [vmem:[#allocation2 + $0x1d60] sm:$0xff]
        %v2399 = vld [vmem:[#allocation2 + $0x1d68] sm:$0xff]
        %v2400 = vld [vmem:[#allocation2 + $0x1d70] sm:$0xff]
        %v2401 = vld [vmem:[#allocation2 + $0x1d78] sm:$0xff]
        %v2402 = vld [vmem:[#allocation2 + $0x1d80] sm:$0xff]
        %v2403 = vld [vmem:[#allocation2 + $0x1d88] sm:$0xff]
        %v2404 = vld [vmem:[#allocation2 + $0x1d90] sm:$0xff]
        %v2405 = vld [vmem:[#allocation2 + $0x1d98] sm:$0xff]
        %v2406 = vld [vmem:[#allocation2 + $0x1da0] sm:$0xff]
        %v2407 = vld [vmem:[#allocation2 + $0x1da8] sm:$0xff]
        %v2408 = vld [vmem:[#allocation2 + $0x1db0] sm:$0xff]
        %v2409 = vld [vmem:[#allocation2 + $0x1db8] sm:$0xff]
        %v2410 = vld [vmem:[#allocation2 + $0x1dc0] sm:$0xff]
        %v2411 = vld [vmem:[#allocation2 + $0x1dc8] sm:$0xff]
        %v2412 = vld [vmem:[#allocation2 + $0x1dd0] sm:$0xff]
        %v2413 = vld [vmem:[#allocation2 + $0x1dd8] sm:$0xff]
        %v2414 = vld [vmem:[#allocation2 + $0x1de0] sm:$0xff]
        %v2415 = vld [vmem:[#allocation2 + $0x1de8] sm:$0xff]
        %v2416 = vld [vmem:[#allocation2 + $0x1df0] sm:$0xff]
        %v2417 = vld [vmem:[#allocation2 + $0x1df8] sm:$0xff]
        %v2418 = vld [vmem:[#allocation2 + $0x1e00] sm:$0xff]
        %v2419 = vld [vmem:[#allocation2 + $0x1e08] sm:$0xff]
        %v2420 = vld [vmem:[#allocation2 + $0x1e10] sm:$0xff]
        %v2421 = vld [vmem:[#allocation2 + $0x1e18] sm:$0xff]
        %v2422 = vld [vmem:[#allocation2 + $0x1e20] sm:$0xff]
        %v2423 = vld [vmem:[#allocation2 + $0x1e28] sm:$0xff]
        %v2424 = vld [vmem:[#allocation2 + $0x1e30] sm:$0xff]
        %v2425 = vld [vmem:[#allocation2 + $0x1e38] sm:$0xff]
        %v2426 = vld [vmem:[#allocation2 + $0x1e40] sm:$0xff]
        %v2427 = vld [vmem:[#allocation2 + $0x1e48] sm:$0xff]
        %v2428 = vld [vmem:[#allocation2 + $0x1e50] sm:$0xff]
        %v2429 = vld [vmem:[#allocation2 + $0x1e58] sm:$0xff]
        %v2430 = vld [vmem:[#allocation2 + $0x1e60] sm:$0xff]
        %v2431 = vld [vmem:[#allocation2 + $0x1e68] sm:$0xff]
        %v2432 = vld [vmem:[#allocation2 + $0x1e70] sm:$0xff]
        %v2433 = vld [vmem:[#allocation2 + $0x1e78] sm:$0xff]
        %v2434 = vld [vmem:[#allocation2 + $0x1e80] sm:$0xff]
        %v2435 = vld [vmem:[#allocation2 + $0x1e88] sm:$0xff]
        %v2436 = vld [vmem:[#allocation2 + $0x1e90] sm:$0xff]
        %v2437 = vld [vmem:[#allocation2 + $0x1e98] sm:$0xff]
        %v2438 = vld [vmem:[#allocation2 + $0x1ea0] sm:$0xff]
        %v2439 = vld [vmem:[#allocation2 + $0x1ea8] sm:$0xff]
        %v2440 = vld [vmem:[#allocation2 + $0x1eb0] sm:$0xff]
        %v2441 = vld [vmem:[#allocation2 + $0x1eb8] sm:$0xff]
        %v2442 = vld [vmem:[#allocation2 + $0x1ec0] sm:$0xff]
        %v2443 = vld [vmem:[#allocation2 + $0x1ec8] sm:$0xff]
        %v2444 = vld [vmem:[#allocation2 + $0x1ed0] sm:$0xff]
        %v2445 = vld [vmem:[#allocation2 + $0x1ed8] sm:$0xff]
        %v2446 = vld [vmem:[#allocation2 + $0x1ee0] sm:$0xff]
        %v2447 = vld [vmem:[#allocation2 + $0x1ee8] sm:$0xff]
        %v2448 = vld [vmem:[#allocation2 + $0x1ef0] sm:$0xff]
        %v2449 = vld [vmem:[#allocation2 + $0x1ef8] sm:$0xff]
        %v2450 = vld [vmem:[#allocation2 + $0x1f00] sm:$0xff]
        %v2451 = vld [vmem:[#allocation2 + $0x1f08] sm:$0xff]
        %v2452 = vld [vmem:[#allocation2 + $0x1f10] sm:$0xff]
        %v2453 = vld [vmem:[#allocation2 + $0x1f18] sm:$0xff]
        %v2454 = vld [vmem:[#allocation2 + $0x1f20] sm:$0xff]
        %v2455 = vld [vmem:[#allocation2 + $0x1f28] sm:$0xff]
        %v2456 = vld [vmem:[#allocation2 + $0x1f30] sm:$0xff]
        %v2457 = vld [vmem:[#allocation2 + $0x1f38] sm:$0xff]
        %v2458 = vld [vmem:[#allocation2 + $0x1f40] sm:$0xff]
        %v2459 = vld [vmem:[#allocation2 + $0x1f48] sm:$0xff]
        %v2460 = vld [vmem:[#allocation2 + $0x1f50] sm:$0xff]
        %v2461 = vld [vmem:[#allocation2 + $0x1f58] sm:$0xff]
        %v2462 = vld [vmem:[#allocation2 + $0x1f60] sm:$0xff]
        %v2463 = vld [vmem:[#allocation2 + $0x1f68] sm:$0xff]
        %v2464 = vld [vmem:[#allocation2 + $0x1f70] sm:$0xff]
        %v2465 = vld [vmem:[#allocation2 + $0x1f78] sm:$0xff]
        %v2466 = vld [vmem:[#allocation2 + $0x1f80] sm:$0xff]
        %v2467 = vld [vmem:[#allocation2 + $0x1f88] sm:$0xff]
        %v2468 = vld [vmem:[#allocation2 + $0x1f90] sm:$0xff]
        %v2469 = vld [vmem:[#allocation2 + $0x1f98] sm:$0xff]
        %v2470 = vld [vmem:[#allocation2 + $0x1fa0] sm:$0xff]
        %v2471 = vld [vmem:[#allocation2 + $0x1fa8] sm:$0xff]
        %v2472 = vld [vmem:[#allocation2 + $0x1fb0] sm:$0xff]
        %v2473 = vld [vmem:[#allocation2 + $0x1fb8] sm:$0xff]
        %v2474 = vld [vmem:[#allocation2 + $0x1fc0] sm:$0xff]
        %v2475 = vld [vmem:[#allocation2 + $0x1fc8] sm:$0xff]
        %v2476 = vld [vmem:[#allocation2 + $0x1fd0] sm:$0xff]
        %v2477 = vld [vmem:[#allocation2 + $0x1fd8] sm:$0xff]
        %v2478 = vld [vmem:[#allocation2 + $0x1fe0] sm:$0xff]
        %v2479 = vld [vmem:[#allocation2 + $0x1fe8] sm:$0xff]
        %v2480 = vld [vmem:[#allocation2 + $0x1ff0] sm:$0xff]
        %v2481 = vld [vmem:[#allocation2 + $0x1ff8] sm:$0xff]
        %v2482 = vlaneseq
        %v2483 = vshrl.u32 %v2482, 7
        %v2484 = vsub.s32 0, %v2483
        %v2485 = vrot.slane %v1456, %v2484
        %v2486 = vlaneseq
        %v2487 = vshrl.u32 %v2486, 7
        %v2488 = vsub.s32 1, %v2487
        %v2489 = vrot.slane %v1456, %v2488
        %v2490 = vlaneseq
        %v2491 = vshrl.u32 %v2490, 7
        %v2492 = vsub.s32 2, %v2491
        %v2493 = vrot.slane %v1456, %v2492
        %v2494 = vlaneseq
        %v2495 = vshrl.u32 %v2494, 7
        %v2496 = vsub.s32 3, %v2495
        %v2497 = vrot.slane %v1456, %v2496
        %v2498 = vlaneseq
        %v2499 = vshrl.u32 %v2498, 7
        %v2500 = vsub.s32 4, %v2499
        %v2501 = vrot.slane %v1456, %v2500
        %v2502 = vlaneseq
        %v2503 = vshrl.u32 %v2502, 7
        %v2504 = vsub.s32 5, %v2503
        %v2505 = vrot.slane %v1456, %v2504
        %v2506 = vlaneseq
        %v2507 = vshrl.u32 %v2506, 7
        %v2508 = vsub.s32 6, %v2507
        %v2509 = vrot.slane %v1456, %v2508
        %v2510 = vlaneseq
        %v2511 = vshrl.u32 %v2510, 7
        %v2512 = vsub.s32 7, %v2511
        %v2513 = vrot.slane %v1456, %v2512
        %v2514 = vlaneseq
        %v2515 = vshrl.u32 %v2514, 7
        %v2516 = vsub.s32 0, %v2515
        %v2517 = vrot.slane %v1457, %v2516
        %v2518 = vlaneseq
        %v2519 = vshrl.u32 %v2518, 7
        %v2520 = vsub.s32 1, %v2519
        %v2521 = vrot.slane %v1457, %v2520
        %v2522 = vlaneseq
        %v2523 = vshrl.u32 %v2522, 7
        %v2524 = vsub.s32 2, %v2523
        %v2525 = vrot.slane %v1457, %v2524
        %v2526 = vlaneseq
        %v2527 = vshrl.u32 %v2526, 7
        %v2528 = vsub.s32 3, %v2527
        %v2529 = vrot.slane %v1457, %v2528
        %v2530 = vlaneseq
        %v2531 = vshrl.u32 %v2530, 7
        %v2532 = vsub.s32 4, %v2531
        %v2533 = vrot.slane %v1457, %v2532
        %v2534 = vlaneseq
        %v2535 = vshrl.u32 %v2534, 7
        %v2536 = vsub.s32 5, %v2535
        %v2537 = vrot.slane %v1457, %v2536
        %v2538 = vlaneseq
        %v2539 = vshrl.u32 %v2538, 7
        %v2540 = vsub.s32 6, %v2539
        %v2541 = vrot.slane %v1457, %v2540
        %v2542 = vlaneseq
        %v2543 = vshrl.u32 %v2542, 7
        %v2544 = vsub.s32 7, %v2543
        %v2545 = vrot.slane %v1457, %v2544
        %vm2546 = vcmp.eq.s32.totalorder %v1458, %v2485
        %vm2547 = vcmp.eq.s32.totalorder %v1459, %v2489
        %vm2548 = vcmp.eq.s32.totalorder %v1460, %v2493
        %vm2549 = vcmp.eq.s32.totalorder %v1461, %v2497
        %vm2550 = vcmp.eq.s32.totalorder %v1462, %v2501
        %vm2551 = vcmp.eq.s32.totalorder %v1463, %v2505
        %vm2552 = vcmp.eq.s32.totalorder %v1464, %v2509
        %vm2553 = vcmp.eq.s32.totalorder %v1465, %v2513
        %vm2554 = vcmp.eq.s32.totalorder %v1466, %v2517
        %vm2555 = vcmp.eq.s32.totalorder %v1467, %v2521
        %vm2556 = vcmp.eq.s32.totalorder %v1468, %v2525
        %vm2557 = vcmp.eq.s32.totalorder %v1469, %v2529
        %vm2558 = vcmp.eq.s32.totalorder %v1470, %v2533
        %vm2559 = vcmp.eq.s32.totalorder %v1471, %v2537
        %vm2560 = vcmp.eq.s32.totalorder %v1472, %v2541
        %vm2561 = vcmp.eq.s32.totalorder %v1473, %v2545
        %vm2562 = vcmp.eq.s32.totalorder %v1474, %v2485
        %vm2563 = vcmp.eq.s32.totalorder %v1475, %v2489
        %vm2564 = vcmp.eq.s32.totalorder %v1476, %v2493
        %vm2565 = vcmp.eq.s32.totalorder %v1477, %v2497
        %vm2566 = vcmp.eq.s32.totalorder %v1478, %v2501
        %vm2567 = vcmp.eq.s32.totalorder %v1479, %v2505
        %vm2568 = vcmp.eq.s32.totalorder %v1480, %v2509
        %vm2569 = vcmp.eq.s32.totalorder %v1481, %v2513
        %vm2570 = vcmp.eq.s32.totalorder %v1482, %v2517
        %vm2571 = vcmp.eq.s32.totalorder %v1483, %v2521
        %vm2572 = vcmp.eq.s32.totalorder %v1484, %v2525
        %vm2573 = vcmp.eq.s32.totalorder %v1485, %v2529
        %vm2574 = vcmp.eq.s32.totalorder %v1486, %v2533
        %vm2575 = vcmp.eq.s32.totalorder %v1487, %v2537
        %vm2576 = vcmp.eq.s32.totalorder %v1488, %v2541
        %vm2577 = vcmp.eq.s32.totalorder %v1489, %v2545
        %vm2578 = vcmp.eq.s32.totalorder %v1490, %v2485
        %vm2579 = vcmp.eq.s32.totalorder %v1491, %v2489
        %vm2580 = vcmp.eq.s32.totalorder %v1492, %v2493
        %vm2581 = vcmp.eq.s32.totalorder %v1493, %v2497
        %vm2582 = vcmp.eq.s32.totalorder %v1494, %v2501
        %vm2583 = vcmp.eq.s32.totalorder %v1495, %v2505
        %vm2584 = vcmp.eq.s32.totalorder %v1496, %v2509
        %vm2585 = vcmp.eq.s32.totalorder %v1497, %v2513
        %vm2586 = vcmp.eq.s32.totalorder %v1498, %v2517
        %vm2587 = vcmp.eq.s32.totalorder %v1499, %v2521
        %vm2588 = vcmp.eq.s32.totalorder %v1500, %v2525
        %vm2589 = vcmp.eq.s32.totalorder %v1501, %v2529
        %vm2590 = vcmp.eq.s32.totalorder %v1502, %v2533
        %vm2591 = vcmp.eq.s32.totalorder %v1503, %v2537
        %vm2592 = vcmp.eq.s32.totalorder %v1504, %v2541
        %vm2593 = vcmp.eq.s32.totalorder %v1505, %v2545
        %vm2594 = vcmp.eq.s32.totalorder %v1506, %v2485
        %vm2595 = vcmp.eq.s32.totalorder %v1507, %v2489
        %vm2596 = vcmp.eq.s32.totalorder %v1508, %v2493
        %vm2597 = vcmp.eq.s32.totalorder %v1509, %v2497
        %vm2598 = vcmp.eq.s32.totalorder %v1510, %v2501
        %vm2599 = vcmp.eq.s32.totalorder %v1511, %v2505
        %vm2600 = vcmp.eq.s32.totalorder %v1512, %v2509
        %vm2601 = vcmp.eq.s32.totalorder %v1513, %v2513
        %vm2602 = vcmp.eq.s32.totalorder %v1514, %v2517
        %vm2603 = vcmp.eq.s32.totalorder %v1515, %v2521
        %vm2604 = vcmp.eq.s32.totalorder %v1516, %v2525
        %vm2605 = vcmp.eq.s32.totalorder %v1517, %v2529
        %vm2606 = vcmp.eq.s32.totalorder %v1518, %v2533
        %vm2607 = vcmp.eq.s32.totalorder %v1519, %v2537
        %vm2608 = vcmp.eq.s32.totalorder %v1520, %v2541
        %vm2609 = vcmp.eq.s32.totalorder %v1521, %v2545
        %vm2610 = vcmp.eq.s32.totalorder %v1522, %v2485
        %vm2611 = vcmp.eq.s32.totalorder %v1523, %v2489
        %vm2612 = vcmp.eq.s32.totalorder %v1524, %v2493
        %vm2613 = vcmp.eq.s32.totalorder %v1525, %v2497
        %vm2614 = vcmp.eq.s32.totalorder %v1526, %v2501
        %vm2615 = vcmp.eq.s32.totalorder %v1527, %v2505
        %vm2616 = vcmp.eq.s32.totalorder %v1528, %v2509
        %vm2617 = vcmp.eq.s32.totalorder %v1529, %v2513
        %vm2618 = vcmp.eq.s32.totalorder %v1530, %v2517
        %vm2619 = vcmp.eq.s32.totalorder %v1531, %v2521
        %vm2620 = vcmp.eq.s32.totalorder %v1532, %v2525
        %vm2621 = vcmp.eq.s32.totalorder %v1533, %v2529
        %vm2622 = vcmp.eq.s32.totalorder %v1534, %v2533
        %vm2623 = vcmp.eq.s32.totalorder %v1535, %v2537
        %vm2624 = vcmp.eq.s32.totalorder %v1536, %v2541
        %vm2625 = vcmp.eq.s32.totalorder %v1537, %v2545
        %vm2626 = vcmp.eq.s32.totalorder %v1538, %v2485
        %vm2627 = vcmp.eq.s32.totalorder %v1539, %v2489
        %vm2628 = vcmp.eq.s32.totalorder %v1540, %v2493
        %vm2629 = vcmp.eq.s32.totalorder %v1541, %v2497
        %vm2630 = vcmp.eq.s32.totalorder %v1542, %v2501
        %vm2631 = vcmp.eq.s32.totalorder %v1543, %v2505
        %vm2632 = vcmp.eq.s32.totalorder %v1544, %v2509
        %vm2633 = vcmp.eq.s32.totalorder %v1545, %v2513
        %vm2634 = vcmp.eq.s32.totalorder %v1546, %v2517
        %vm2635 = vcmp.eq.s32.totalorder %v1547, %v2521
        %vm2636 = vcmp.eq.s32.totalorder %v1548, %v2525
        %vm2637 = vcmp.eq.s32.totalorder %v1549, %v2529
        %vm2638 = vcmp.eq.s32.totalorder %v1550, %v2533
        %vm2639 = vcmp.eq.s32.totalorder %v1551, %v2537
        %vm2640 = vcmp.eq.s32.totalorder %v1552, %v2541
        %vm2641 = vcmp.eq.s32.totalorder %v1553, %v2545
        %vm2642 = vcmp.eq.s32.totalorder %v1554, %v2485
        %vm2643 = vcmp.eq.s32.totalorder %v1555, %v2489
        %vm2644 = vcmp.eq.s32.totalorder %v1556, %v2493
        %vm2645 = vcmp.eq.s32.totalorder %v1557, %v2497
        %vm2646 = vcmp.eq.s32.totalorder %v1558, %v2501
        %vm2647 = vcmp.eq.s32.totalorder %v1559, %v2505
        %vm2648 = vcmp.eq.s32.totalorder %v1560, %v2509
        %vm2649 = vcmp.eq.s32.totalorder %v1561, %v2513
        %vm2650 = vcmp.eq.s32.totalorder %v1562, %v2517
        %vm2651 = vcmp.eq.s32.totalorder %v1563, %v2521
        %vm2652 = vcmp.eq.s32.totalorder %v1564, %v2525
        %vm2653 = vcmp.eq.s32.totalorder %v1565, %v2529
        %vm2654 = vcmp.eq.s32.totalorder %v1566, %v2533
        %vm2655 = vcmp.eq.s32.totalorder %v1567, %v2537
        %vm2656 = vcmp.eq.s32.totalorder %v1568, %v2541
        %vm2657 = vcmp.eq.s32.totalorder %v1569, %v2545
        %vm2658 = vcmp.eq.s32.totalorder %v1570, %v2485
        %vm2659 = vcmp.eq.s32.totalorder %v1571, %v2489
        %vm2660 = vcmp.eq.s32.totalorder %v1572, %v2493
        %vm2661 = vcmp.eq.s32.totalorder %v1573, %v2497
        %vm2662 = vcmp.eq.s32.totalorder %v1574, %v2501
        %vm2663 = vcmp.eq.s32.totalorder %v1575, %v2505
        %vm2664 = vcmp.eq.s32.totalorder %v1576, %v2509
        %vm2665 = vcmp.eq.s32.totalorder %v1577, %v2513
        %vm2666 = vcmp.eq.s32.totalorder %v1578, %v2517
        %vm2667 = vcmp.eq.s32.totalorder %v1579, %v2521
        %vm2668 = vcmp.eq.s32.totalorder %v1580, %v2525
        %vm2669 = vcmp.eq.s32.totalorder %v1581, %v2529
        %vm2670 = vcmp.eq.s32.totalorder %v1582, %v2533
        %vm2671 = vcmp.eq.s32.totalorder %v1583, %v2537
        %vm2672 = vcmp.eq.s32.totalorder %v1584, %v2541
        %vm2673 = vcmp.eq.s32.totalorder %v1585, %v2545
        %vm2674 = vcmp.eq.s32.totalorder %v1586, %v2485
        %vm2675 = vcmp.eq.s32.totalorder %v1587, %v2489
        %vm2676 = vcmp.eq.s32.totalorder %v1588, %v2493
        %vm2677 = vcmp.eq.s32.totalorder %v1589, %v2497
        %vm2678 = vcmp.eq.s32.totalorder %v1590, %v2501
        %vm2679 = vcmp.eq.s32.totalorder %v1591, %v2505
        %vm2680 = vcmp.eq.s32.totalorder %v1592, %v2509
        %vm2681 = vcmp.eq.s32.totalorder %v1593, %v2513
        %vm2682 = vcmp.eq.s32.totalorder %v1594, %v2517
        %vm2683 = vcmp.eq.s32.totalorder %v1595, %v2521
        %vm2684 = vcmp.eq.s32.totalorder %v1596, %v2525
        %vm2685 = vcmp.eq.s32.totalorder %v1597, %v2529
        %vm2686 = vcmp.eq.s32.totalorder %v1598, %v2533
        %vm2687 = vcmp.eq.s32.totalorder %v1599, %v2537
        %vm2688 = vcmp.eq.s32.totalorder %v1600, %v2541
        %vm2689 = vcmp.eq.s32.totalorder %v1601, %v2545
        %vm2690 = vcmp.eq.s32.totalorder %v1602, %v2485
        %vm2691 = vcmp.eq.s32.totalorder %v1603, %v2489
        %vm2692 = vcmp.eq.s32.totalorder %v1604, %v2493
        %vm2693 = vcmp.eq.s32.totalorder %v1605, %v2497
        %vm2694 = vcmp.eq.s32.totalorder %v1606, %v2501
        %vm2695 = vcmp.eq.s32.totalorder %v1607, %v2505
        %vm2696 = vcmp.eq.s32.totalorder %v1608, %v2509
        %vm2697 = vcmp.eq.s32.totalorder %v1609, %v2513
        %vm2698 = vcmp.eq.s32.totalorder %v1610, %v2517
        %vm2699 = vcmp.eq.s32.totalorder %v1611, %v2521
        %vm2700 = vcmp.eq.s32.totalorder %v1612, %v2525
        %vm2701 = vcmp.eq.s32.totalorder %v1613, %v2529
        %vm2702 = vcmp.eq.s32.totalorder %v1614, %v2533
        %vm2703 = vcmp.eq.s32.totalorder %v1615, %v2537
        %vm2704 = vcmp.eq.s32.totalorder %v1616, %v2541
        %vm2705 = vcmp.eq.s32.totalorder %v1617, %v2545
        %vm2706 = vcmp.eq.s32.totalorder %v1618, %v2485
        %vm2707 = vcmp.eq.s32.totalorder %v1619, %v2489
        %vm2708 = vcmp.eq.s32.totalorder %v1620, %v2493
        %vm2709 = vcmp.eq.s32.totalorder %v1621, %v2497
        %vm2710 = vcmp.eq.s32.totalorder %v1622, %v2501
        %vm2711 = vcmp.eq.s32.totalorder %v1623, %v2505
        %vm2712 = vcmp.eq.s32.totalorder %v1624, %v2509
        %vm2713 = vcmp.eq.s32.totalorder %v1625, %v2513
        %vm2714 = vcmp.eq.s32.totalorder %v1626, %v2517
        %vm2715 = vcmp.eq.s32.totalorder %v1627, %v2521
        %vm2716 = vcmp.eq.s32.totalorder %v1628, %v2525
        %vm2717 = vcmp.eq.s32.totalorder %v1629, %v2529
        %vm2718 = vcmp.eq.s32.totalorder %v1630, %v2533
        %vm2719 = vcmp.eq.s32.totalorder %v1631, %v2537
        %vm2720 = vcmp.eq.s32.totalorder %v1632, %v2541
        %vm2721 = vcmp.eq.s32.totalorder %v1633, %v2545
        %vm2722 = vcmp.eq.s32.totalorder %v1634, %v2485
        %vm2723 = vcmp.eq.s32.totalorder %v1635, %v2489
        %vm2724 = vcmp.eq.s32.totalorder %v1636, %v2493
        %vm2725 = vcmp.eq.s32.totalorder %v1637, %v2497
        %vm2726 = vcmp.eq.s32.totalorder %v1638, %v2501
        %vm2727 = vcmp.eq.s32.totalorder %v1639, %v2505
        %vm2728 = vcmp.eq.s32.totalorder %v1640, %v2509
        %vm2729 = vcmp.eq.s32.totalorder %v1641, %v2513
        %vm2730 = vcmp.eq.s32.totalorder %v1642, %v2517
        %vm2731 = vcmp.eq.s32.totalorder %v1643, %v2521
        %vm2732 = vcmp.eq.s32.totalorder %v1644, %v2525
        %vm2733 = vcmp.eq.s32.totalorder %v1645, %v2529
        %vm2734 = vcmp.eq.s32.totalorder %v1646, %v2533
        %vm2735 = vcmp.eq.s32.totalorder %v1647, %v2537
        %vm2736 = vcmp.eq.s32.totalorder %v1648, %v2541
        %vm2737 = vcmp.eq.s32.totalorder %v1649, %v2545
        %vm2738 = vcmp.eq.s32.totalorder %v1650, %v2485
        %vm2739 = vcmp.eq.s32.totalorder %v1651, %v2489
        %vm2740 = vcmp.eq.s32.totalorder %v1652, %v2493
        %vm2741 = vcmp.eq.s32.totalorder %v1653, %v2497
        %vm2742 = vcmp.eq.s32.totalorder %v1654, %v2501
        %vm2743 = vcmp.eq.s32.totalorder %v1655, %v2505
        %vm2744 = vcmp.eq.s32.totalorder %v1656, %v2509
        %vm2745 = vcmp.eq.s32.totalorder %v1657, %v2513
        %vm2746 = vcmp.eq.s32.totalorder %v1658, %v2517
        %vm2747 = vcmp.eq.s32.totalorder %v1659, %v2521
        %vm2748 = vcmp.eq.s32.totalorder %v1660, %v2525
        %vm2749 = vcmp.eq.s32.totalorder %v1661, %v2529
        %vm2750 = vcmp.eq.s32.totalorder %v1662, %v2533
        %vm2751 = vcmp.eq.s32.totalorder %v1663, %v2537
        %vm2752 = vcmp.eq.s32.totalorder %v1664, %v2541
        %vm2753 = vcmp.eq.s32.totalorder %v1665, %v2545
        %vm2754 = vcmp.eq.s32.totalorder %v1666, %v2485
        %vm2755 = vcmp.eq.s32.totalorder %v1667, %v2489
        %vm2756 = vcmp.eq.s32.totalorder %v1668, %v2493
        %vm2757 = vcmp.eq.s32.totalorder %v1669, %v2497
        %vm2758 = vcmp.eq.s32.totalorder %v1670, %v2501
        %vm2759 = vcmp.eq.s32.totalorder %v1671, %v2505
        %vm2760 = vcmp.eq.s32.totalorder %v1672, %v2509
        %vm2761 = vcmp.eq.s32.totalorder %v1673, %v2513
        %vm2762 = vcmp.eq.s32.totalorder %v1674, %v2517
        %vm2763 = vcmp.eq.s32.totalorder %v1675, %v2521
        %vm2764 = vcmp.eq.s32.totalorder %v1676, %v2525
        %vm2765 = vcmp.eq.s32.totalorder %v1677, %v2529
        %vm2766 = vcmp.eq.s32.totalorder %v1678, %v2533
        %vm2767 = vcmp.eq.s32.totalorder %v1679, %v2537
        %vm2768 = vcmp.eq.s32.totalorder %v1680, %v2541
        %vm2769 = vcmp.eq.s32.totalorder %v1681, %v2545
        %vm2770 = vcmp.eq.s32.totalorder %v1682, %v2485
        %vm2771 = vcmp.eq.s32.totalorder %v1683, %v2489
        %vm2772 = vcmp.eq.s32.totalorder %v1684, %v2493
        %vm2773 = vcmp.eq.s32.totalorder %v1685, %v2497
        %vm2774 = vcmp.eq.s32.totalorder %v1686, %v2501
        %vm2775 = vcmp.eq.s32.totalorder %v1687, %v2505
        %vm2776 = vcmp.eq.s32.totalorder %v1688, %v2509
        %vm2777 = vcmp.eq.s32.totalorder %v1689, %v2513
        %vm2778 = vcmp.eq.s32.totalorder %v1690, %v2517
        %vm2779 = vcmp.eq.s32.totalorder %v1691, %v2521
        %vm2780 = vcmp.eq.s32.totalorder %v1692, %v2525
        %vm2781 = vcmp.eq.s32.totalorder %v1693, %v2529
        %vm2782 = vcmp.eq.s32.totalorder %v1694, %v2533
        %vm2783 = vcmp.eq.s32.totalorder %v1695, %v2537
        %vm2784 = vcmp.eq.s32.totalorder %v1696, %v2541
        %vm2785 = vcmp.eq.s32.totalorder %v1697, %v2545
        %vm2786 = vcmp.eq.s32.totalorder %v1698, %v2485
        %vm2787 = vcmp.eq.s32.totalorder %v1699, %v2489
        %vm2788 = vcmp.eq.s32.totalorder %v1700, %v2493
        %vm2789 = vcmp.eq.s32.totalorder %v1701, %v2497
        %vm2790 = vcmp.eq.s32.totalorder %v1702, %v2501
        %vm2791 = vcmp.eq.s32.totalorder %v1703, %v2505
        %vm2792 = vcmp.eq.s32.totalorder %v1704, %v2509
        %vm2793 = vcmp.eq.s32.totalorder %v1705, %v2513
        %vm2794 = vcmp.eq.s32.totalorder %v1706, %v2517
        %vm2795 = vcmp.eq.s32.totalorder %v1707, %v2521
        %vm2796 = vcmp.eq.s32.totalorder %v1708, %v2525
        %vm2797 = vcmp.eq.s32.totalorder %v1709, %v2529
        %vm2798 = vcmp.eq.s32.totalorder %v1710, %v2533
        %vm2799 = vcmp.eq.s32.totalorder %v1711, %v2537
        %vm2800 = vcmp.eq.s32.totalorder %v1712, %v2541
        %vm2801 = vcmp.eq.s32.totalorder %v1713, %v2545
        %vm2802 = vcmp.eq.s32.totalorder %v1714, %v2485
        %vm2803 = vcmp.eq.s32.totalorder %v1715, %v2489
        %vm2804 = vcmp.eq.s32.totalorder %v1716, %v2493
        %vm2805 = vcmp.eq.s32.totalorder %v1717, %v2497
        %vm2806 = vcmp.eq.s32.totalorder %v1718, %v2501
        %vm2807 = vcmp.eq.s32.totalorder %v1719, %v2505
        %vm2808 = vcmp.eq.s32.totalorder %v1720, %v2509
        %vm2809 = vcmp.eq.s32.totalorder %v1721, %v2513
        %vm2810 = vcmp.eq.s32.totalorder %v1722, %v2517
        %vm2811 = vcmp.eq.s32.totalorder %v1723, %v2521
        %vm2812 = vcmp.eq.s32.totalorder %v1724, %v2525
        %vm2813 = vcmp.eq.s32.totalorder %v1725, %v2529
        %vm2814 = vcmp.eq.s32.totalorder %v1726, %v2533
        %vm2815 = vcmp.eq.s32.totalorder %v1727, %v2537
        %vm2816 = vcmp.eq.s32.totalorder %v1728, %v2541
        %vm2817 = vcmp.eq.s32.totalorder %v1729, %v2545
        %vm2818 = vcmp.eq.s32.totalorder %v1730, %v2485
        %vm2819 = vcmp.eq.s32.totalorder %v1731, %v2489
        %vm2820 = vcmp.eq.s32.totalorder %v1732, %v2493
        %vm2821 = vcmp.eq.s32.totalorder %v1733, %v2497
        %vm2822 = vcmp.eq.s32.totalorder %v1734, %v2501
        %vm2823 = vcmp.eq.s32.totalorder %v1735, %v2505
        %vm2824 = vcmp.eq.s32.totalorder %v1736, %v2509
        %vm2825 = vcmp.eq.s32.totalorder %v1737, %v2513
        %vm2826 = vcmp.eq.s32.totalorder %v1738, %v2517
        %vm2827 = vcmp.eq.s32.totalorder %v1739, %v2521
        %vm2828 = vcmp.eq.s32.totalorder %v1740, %v2525
        %vm2829 = vcmp.eq.s32.totalorder %v1741, %v2529
        %vm2830 = vcmp.eq.s32.totalorder %v1742, %v2533
        %vm2831 = vcmp.eq.s32.totalorder %v1743, %v2537
        %vm2832 = vcmp.eq.s32.totalorder %v1744, %v2541
        %vm2833 = vcmp.eq.s32.totalorder %v1745, %v2545
        %vm2834 = vcmp.eq.s32.totalorder %v1746, %v2485
        %vm2835 = vcmp.eq.s32.totalorder %v1747, %v2489
        %vm2836 = vcmp.eq.s32.totalorder %v1748, %v2493
        %vm2837 = vcmp.eq.s32.totalorder %v1749, %v2497
        %vm2838 = vcmp.eq.s32.totalorder %v1750, %v2501
        %vm2839 = vcmp.eq.s32.totalorder %v1751, %v2505
        %vm2840 = vcmp.eq.s32.totalorder %v1752, %v2509
        %vm2841 = vcmp.eq.s32.totalorder %v1753, %v2513
        %vm2842 = vcmp.eq.s32.totalorder %v1754, %v2517
        %vm2843 = vcmp.eq.s32.totalorder %v1755, %v2521
        %vm2844 = vcmp.eq.s32.totalorder %v1756, %v2525
        %vm2845 = vcmp.eq.s32.totalorder %v1757, %v2529
        %vm2846 = vcmp.eq.s32.totalorder %v1758, %v2533
        %vm2847 = vcmp.eq.s32.totalorder %v1759, %v2537
        %vm2848 = vcmp.eq.s32.totalorder %v1760, %v2541
        %vm2849 = vcmp.eq.s32.totalorder %v1761, %v2545
        %vm2850 = vcmp.eq.s32.totalorder %v1762, %v2485
        %vm2851 = vcmp.eq.s32.totalorder %v1763, %v2489
        %vm2852 = vcmp.eq.s32.totalorder %v1764, %v2493
        %vm2853 = vcmp.eq.s32.totalorder %v1765, %v2497
        %vm2854 = vcmp.eq.s32.totalorder %v1766, %v2501
        %vm2855 = vcmp.eq.s32.totalorder %v1767, %v2505
        %vm2856 = vcmp.eq.s32.totalorder %v1768, %v2509
        %vm2857 = vcmp.eq.s32.totalorder %v1769, %v2513
        %vm2858 = vcmp.eq.s32.totalorder %v1770, %v2517
        %vm2859 = vcmp.eq.s32.totalorder %v1771, %v2521
        %vm2860 = vcmp.eq.s32.totalorder %v1772, %v2525
        %vm2861 = vcmp.eq.s32.totalorder %v1773, %v2529
        %vm2862 = vcmp.eq.s32.totalorder %v1774, %v2533
        %vm2863 = vcmp.eq.s32.totalorder %v1775, %v2537
        %vm2864 = vcmp.eq.s32.totalorder %v1776, %v2541
        %vm2865 = vcmp.eq.s32.totalorder %v1777, %v2545
        %vm2866 = vcmp.eq.s32.totalorder %v1778, %v2485
        %vm2867 = vcmp.eq.s32.totalorder %v1779, %v2489
        %vm2868 = vcmp.eq.s32.totalorder %v1780, %v2493
        %vm2869 = vcmp.eq.s32.totalorder %v1781, %v2497
        %vm2870 = vcmp.eq.s32.totalorder %v1782, %v2501
        %vm2871 = vcmp.eq.s32.totalorder %v1783, %v2505
        %vm2872 = vcmp.eq.s32.totalorder %v1784, %v2509
        %vm2873 = vcmp.eq.s32.totalorder %v1785, %v2513
        %vm2874 = vcmp.eq.s32.totalorder %v1786, %v2517
        %vm2875 = vcmp.eq.s32.totalorder %v1787, %v2521
        %vm2876 = vcmp.eq.s32.totalorder %v1788, %v2525
        %vm2877 = vcmp.eq.s32.totalorder %v1789, %v2529
        %vm2878 = vcmp.eq.s32.totalorder %v1790, %v2533
        %vm2879 = vcmp.eq.s32.totalorder %v1791, %v2537
        %vm2880 = vcmp.eq.s32.totalorder %v1792, %v2541
        %vm2881 = vcmp.eq.s32.totalorder %v1793, %v2545
        %vm2882 = vcmp.eq.s32.totalorder %v1794, %v2485
        %vm2883 = vcmp.eq.s32.totalorder %v1795, %v2489
        %vm2884 = vcmp.eq.s32.totalorder %v1796, %v2493
        %vm2885 = vcmp.eq.s32.totalorder %v1797, %v2497
        %vm2886 = vcmp.eq.s32.totalorder %v1798, %v2501
        %vm2887 = vcmp.eq.s32.totalorder %v1799, %v2505
        %vm2888 = vcmp.eq.s32.totalorder %v1800, %v2509
        %vm2889 = vcmp.eq.s32.totalorder %v1801, %v2513
        %vm2890 = vcmp.eq.s32.totalorder %v1802, %v2517
        %vm2891 = vcmp.eq.s32.totalorder %v1803, %v2521
        %vm2892 = vcmp.eq.s32.totalorder %v1804, %v2525
        %vm2893 = vcmp.eq.s32.totalorder %v1805, %v2529
        %vm2894 = vcmp.eq.s32.totalorder %v1806, %v2533
        %vm2895 = vcmp.eq.s32.totalorder %v1807, %v2537
        %vm2896 = vcmp.eq.s32.totalorder %v1808, %v2541
        %vm2897 = vcmp.eq.s32.totalorder %v1809, %v2545
        %vm2898 = vcmp.eq.s32.totalorder %v1810, %v2485
        %vm2899 = vcmp.eq.s32.totalorder %v1811, %v2489
        %vm2900 = vcmp.eq.s32.totalorder %v1812, %v2493
        %vm2901 = vcmp.eq.s32.totalorder %v1813, %v2497
        %vm2902 = vcmp.eq.s32.totalorder %v1814, %v2501
        %vm2903 = vcmp.eq.s32.totalorder %v1815, %v2505
        %vm2904 = vcmp.eq.s32.totalorder %v1816, %v2509
        %vm2905 = vcmp.eq.s32.totalorder %v1817, %v2513
        %vm2906 = vcmp.eq.s32.totalorder %v1818, %v2517
        %vm2907 = vcmp.eq.s32.totalorder %v1819, %v2521
        %vm2908 = vcmp.eq.s32.totalorder %v1820, %v2525
        %vm2909 = vcmp.eq.s32.totalorder %v1821, %v2529
        %vm2910 = vcmp.eq.s32.totalorder %v1822, %v2533
        %vm2911 = vcmp.eq.s32.totalorder %v1823, %v2537
        %vm2912 = vcmp.eq.s32.totalorder %v1824, %v2541
        %vm2913 = vcmp.eq.s32.totalorder %v1825, %v2545
        %vm2914 = vcmp.eq.s32.totalorder %v1826, %v2485
        %vm2915 = vcmp.eq.s32.totalorder %v1827, %v2489
        %vm2916 = vcmp.eq.s32.totalorder %v1828, %v2493
        %vm2917 = vcmp.eq.s32.totalorder %v1829, %v2497
        %vm2918 = vcmp.eq.s32.totalorder %v1830, %v2501
        %vm2919 = vcmp.eq.s32.totalorder %v1831, %v2505
        %vm2920 = vcmp.eq.s32.totalorder %v1832, %v2509
        %vm2921 = vcmp.eq.s32.totalorder %v1833, %v2513
        %vm2922 = vcmp.eq.s32.totalorder %v1834, %v2517
        %vm2923 = vcmp.eq.s32.totalorder %v1835, %v2521
        %vm2924 = vcmp.eq.s32.totalorder %v1836, %v2525
        %vm2925 = vcmp.eq.s32.totalorder %v1837, %v2529
        %vm2926 = vcmp.eq.s32.totalorder %v1838, %v2533
        %vm2927 = vcmp.eq.s32.totalorder %v1839, %v2537
        %vm2928 = vcmp.eq.s32.totalorder %v1840, %v2541
        %vm2929 = vcmp.eq.s32.totalorder %v1841, %v2545
        %vm2930 = vcmp.eq.s32.totalorder %v1842, %v2485
        %vm2931 = vcmp.eq.s32.totalorder %v1843, %v2489
        %vm2932 = vcmp.eq.s32.totalorder %v1844, %v2493
        %vm2933 = vcmp.eq.s32.totalorder %v1845, %v2497
        %vm2934 = vcmp.eq.s32.totalorder %v1846, %v2501
        %vm2935 = vcmp.eq.s32.totalorder %v1847, %v2505
        %vm2936 = vcmp.eq.s32.totalorder %v1848, %v2509
        %vm2937 = vcmp.eq.s32.totalorder %v1849, %v2513
        %vm2938 = vcmp.eq.s32.totalorder %v1850, %v2517
        %vm2939 = vcmp.eq.s32.totalorder %v1851, %v2521
        %vm2940 = vcmp.eq.s32.totalorder %v1852, %v2525
        %vm2941 = vcmp.eq.s32.totalorder %v1853, %v2529
        %vm2942 = vcmp.eq.s32.totalorder %v1854, %v2533
        %vm2943 = vcmp.eq.s32.totalorder %v1855, %v2537
        %vm2944 = vcmp.eq.s32.totalorder %v1856, %v2541
        %vm2945 = vcmp.eq.s32.totalorder %v1857, %v2545
        %vm2946 = vcmp.eq.s32.totalorder %v1858, %v2485
        %vm2947 = vcmp.eq.s32.totalorder %v1859, %v2489
        %vm2948 = vcmp.eq.s32.totalorder %v1860, %v2493
        %vm2949 = vcmp.eq.s32.totalorder %v1861, %v2497
        %vm2950 = vcmp.eq.s32.totalorder %v1862, %v2501
        %vm2951 = vcmp.eq.s32.totalorder %v1863, %v2505
        %vm2952 = vcmp.eq.s32.totalorder %v1864, %v2509
        %vm2953 = vcmp.eq.s32.totalorder %v1865, %v2513
        %vm2954 = vcmp.eq.s32.totalorder %v1866, %v2517
        %vm2955 = vcmp.eq.s32.totalorder %v1867, %v2521
        %vm2956 = vcmp.eq.s32.totalorder %v1868, %v2525
        %vm2957 = vcmp.eq.s32.totalorder %v1869, %v2529
        %vm2958 = vcmp.eq.s32.totalorder %v1870, %v2533
        %vm2959 = vcmp.eq.s32.totalorder %v1871, %v2537
        %vm2960 = vcmp.eq.s32.totalorder %v1872, %v2541
        %vm2961 = vcmp.eq.s32.totalorder %v1873, %v2545
        %vm2962 = vcmp.eq.s32.totalorder %v1874, %v2485
        %vm2963 = vcmp.eq.s32.totalorder %v1875, %v2489
        %vm2964 = vcmp.eq.s32.totalorder %v1876, %v2493
        %vm2965 = vcmp.eq.s32.totalorder %v1877, %v2497
        %vm2966 = vcmp.eq.s32.totalorder %v1878, %v2501
        %vm2967 = vcmp.eq.s32.totalorder %v1879, %v2505
        %vm2968 = vcmp.eq.s32.totalorder %v1880, %v2509
        %vm2969 = vcmp.eq.s32.totalorder %v1881, %v2513
        %vm2970 = vcmp.eq.s32.totalorder %v1882, %v2517
        %vm2971 = vcmp.eq.s32.totalorder %v1883, %v2521
        %vm2972 = vcmp.eq.s32.totalorder %v1884, %v2525
        %vm2973 = vcmp.eq.s32.totalorder %v1885, %v2529
        %vm2974 = vcmp.eq.s32.totalorder %v1886, %v2533
        %vm2975 = vcmp.eq.s32.totalorder %v1887, %v2537
        %vm2976 = vcmp.eq.s32.totalorder %v1888, %v2541
        %vm2977 = vcmp.eq.s32.totalorder %v1889, %v2545
        %vm2978 = vcmp.eq.s32.totalorder %v1890, %v2485
        %vm2979 = vcmp.eq.s32.totalorder %v1891, %v2489
        %vm2980 = vcmp.eq.s32.totalorder %v1892, %v2493
        %vm2981 = vcmp.eq.s32.totalorder %v1893, %v2497
        %vm2982 = vcmp.eq.s32.totalorder %v1894, %v2501
        %vm2983 = vcmp.eq.s32.totalorder %v1895, %v2505
        %vm2984 = vcmp.eq.s32.totalorder %v1896, %v2509
        %vm2985 = vcmp.eq.s32.totalorder %v1897, %v2513
        %vm2986 = vcmp.eq.s32.totalorder %v1898, %v2517
        %vm2987 = vcmp.eq.s32.totalorder %v1899, %v2521
        %vm2988 = vcmp.eq.s32.totalorder %v1900, %v2525
        %vm2989 = vcmp.eq.s32.totalorder %v1901, %v2529
        %vm2990 = vcmp.eq.s32.totalorder %v1902, %v2533
        %vm2991 = vcmp.eq.s32.totalorder %v1903, %v2537
        %vm2992 = vcmp.eq.s32.totalorder %v1904, %v2541
        %vm2993 = vcmp.eq.s32.totalorder %v1905, %v2545
        %vm2994 = vcmp.eq.s32.totalorder %v1906, %v2485
        %vm2995 = vcmp.eq.s32.totalorder %v1907, %v2489
        %vm2996 = vcmp.eq.s32.totalorder %v1908, %v2493
        %vm2997 = vcmp.eq.s32.totalorder %v1909, %v2497
        %vm2998 = vcmp.eq.s32.totalorder %v1910, %v2501
        %vm2999 = vcmp.eq.s32.totalorder %v1911, %v2505
        %vm3000 = vcmp.eq.s32.totalorder %v1912, %v2509
        %vm3001 = vcmp.eq.s32.totalorder %v1913, %v2513
        %vm3002 = vcmp.eq.s32.totalorder %v1914, %v2517
        %vm3003 = vcmp.eq.s32.totalorder %v1915, %v2521
        %vm3004 = vcmp.eq.s32.totalorder %v1916, %v2525
        %vm3005 = vcmp.eq.s32.totalorder %v1917, %v2529
        %vm3006 = vcmp.eq.s32.totalorder %v1918, %v2533
        %vm3007 = vcmp.eq.s32.totalorder %v1919, %v2537
        %vm3008 = vcmp.eq.s32.totalorder %v1920, %v2541
        %vm3009 = vcmp.eq.s32.totalorder %v1921, %v2545
        %vm3010 = vcmp.eq.s32.totalorder %v1922, %v2485
        %vm3011 = vcmp.eq.s32.totalorder %v1923, %v2489
        %vm3012 = vcmp.eq.s32.totalorder %v1924, %v2493
        %vm3013 = vcmp.eq.s32.totalorder %v1925, %v2497
        %vm3014 = vcmp.eq.s32.totalorder %v1926, %v2501
        %vm3015 = vcmp.eq.s32.totalorder %v1927, %v2505
        %vm3016 = vcmp.eq.s32.totalorder %v1928, %v2509
        %vm3017 = vcmp.eq.s32.totalorder %v1929, %v2513
        %vm3018 = vcmp.eq.s32.totalorder %v1930, %v2517
        %vm3019 = vcmp.eq.s32.totalorder %v1931, %v2521
        %vm3020 = vcmp.eq.s32.totalorder %v1932, %v2525
        %vm3021 = vcmp.eq.s32.totalorder %v1933, %v2529
        %vm3022 = vcmp.eq.s32.totalorder %v1934, %v2533
        %vm3023 = vcmp.eq.s32.totalorder %v1935, %v2537
        %vm3024 = vcmp.eq.s32.totalorder %v1936, %v2541
        %vm3025 = vcmp.eq.s32.totalorder %v1937, %v2545
        %vm3026 = vcmp.eq.s32.totalorder %v1938, %v2485
        %vm3027 = vcmp.eq.s32.totalorder %v1939, %v2489
        %vm3028 = vcmp.eq.s32.totalorder %v1940, %v2493
        %vm3029 = vcmp.eq.s32.totalorder %v1941, %v2497
        %vm3030 = vcmp.eq.s32.totalorder %v1942, %v2501
        %vm3031 = vcmp.eq.s32.totalorder %v1943, %v2505
        %vm3032 = vcmp.eq.s32.totalorder %v1944, %v2509
        %vm3033 = vcmp.eq.s32.totalorder %v1945, %v2513
        %vm3034 = vcmp.eq.s32.totalorder %v1946, %v2517
        %vm3035 = vcmp.eq.s32.totalorder %v1947, %v2521
        %vm3036 = vcmp.eq.s32.totalorder %v1948, %v2525
        %vm3037 = vcmp.eq.s32.totalorder %v1949, %v2529
        %vm3038 = vcmp.eq.s32.totalorder %v1950, %v2533
        %vm3039 = vcmp.eq.s32.totalorder %v1951, %v2537
        %vm3040 = vcmp.eq.s32.totalorder %v1952, %v2541
        %vm3041 = vcmp.eq.s32.totalorder %v1953, %v2545
        %vm3042 = vcmp.eq.s32.totalorder %v1954, %v2485
        %vm3043 = vcmp.eq.s32.totalorder %v1955, %v2489
        %vm3044 = vcmp.eq.s32.totalorder %v1956, %v2493
        %vm3045 = vcmp.eq.s32.totalorder %v1957, %v2497
        %vm3046 = vcmp.eq.s32.totalorder %v1958, %v2501
        %vm3047 = vcmp.eq.s32.totalorder %v1959, %v2505
        %vm3048 = vcmp.eq.s32.totalorder %v1960, %v2509
        %vm3049 = vcmp.eq.s32.totalorder %v1961, %v2513
        %vm3050 = vcmp.eq.s32.totalorder %v1962, %v2517
        %vm3051 = vcmp.eq.s32.totalorder %v1963, %v2521
        %vm3052 = vcmp.eq.s32.totalorder %v1964, %v2525
        %vm3053 = vcmp.eq.s32.totalorder %v1965, %v2529
        %vm3054 = vcmp.eq.s32.totalorder %v1966, %v2533
        %vm3055 = vcmp.eq.s32.totalorder %v1967, %v2537
        %vm3056 = vcmp.eq.s32.totalorder %v1968, %v2541
        %vm3057 = vcmp.eq.s32.totalorder %v1969, %v2545
        %vm3058 = vcmp.eq.s32.totalorder %v1970, %v2485
        %vm3059 = vcmp.eq.s32.totalorder %v1971, %v2489
        %vm3060 = vcmp.eq.s32.totalorder %v1972, %v2493
        %vm3061 = vcmp.eq.s32.totalorder %v1973, %v2497
        %vm3062 = vcmp.eq.s32.totalorder %v1974, %v2501
        %vm3063 = vcmp.eq.s32.totalorder %v1975, %v2505
        %vm3064 = vcmp.eq.s32.totalorder %v1976, %v2509
        %vm3065 = vcmp.eq.s32.totalorder %v1977, %v2513
        %vm3066 = vcmp.eq.s32.totalorder %v1978, %v2517
        %vm3067 = vcmp.eq.s32.totalorder %v1979, %v2521
        %vm3068 = vcmp.eq.s32.totalorder %v1980, %v2525
        %vm3069 = vcmp.eq.s32.totalorder %v1981, %v2529
        %vm3070 = vcmp.eq.s32.totalorder %v1982, %v2533
        %vm3071 = vcmp.eq.s32.totalorder %v1983, %v2537
        %vm3072 = vcmp.eq.s32.totalorder %v1984, %v2541
        %vm3073 = vcmp.eq.s32.totalorder %v1985, %v2545
        %vm3074 = vcmp.eq.s32.totalorder %v1986, %v2485
        %vm3075 = vcmp.eq.s32.totalorder %v1987, %v2489
        %vm3076 = vcmp.eq.s32.totalorder %v1988, %v2493
        %vm3077 = vcmp.eq.s32.totalorder %v1989, %v2497
        %vm3078 = vcmp.eq.s32.totalorder %v1990, %v2501
        %vm3079 = vcmp.eq.s32.totalorder %v1991, %v2505
        %vm3080 = vcmp.eq.s32.totalorder %v1992, %v2509
        %vm3081 = vcmp.eq.s32.totalorder %v1993, %v2513
        %vm3082 = vcmp.eq.s32.totalorder %v1994, %v2517
        %vm3083 = vcmp.eq.s32.totalorder %v1995, %v2521
        %vm3084 = vcmp.eq.s32.totalorder %v1996, %v2525
        %vm3085 = vcmp.eq.s32.totalorder %v1997, %v2529
        %vm3086 = vcmp.eq.s32.totalorder %v1998, %v2533
        %vm3087 = vcmp.eq.s32.totalorder %v1999, %v2537
        %vm3088 = vcmp.eq.s32.totalorder %v2000, %v2541
        %vm3089 = vcmp.eq.s32.totalorder %v2001, %v2545
        %vm3090 = vcmp.eq.s32.totalorder %v2002, %v2485
        %vm3091 = vcmp.eq.s32.totalorder %v2003, %v2489
        %vm3092 = vcmp.eq.s32.totalorder %v2004, %v2493
        %vm3093 = vcmp.eq.s32.totalorder %v2005, %v2497
        %vm3094 = vcmp.eq.s32.totalorder %v2006, %v2501
        %vm3095 = vcmp.eq.s32.totalorder %v2007, %v2505
        %vm3096 = vcmp.eq.s32.totalorder %v2008, %v2509
        %vm3097 = vcmp.eq.s32.totalorder %v2009, %v2513
        %vm3098 = vcmp.eq.s32.totalorder %v2010, %v2517
        %vm3099 = vcmp.eq.s32.totalorder %v2011, %v2521
        %vm3100 = vcmp.eq.s32.totalorder %v2012, %v2525
        %vm3101 = vcmp.eq.s32.totalorder %v2013, %v2529
        %vm3102 = vcmp.eq.s32.totalorder %v2014, %v2533
        %vm3103 = vcmp.eq.s32.totalorder %v2015, %v2537
        %vm3104 = vcmp.eq.s32.totalorder %v2016, %v2541
        %vm3105 = vcmp.eq.s32.totalorder %v2017, %v2545
        %vm3106 = vcmp.eq.s32.totalorder %v2018, %v2485
        %vm3107 = vcmp.eq.s32.totalorder %v2019, %v2489
        %vm3108 = vcmp.eq.s32.totalorder %v2020, %v2493
        %vm3109 = vcmp.eq.s32.totalorder %v2021, %v2497
        %vm3110 = vcmp.eq.s32.totalorder %v2022, %v2501
        %vm3111 = vcmp.eq.s32.totalorder %v2023, %v2505
        %vm3112 = vcmp.eq.s32.totalorder %v2024, %v2509
        %vm3113 = vcmp.eq.s32.totalorder %v2025, %v2513
        %vm3114 = vcmp.eq.s32.totalorder %v2026, %v2517
        %vm3115 = vcmp.eq.s32.totalorder %v2027, %v2521
        %vm3116 = vcmp.eq.s32.totalorder %v2028, %v2525
        %vm3117 = vcmp.eq.s32.totalorder %v2029, %v2529
        %vm3118 = vcmp.eq.s32.totalorder %v2030, %v2533
        %vm3119 = vcmp.eq.s32.totalorder %v2031, %v2537
        %vm3120 = vcmp.eq.s32.totalorder %v2032, %v2541
        %vm3121 = vcmp.eq.s32.totalorder %v2033, %v2545
        %vm3122 = vcmp.eq.s32.totalorder %v2034, %v2485
        %vm3123 = vcmp.eq.s32.totalorder %v2035, %v2489
        %vm3124 = vcmp.eq.s32.totalorder %v2036, %v2493
        %vm3125 = vcmp.eq.s32.totalorder %v2037, %v2497
        %vm3126 = vcmp.eq.s32.totalorder %v2038, %v2501
        %vm3127 = vcmp.eq.s32.totalorder %v2039, %v2505
        %vm3128 = vcmp.eq.s32.totalorder %v2040, %v2509
        %vm3129 = vcmp.eq.s32.totalorder %v2041, %v2513
        %vm3130 = vcmp.eq.s32.totalorder %v2042, %v2517
        %vm3131 = vcmp.eq.s32.totalorder %v2043, %v2521
        %vm3132 = vcmp.eq.s32.totalorder %v2044, %v2525
        %vm3133 = vcmp.eq.s32.totalorder %v2045, %v2529
        %vm3134 = vcmp.eq.s32.totalorder %v2046, %v2533
        %vm3135 = vcmp.eq.s32.totalorder %v2047, %v2537
        %vm3136 = vcmp.eq.s32.totalorder %v2048, %v2541
        %vm3137 = vcmp.eq.s32.totalorder %v2049, %v2545
        %vm3138 = vcmp.eq.s32.totalorder %v2050, %v2485
        %vm3139 = vcmp.eq.s32.totalorder %v2051, %v2489
        %vm3140 = vcmp.eq.s32.totalorder %v2052, %v2493
        %vm3141 = vcmp.eq.s32.totalorder %v2053, %v2497
        %vm3142 = vcmp.eq.s32.totalorder %v2054, %v2501
        %vm3143 = vcmp.eq.s32.totalorder %v2055, %v2505
        %vm3144 = vcmp.eq.s32.totalorder %v2056, %v2509
        %vm3145 = vcmp.eq.s32.totalorder %v2057, %v2513
        %vm3146 = vcmp.eq.s32.totalorder %v2058, %v2517
        %vm3147 = vcmp.eq.s32.totalorder %v2059, %v2521
        %vm3148 = vcmp.eq.s32.totalorder %v2060, %v2525
        %vm3149 = vcmp.eq.s32.totalorder %v2061, %v2529
        %vm3150 = vcmp.eq.s32.totalorder %v2062, %v2533
        %vm3151 = vcmp.eq.s32.totalorder %v2063, %v2537
        %vm3152 = vcmp.eq.s32.totalorder %v2064, %v2541
        %vm3153 = vcmp.eq.s32.totalorder %v2065, %v2545
        %vm3154 = vcmp.eq.s32.totalorder %v2066, %v2485
        %vm3155 = vcmp.eq.s32.totalorder %v2067, %v2489
        %vm3156 = vcmp.eq.s32.totalorder %v2068, %v2493
        %vm3157 = vcmp.eq.s32.totalorder %v2069, %v2497
        %vm3158 = vcmp.eq.s32.totalorder %v2070, %v2501
        %vm3159 = vcmp.eq.s32.totalorder %v2071, %v2505
        %vm3160 = vcmp.eq.s32.totalorder %v2072, %v2509
        %vm3161 = vcmp.eq.s32.totalorder %v2073, %v2513
        %vm3162 = vcmp.eq.s32.totalorder %v2074, %v2517
        %vm3163 = vcmp.eq.s32.totalorder %v2075, %v2521
        %vm3164 = vcmp.eq.s32.totalorder %v2076, %v2525
        %vm3165 = vcmp.eq.s32.totalorder %v2077, %v2529
        %vm3166 = vcmp.eq.s32.totalorder %v2078, %v2533
        %vm3167 = vcmp.eq.s32.totalorder %v2079, %v2537
        %vm3168 = vcmp.eq.s32.totalorder %v2080, %v2541
        %vm3169 = vcmp.eq.s32.totalorder %v2081, %v2545
        %vm3170 = vcmp.eq.s32.totalorder %v2082, %v2485
        %vm3171 = vcmp.eq.s32.totalorder %v2083, %v2489
        %vm3172 = vcmp.eq.s32.totalorder %v2084, %v2493
        %vm3173 = vcmp.eq.s32.totalorder %v2085, %v2497
        %vm3174 = vcmp.eq.s32.totalorder %v2086, %v2501
        %vm3175 = vcmp.eq.s32.totalorder %v2087, %v2505
        %vm3176 = vcmp.eq.s32.totalorder %v2088, %v2509
        %vm3177 = vcmp.eq.s32.totalorder %v2089, %v2513
        %vm3178 = vcmp.eq.s32.totalorder %v2090, %v2517
        %vm3179 = vcmp.eq.s32.totalorder %v2091, %v2521
        %vm3180 = vcmp.eq.s32.totalorder %v2092, %v2525
        %vm3181 = vcmp.eq.s32.totalorder %v2093, %v2529
        %vm3182 = vcmp.eq.s32.totalorder %v2094, %v2533
        %vm3183 = vcmp.eq.s32.totalorder %v2095, %v2537
        %vm3184 = vcmp.eq.s32.totalorder %v2096, %v2541
        %vm3185 = vcmp.eq.s32.totalorder %v2097, %v2545
        %vm3186 = vcmp.eq.s32.totalorder %v2098, %v2485
        %vm3187 = vcmp.eq.s32.totalorder %v2099, %v2489
        %vm3188 = vcmp.eq.s32.totalorder %v2100, %v2493
        %vm3189 = vcmp.eq.s32.totalorder %v2101, %v2497
        %vm3190 = vcmp.eq.s32.totalorder %v2102, %v2501
        %vm3191 = vcmp.eq.s32.totalorder %v2103, %v2505
        %vm3192 = vcmp.eq.s32.totalorder %v2104, %v2509
        %vm3193 = vcmp.eq.s32.totalorder %v2105, %v2513
        %vm3194 = vcmp.eq.s32.totalorder %v2106, %v2517
        %vm3195 = vcmp.eq.s32.totalorder %v2107, %v2521
        %vm3196 = vcmp.eq.s32.totalorder %v2108, %v2525
        %vm3197 = vcmp.eq.s32.totalorder %v2109, %v2529
        %vm3198 = vcmp.eq.s32.totalorder %v2110, %v2533
        %vm3199 = vcmp.eq.s32.totalorder %v2111, %v2537
        %vm3200 = vcmp.eq.s32.totalorder %v2112, %v2541
        %vm3201 = vcmp.eq.s32.totalorder %v2113, %v2545
        %vm3202 = vcmp.eq.s32.totalorder %v2114, %v2485
        %vm3203 = vcmp.eq.s32.totalorder %v2115, %v2489
        %vm3204 = vcmp.eq.s32.totalorder %v2116, %v2493
        %vm3205 = vcmp.eq.s32.totalorder %v2117, %v2497
        %vm3206 = vcmp.eq.s32.totalorder %v2118, %v2501
        %vm3207 = vcmp.eq.s32.totalorder %v2119, %v2505
        %vm3208 = vcmp.eq.s32.totalorder %v2120, %v2509
        %vm3209 = vcmp.eq.s32.totalorder %v2121, %v2513
        %vm3210 = vcmp.eq.s32.totalorder %v2122, %v2517
        %vm3211 = vcmp.eq.s32.totalorder %v2123, %v2521
        %vm3212 = vcmp.eq.s32.totalorder %v2124, %v2525
        %vm3213 = vcmp.eq.s32.totalorder %v2125, %v2529
        %vm3214 = vcmp.eq.s32.totalorder %v2126, %v2533
        %vm3215 = vcmp.eq.s32.totalorder %v2127, %v2537
        %vm3216 = vcmp.eq.s32.totalorder %v2128, %v2541
        %vm3217 = vcmp.eq.s32.totalorder %v2129, %v2545
        %vm3218 = vcmp.eq.s32.totalorder %v2130, %v2485
        %vm3219 = vcmp.eq.s32.totalorder %v2131, %v2489
        %vm3220 = vcmp.eq.s32.totalorder %v2132, %v2493
        %vm3221 = vcmp.eq.s32.totalorder %v2133, %v2497
        %vm3222 = vcmp.eq.s32.totalorder %v2134, %v2501
        %vm3223 = vcmp.eq.s32.totalorder %v2135, %v2505
        %vm3224 = vcmp.eq.s32.totalorder %v2136, %v2509
        %vm3225 = vcmp.eq.s32.totalorder %v2137, %v2513
        %vm3226 = vcmp.eq.s32.totalorder %v2138, %v2517
        %vm3227 = vcmp.eq.s32.totalorder %v2139, %v2521
        %vm3228 = vcmp.eq.s32.totalorder %v2140, %v2525
        %vm3229 = vcmp.eq.s32.totalorder %v2141, %v2529
        %vm3230 = vcmp.eq.s32.totalorder %v2142, %v2533
        %vm3231 = vcmp.eq.s32.totalorder %v2143, %v2537
        %vm3232 = vcmp.eq.s32.totalorder %v2144, %v2541
        %vm3233 = vcmp.eq.s32.totalorder %v2145, %v2545
        %vm3234 = vcmp.eq.s32.totalorder %v2146, %v2485
        %vm3235 = vcmp.eq.s32.totalorder %v2147, %v2489
        %vm3236 = vcmp.eq.s32.totalorder %v2148, %v2493
        %vm3237 = vcmp.eq.s32.totalorder %v2149, %v2497
        %vm3238 = vcmp.eq.s32.totalorder %v2150, %v2501
        %vm3239 = vcmp.eq.s32.totalorder %v2151, %v2505
        %vm3240 = vcmp.eq.s32.totalorder %v2152, %v2509
        %vm3241 = vcmp.eq.s32.totalorder %v2153, %v2513
        %vm3242 = vcmp.eq.s32.totalorder %v2154, %v2517
        %vm3243 = vcmp.eq.s32.totalorder %v2155, %v2521
        %vm3244 = vcmp.eq.s32.totalorder %v2156, %v2525
        %vm3245 = vcmp.eq.s32.totalorder %v2157, %v2529
        %vm3246 = vcmp.eq.s32.totalorder %v2158, %v2533
        %vm3247 = vcmp.eq.s32.totalorder %v2159, %v2537
        %vm3248 = vcmp.eq.s32.totalorder %v2160, %v2541
        %vm3249 = vcmp.eq.s32.totalorder %v2161, %v2545
        %vm3250 = vcmp.eq.s32.totalorder %v2162, %v2485
        %vm3251 = vcmp.eq.s32.totalorder %v2163, %v2489
        %vm3252 = vcmp.eq.s32.totalorder %v2164, %v2493
        %vm3253 = vcmp.eq.s32.totalorder %v2165, %v2497
        %vm3254 = vcmp.eq.s32.totalorder %v2166, %v2501
        %vm3255 = vcmp.eq.s32.totalorder %v2167, %v2505
        %vm3256 = vcmp.eq.s32.totalorder %v2168, %v2509
        %vm3257 = vcmp.eq.s32.totalorder %v2169, %v2513
        %vm3258 = vcmp.eq.s32.totalorder %v2170, %v2517
        %vm3259 = vcmp.eq.s32.totalorder %v2171, %v2521
        %vm3260 = vcmp.eq.s32.totalorder %v2172, %v2525
        %vm3261 = vcmp.eq.s32.totalorder %v2173, %v2529
        %vm3262 = vcmp.eq.s32.totalorder %v2174, %v2533
        %vm3263 = vcmp.eq.s32.totalorder %v2175, %v2537
        %vm3264 = vcmp.eq.s32.totalorder %v2176, %v2541
        %vm3265 = vcmp.eq.s32.totalorder %v2177, %v2545
        %vm3266 = vcmp.eq.s32.totalorder %v2178, %v2485
        %vm3267 = vcmp.eq.s32.totalorder %v2179, %v2489
        %vm3268 = vcmp.eq.s32.totalorder %v2180, %v2493
        %vm3269 = vcmp.eq.s32.totalorder %v2181, %v2497
        %vm3270 = vcmp.eq.s32.totalorder %v2182, %v2501
        %vm3271 = vcmp.eq.s32.totalorder %v2183, %v2505
        %vm3272 = vcmp.eq.s32.totalorder %v2184, %v2509
        %vm3273 = vcmp.eq.s32.totalorder %v2185, %v2513
        %vm3274 = vcmp.eq.s32.totalorder %v2186, %v2517
        %vm3275 = vcmp.eq.s32.totalorder %v2187, %v2521
        %vm3276 = vcmp.eq.s32.totalorder %v2188, %v2525
        %vm3277 = vcmp.eq.s32.totalorder %v2189, %v2529
        %vm3278 = vcmp.eq.s32.totalorder %v2190, %v2533
        %vm3279 = vcmp.eq.s32.totalorder %v2191, %v2537
        %vm3280 = vcmp.eq.s32.totalorder %v2192, %v2541
        %vm3281 = vcmp.eq.s32.totalorder %v2193, %v2545
        %vm3282 = vcmp.eq.s32.totalorder %v2194, %v2485
        %vm3283 = vcmp.eq.s32.totalorder %v2195, %v2489
        %vm3284 = vcmp.eq.s32.totalorder %v2196, %v2493
        %vm3285 = vcmp.eq.s32.totalorder %v2197, %v2497
        %vm3286 = vcmp.eq.s32.totalorder %v2198, %v2501
        %vm3287 = vcmp.eq.s32.totalorder %v2199, %v2505
        %vm3288 = vcmp.eq.s32.totalorder %v2200, %v2509
        %vm3289 = vcmp.eq.s32.totalorder %v2201, %v2513
        %vm3290 = vcmp.eq.s32.totalorder %v2202, %v2517
        %vm3291 = vcmp.eq.s32.totalorder %v2203, %v2521
        %vm3292 = vcmp.eq.s32.totalorder %v2204, %v2525
        %vm3293 = vcmp.eq.s32.totalorder %v2205, %v2529
        %vm3294 = vcmp.eq.s32.totalorder %v2206, %v2533
        %vm3295 = vcmp.eq.s32.totalorder %v2207, %v2537
        %vm3296 = vcmp.eq.s32.totalorder %v2208, %v2541
        %vm3297 = vcmp.eq.s32.totalorder %v2209, %v2545
        %vm3298 = vcmp.eq.s32.totalorder %v2210, %v2485
        %vm3299 = vcmp.eq.s32.totalorder %v2211, %v2489
        %vm3300 = vcmp.eq.s32.totalorder %v2212, %v2493
        %vm3301 = vcmp.eq.s32.totalorder %v2213, %v2497
        %vm3302 = vcmp.eq.s32.totalorder %v2214, %v2501
        %vm3303 = vcmp.eq.s32.totalorder %v2215, %v2505
        %vm3304 = vcmp.eq.s32.totalorder %v2216, %v2509
        %vm3305 = vcmp.eq.s32.totalorder %v2217, %v2513
        %vm3306 = vcmp.eq.s32.totalorder %v2218, %v2517
        %vm3307 = vcmp.eq.s32.totalorder %v2219, %v2521
        %vm3308 = vcmp.eq.s32.totalorder %v2220, %v2525
        %vm3309 = vcmp.eq.s32.totalorder %v2221, %v2529
        %vm3310 = vcmp.eq.s32.totalorder %v2222, %v2533
        %vm3311 = vcmp.eq.s32.totalorder %v2223, %v2537
        %vm3312 = vcmp.eq.s32.totalorder %v2224, %v2541
        %vm3313 = vcmp.eq.s32.totalorder %v2225, %v2545
        %vm3314 = vcmp.eq.s32.totalorder %v2226, %v2485
        %vm3315 = vcmp.eq.s32.totalorder %v2227, %v2489
        %vm3316 = vcmp.eq.s32.totalorder %v2228, %v2493
        %vm3317 = vcmp.eq.s32.totalorder %v2229, %v2497
        %vm3318 = vcmp.eq.s32.totalorder %v2230, %v2501
        %vm3319 = vcmp.eq.s32.totalorder %v2231, %v2505
        %vm3320 = vcmp.eq.s32.totalorder %v2232, %v2509
        %vm3321 = vcmp.eq.s32.totalorder %v2233, %v2513
        %vm3322 = vcmp.eq.s32.totalorder %v2234, %v2517
        %vm3323 = vcmp.eq.s32.totalorder %v2235, %v2521
        %vm3324 = vcmp.eq.s32.totalorder %v2236, %v2525
        %vm3325 = vcmp.eq.s32.totalorder %v2237, %v2529
        %vm3326 = vcmp.eq.s32.totalorder %v2238, %v2533
        %vm3327 = vcmp.eq.s32.totalorder %v2239, %v2537
        %vm3328 = vcmp.eq.s32.totalorder %v2240, %v2541
        %vm3329 = vcmp.eq.s32.totalorder %v2241, %v2545
        %vm3330 = vcmp.eq.s32.totalorder %v2242, %v2485
        %vm3331 = vcmp.eq.s32.totalorder %v2243, %v2489
        %vm3332 = vcmp.eq.s32.totalorder %v2244, %v2493
        %vm3333 = vcmp.eq.s32.totalorder %v2245, %v2497
        %vm3334 = vcmp.eq.s32.totalorder %v2246, %v2501
        %vm3335 = vcmp.eq.s32.totalorder %v2247, %v2505
        %vm3336 = vcmp.eq.s32.totalorder %v2248, %v2509
        %vm3337 = vcmp.eq.s32.totalorder %v2249, %v2513
        %vm3338 = vcmp.eq.s32.totalorder %v2250, %v2517
        %vm3339 = vcmp.eq.s32.totalorder %v2251, %v2521
        %vm3340 = vcmp.eq.s32.totalorder %v2252, %v2525
        %vm3341 = vcmp.eq.s32.totalorder %v2253, %v2529
        %vm3342 = vcmp.eq.s32.totalorder %v2254, %v2533
        %vm3343 = vcmp.eq.s32.totalorder %v2255, %v2537
        %vm3344 = vcmp.eq.s32.totalorder %v2256, %v2541
        %vm3345 = vcmp.eq.s32.totalorder %v2257, %v2545
        %vm3346 = vcmp.eq.s32.totalorder %v2258, %v2485
        %vm3347 = vcmp.eq.s32.totalorder %v2259, %v2489
        %vm3348 = vcmp.eq.s32.totalorder %v2260, %v2493
        %vm3349 = vcmp.eq.s32.totalorder %v2261, %v2497
        %vm3350 = vcmp.eq.s32.totalorder %v2262, %v2501
        %vm3351 = vcmp.eq.s32.totalorder %v2263, %v2505
        %vm3352 = vcmp.eq.s32.totalorder %v2264, %v2509
        %vm3353 = vcmp.eq.s32.totalorder %v2265, %v2513
        %vm3354 = vcmp.eq.s32.totalorder %v2266, %v2517
        %vm3355 = vcmp.eq.s32.totalorder %v2267, %v2521
        %vm3356 = vcmp.eq.s32.totalorder %v2268, %v2525
        %vm3357 = vcmp.eq.s32.totalorder %v2269, %v2529
        %vm3358 = vcmp.eq.s32.totalorder %v2270, %v2533
        %vm3359 = vcmp.eq.s32.totalorder %v2271, %v2537
        %vm3360 = vcmp.eq.s32.totalorder %v2272, %v2541
        %vm3361 = vcmp.eq.s32.totalorder %v2273, %v2545
        %vm3362 = vcmp.eq.s32.totalorder %v2274, %v2485
        %vm3363 = vcmp.eq.s32.totalorder %v2275, %v2489
        %vm3364 = vcmp.eq.s32.totalorder %v2276, %v2493
        %vm3365 = vcmp.eq.s32.totalorder %v2277, %v2497
        %vm3366 = vcmp.eq.s32.totalorder %v2278, %v2501
        %vm3367 = vcmp.eq.s32.totalorder %v2279, %v2505
        %vm3368 = vcmp.eq.s32.totalorder %v2280, %v2509
        %vm3369 = vcmp.eq.s32.totalorder %v2281, %v2513
        %vm3370 = vcmp.eq.s32.totalorder %v2282, %v2517
        %vm3371 = vcmp.eq.s32.totalorder %v2283, %v2521
        %vm3372 = vcmp.eq.s32.totalorder %v2284, %v2525
        %vm3373 = vcmp.eq.s32.totalorder %v2285, %v2529
        %vm3374 = vcmp.eq.s32.totalorder %v2286, %v2533
        %vm3375 = vcmp.eq.s32.totalorder %v2287, %v2537
        %vm3376 = vcmp.eq.s32.totalorder %v2288, %v2541
        %vm3377 = vcmp.eq.s32.totalorder %v2289, %v2545
        %vm3378 = vcmp.eq.s32.totalorder %v2290, %v2485
        %vm3379 = vcmp.eq.s32.totalorder %v2291, %v2489
        %vm3380 = vcmp.eq.s32.totalorder %v2292, %v2493
        %vm3381 = vcmp.eq.s32.totalorder %v2293, %v2497
        %vm3382 = vcmp.eq.s32.totalorder %v2294, %v2501
        %vm3383 = vcmp.eq.s32.totalorder %v2295, %v2505
        %vm3384 = vcmp.eq.s32.totalorder %v2296, %v2509
        %vm3385 = vcmp.eq.s32.totalorder %v2297, %v2513
        %vm3386 = vcmp.eq.s32.totalorder %v2298, %v2517
        %vm3387 = vcmp.eq.s32.totalorder %v2299, %v2521
        %vm3388 = vcmp.eq.s32.totalorder %v2300, %v2525
        %vm3389 = vcmp.eq.s32.totalorder %v2301, %v2529
        %vm3390 = vcmp.eq.s32.totalorder %v2302, %v2533
        %vm3391 = vcmp.eq.s32.totalorder %v2303, %v2537
        %vm3392 = vcmp.eq.s32.totalorder %v2304, %v2541
        %vm3393 = vcmp.eq.s32.totalorder %v2305, %v2545
        %vm3394 = vcmp.eq.s32.totalorder %v2306, %v2485
        %vm3395 = vcmp.eq.s32.totalorder %v2307, %v2489
        %vm3396 = vcmp.eq.s32.totalorder %v2308, %v2493
        %vm3397 = vcmp.eq.s32.totalorder %v2309, %v2497
        %vm3398 = vcmp.eq.s32.totalorder %v2310, %v2501
        %vm3399 = vcmp.eq.s32.totalorder %v2311, %v2505
        %vm3400 = vcmp.eq.s32.totalorder %v2312, %v2509
        %vm3401 = vcmp.eq.s32.totalorder %v2313, %v2513
        %vm3402 = vcmp.eq.s32.totalorder %v2314, %v2517
        %vm3403 = vcmp.eq.s32.totalorder %v2315, %v2521
        %vm3404 = vcmp.eq.s32.totalorder %v2316, %v2525
        %vm3405 = vcmp.eq.s32.totalorder %v2317, %v2529
        %vm3406 = vcmp.eq.s32.totalorder %v2318, %v2533
        %vm3407 = vcmp.eq.s32.totalorder %v2319, %v2537
        %vm3408 = vcmp.eq.s32.totalorder %v2320, %v2541
        %vm3409 = vcmp.eq.s32.totalorder %v2321, %v2545
        %vm3410 = vcmp.eq.s32.totalorder %v2322, %v2485
        %vm3411 = vcmp.eq.s32.totalorder %v2323, %v2489
        %vm3412 = vcmp.eq.s32.totalorder %v2324, %v2493
        %vm3413 = vcmp.eq.s32.totalorder %v2325, %v2497
        %vm3414 = vcmp.eq.s32.totalorder %v2326, %v2501
        %vm3415 = vcmp.eq.s32.totalorder %v2327, %v2505
        %vm3416 = vcmp.eq.s32.totalorder %v2328, %v2509
        %vm3417 = vcmp.eq.s32.totalorder %v2329, %v2513
        %vm3418 = vcmp.eq.s32.totalorder %v2330, %v2517
        %vm3419 = vcmp.eq.s32.totalorder %v2331, %v2521
        %vm3420 = vcmp.eq.s32.totalorder %v2332, %v2525
        %vm3421 = vcmp.eq.s32.totalorder %v2333, %v2529
        %vm3422 = vcmp.eq.s32.totalorder %v2334, %v2533
        %vm3423 = vcmp.eq.s32.totalorder %v2335, %v2537
        %vm3424 = vcmp.eq.s32.totalorder %v2336, %v2541
        %vm3425 = vcmp.eq.s32.totalorder %v2337, %v2545
        %vm3426 = vcmp.eq.s32.totalorder %v2338, %v2485
        %vm3427 = vcmp.eq.s32.totalorder %v2339, %v2489
        %vm3428 = vcmp.eq.s32.totalorder %v2340, %v2493
        %vm3429 = vcmp.eq.s32.totalorder %v2341, %v2497
        %vm3430 = vcmp.eq.s32.totalorder %v2342, %v2501
        %vm3431 = vcmp.eq.s32.totalorder %v2343, %v2505
        %vm3432 = vcmp.eq.s32.totalorder %v2344, %v2509
        %vm3433 = vcmp.eq.s32.totalorder %v2345, %v2513
        %vm3434 = vcmp.eq.s32.totalorder %v2346, %v2517
        %vm3435 = vcmp.eq.s32.totalorder %v2347, %v2521
        %vm3436 = vcmp.eq.s32.totalorder %v2348, %v2525
        %vm3437 = vcmp.eq.s32.totalorder %v2349, %v2529
        %vm3438 = vcmp.eq.s32.totalorder %v2350, %v2533
        %vm3439 = vcmp.eq.s32.totalorder %v2351, %v2537
        %vm3440 = vcmp.eq.s32.totalorder %v2352, %v2541
        %vm3441 = vcmp.eq.s32.totalorder %v2353, %v2545
        %vm3442 = vcmp.eq.s32.totalorder %v2354, %v2485
        %vm3443 = vcmp.eq.s32.totalorder %v2355, %v2489
        %vm3444 = vcmp.eq.s32.totalorder %v2356, %v2493
        %vm3445 = vcmp.eq.s32.totalorder %v2357, %v2497
        %vm3446 = vcmp.eq.s32.totalorder %v2358, %v2501
        %vm3447 = vcmp.eq.s32.totalorder %v2359, %v2505
        %vm3448 = vcmp.eq.s32.totalorder %v2360, %v2509
        %vm3449 = vcmp.eq.s32.totalorder %v2361, %v2513
        %vm3450 = vcmp.eq.s32.totalorder %v2362, %v2517
        %vm3451 = vcmp.eq.s32.totalorder %v2363, %v2521
        %vm3452 = vcmp.eq.s32.totalorder %v2364, %v2525
        %vm3453 = vcmp.eq.s32.totalorder %v2365, %v2529
        %vm3454 = vcmp.eq.s32.totalorder %v2366, %v2533
        %vm3455 = vcmp.eq.s32.totalorder %v2367, %v2537
        %vm3456 = vcmp.eq.s32.totalorder %v2368, %v2541
        %vm3457 = vcmp.eq.s32.totalorder %v2369, %v2545
        %vm3458 = vcmp.eq.s32.totalorder %v2370, %v2485
        %vm3459 = vcmp.eq.s32.totalorder %v2371, %v2489
        %vm3460 = vcmp.eq.s32.totalorder %v2372, %v2493
        %vm3461 = vcmp.eq.s32.totalorder %v2373, %v2497
        %vm3462 = vcmp.eq.s32.totalorder %v2374, %v2501
        %vm3463 = vcmp.eq.s32.totalorder %v2375, %v2505
        %vm3464 = vcmp.eq.s32.totalorder %v2376, %v2509
        %vm3465 = vcmp.eq.s32.totalorder %v2377, %v2513
        %vm3466 = vcmp.eq.s32.totalorder %v2378, %v2517
        %vm3467 = vcmp.eq.s32.totalorder %v2379, %v2521
        %vm3468 = vcmp.eq.s32.totalorder %v2380, %v2525
        %vm3469 = vcmp.eq.s32.totalorder %v2381, %v2529
        %vm3470 = vcmp.eq.s32.totalorder %v2382, %v2533
        %vm3471 = vcmp.eq.s32.totalorder %v2383, %v2537
        %vm3472 = vcmp.eq.s32.totalorder %v2384, %v2541
        %vm3473 = vcmp.eq.s32.totalorder %v2385, %v2545
        %vm3474 = vcmp.eq.s32.totalorder %v2386, %v2485
        %vm3475 = vcmp.eq.s32.totalorder %v2387, %v2489
        %vm3476 = vcmp.eq.s32.totalorder %v2388, %v2493
        %vm3477 = vcmp.eq.s32.totalorder %v2389, %v2497
        %vm3478 = vcmp.eq.s32.totalorder %v2390, %v2501
        %vm3479 = vcmp.eq.s32.totalorder %v2391, %v2505
        %vm3480 = vcmp.eq.s32.totalorder %v2392, %v2509
        %vm3481 = vcmp.eq.s32.totalorder %v2393, %v2513
        %vm3482 = vcmp.eq.s32.totalorder %v2394, %v2517
        %vm3483 = vcmp.eq.s32.totalorder %v2395, %v2521
        %vm3484 = vcmp.eq.s32.totalorder %v2396, %v2525
        %vm3485 = vcmp.eq.s32.totalorder %v2397, %v2529
        %vm3486 = vcmp.eq.s32.totalorder %v2398, %v2533
        %vm3487 = vcmp.eq.s32.totalorder %v2399, %v2537
        %vm3488 = vcmp.eq.s32.totalorder %v2400, %v2541
        %vm3489 = vcmp.eq.s32.totalorder %v2401, %v2545
        %vm3490 = vcmp.eq.s32.totalorder %v2402, %v2485
        %vm3491 = vcmp.eq.s32.totalorder %v2403, %v2489
        %vm3492 = vcmp.eq.s32.totalorder %v2404, %v2493
        %vm3493 = vcmp.eq.s32.totalorder %v2405, %v2497
        %vm3494 = vcmp.eq.s32.totalorder %v2406, %v2501
        %vm3495 = vcmp.eq.s32.totalorder %v2407, %v2505
        %vm3496 = vcmp.eq.s32.totalorder %v2408, %v2509
        %vm3497 = vcmp.eq.s32.totalorder %v2409, %v2513
        %vm3498 = vcmp.eq.s32.totalorder %v2410, %v2517
        %vm3499 = vcmp.eq.s32.totalorder %v2411, %v2521
        %vm3500 = vcmp.eq.s32.totalorder %v2412, %v2525
        %vm3501 = vcmp.eq.s32.totalorder %v2413, %v2529
        %vm3502 = vcmp.eq.s32.totalorder %v2414, %v2533
        %vm3503 = vcmp.eq.s32.totalorder %v2415, %v2537
        %vm3504 = vcmp.eq.s32.totalorder %v2416, %v2541
        %vm3505 = vcmp.eq.s32.totalorder %v2417, %v2545
        %vm3506 = vcmp.eq.s32.totalorder %v2418, %v2485
        %vm3507 = vcmp.eq.s32.totalorder %v2419, %v2489
        %vm3508 = vcmp.eq.s32.totalorder %v2420, %v2493
        %vm3509 = vcmp.eq.s32.totalorder %v2421, %v2497
        %vm3510 = vcmp.eq.s32.totalorder %v2422, %v2501
        %vm3511 = vcmp.eq.s32.totalorder %v2423, %v2505
        %vm3512 = vcmp.eq.s32.totalorder %v2424, %v2509
        %vm3513 = vcmp.eq.s32.totalorder %v2425, %v2513
        %vm3514 = vcmp.eq.s32.totalorder %v2426, %v2517
        %vm3515 = vcmp.eq.s32.totalorder %v2427, %v2521
        %vm3516 = vcmp.eq.s32.totalorder %v2428, %v2525
        %vm3517 = vcmp.eq.s32.totalorder %v2429, %v2529
        %vm3518 = vcmp.eq.s32.totalorder %v2430, %v2533
        %vm3519 = vcmp.eq.s32.totalorder %v2431, %v2537
        %vm3520 = vcmp.eq.s32.totalorder %v2432, %v2541
        %vm3521 = vcmp.eq.s32.totalorder %v2433, %v2545
        %vm3522 = vcmp.eq.s32.totalorder %v2434, %v2485
        %vm3523 = vcmp.eq.s32.totalorder %v2435, %v2489
        %vm3524 = vcmp.eq.s32.totalorder %v2436, %v2493
        %vm3525 = vcmp.eq.s32.totalorder %v2437, %v2497
        %vm3526 = vcmp.eq.s32.totalorder %v2438, %v2501
        %vm3527 = vcmp.eq.s32.totalorder %v2439, %v2505
        %vm3528 = vcmp.eq.s32.totalorder %v2440, %v2509
        %vm3529 = vcmp.eq.s32.totalorder %v2441, %v2513
        %vm3530 = vcmp.eq.s32.totalorder %v2442, %v2517
        %vm3531 = vcmp.eq.s32.totalorder %v2443, %v2521
        %vm3532 = vcmp.eq.s32.totalorder %v2444, %v2525
        %vm3533 = vcmp.eq.s32.totalorder %v2445, %v2529
        %vm3534 = vcmp.eq.s32.totalorder %v2446, %v2533
        %vm3535 = vcmp.eq.s32.totalorder %v2447, %v2537
        %vm3536 = vcmp.eq.s32.totalorder %v2448, %v2541
        %vm3537 = vcmp.eq.s32.totalorder %v2449, %v2545
        %vm3538 = vcmp.eq.s32.totalorder %v2450, %v2485
        %vm3539 = vcmp.eq.s32.totalorder %v2451, %v2489
        %vm3540 = vcmp.eq.s32.totalorder %v2452, %v2493
        %vm3541 = vcmp.eq.s32.totalorder %v2453, %v2497
        %vm3542 = vcmp.eq.s32.totalorder %v2454, %v2501
        %vm3543 = vcmp.eq.s32.totalorder %v2455, %v2505
        %vm3544 = vcmp.eq.s32.totalorder %v2456, %v2509
        %vm3545 = vcmp.eq.s32.totalorder %v2457, %v2513
        %vm3546 = vcmp.eq.s32.totalorder %v2458, %v2517
        %vm3547 = vcmp.eq.s32.totalorder %v2459, %v2521
        %vm3548 = vcmp.eq.s32.totalorder %v2460, %v2525
        %vm3549 = vcmp.eq.s32.totalorder %v2461, %v2529
        %vm3550 = vcmp.eq.s32.totalorder %v2462, %v2533
        %vm3551 = vcmp.eq.s32.totalorder %v2463, %v2537
        %vm3552 = vcmp.eq.s32.totalorder %v2464, %v2541
        %vm3553 = vcmp.eq.s32.totalorder %v2465, %v2545
        %vm3554 = vcmp.eq.s32.totalorder %v2466, %v2485
        %vm3555 = vcmp.eq.s32.totalorder %v2467, %v2489
        %vm3556 = vcmp.eq.s32.totalorder %v2468, %v2493
        %vm3557 = vcmp.eq.s32.totalorder %v2469, %v2497
        %vm3558 = vcmp.eq.s32.totalorder %v2470, %v2501
        %vm3559 = vcmp.eq.s32.totalorder %v2471, %v2505
        %vm3560 = vcmp.eq.s32.totalorder %v2472, %v2509
        %vm3561 = vcmp.eq.s32.totalorder %v2473, %v2513
        %vm3562 = vcmp.eq.s32.totalorder %v2474, %v2517
        %vm3563 = vcmp.eq.s32.totalorder %v2475, %v2521
        %vm3564 = vcmp.eq.s32.totalorder %v2476, %v2525
        %vm3565 = vcmp.eq.s32.totalorder %v2477, %v2529
        %vm3566 = vcmp.eq.s32.totalorder %v2478, %v2533
        %vm3567 = vcmp.eq.s32.totalorder %v2479, %v2537
        %vm3568 = vcmp.eq.s32.totalorder %v2480, %v2541
        %vm3569 = vcmp.eq.s32.totalorder %v2481, %v2545
        %v3572 = vlaneseq
        %v3573 = vshrl.u32 %v3572, 7
        %v3574 = vsub.s32 0, %v3573
        %v3575 = vrot.slane %v1450, %v3574
        %v3576 = vlaneseq
        %v3577 = vshrl.u32 %v3576, 7
        %v3578 = vsub.s32 1, %v3577
        %v3579 = vrot.slane %v1450, %v3578
        %v3580 = vlaneseq
        %v3581 = vshrl.u32 %v3580, 7
        %v3582 = vsub.s32 2, %v3581
        %v3583 = vrot.slane %v1450, %v3582
        %v3584 = vlaneseq
        %v3585 = vshrl.u32 %v3584, 7
        %v3586 = vsub.s32 3, %v3585
        %v3587 = vrot.slane %v1450, %v3586
        %v3588 = vlaneseq
        %v3589 = vshrl.u32 %v3588, 7
        %v3590 = vsub.s32 4, %v3589
        %v3591 = vrot.slane %v1450, %v3590
        %v3592 = vlaneseq
        %v3593 = vshrl.u32 %v3592, 7
        %v3594 = vsub.s32 5, %v3593
        %v3595 = vrot.slane %v1450, %v3594
        %v3596 = vlaneseq
        %v3597 = vshrl.u32 %v3596, 7
        %v3598 = vsub.s32 6, %v3597
        %v3599 = vrot.slane %v1450, %v3598
        %v3600 = vlaneseq
        %v3601 = vshrl.u32 %v3600, 7
        %v3602 = vsub.s32 7, %v3601
        %v3603 = vrot.slane %v1450, %v3602
        %v3604 = vlaneseq
        %v3605 = vshrl.u32 %v3604, 7
        %v3606 = vsub.s32 0, %v3605
        %v3607 = vrot.slane %v1451, %v3606
        %v3608 = vlaneseq
        %v3609 = vshrl.u32 %v3608, 7
        %v3610 = vsub.s32 1, %v3609
        %v3611 = vrot.slane %v1451, %v3610
        %v3612 = vlaneseq
        %v3613 = vshrl.u32 %v3612, 7
        %v3614 = vsub.s32 2, %v3613
        %v3615 = vrot.slane %v1451, %v3614
        %v3616 = vlaneseq
        %v3617 = vshrl.u32 %v3616, 7
        %v3618 = vsub.s32 3, %v3617
        %v3619 = vrot.slane %v1451, %v3618
        %v3620 = vlaneseq
        %v3621 = vshrl.u32 %v3620, 7
        %v3622 = vsub.s32 4, %v3621
        %v3623 = vrot.slane %v1451, %v3622
        %v3624 = vlaneseq
        %v3625 = vshrl.u32 %v3624, 7
        %v3626 = vsub.s32 5, %v3625
        %v3627 = vrot.slane %v1451, %v3626
        %v3628 = vlaneseq
        %v3629 = vshrl.u32 %v3628, 7
        %v3630 = vsub.s32 6, %v3629
        %v3631 = vrot.slane %v1451, %v3630
        %v3632 = vlaneseq
        %v3633 = vshrl.u32 %v3632, 7
        %v3634 = vsub.s32 7, %v3633
        %v3635 = vrot.slane %v1451, %v3634
        %v3652 = vsel %vm2546, %v3575, 0.0
        %v3653 = vsel %vm2547, %v3579, 0.0
        %v3654 = vsel %vm2548, %v3583, 0.0
        %v3655 = vsel %vm2549, %v3587, 0.0
        %v3656 = vsel %vm2550, %v3591, 0.0
        %v3657 = vsel %vm2551, %v3595, 0.0
        %v3658 = vsel %vm2552, %v3599, 0.0
        %v3659 = vsel %vm2553, %v3603, 0.0
        %v3660 = vsel %vm2554, %v3607, 0.0
        %v3661 = vsel %vm2555, %v3611, 0.0
        %v3662 = vsel %vm2556, %v3615, 0.0
        %v3663 = vsel %vm2557, %v3619, 0.0
        %v3664 = vsel %vm2558, %v3623, 0.0
        %v3665 = vsel %vm2559, %v3627, 0.0
        %v3666 = vsel %vm2560, %v3631, 0.0
        %v3667 = vsel %vm2561, %v3635, 0.0
        %v3668 = vsel %vm2562, %v3575, 0.0
        %v3669 = vsel %vm2563, %v3579, 0.0
        %v3670 = vsel %vm2564, %v3583, 0.0
        %v3671 = vsel %vm2565, %v3587, 0.0
        %v3672 = vsel %vm2566, %v3591, 0.0
        %v3673 = vsel %vm2567, %v3595, 0.0
        %v3674 = vsel %vm2568, %v3599, 0.0
        %v3675 = vsel %vm2569, %v3603, 0.0
        %v3676 = vsel %vm2570, %v3607, 0.0
        %v3677 = vsel %vm2571, %v3611, 0.0
        %v3678 = vsel %vm2572, %v3615, 0.0
        %v3679 = vsel %vm2573, %v3619, 0.0
        %v3680 = vsel %vm2574, %v3623, 0.0
        %v3681 = vsel %vm2575, %v3627, 0.0
        %v3682 = vsel %vm2576, %v3631, 0.0
        %v3683 = vsel %vm2577, %v3635, 0.0
        %v3684 = vsel %vm2578, %v3575, 0.0
        %v3685 = vsel %vm2579, %v3579, 0.0
        %v3686 = vsel %vm2580, %v3583, 0.0
        %v3687 = vsel %vm2581, %v3587, 0.0
        %v3688 = vsel %vm2582, %v3591, 0.0
        %v3689 = vsel %vm2583, %v3595, 0.0
        %v3690 = vsel %vm2584, %v3599, 0.0
        %v3691 = vsel %vm2585, %v3603, 0.0
        %v3692 = vsel %vm2586, %v3607, 0.0
        %v3693 = vsel %vm2587, %v3611, 0.0
        %v3694 = vsel %vm2588, %v3615, 0.0
        %v3695 = vsel %vm2589, %v3619, 0.0
        %v3696 = vsel %vm2590, %v3623, 0.0
        %v3697 = vsel %vm2591, %v3627, 0.0
        %v3698 = vsel %vm2592, %v3631, 0.0
        %v3699 = vsel %vm2593, %v3635, 0.0
        %v3700 = vsel %vm2594, %v3575, 0.0
        %v3701 = vsel %vm2595, %v3579, 0.0
        %v3702 = vsel %vm2596, %v3583, 0.0
        %v3703 = vsel %vm2597, %v3587, 0.0
        %v3704 = vsel %vm2598, %v3591, 0.0
        %v3705 = vsel %vm2599, %v3595, 0.0
        %v3706 = vsel %vm2600, %v3599, 0.0
        %v3707 = vsel %vm2601, %v3603, 0.0
        %v3708 = vsel %vm2602, %v3607, 0.0
        %v3709 = vsel %vm2603, %v3611, 0.0
        %v3710 = vsel %vm2604, %v3615, 0.0
        %v3711 = vsel %vm2605, %v3619, 0.0
        %v3712 = vsel %vm2606, %v3623, 0.0
        %v3713 = vsel %vm2607, %v3627, 0.0
        %v3714 = vsel %vm2608, %v3631, 0.0
        %v3715 = vsel %vm2609, %v3635, 0.0
        %v3716 = vsel %vm2610, %v3575, 0.0
        %v3717 = vsel %vm2611, %v3579, 0.0
        %v3718 = vsel %vm2612, %v3583, 0.0
        %v3719 = vsel %vm2613, %v3587, 0.0
        %v3720 = vsel %vm2614, %v3591, 0.0
        %v3721 = vsel %vm2615, %v3595, 0.0
        %v3722 = vsel %vm2616, %v3599, 0.0
        %v3723 = vsel %vm2617, %v3603, 0.0
        %v3724 = vsel %vm2618, %v3607, 0.0
        %v3725 = vsel %vm2619, %v3611, 0.0
        %v3726 = vsel %vm2620, %v3615, 0.0
        %v3727 = vsel %vm2621, %v3619, 0.0
        %v3728 = vsel %vm2622, %v3623, 0.0
        %v3729 = vsel %vm2623, %v3627, 0.0
        %v3730 = vsel %vm2624, %v3631, 0.0
        %v3731 = vsel %vm2625, %v3635, 0.0
        %v3732 = vsel %vm2626, %v3575, 0.0
        %v3733 = vsel %vm2627, %v3579, 0.0
        %v3734 = vsel %vm2628, %v3583, 0.0
        %v3735 = vsel %vm2629, %v3587, 0.0
        %v3736 = vsel %vm2630, %v3591, 0.0
        %v3737 = vsel %vm2631, %v3595, 0.0
        %v3738 = vsel %vm2632, %v3599, 0.0
        %v3739 = vsel %vm2633, %v3603, 0.0
        %v3740 = vsel %vm2634, %v3607, 0.0
        %v3741 = vsel %vm2635, %v3611, 0.0
        %v3742 = vsel %vm2636, %v3615, 0.0
        %v3743 = vsel %vm2637, %v3619, 0.0
        %v3744 = vsel %vm2638, %v3623, 0.0
        %v3745 = vsel %vm2639, %v3627, 0.0
        %v3746 = vsel %vm2640, %v3631, 0.0
        %v3747 = vsel %vm2641, %v3635, 0.0
        %v3748 = vsel %vm2642, %v3575, 0.0
        %v3749 = vsel %vm2643, %v3579, 0.0
        %v3750 = vsel %vm2644, %v3583, 0.0
        %v3751 = vsel %vm2645, %v3587, 0.0
        %v3752 = vsel %vm2646, %v3591, 0.0
        %v3753 = vsel %vm2647, %v3595, 0.0
        %v3754 = vsel %vm2648, %v3599, 0.0
        %v3755 = vsel %vm2649, %v3603, 0.0
        %v3756 = vsel %vm2650, %v3607, 0.0
        %v3757 = vsel %vm2651, %v3611, 0.0
        %v3758 = vsel %vm2652, %v3615, 0.0
        %v3759 = vsel %vm2653, %v3619, 0.0
        %v3760 = vsel %vm2654, %v3623, 0.0
        %v3761 = vsel %vm2655, %v3627, 0.0
        %v3762 = vsel %vm2656, %v3631, 0.0
        %v3763 = vsel %vm2657, %v3635, 0.0
        %v3764 = vsel %vm2658, %v3575, 0.0
        %v3765 = vsel %vm2659, %v3579, 0.0
        %v3766 = vsel %vm2660, %v3583, 0.0
        %v3767 = vsel %vm2661, %v3587, 0.0
        %v3768 = vsel %vm2662, %v3591, 0.0
        %v3769 = vsel %vm2663, %v3595, 0.0
        %v3770 = vsel %vm2664, %v3599, 0.0
        %v3771 = vsel %vm2665, %v3603, 0.0
        %v3772 = vsel %vm2666, %v3607, 0.0
        %v3773 = vsel %vm2667, %v3611, 0.0
        %v3774 = vsel %vm2668, %v3615, 0.0
        %v3775 = vsel %vm2669, %v3619, 0.0
        %v3776 = vsel %vm2670, %v3623, 0.0
        %v3777 = vsel %vm2671, %v3627, 0.0
        %v3778 = vsel %vm2672, %v3631, 0.0
        %v3779 = vsel %vm2673, %v3635, 0.0
        %v3780 = vsel %vm2674, %v3575, 0.0
        %v3781 = vsel %vm2675, %v3579, 0.0
        %v3782 = vsel %vm2676, %v3583, 0.0
        %v3783 = vsel %vm2677, %v3587, 0.0
        %v3784 = vsel %vm2678, %v3591, 0.0
        %v3785 = vsel %vm2679, %v3595, 0.0
        %v3786 = vsel %vm2680, %v3599, 0.0
        %v3787 = vsel %vm2681, %v3603, 0.0
        %v3788 = vsel %vm2682, %v3607, 0.0
        %v3789 = vsel %vm2683, %v3611, 0.0
        %v3790 = vsel %vm2684, %v3615, 0.0
        %v3791 = vsel %vm2685, %v3619, 0.0
        %v3792 = vsel %vm2686, %v3623, 0.0
        %v3793 = vsel %vm2687, %v3627, 0.0
        %v3794 = vsel %vm2688, %v3631, 0.0
        %v3795 = vsel %vm2689, %v3635, 0.0
        %v3796 = vsel %vm2690, %v3575, 0.0
        %v3797 = vsel %vm2691, %v3579, 0.0
        %v3798 = vsel %vm2692, %v3583, 0.0
        %v3799 = vsel %vm2693, %v3587, 0.0
        %v3800 = vsel %vm2694, %v3591, 0.0
        %v3801 = vsel %vm2695, %v3595, 0.0
        %v3802 = vsel %vm2696, %v3599, 0.0
        %v3803 = vsel %vm2697, %v3603, 0.0
        %v3804 = vsel %vm2698, %v3607, 0.0
        %v3805 = vsel %vm2699, %v3611, 0.0
        %v3806 = vsel %vm2700, %v3615, 0.0
        %v3807 = vsel %vm2701, %v3619, 0.0
        %v3808 = vsel %vm2702, %v3623, 0.0
        %v3809 = vsel %vm2703, %v3627, 0.0
        %v3810 = vsel %vm2704, %v3631, 0.0
        %v3811 = vsel %vm2705, %v3635, 0.0
        %v3812 = vsel %vm2706, %v3575, 0.0
        %v3813 = vsel %vm2707, %v3579, 0.0
        %v3814 = vsel %vm2708, %v3583, 0.0
        %v3815 = vsel %vm2709, %v3587, 0.0
        %v3816 = vsel %vm2710, %v3591, 0.0
        %v3817 = vsel %vm2711, %v3595, 0.0
        %v3818 = vsel %vm2712, %v3599, 0.0
        %v3819 = vsel %vm2713, %v3603, 0.0
        %v3820 = vsel %vm2714, %v3607, 0.0
        %v3821 = vsel %vm2715, %v3611, 0.0
        %v3822 = vsel %vm2716, %v3615, 0.0
        %v3823 = vsel %vm2717, %v3619, 0.0
        %v3824 = vsel %vm2718, %v3623, 0.0
        %v3825 = vsel %vm2719, %v3627, 0.0
        %v3826 = vsel %vm2720, %v3631, 0.0
        %v3827 = vsel %vm2721, %v3635, 0.0
        %v3828 = vsel %vm2722, %v3575, 0.0
        %v3829 = vsel %vm2723, %v3579, 0.0
        %v3830 = vsel %vm2724, %v3583, 0.0
        %v3831 = vsel %vm2725, %v3587, 0.0
        %v3832 = vsel %vm2726, %v3591, 0.0
        %v3833 = vsel %vm2727, %v3595, 0.0
        %v3834 = vsel %vm2728, %v3599, 0.0
        %v3835 = vsel %vm2729, %v3603, 0.0
        %v3836 = vsel %vm2730, %v3607, 0.0
        %v3837 = vsel %vm2731, %v3611, 0.0
        %v3838 = vsel %vm2732, %v3615, 0.0
        %v3839 = vsel %vm2733, %v3619, 0.0
        %v3840 = vsel %vm2734, %v3623, 0.0
        %v3841 = vsel %vm2735, %v3627, 0.0
        %v3842 = vsel %vm2736, %v3631, 0.0
        %v3843 = vsel %vm2737, %v3635, 0.0
        %v3844 = vsel %vm2738, %v3575, 0.0
        %v3845 = vsel %vm2739, %v3579, 0.0
        %v3846 = vsel %vm2740, %v3583, 0.0
        %v3847 = vsel %vm2741, %v3587, 0.0
        %v3848 = vsel %vm2742, %v3591, 0.0
        %v3849 = vsel %vm2743, %v3595, 0.0
        %v3850 = vsel %vm2744, %v3599, 0.0
        %v3851 = vsel %vm2745, %v3603, 0.0
        %v3852 = vsel %vm2746, %v3607, 0.0
        %v3853 = vsel %vm2747, %v3611, 0.0
        %v3854 = vsel %vm2748, %v3615, 0.0
        %v3855 = vsel %vm2749, %v3619, 0.0
        %v3856 = vsel %vm2750, %v3623, 0.0
        %v3857 = vsel %vm2751, %v3627, 0.0
        %v3858 = vsel %vm2752, %v3631, 0.0
        %v3859 = vsel %vm2753, %v3635, 0.0
        %v3860 = vsel %vm2754, %v3575, 0.0
        %v3861 = vsel %vm2755, %v3579, 0.0
        %v3862 = vsel %vm2756, %v3583, 0.0
        %v3863 = vsel %vm2757, %v3587, 0.0
        %v3864 = vsel %vm2758, %v3591, 0.0
        %v3865 = vsel %vm2759, %v3595, 0.0
        %v3866 = vsel %vm2760, %v3599, 0.0
        %v3867 = vsel %vm2761, %v3603, 0.0
        %v3868 = vsel %vm2762, %v3607, 0.0
        %v3869 = vsel %vm2763, %v3611, 0.0
        %v3870 = vsel %vm2764, %v3615, 0.0
        %v3871 = vsel %vm2765, %v3619, 0.0
        %v3872 = vsel %vm2766, %v3623, 0.0
        %v3873 = vsel %vm2767, %v3627, 0.0
        %v3874 = vsel %vm2768, %v3631, 0.0
        %v3875 = vsel %vm2769, %v3635, 0.0
        %v3876 = vsel %vm2770, %v3575, 0.0
        %v3877 = vsel %vm2771, %v3579, 0.0
        %v3878 = vsel %vm2772, %v3583, 0.0
        %v3879 = vsel %vm2773, %v3587, 0.0
        %v3880 = vsel %vm2774, %v3591, 0.0
        %v3881 = vsel %vm2775, %v3595, 0.0
        %v3882 = vsel %vm2776, %v3599, 0.0
        %v3883 = vsel %vm2777, %v3603, 0.0
        %v3884 = vsel %vm2778, %v3607, 0.0
        %v3885 = vsel %vm2779, %v3611, 0.0
        %v3886 = vsel %vm2780, %v3615, 0.0
        %v3887 = vsel %vm2781, %v3619, 0.0
        %v3888 = vsel %vm2782, %v3623, 0.0
        %v3889 = vsel %vm2783, %v3627, 0.0
        %v3890 = vsel %vm2784, %v3631, 0.0
        %v3891 = vsel %vm2785, %v3635, 0.0
        %v3892 = vsel %vm2786, %v3575, 0.0
        %v3893 = vsel %vm2787, %v3579, 0.0
        %v3894 = vsel %vm2788, %v3583, 0.0
        %v3895 = vsel %vm2789, %v3587, 0.0
        %v3896 = vsel %vm2790, %v3591, 0.0
        %v3897 = vsel %vm2791, %v3595, 0.0
        %v3898 = vsel %vm2792, %v3599, 0.0
        %v3899 = vsel %vm2793, %v3603, 0.0
        %v3900 = vsel %vm2794, %v3607, 0.0
        %v3901 = vsel %vm2795, %v3611, 0.0
        %v3902 = vsel %vm2796, %v3615, 0.0
        %v3903 = vsel %vm2797, %v3619, 0.0
        %v3904 = vsel %vm2798, %v3623, 0.0
        %v3905 = vsel %vm2799, %v3627, 0.0
        %v3906 = vsel %vm2800, %v3631, 0.0
        %v3907 = vsel %vm2801, %v3635, 0.0
        %v3908 = vsel %vm2802, %v3575, 0.0
        %v3909 = vsel %vm2803, %v3579, 0.0
        %v3910 = vsel %vm2804, %v3583, 0.0
        %v3911 = vsel %vm2805, %v3587, 0.0
        %v3912 = vsel %vm2806, %v3591, 0.0
        %v3913 = vsel %vm2807, %v3595, 0.0
        %v3914 = vsel %vm2808, %v3599, 0.0
        %v3915 = vsel %vm2809, %v3603, 0.0
        %v3916 = vsel %vm2810, %v3607, 0.0
        %v3917 = vsel %vm2811, %v3611, 0.0
        %v3918 = vsel %vm2812, %v3615, 0.0
        %v3919 = vsel %vm2813, %v3619, 0.0
        %v3920 = vsel %vm2814, %v3623, 0.0
        %v3921 = vsel %vm2815, %v3627, 0.0
        %v3922 = vsel %vm2816, %v3631, 0.0
        %v3923 = vsel %vm2817, %v3635, 0.0
        %v3924 = vsel %vm2818, %v3575, 0.0
        %v3925 = vsel %vm2819, %v3579, 0.0
        %v3926 = vsel %vm2820, %v3583, 0.0
        %v3927 = vsel %vm2821, %v3587, 0.0
        %v3928 = vsel %vm2822, %v3591, 0.0
        %v3929 = vsel %vm2823, %v3595, 0.0
        %v3930 = vsel %vm2824, %v3599, 0.0
        %v3931 = vsel %vm2825, %v3603, 0.0
        %v3932 = vsel %vm2826, %v3607, 0.0
        %v3933 = vsel %vm2827, %v3611, 0.0
        %v3934 = vsel %vm2828, %v3615, 0.0
        %v3935 = vsel %vm2829, %v3619, 0.0
        %v3936 = vsel %vm2830, %v3623, 0.0
        %v3937 = vsel %vm2831, %v3627, 0.0
        %v3938 = vsel %vm2832, %v3631, 0.0
        %v3939 = vsel %vm2833, %v3635, 0.0
        %v3940 = vsel %vm2834, %v3575, 0.0
        %v3941 = vsel %vm2835, %v3579, 0.0
        %v3942 = vsel %vm2836, %v3583, 0.0
        %v3943 = vsel %vm2837, %v3587, 0.0
        %v3944 = vsel %vm2838, %v3591, 0.0
        %v3945 = vsel %vm2839, %v3595, 0.0
        %v3946 = vsel %vm2840, %v3599, 0.0
        %v3947 = vsel %vm2841, %v3603, 0.0
        %v3948 = vsel %vm2842, %v3607, 0.0
        %v3949 = vsel %vm2843, %v3611, 0.0
        %v3950 = vsel %vm2844, %v3615, 0.0
        %v3951 = vsel %vm2845, %v3619, 0.0
        %v3952 = vsel %vm2846, %v3623, 0.0
        %v3953 = vsel %vm2847, %v3627, 0.0
        %v3954 = vsel %vm2848, %v3631, 0.0
        %v3955 = vsel %vm2849, %v3635, 0.0
        %v3956 = vsel %vm2850, %v3575, 0.0
        %v3957 = vsel %vm2851, %v3579, 0.0
        %v3958 = vsel %vm2852, %v3583, 0.0
        %v3959 = vsel %vm2853, %v3587, 0.0
        %v3960 = vsel %vm2854, %v3591, 0.0
        %v3961 = vsel %vm2855, %v3595, 0.0
        %v3962 = vsel %vm2856, %v3599, 0.0
        %v3963 = vsel %vm2857, %v3603, 0.0
        %v3964 = vsel %vm2858, %v3607, 0.0
        %v3965 = vsel %vm2859, %v3611, 0.0
        %v3966 = vsel %vm2860, %v3615, 0.0
        %v3967 = vsel %vm2861, %v3619, 0.0
        %v3968 = vsel %vm2862, %v3623, 0.0
        %v3969 = vsel %vm2863, %v3627, 0.0
        %v3970 = vsel %vm2864, %v3631, 0.0
        %v3971 = vsel %vm2865, %v3635, 0.0
        %v3972 = vsel %vm2866, %v3575, 0.0
        %v3973 = vsel %vm2867, %v3579, 0.0
        %v3974 = vsel %vm2868, %v3583, 0.0
        %v3975 = vsel %vm2869, %v3587, 0.0
        %v3976 = vsel %vm2870, %v3591, 0.0
        %v3977 = vsel %vm2871, %v3595, 0.0
        %v3978 = vsel %vm2872, %v3599, 0.0
        %v3979 = vsel %vm2873, %v3603, 0.0
        %v3980 = vsel %vm2874, %v3607, 0.0
        %v3981 = vsel %vm2875, %v3611, 0.0
        %v3982 = vsel %vm2876, %v3615, 0.0
        %v3983 = vsel %vm2877, %v3619, 0.0
        %v3984 = vsel %vm2878, %v3623, 0.0
        %v3985 = vsel %vm2879, %v3627, 0.0
        %v3986 = vsel %vm2880, %v3631, 0.0
        %v3987 = vsel %vm2881, %v3635, 0.0
        %v3988 = vsel %vm2882, %v3575, 0.0
        %v3989 = vsel %vm2883, %v3579, 0.0
        %v3990 = vsel %vm2884, %v3583, 0.0
        %v3991 = vsel %vm2885, %v3587, 0.0
        %v3992 = vsel %vm2886, %v3591, 0.0
        %v3993 = vsel %vm2887, %v3595, 0.0
        %v3994 = vsel %vm2888, %v3599, 0.0
        %v3995 = vsel %vm2889, %v3603, 0.0
        %v3996 = vsel %vm2890, %v3607, 0.0
        %v3997 = vsel %vm2891, %v3611, 0.0
        %v3998 = vsel %vm2892, %v3615, 0.0
        %v3999 = vsel %vm2893, %v3619, 0.0
        %v4000 = vsel %vm2894, %v3623, 0.0
        %v4001 = vsel %vm2895, %v3627, 0.0
        %v4002 = vsel %vm2896, %v3631, 0.0
        %v4003 = vsel %vm2897, %v3635, 0.0
        %v4004 = vsel %vm2898, %v3575, 0.0
        %v4005 = vsel %vm2899, %v3579, 0.0
        %v4006 = vsel %vm2900, %v3583, 0.0
        %v4007 = vsel %vm2901, %v3587, 0.0
        %v4008 = vsel %vm2902, %v3591, 0.0
        %v4009 = vsel %vm2903, %v3595, 0.0
        %v4010 = vsel %vm2904, %v3599, 0.0
        %v4011 = vsel %vm2905, %v3603, 0.0
        %v4012 = vsel %vm2906, %v3607, 0.0
        %v4013 = vsel %vm2907, %v3611, 0.0
        %v4014 = vsel %vm2908, %v3615, 0.0
        %v4015 = vsel %vm2909, %v3619, 0.0
        %v4016 = vsel %vm2910, %v3623, 0.0
        %v4017 = vsel %vm2911, %v3627, 0.0
        %v4018 = vsel %vm2912, %v3631, 0.0
        %v4019 = vsel %vm2913, %v3635, 0.0
        %v4020 = vsel %vm2914, %v3575, 0.0
        %v4021 = vsel %vm2915, %v3579, 0.0
        %v4022 = vsel %vm2916, %v3583, 0.0
        %v4023 = vsel %vm2917, %v3587, 0.0
        %v4024 = vsel %vm2918, %v3591, 0.0
        %v4025 = vsel %vm2919, %v3595, 0.0
        %v4026 = vsel %vm2920, %v3599, 0.0
        %v4027 = vsel %vm2921, %v3603, 0.0
        %v4028 = vsel %vm2922, %v3607, 0.0
        %v4029 = vsel %vm2923, %v3611, 0.0
        %v4030 = vsel %vm2924, %v3615, 0.0
        %v4031 = vsel %vm2925, %v3619, 0.0
        %v4032 = vsel %vm2926, %v3623, 0.0
        %v4033 = vsel %vm2927, %v3627, 0.0
        %v4034 = vsel %vm2928, %v3631, 0.0
        %v4035 = vsel %vm2929, %v3635, 0.0
        %v4036 = vsel %vm2930, %v3575, 0.0
        %v4037 = vsel %vm2931, %v3579, 0.0
        %v4038 = vsel %vm2932, %v3583, 0.0
        %v4039 = vsel %vm2933, %v3587, 0.0
        %v4040 = vsel %vm2934, %v3591, 0.0
        %v4041 = vsel %vm2935, %v3595, 0.0
        %v4042 = vsel %vm2936, %v3599, 0.0
        %v4043 = vsel %vm2937, %v3603, 0.0
        %v4044 = vsel %vm2938, %v3607, 0.0
        %v4045 = vsel %vm2939, %v3611, 0.0
        %v4046 = vsel %vm2940, %v3615, 0.0
        %v4047 = vsel %vm2941, %v3619, 0.0
        %v4048 = vsel %vm2942, %v3623, 0.0
        %v4049 = vsel %vm2943, %v3627, 0.0
        %v4050 = vsel %vm2944, %v3631, 0.0
        %v4051 = vsel %vm2945, %v3635, 0.0
        %v4052 = vsel %vm2946, %v3575, 0.0
        %v4053 = vsel %vm2947, %v3579, 0.0
        %v4054 = vsel %vm2948, %v3583, 0.0
        %v4055 = vsel %vm2949, %v3587, 0.0
        %v4056 = vsel %vm2950, %v3591, 0.0
        %v4057 = vsel %vm2951, %v3595, 0.0
        %v4058 = vsel %vm2952, %v3599, 0.0
        %v4059 = vsel %vm2953, %v3603, 0.0
        %v4060 = vsel %vm2954, %v3607, 0.0
        %v4061 = vsel %vm2955, %v3611, 0.0
        %v4062 = vsel %vm2956, %v3615, 0.0
        %v4063 = vsel %vm2957, %v3619, 0.0
        %v4064 = vsel %vm2958, %v3623, 0.0
        %v4065 = vsel %vm2959, %v3627, 0.0
        %v4066 = vsel %vm2960, %v3631, 0.0
        %v4067 = vsel %vm2961, %v3635, 0.0
        %v4068 = vsel %vm2962, %v3575, 0.0
        %v4069 = vsel %vm2963, %v3579, 0.0
        %v4070 = vsel %vm2964, %v3583, 0.0
        %v4071 = vsel %vm2965, %v3587, 0.0
        %v4072 = vsel %vm2966, %v3591, 0.0
        %v4073 = vsel %vm2967, %v3595, 0.0
        %v4074 = vsel %vm2968, %v3599, 0.0
        %v4075 = vsel %vm2969, %v3603, 0.0
        %v4076 = vsel %vm2970, %v3607, 0.0
        %v4077 = vsel %vm2971, %v3611, 0.0
        %v4078 = vsel %vm2972, %v3615, 0.0
        %v4079 = vsel %vm2973, %v3619, 0.0
        %v4080 = vsel %vm2974, %v3623, 0.0
        %v4081 = vsel %vm2975, %v3627, 0.0
        %v4082 = vsel %vm2976, %v3631, 0.0
        %v4083 = vsel %vm2977, %v3635, 0.0
        %v4084 = vsel %vm2978, %v3575, 0.0
        %v4085 = vsel %vm2979, %v3579, 0.0
        %v4086 = vsel %vm2980, %v3583, 0.0
        %v4087 = vsel %vm2981, %v3587, 0.0
        %v4088 = vsel %vm2982, %v3591, 0.0
        %v4089 = vsel %vm2983, %v3595, 0.0
        %v4090 = vsel %vm2984, %v3599, 0.0
        %v4091 = vsel %vm2985, %v3603, 0.0
        %v4092 = vsel %vm2986, %v3607, 0.0
        %v4093 = vsel %vm2987, %v3611, 0.0
        %v4094 = vsel %vm2988, %v3615, 0.0
        %v4095 = vsel %vm2989, %v3619, 0.0
        %v4096 = vsel %vm2990, %v3623, 0.0
        %v4097 = vsel %vm2991, %v3627, 0.0
        %v4098 = vsel %vm2992, %v3631, 0.0
        %v4099 = vsel %vm2993, %v3635, 0.0
        %v4100 = vsel %vm2994, %v3575, 0.0
        %v4101 = vsel %vm2995, %v3579, 0.0
        %v4102 = vsel %vm2996, %v3583, 0.0
        %v4103 = vsel %vm2997, %v3587, 0.0
        %v4104 = vsel %vm2998, %v3591, 0.0
        %v4105 = vsel %vm2999, %v3595, 0.0
        %v4106 = vsel %vm3000, %v3599, 0.0
        %v4107 = vsel %vm3001, %v3603, 0.0
        %v4108 = vsel %vm3002, %v3607, 0.0
        %v4109 = vsel %vm3003, %v3611, 0.0
        %v4110 = vsel %vm3004, %v3615, 0.0
        %v4111 = vsel %vm3005, %v3619, 0.0
        %v4112 = vsel %vm3006, %v3623, 0.0
        %v4113 = vsel %vm3007, %v3627, 0.0
        %v4114 = vsel %vm3008, %v3631, 0.0
        %v4115 = vsel %vm3009, %v3635, 0.0
        %v4116 = vsel %vm3010, %v3575, 0.0
        %v4117 = vsel %vm3011, %v3579, 0.0
        %v4118 = vsel %vm3012, %v3583, 0.0
        %v4119 = vsel %vm3013, %v3587, 0.0
        %v4120 = vsel %vm3014, %v3591, 0.0
        %v4121 = vsel %vm3015, %v3595, 0.0
        %v4122 = vsel %vm3016, %v3599, 0.0
        %v4123 = vsel %vm3017, %v3603, 0.0
        %v4124 = vsel %vm3018, %v3607, 0.0
        %v4125 = vsel %vm3019, %v3611, 0.0
        %v4126 = vsel %vm3020, %v3615, 0.0
        %v4127 = vsel %vm3021, %v3619, 0.0
        %v4128 = vsel %vm3022, %v3623, 0.0
        %v4129 = vsel %vm3023, %v3627, 0.0
        %v4130 = vsel %vm3024, %v3631, 0.0
        %v4131 = vsel %vm3025, %v3635, 0.0
        %v4132 = vsel %vm3026, %v3575, 0.0
        %v4133 = vsel %vm3027, %v3579, 0.0
        %v4134 = vsel %vm3028, %v3583, 0.0
        %v4135 = vsel %vm3029, %v3587, 0.0
        %v4136 = vsel %vm3030, %v3591, 0.0
        %v4137 = vsel %vm3031, %v3595, 0.0
        %v4138 = vsel %vm3032, %v3599, 0.0
        %v4139 = vsel %vm3033, %v3603, 0.0
        %v4140 = vsel %vm3034, %v3607, 0.0
        %v4141 = vsel %vm3035, %v3611, 0.0
        %v4142 = vsel %vm3036, %v3615, 0.0
        %v4143 = vsel %vm3037, %v3619, 0.0
        %v4144 = vsel %vm3038, %v3623, 0.0
        %v4145 = vsel %vm3039, %v3627, 0.0
        %v4146 = vsel %vm3040, %v3631, 0.0
        %v4147 = vsel %vm3041, %v3635, 0.0
        %v4148 = vsel %vm3042, %v3575, 0.0
        %v4149 = vsel %vm3043, %v3579, 0.0
        %v4150 = vsel %vm3044, %v3583, 0.0
        %v4151 = vsel %vm3045, %v3587, 0.0
        %v4152 = vsel %vm3046, %v3591, 0.0
        %v4153 = vsel %vm3047, %v3595, 0.0
        %v4154 = vsel %vm3048, %v3599, 0.0
        %v4155 = vsel %vm3049, %v3603, 0.0
        %v4156 = vsel %vm3050, %v3607, 0.0
        %v4157 = vsel %vm3051, %v3611, 0.0
        %v4158 = vsel %vm3052, %v3615, 0.0
        %v4159 = vsel %vm3053, %v3619, 0.0
        %v4160 = vsel %vm3054, %v3623, 0.0
        %v4161 = vsel %vm3055, %v3627, 0.0
        %v4162 = vsel %vm3056, %v3631, 0.0
        %v4163 = vsel %vm3057, %v3635, 0.0
        %v4164 = vsel %vm3058, %v3575, 0.0
        %v4165 = vsel %vm3059, %v3579, 0.0
        %v4166 = vsel %vm3060, %v3583, 0.0
        %v4167 = vsel %vm3061, %v3587, 0.0
        %v4168 = vsel %vm3062, %v3591, 0.0
        %v4169 = vsel %vm3063, %v3595, 0.0
        %v4170 = vsel %vm3064, %v3599, 0.0
        %v4171 = vsel %vm3065, %v3603, 0.0
        %v4172 = vsel %vm3066, %v3607, 0.0
        %v4173 = vsel %vm3067, %v3611, 0.0
        %v4174 = vsel %vm3068, %v3615, 0.0
        %v4175 = vsel %vm3069, %v3619, 0.0
        %v4176 = vsel %vm3070, %v3623, 0.0
        %v4177 = vsel %vm3071, %v3627, 0.0
        %v4178 = vsel %vm3072, %v3631, 0.0
        %v4179 = vsel %vm3073, %v3635, 0.0
        %v4180 = vsel %vm3074, %v3575, 0.0
        %v4181 = vsel %vm3075, %v3579, 0.0
        %v4182 = vsel %vm3076, %v3583, 0.0
        %v4183 = vsel %vm3077, %v3587, 0.0
        %v4184 = vsel %vm3078, %v3591, 0.0
        %v4185 = vsel %vm3079, %v3595, 0.0
        %v4186 = vsel %vm3080, %v3599, 0.0
        %v4187 = vsel %vm3081, %v3603, 0.0
        %v4188 = vsel %vm3082, %v3607, 0.0
        %v4189 = vsel %vm3083, %v3611, 0.0
        %v4190 = vsel %vm3084, %v3615, 0.0
        %v4191 = vsel %vm3085, %v3619, 0.0
        %v4192 = vsel %vm3086, %v3623, 0.0
        %v4193 = vsel %vm3087, %v3627, 0.0
        %v4194 = vsel %vm3088, %v3631, 0.0
        %v4195 = vsel %vm3089, %v3635, 0.0
        %v4196 = vsel %vm3090, %v3575, 0.0
        %v4197 = vsel %vm3091, %v3579, 0.0
        %v4198 = vsel %vm3092, %v3583, 0.0
        %v4199 = vsel %vm3093, %v3587, 0.0
        %v4200 = vsel %vm3094, %v3591, 0.0
        %v4201 = vsel %vm3095, %v3595, 0.0
        %v4202 = vsel %vm3096, %v3599, 0.0
        %v4203 = vsel %vm3097, %v3603, 0.0
        %v4204 = vsel %vm3098, %v3607, 0.0
        %v4205 = vsel %vm3099, %v3611, 0.0
        %v4206 = vsel %vm3100, %v3615, 0.0
        %v4207 = vsel %vm3101, %v3619, 0.0
        %v4208 = vsel %vm3102, %v3623, 0.0
        %v4209 = vsel %vm3103, %v3627, 0.0
        %v4210 = vsel %vm3104, %v3631, 0.0
        %v4211 = vsel %vm3105, %v3635, 0.0
        %v4212 = vsel %vm3106, %v3575, 0.0
        %v4213 = vsel %vm3107, %v3579, 0.0
        %v4214 = vsel %vm3108, %v3583, 0.0
        %v4215 = vsel %vm3109, %v3587, 0.0
        %v4216 = vsel %vm3110, %v3591, 0.0
        %v4217 = vsel %vm3111, %v3595, 0.0
        %v4218 = vsel %vm3112, %v3599, 0.0
        %v4219 = vsel %vm3113, %v3603, 0.0
        %v4220 = vsel %vm3114, %v3607, 0.0
        %v4221 = vsel %vm3115, %v3611, 0.0
        %v4222 = vsel %vm3116, %v3615, 0.0
        %v4223 = vsel %vm3117, %v3619, 0.0
        %v4224 = vsel %vm3118, %v3623, 0.0
        %v4225 = vsel %vm3119, %v3627, 0.0
        %v4226 = vsel %vm3120, %v3631, 0.0
        %v4227 = vsel %vm3121, %v3635, 0.0
        %v4228 = vsel %vm3122, %v3575, 0.0
        %v4229 = vsel %vm3123, %v3579, 0.0
        %v4230 = vsel %vm3124, %v3583, 0.0
        %v4231 = vsel %vm3125, %v3587, 0.0
        %v4232 = vsel %vm3126, %v3591, 0.0
        %v4233 = vsel %vm3127, %v3595, 0.0
        %v4234 = vsel %vm3128, %v3599, 0.0
        %v4235 = vsel %vm3129, %v3603, 0.0
        %v4236 = vsel %vm3130, %v3607, 0.0
        %v4237 = vsel %vm3131, %v3611, 0.0
        %v4238 = vsel %vm3132, %v3615, 0.0
        %v4239 = vsel %vm3133, %v3619, 0.0
        %v4240 = vsel %vm3134, %v3623, 0.0
        %v4241 = vsel %vm3135, %v3627, 0.0
        %v4242 = vsel %vm3136, %v3631, 0.0
        %v4243 = vsel %vm3137, %v3635, 0.0
        %v4244 = vsel %vm3138, %v3575, 0.0
        %v4245 = vsel %vm3139, %v3579, 0.0
        %v4246 = vsel %vm3140, %v3583, 0.0
        %v4247 = vsel %vm3141, %v3587, 0.0
        %v4248 = vsel %vm3142, %v3591, 0.0
        %v4249 = vsel %vm3143, %v3595, 0.0
        %v4250 = vsel %vm3144, %v3599, 0.0
        %v4251 = vsel %vm3145, %v3603, 0.0
        %v4252 = vsel %vm3146, %v3607, 0.0
        %v4253 = vsel %vm3147, %v3611, 0.0
        %v4254 = vsel %vm3148, %v3615, 0.0
        %v4255 = vsel %vm3149, %v3619, 0.0
        %v4256 = vsel %vm3150, %v3623, 0.0
        %v4257 = vsel %vm3151, %v3627, 0.0
        %v4258 = vsel %vm3152, %v3631, 0.0
        %v4259 = vsel %vm3153, %v3635, 0.0
        %v4260 = vsel %vm3154, %v3575, 0.0
        %v4261 = vsel %vm3155, %v3579, 0.0
        %v4262 = vsel %vm3156, %v3583, 0.0
        %v4263 = vsel %vm3157, %v3587, 0.0
        %v4264 = vsel %vm3158, %v3591, 0.0
        %v4265 = vsel %vm3159, %v3595, 0.0
        %v4266 = vsel %vm3160, %v3599, 0.0
        %v4267 = vsel %vm3161, %v3603, 0.0
        %v4268 = vsel %vm3162, %v3607, 0.0
        %v4269 = vsel %vm3163, %v3611, 0.0
        %v4270 = vsel %vm3164, %v3615, 0.0
        %v4271 = vsel %vm3165, %v3619, 0.0
        %v4272 = vsel %vm3166, %v3623, 0.0
        %v4273 = vsel %vm3167, %v3627, 0.0
        %v4274 = vsel %vm3168, %v3631, 0.0
        %v4275 = vsel %vm3169, %v3635, 0.0
        %v4276 = vsel %vm3170, %v3575, 0.0
        %v4277 = vsel %vm3171, %v3579, 0.0
        %v4278 = vsel %vm3172, %v3583, 0.0
        %v4279 = vsel %vm3173, %v3587, 0.0
        %v4280 = vsel %vm3174, %v3591, 0.0
        %v4281 = vsel %vm3175, %v3595, 0.0
        %v4282 = vsel %vm3176, %v3599, 0.0
        %v4283 = vsel %vm3177, %v3603, 0.0
        %v4284 = vsel %vm3178, %v3607, 0.0
        %v4285 = vsel %vm3179, %v3611, 0.0
        %v4286 = vsel %vm3180, %v3615, 0.0
        %v4287 = vsel %vm3181, %v3619, 0.0
        %v4288 = vsel %vm3182, %v3623, 0.0
        %v4289 = vsel %vm3183, %v3627, 0.0
        %v4290 = vsel %vm3184, %v3631, 0.0
        %v4291 = vsel %vm3185, %v3635, 0.0
        %v4292 = vsel %vm3186, %v3575, 0.0
        %v4293 = vsel %vm3187, %v3579, 0.0
        %v4294 = vsel %vm3188, %v3583, 0.0
        %v4295 = vsel %vm3189, %v3587, 0.0
        %v4296 = vsel %vm3190, %v3591, 0.0
        %v4297 = vsel %vm3191, %v3595, 0.0
        %v4298 = vsel %vm3192, %v3599, 0.0
        %v4299 = vsel %vm3193, %v3603, 0.0
        %v4300 = vsel %vm3194, %v3607, 0.0
        %v4301 = vsel %vm3195, %v3611, 0.0
        %v4302 = vsel %vm3196, %v3615, 0.0
        %v4303 = vsel %vm3197, %v3619, 0.0
        %v4304 = vsel %vm3198, %v3623, 0.0
        %v4305 = vsel %vm3199, %v3627, 0.0
        %v4306 = vsel %vm3200, %v3631, 0.0
        %v4307 = vsel %vm3201, %v3635, 0.0
        %v4308 = vsel %vm3202, %v3575, 0.0
        %v4309 = vsel %vm3203, %v3579, 0.0
        %v4310 = vsel %vm3204, %v3583, 0.0
        %v4311 = vsel %vm3205, %v3587, 0.0
        %v4312 = vsel %vm3206, %v3591, 0.0
        %v4313 = vsel %vm3207, %v3595, 0.0
        %v4314 = vsel %vm3208, %v3599, 0.0
        %v4315 = vsel %vm3209, %v3603, 0.0
        %v4316 = vsel %vm3210, %v3607, 0.0
        %v4317 = vsel %vm3211, %v3611, 0.0
        %v4318 = vsel %vm3212, %v3615, 0.0
        %v4319 = vsel %vm3213, %v3619, 0.0
        %v4320 = vsel %vm3214, %v3623, 0.0
        %v4321 = vsel %vm3215, %v3627, 0.0
        %v4322 = vsel %vm3216, %v3631, 0.0
        %v4323 = vsel %vm3217, %v3635, 0.0
        %v4324 = vsel %vm3218, %v3575, 0.0
        %v4325 = vsel %vm3219, %v3579, 0.0
        %v4326 = vsel %vm3220, %v3583, 0.0
        %v4327 = vsel %vm3221, %v3587, 0.0
        %v4328 = vsel %vm3222, %v3591, 0.0
        %v4329 = vsel %vm3223, %v3595, 0.0
        %v4330 = vsel %vm3224, %v3599, 0.0
        %v4331 = vsel %vm3225, %v3603, 0.0
        %v4332 = vsel %vm3226, %v3607, 0.0
        %v4333 = vsel %vm3227, %v3611, 0.0
        %v4334 = vsel %vm3228, %v3615, 0.0
        %v4335 = vsel %vm3229, %v3619, 0.0
        %v4336 = vsel %vm3230, %v3623, 0.0
        %v4337 = vsel %vm3231, %v3627, 0.0
        %v4338 = vsel %vm3232, %v3631, 0.0
        %v4339 = vsel %vm3233, %v3635, 0.0
        %v4340 = vsel %vm3234, %v3575, 0.0
        %v4341 = vsel %vm3235, %v3579, 0.0
        %v4342 = vsel %vm3236, %v3583, 0.0
        %v4343 = vsel %vm3237, %v3587, 0.0
        %v4344 = vsel %vm3238, %v3591, 0.0
        %v4345 = vsel %vm3239, %v3595, 0.0
        %v4346 = vsel %vm3240, %v3599, 0.0
        %v4347 = vsel %vm3241, %v3603, 0.0
        %v4348 = vsel %vm3242, %v3607, 0.0
        %v4349 = vsel %vm3243, %v3611, 0.0
        %v4350 = vsel %vm3244, %v3615, 0.0
        %v4351 = vsel %vm3245, %v3619, 0.0
        %v4352 = vsel %vm3246, %v3623, 0.0
        %v4353 = vsel %vm3247, %v3627, 0.0
        %v4354 = vsel %vm3248, %v3631, 0.0
        %v4355 = vsel %vm3249, %v3635, 0.0
        %v4356 = vsel %vm3250, %v3575, 0.0
        %v4357 = vsel %vm3251, %v3579, 0.0
        %v4358 = vsel %vm3252, %v3583, 0.0
        %v4359 = vsel %vm3253, %v3587, 0.0
        %v4360 = vsel %vm3254, %v3591, 0.0
        %v4361 = vsel %vm3255, %v3595, 0.0
        %v4362 = vsel %vm3256, %v3599, 0.0
        %v4363 = vsel %vm3257, %v3603, 0.0
        %v4364 = vsel %vm3258, %v3607, 0.0
        %v4365 = vsel %vm3259, %v3611, 0.0
        %v4366 = vsel %vm3260, %v3615, 0.0
        %v4367 = vsel %vm3261, %v3619, 0.0
        %v4368 = vsel %vm3262, %v3623, 0.0
        %v4369 = vsel %vm3263, %v3627, 0.0
        %v4370 = vsel %vm3264, %v3631, 0.0
        %v4371 = vsel %vm3265, %v3635, 0.0
        %v4372 = vsel %vm3266, %v3575, 0.0
        %v4373 = vsel %vm3267, %v3579, 0.0
        %v4374 = vsel %vm3268, %v3583, 0.0
        %v4375 = vsel %vm3269, %v3587, 0.0
        %v4376 = vsel %vm3270, %v3591, 0.0
        %v4377 = vsel %vm3271, %v3595, 0.0
        %v4378 = vsel %vm3272, %v3599, 0.0
        %v4379 = vsel %vm3273, %v3603, 0.0
        %v4380 = vsel %vm3274, %v3607, 0.0
        %v4381 = vsel %vm3275, %v3611, 0.0
        %v4382 = vsel %vm3276, %v3615, 0.0
        %v4383 = vsel %vm3277, %v3619, 0.0
        %v4384 = vsel %vm3278, %v3623, 0.0
        %v4385 = vsel %vm3279, %v3627, 0.0
        %v4386 = vsel %vm3280, %v3631, 0.0
        %v4387 = vsel %vm3281, %v3635, 0.0
        %v4388 = vsel %vm3282, %v3575, 0.0
        %v4389 = vsel %vm3283, %v3579, 0.0
        %v4390 = vsel %vm3284, %v3583, 0.0
        %v4391 = vsel %vm3285, %v3587, 0.0
        %v4392 = vsel %vm3286, %v3591, 0.0
        %v4393 = vsel %vm3287, %v3595, 0.0
        %v4394 = vsel %vm3288, %v3599, 0.0
        %v4395 = vsel %vm3289, %v3603, 0.0
        %v4396 = vsel %vm3290, %v3607, 0.0
        %v4397 = vsel %vm3291, %v3611, 0.0
        %v4398 = vsel %vm3292, %v3615, 0.0
        %v4399 = vsel %vm3293, %v3619, 0.0
        %v4400 = vsel %vm3294, %v3623, 0.0
        %v4401 = vsel %vm3295, %v3627, 0.0
        %v4402 = vsel %vm3296, %v3631, 0.0
        %v4403 = vsel %vm3297, %v3635, 0.0
        %v4404 = vsel %vm3298, %v3575, 0.0
        %v4405 = vsel %vm3299, %v3579, 0.0
        %v4406 = vsel %vm3300, %v3583, 0.0
        %v4407 = vsel %vm3301, %v3587, 0.0
        %v4408 = vsel %vm3302, %v3591, 0.0
        %v4409 = vsel %vm3303, %v3595, 0.0
        %v4410 = vsel %vm3304, %v3599, 0.0
        %v4411 = vsel %vm3305, %v3603, 0.0
        %v4412 = vsel %vm3306, %v3607, 0.0
        %v4413 = vsel %vm3307, %v3611, 0.0
        %v4414 = vsel %vm3308, %v3615, 0.0
        %v4415 = vsel %vm3309, %v3619, 0.0
        %v4416 = vsel %vm3310, %v3623, 0.0
        %v4417 = vsel %vm3311, %v3627, 0.0
        %v4418 = vsel %vm3312, %v3631, 0.0
        %v4419 = vsel %vm3313, %v3635, 0.0
        %v4420 = vsel %vm3314, %v3575, 0.0
        %v4421 = vsel %vm3315, %v3579, 0.0
        %v4422 = vsel %vm3316, %v3583, 0.0
        %v4423 = vsel %vm3317, %v3587, 0.0
        %v4424 = vsel %vm3318, %v3591, 0.0
        %v4425 = vsel %vm3319, %v3595, 0.0
        %v4426 = vsel %vm3320, %v3599, 0.0
        %v4427 = vsel %vm3321, %v3603, 0.0
        %v4428 = vsel %vm3322, %v3607, 0.0
        %v4429 = vsel %vm3323, %v3611, 0.0
        %v4430 = vsel %vm3324, %v3615, 0.0
        %v4431 = vsel %vm3325, %v3619, 0.0
        %v4432 = vsel %vm3326, %v3623, 0.0
        %v4433 = vsel %vm3327, %v3627, 0.0
        %v4434 = vsel %vm3328, %v3631, 0.0
        %v4435 = vsel %vm3329, %v3635, 0.0
        %v4436 = vsel %vm3330, %v3575, 0.0
        %v4437 = vsel %vm3331, %v3579, 0.0
        %v4438 = vsel %vm3332, %v3583, 0.0
        %v4439 = vsel %vm3333, %v3587, 0.0
        %v4440 = vsel %vm3334, %v3591, 0.0
        %v4441 = vsel %vm3335, %v3595, 0.0
        %v4442 = vsel %vm3336, %v3599, 0.0
        %v4443 = vsel %vm3337, %v3603, 0.0
        %v4444 = vsel %vm3338, %v3607, 0.0
        %v4445 = vsel %vm3339, %v3611, 0.0
        %v4446 = vsel %vm3340, %v3615, 0.0
        %v4447 = vsel %vm3341, %v3619, 0.0
        %v4448 = vsel %vm3342, %v3623, 0.0
        %v4449 = vsel %vm3343, %v3627, 0.0
        %v4450 = vsel %vm3344, %v3631, 0.0
        %v4451 = vsel %vm3345, %v3635, 0.0
        %v4452 = vsel %vm3346, %v3575, 0.0
        %v4453 = vsel %vm3347, %v3579, 0.0
        %v4454 = vsel %vm3348, %v3583, 0.0
        %v4455 = vsel %vm3349, %v3587, 0.0
        %v4456 = vsel %vm3350, %v3591, 0.0
        %v4457 = vsel %vm3351, %v3595, 0.0
        %v4458 = vsel %vm3352, %v3599, 0.0
        %v4459 = vsel %vm3353, %v3603, 0.0
        %v4460 = vsel %vm3354, %v3607, 0.0
        %v4461 = vsel %vm3355, %v3611, 0.0
        %v4462 = vsel %vm3356, %v3615, 0.0
        %v4463 = vsel %vm3357, %v3619, 0.0
        %v4464 = vsel %vm3358, %v3623, 0.0
        %v4465 = vsel %vm3359, %v3627, 0.0
        %v4466 = vsel %vm3360, %v3631, 0.0
        %v4467 = vsel %vm3361, %v3635, 0.0
        %v4468 = vsel %vm3362, %v3575, 0.0
        %v4469 = vsel %vm3363, %v3579, 0.0
        %v4470 = vsel %vm3364, %v3583, 0.0
        %v4471 = vsel %vm3365, %v3587, 0.0
        %v4472 = vsel %vm3366, %v3591, 0.0
        %v4473 = vsel %vm3367, %v3595, 0.0
        %v4474 = vsel %vm3368, %v3599, 0.0
        %v4475 = vsel %vm3369, %v3603, 0.0
        %v4476 = vsel %vm3370, %v3607, 0.0
        %v4477 = vsel %vm3371, %v3611, 0.0
        %v4478 = vsel %vm3372, %v3615, 0.0
        %v4479 = vsel %vm3373, %v3619, 0.0
        %v4480 = vsel %vm3374, %v3623, 0.0
        %v4481 = vsel %vm3375, %v3627, 0.0
        %v4482 = vsel %vm3376, %v3631, 0.0
        %v4483 = vsel %vm3377, %v3635, 0.0
        %v4484 = vsel %vm3378, %v3575, 0.0
        %v4485 = vsel %vm3379, %v3579, 0.0
        %v4486 = vsel %vm3380, %v3583, 0.0
        %v4487 = vsel %vm3381, %v3587, 0.0
        %v4488 = vsel %vm3382, %v3591, 0.0
        %v4489 = vsel %vm3383, %v3595, 0.0
        %v4490 = vsel %vm3384, %v3599, 0.0
        %v4491 = vsel %vm3385, %v3603, 0.0
        %v4492 = vsel %vm3386, %v3607, 0.0
        %v4493 = vsel %vm3387, %v3611, 0.0
        %v4494 = vsel %vm3388, %v3615, 0.0
        %v4495 = vsel %vm3389, %v3619, 0.0
        %v4496 = vsel %vm3390, %v3623, 0.0
        %v4497 = vsel %vm3391, %v3627, 0.0
        %v4498 = vsel %vm3392, %v3631, 0.0
        %v4499 = vsel %vm3393, %v3635, 0.0
        %v4500 = vsel %vm3394, %v3575, 0.0
        %v4501 = vsel %vm3395, %v3579, 0.0
        %v4502 = vsel %vm3396, %v3583, 0.0
        %v4503 = vsel %vm3397, %v3587, 0.0
        %v4504 = vsel %vm3398, %v3591, 0.0
        %v4505 = vsel %vm3399, %v3595, 0.0
        %v4506 = vsel %vm3400, %v3599, 0.0
        %v4507 = vsel %vm3401, %v3603, 0.0
        %v4508 = vsel %vm3402, %v3607, 0.0
        %v4509 = vsel %vm3403, %v3611, 0.0
        %v4510 = vsel %vm3404, %v3615, 0.0
        %v4511 = vsel %vm3405, %v3619, 0.0
        %v4512 = vsel %vm3406, %v3623, 0.0
        %v4513 = vsel %vm3407, %v3627, 0.0
        %v4514 = vsel %vm3408, %v3631, 0.0
        %v4515 = vsel %vm3409, %v3635, 0.0
        %v4516 = vsel %vm3410, %v3575, 0.0
        %v4517 = vsel %vm3411, %v3579, 0.0
        %v4518 = vsel %vm3412, %v3583, 0.0
        %v4519 = vsel %vm3413, %v3587, 0.0
        %v4520 = vsel %vm3414, %v3591, 0.0
        %v4521 = vsel %vm3415, %v3595, 0.0
        %v4522 = vsel %vm3416, %v3599, 0.0
        %v4523 = vsel %vm3417, %v3603, 0.0
        %v4524 = vsel %vm3418, %v3607, 0.0
        %v4525 = vsel %vm3419, %v3611, 0.0
        %v4526 = vsel %vm3420, %v3615, 0.0
        %v4527 = vsel %vm3421, %v3619, 0.0
        %v4528 = vsel %vm3422, %v3623, 0.0
        %v4529 = vsel %vm3423, %v3627, 0.0
        %v4530 = vsel %vm3424, %v3631, 0.0
        %v4531 = vsel %vm3425, %v3635, 0.0
        %v4532 = vsel %vm3426, %v3575, 0.0
        %v4533 = vsel %vm3427, %v3579, 0.0
        %v4534 = vsel %vm3428, %v3583, 0.0
        %v4535 = vsel %vm3429, %v3587, 0.0
        %v4536 = vsel %vm3430, %v3591, 0.0
        %v4537 = vsel %vm3431, %v3595, 0.0
        %v4538 = vsel %vm3432, %v3599, 0.0
        %v4539 = vsel %vm3433, %v3603, 0.0
        %v4540 = vsel %vm3434, %v3607, 0.0
        %v4541 = vsel %vm3435, %v3611, 0.0
        %v4542 = vsel %vm3436, %v3615, 0.0
        %v4543 = vsel %vm3437, %v3619, 0.0
        %v4544 = vsel %vm3438, %v3623, 0.0
        %v4545 = vsel %vm3439, %v3627, 0.0
        %v4546 = vsel %vm3440, %v3631, 0.0
        %v4547 = vsel %vm3441, %v3635, 0.0
        %v4548 = vsel %vm3442, %v3575, 0.0
        %v4549 = vsel %vm3443, %v3579, 0.0
        %v4550 = vsel %vm3444, %v3583, 0.0
        %v4551 = vsel %vm3445, %v3587, 0.0
        %v4552 = vsel %vm3446, %v3591, 0.0
        %v4553 = vsel %vm3447, %v3595, 0.0
        %v4554 = vsel %vm3448, %v3599, 0.0
        %v4555 = vsel %vm3449, %v3603, 0.0
        %v4556 = vsel %vm3450, %v3607, 0.0
        %v4557 = vsel %vm3451, %v3611, 0.0
        %v4558 = vsel %vm3452, %v3615, 0.0
        %v4559 = vsel %vm3453, %v3619, 0.0
        %v4560 = vsel %vm3454, %v3623, 0.0
        %v4561 = vsel %vm3455, %v3627, 0.0
        %v4562 = vsel %vm3456, %v3631, 0.0
        %v4563 = vsel %vm3457, %v3635, 0.0
        %v4564 = vsel %vm3458, %v3575, 0.0
        %v4565 = vsel %vm3459, %v3579, 0.0
        %v4566 = vsel %vm3460, %v3583, 0.0
        %v4567 = vsel %vm3461, %v3587, 0.0
        %v4568 = vsel %vm3462, %v3591, 0.0
        %v4569 = vsel %vm3463, %v3595, 0.0
        %v4570 = vsel %vm3464, %v3599, 0.0
        %v4571 = vsel %vm3465, %v3603, 0.0
        %v4572 = vsel %vm3466, %v3607, 0.0
        %v4573 = vsel %vm3467, %v3611, 0.0
        %v4574 = vsel %vm3468, %v3615, 0.0
        %v4575 = vsel %vm3469, %v3619, 0.0
        %v4576 = vsel %vm3470, %v3623, 0.0
        %v4577 = vsel %vm3471, %v3627, 0.0
        %v4578 = vsel %vm3472, %v3631, 0.0
        %v4579 = vsel %vm3473, %v3635, 0.0
        %v4580 = vsel %vm3474, %v3575, 0.0
        %v4581 = vsel %vm3475, %v3579, 0.0
        %v4582 = vsel %vm3476, %v3583, 0.0
        %v4583 = vsel %vm3477, %v3587, 0.0
        %v4584 = vsel %vm3478, %v3591, 0.0
        %v4585 = vsel %vm3479, %v3595, 0.0
        %v4586 = vsel %vm3480, %v3599, 0.0
        %v4587 = vsel %vm3481, %v3603, 0.0
        %v4588 = vsel %vm3482, %v3607, 0.0
        %v4589 = vsel %vm3483, %v3611, 0.0
        %v4590 = vsel %vm3484, %v3615, 0.0
        %v4591 = vsel %vm3485, %v3619, 0.0
        %v4592 = vsel %vm3486, %v3623, 0.0
        %v4593 = vsel %vm3487, %v3627, 0.0
        %v4594 = vsel %vm3488, %v3631, 0.0
        %v4595 = vsel %vm3489, %v3635, 0.0
        %v4596 = vsel %vm3490, %v3575, 0.0
        %v4597 = vsel %vm3491, %v3579, 0.0
        %v4598 = vsel %vm3492, %v3583, 0.0
        %v4599 = vsel %vm3493, %v3587, 0.0
        %v4600 = vsel %vm3494, %v3591, 0.0
        %v4601 = vsel %vm3495, %v3595, 0.0
        %v4602 = vsel %vm3496, %v3599, 0.0
        %v4603 = vsel %vm3497, %v3603, 0.0
        %v4604 = vsel %vm3498, %v3607, 0.0
        %v4605 = vsel %vm3499, %v3611, 0.0
        %v4606 = vsel %vm3500, %v3615, 0.0
        %v4607 = vsel %vm3501, %v3619, 0.0
        %v4608 = vsel %vm3502, %v3623, 0.0
        %v4609 = vsel %vm3503, %v3627, 0.0
        %v4610 = vsel %vm3504, %v3631, 0.0
        %v4611 = vsel %vm3505, %v3635, 0.0
        %v4612 = vsel %vm3506, %v3575, 0.0
        %v4613 = vsel %vm3507, %v3579, 0.0
        %v4614 = vsel %vm3508, %v3583, 0.0
        %v4615 = vsel %vm3509, %v3587, 0.0
        %v4616 = vsel %vm3510, %v3591, 0.0
        %v4617 = vsel %vm3511, %v3595, 0.0
        %v4618 = vsel %vm3512, %v3599, 0.0
        %v4619 = vsel %vm3513, %v3603, 0.0
        %v4620 = vsel %vm3514, %v3607, 0.0
        %v4621 = vsel %vm3515, %v3611, 0.0
        %v4622 = vsel %vm3516, %v3615, 0.0
        %v4623 = vsel %vm3517, %v3619, 0.0
        %v4624 = vsel %vm3518, %v3623, 0.0
        %v4625 = vsel %vm3519, %v3627, 0.0
        %v4626 = vsel %vm3520, %v3631, 0.0
        %v4627 = vsel %vm3521, %v3635, 0.0
        %v4628 = vsel %vm3522, %v3575, 0.0
        %v4629 = vsel %vm3523, %v3579, 0.0
        %v4630 = vsel %vm3524, %v3583, 0.0
        %v4631 = vsel %vm3525, %v3587, 0.0
        %v4632 = vsel %vm3526, %v3591, 0.0
        %v4633 = vsel %vm3527, %v3595, 0.0
        %v4634 = vsel %vm3528, %v3599, 0.0
        %v4635 = vsel %vm3529, %v3603, 0.0
        %v4636 = vsel %vm3530, %v3607, 0.0
        %v4637 = vsel %vm3531, %v3611, 0.0
        %v4638 = vsel %vm3532, %v3615, 0.0
        %v4639 = vsel %vm3533, %v3619, 0.0
        %v4640 = vsel %vm3534, %v3623, 0.0
        %v4641 = vsel %vm3535, %v3627, 0.0
        %v4642 = vsel %vm3536, %v3631, 0.0
        %v4643 = vsel %vm3537, %v3635, 0.0
        %v4644 = vsel %vm3538, %v3575, 0.0
        %v4645 = vsel %vm3539, %v3579, 0.0
        %v4646 = vsel %vm3540, %v3583, 0.0
        %v4647 = vsel %vm3541, %v3587, 0.0
        %v4648 = vsel %vm3542, %v3591, 0.0
        %v4649 = vsel %vm3543, %v3595, 0.0
        %v4650 = vsel %vm3544, %v3599, 0.0
        %v4651 = vsel %vm3545, %v3603, 0.0
        %v4652 = vsel %vm3546, %v3607, 0.0
        %v4653 = vsel %vm3547, %v3611, 0.0
        %v4654 = vsel %vm3548, %v3615, 0.0
        %v4655 = vsel %vm3549, %v3619, 0.0
        %v4656 = vsel %vm3550, %v3623, 0.0
        %v4657 = vsel %vm3551, %v3627, 0.0
        %v4658 = vsel %vm3552, %v3631, 0.0
        %v4659 = vsel %vm3553, %v3635, 0.0
        %v4660 = vsel %vm3554, %v3575, 0.0
        %v4661 = vsel %vm3555, %v3579, 0.0
        %v4662 = vsel %vm3556, %v3583, 0.0
        %v4663 = vsel %vm3557, %v3587, 0.0
        %v4664 = vsel %vm3558, %v3591, 0.0
        %v4665 = vsel %vm3559, %v3595, 0.0
        %v4666 = vsel %vm3560, %v3599, 0.0
        %v4667 = vsel %vm3561, %v3603, 0.0
        %v4668 = vsel %vm3562, %v3607, 0.0
        %v4669 = vsel %vm3563, %v3611, 0.0
        %v4670 = vsel %vm3564, %v3615, 0.0
        %v4671 = vsel %vm3565, %v3619, 0.0
        %v4672 = vsel %vm3566, %v3623, 0.0
        %v4673 = vsel %vm3567, %v3627, 0.0
        %v4674 = vsel %vm3568, %v3631, 0.0
        %v4675 = vsel %vm3569, %v3635, 0.0
        %v4676 = vld [vmem:[%s213] sm:$0xff]
        %v4677 = vld [vmem:[%s213 + $0x8] sm:$0xff]
        %v4678 = vld [vmem:[%s213 + $0x10] sm:$0xff]
        %v4679 = vld [vmem:[%s213 + $0x18] sm:$0xff]
        %v4680 = vld [vmem:[%s213 + $0x20] sm:$0xff]
        %v4681 = vld [vmem:[%s213 + $0x28] sm:$0xff]
        %v4682 = vld [vmem:[%s213 + $0x30] sm:$0xff]
        %v4683 = vld [vmem:[%s213 + $0x38] sm:$0xff]
        %v4684 = vld [vmem:[%s213 + $0x40] sm:$0xff]
        %v4685 = vld [vmem:[%s213 + $0x48] sm:$0xff]
        %v4686 = vld [vmem:[%s213 + $0x50] sm:$0xff]
        %v4687 = vld [vmem:[%s213 + $0x58] sm:$0xff]
        %v4688 = vld [vmem:[%s213 + $0x60] sm:$0xff]
        %v4689 = vld [vmem:[%s213 + $0x68] sm:$0xff]
        %v4690 = vld [vmem:[%s213 + $0x70] sm:$0xff]
        %v4691 = vld [vmem:[%s213 + $0x78] sm:$0xff]
        %v4692 = vld [vmem:[%s213 + $0x80] sm:$0xff]
        %v4693 = vld [vmem:[%s213 + $0x88] sm:$0xff]
        %v4694 = vld [vmem:[%s213 + $0x90] sm:$0xff]
        %v4695 = vld [vmem:[%s213 + $0x98] sm:$0xff]
        %v4696 = vld [vmem:[%s213 + $0xa0] sm:$0xff]
        %v4697 = vld [vmem:[%s213 + $0xa8] sm:$0xff]
        %v4698 = vld [vmem:[%s213 + $0xb0] sm:$0xff]
        %v4699 = vld [vmem:[%s213 + $0xb8] sm:$0xff]
        %v4700 = vld [vmem:[%s213 + $0xc0] sm:$0xff]
        %v4701 = vld [vmem:[%s213 + $0xc8] sm:$0xff]
        %v4702 = vld [vmem:[%s213 + $0xd0] sm:$0xff]
        %v4703 = vld [vmem:[%s213 + $0xd8] sm:$0xff]
        %v4704 = vld [vmem:[%s213 + $0xe0] sm:$0xff]
        %v4705 = vld [vmem:[%s213 + $0xe8] sm:$0xff]
        %v4706 = vld [vmem:[%s213 + $0xf0] sm:$0xff]
        %v4707 = vld [vmem:[%s213 + $0xf8] sm:$0xff]
        %v4708 = vld [vmem:[%s213 + $0x100] sm:$0xff]
        %v4709 = vld [vmem:[%s213 + $0x108] sm:$0xff]
        %v4710 = vld [vmem:[%s213 + $0x110] sm:$0xff]
        %v4711 = vld [vmem:[%s213 + $0x118] sm:$0xff]
        %v4712 = vld [vmem:[%s213 + $0x120] sm:$0xff]
        %v4713 = vld [vmem:[%s213 + $0x128] sm:$0xff]
        %v4714 = vld [vmem:[%s213 + $0x130] sm:$0xff]
        %v4715 = vld [vmem:[%s213 + $0x138] sm:$0xff]
        %v4716 = vld [vmem:[%s213 + $0x140] sm:$0xff]
        %v4717 = vld [vmem:[%s213 + $0x148] sm:$0xff]
        %v4718 = vld [vmem:[%s213 + $0x150] sm:$0xff]
        %v4719 = vld [vmem:[%s213 + $0x158] sm:$0xff]
        %v4720 = vld [vmem:[%s213 + $0x160] sm:$0xff]
        %v4721 = vld [vmem:[%s213 + $0x168] sm:$0xff]
        %v4722 = vld [vmem:[%s213 + $0x170] sm:$0xff]
        %v4723 = vld [vmem:[%s213 + $0x178] sm:$0xff]
        %v4724 = vld [vmem:[%s213 + $0x180] sm:$0xff]
        %v4725 = vld [vmem:[%s213 + $0x188] sm:$0xff]
        %v4726 = vld [vmem:[%s213 + $0x190] sm:$0xff]
        %v4727 = vld [vmem:[%s213 + $0x198] sm:$0xff]
        %v4728 = vld [vmem:[%s213 + $0x1a0] sm:$0xff]
        %v4729 = vld [vmem:[%s213 + $0x1a8] sm:$0xff]
        %v4730 = vld [vmem:[%s213 + $0x1b0] sm:$0xff]
        %v4731 = vld [vmem:[%s213 + $0x1b8] sm:$0xff]
        %v4732 = vld [vmem:[%s213 + $0x1c0] sm:$0xff]
        %v4733 = vld [vmem:[%s213 + $0x1c8] sm:$0xff]
        %v4734 = vld [vmem:[%s213 + $0x1d0] sm:$0xff]
        %v4735 = vld [vmem:[%s213 + $0x1d8] sm:$0xff]
        %v4736 = vld [vmem:[%s213 + $0x1e0] sm:$0xff]
        %v4737 = vld [vmem:[%s213 + $0x1e8] sm:$0xff]
        %v4738 = vld [vmem:[%s213 + $0x1f0] sm:$0xff]
        %v4739 = vld [vmem:[%s213 + $0x1f8] sm:$0xff]
        %v4740 = vadd.f32 %v3652, %v3653
        %v4741 = vadd.f32 %v4740, %v3654
        %v4742 = vadd.f32 %v4741, %v3655
        %v4743 = vadd.f32 %v4742, %v3656
        %v4744 = vadd.f32 %v4743, %v3657
        %v4745 = vadd.f32 %v4744, %v3658
        %v4746 = vadd.f32 %v4745, %v3659
        %v4747 = vadd.f32 %v4746, %v3660
        %v4748 = vadd.f32 %v4747, %v3661
        %v4749 = vadd.f32 %v4748, %v3662
        %v4750 = vadd.f32 %v4749, %v3663
        %v4751 = vadd.f32 %v4750, %v3664
        %v4752 = vadd.f32 %v4751, %v3665
        %v4753 = vadd.f32 %v4752, %v3666
        %v4754 = vadd.f32 %v4753, %v3667
        %4755 = vadd.xlane.f32.xlu0 %v4754
        %v4756 = vpop.xlane.xlu0 %4755
        %v4757 = vadd.f32 %v3668, %v3669
        %v4758 = vadd.f32 %v4757, %v3670
        %v4759 = vadd.f32 %v4758, %v3671
        %v4760 = vadd.f32 %v4759, %v3672
        %v4761 = vadd.f32 %v4760, %v3673
        %v4762 = vadd.f32 %v4761, %v3674
        %v4763 = vadd.f32 %v4762, %v3675
        %v4764 = vadd.f32 %v4763, %v3676
        %v4765 = vadd.f32 %v4764, %v3677
        %v4766 = vadd.f32 %v4765, %v3678
        %v4767 = vadd.f32 %v4766, %v3679
        %v4768 = vadd.f32 %v4767, %v3680
        %v4769 = vadd.f32 %v4768, %v3681
        %v4770 = vadd.f32 %v4769, %v3682
        %v4771 = vadd.f32 %v4770, %v3683
        %4772 = vadd.xlane.f32.xlu0 %v4771
        %v4773 = vpop.xlane.xlu0 %4772
        %v4774 = vadd.f32 %v3684, %v3685
        %v4775 = vadd.f32 %v4774, %v3686
        %v4776 = vadd.f32 %v4775, %v3687
        %v4777 = vadd.f32 %v4776, %v3688
        %v4778 = vadd.f32 %v4777, %v3689
        %v4779 = vadd.f32 %v4778, %v3690
        %v4780 = vadd.f32 %v4779, %v3691
        %v4781 = vadd.f32 %v4780, %v3692
        %v4782 = vadd.f32 %v4781, %v3693
        %v4783 = vadd.f32 %v4782, %v3694
        %v4784 = vadd.f32 %v4783, %v3695
        %v4785 = vadd.f32 %v4784, %v3696
        %v4786 = vadd.f32 %v4785, %v3697
        %v4787 = vadd.f32 %v4786, %v3698
        %v4788 = vadd.f32 %v4787, %v3699
        %4789 = vadd.xlane.f32.xlu0 %v4788
        %v4790 = vpop.xlane.xlu0 %4789
        %v4791 = vadd.f32 %v3700, %v3701
        %v4792 = vadd.f32 %v4791, %v3702
        %v4793 = vadd.f32 %v4792, %v3703
        %v4794 = vadd.f32 %v4793, %v3704
        %v4795 = vadd.f32 %v4794, %v3705
        %v4796 = vadd.f32 %v4795, %v3706
        %v4797 = vadd.f32 %v4796, %v3707
        %v4798 = vadd.f32 %v4797, %v3708
        %v4799 = vadd.f32 %v4798, %v3709
        %v4800 = vadd.f32 %v4799, %v3710
        %v4801 = vadd.f32 %v4800, %v3711
        %v4802 = vadd.f32 %v4801, %v3712
        %v4803 = vadd.f32 %v4802, %v3713
        %v4804 = vadd.f32 %v4803, %v3714
        %v4805 = vadd.f32 %v4804, %v3715
        %4806 = vadd.xlane.f32.xlu0 %v4805
        %v4807 = vpop.xlane.xlu0 %4806
        %v4808 = vadd.f32 %v3716, %v3717
        %v4809 = vadd.f32 %v4808, %v3718
        %v4810 = vadd.f32 %v4809, %v3719
        %v4811 = vadd.f32 %v4810, %v3720
        %v4812 = vadd.f32 %v4811, %v3721
        %v4813 = vadd.f32 %v4812, %v3722
        %v4814 = vadd.f32 %v4813, %v3723
        %v4815 = vadd.f32 %v4814, %v3724
        %v4816 = vadd.f32 %v4815, %v3725
        %v4817 = vadd.f32 %v4816, %v3726
        %v4818 = vadd.f32 %v4817, %v3727
        %v4819 = vadd.f32 %v4818, %v3728
        %v4820 = vadd.f32 %v4819, %v3729
        %v4821 = vadd.f32 %v4820, %v3730
        %v4822 = vadd.f32 %v4821, %v3731
        %4823 = vadd.xlane.f32.xlu0 %v4822
        %v4824 = vpop.xlane.xlu0 %4823
        %v4825 = vadd.f32 %v3732, %v3733
        %v4826 = vadd.f32 %v4825, %v3734
        %v4827 = vadd.f32 %v4826, %v3735
        %v4828 = vadd.f32 %v4827, %v3736
        %v4829 = vadd.f32 %v4828, %v3737
        %v4830 = vadd.f32 %v4829, %v3738
        %v4831 = vadd.f32 %v4830, %v3739
        %v4832 = vadd.f32 %v4831, %v3740
        %v4833 = vadd.f32 %v4832, %v3741
        %v4834 = vadd.f32 %v4833, %v3742
        %v4835 = vadd.f32 %v4834, %v3743
        %v4836 = vadd.f32 %v4835, %v3744
        %v4837 = vadd.f32 %v4836, %v3745
        %v4838 = vadd.f32 %v4837, %v3746
        %v4839 = vadd.f32 %v4838, %v3747
        %4840 = vadd.xlane.f32.xlu0 %v4839
        %v4841 = vpop.xlane.xlu0 %4840
        %v4842 = vadd.f32 %v3748, %v3749
        %v4843 = vadd.f32 %v4842, %v3750
        %v4844 = vadd.f32 %v4843, %v3751
        %v4845 = vadd.f32 %v4844, %v3752
        %v4846 = vadd.f32 %v4845, %v3753
        %v4847 = vadd.f32 %v4846, %v3754
        %v4848 = vadd.f32 %v4847, %v3755
        %v4849 = vadd.f32 %v4848, %v3756
        %v4850 = vadd.f32 %v4849, %v3757
        %v4851 = vadd.f32 %v4850, %v3758
        %v4852 = vadd.f32 %v4851, %v3759
        %v4853 = vadd.f32 %v4852, %v3760
        %v4854 = vadd.f32 %v4853, %v3761
        %v4855 = vadd.f32 %v4854, %v3762
        %v4856 = vadd.f32 %v4855, %v3763
        %4857 = vadd.xlane.f32.xlu0 %v4856
        %v4858 = vpop.xlane.xlu0 %4857
        %v4859 = vadd.f32 %v3764, %v3765
        %v4860 = vadd.f32 %v4859, %v3766
        %v4861 = vadd.f32 %v4860, %v3767
        %v4862 = vadd.f32 %v4861, %v3768
        %v4863 = vadd.f32 %v4862, %v3769
        %v4864 = vadd.f32 %v4863, %v3770
        %v4865 = vadd.f32 %v4864, %v3771
        %v4866 = vadd.f32 %v4865, %v3772
        %v4867 = vadd.f32 %v4866, %v3773
        %v4868 = vadd.f32 %v4867, %v3774
        %v4869 = vadd.f32 %v4868, %v3775
        %v4870 = vadd.f32 %v4869, %v3776
        %v4871 = vadd.f32 %v4870, %v3777
        %v4872 = vadd.f32 %v4871, %v3778
        %v4873 = vadd.f32 %v4872, %v3779
        %4874 = vadd.xlane.f32.xlu0 %v4873
        %v4875 = vpop.xlane.xlu0 %4874
        %v4876 = vadd.f32 %v3780, %v3781
        %v4877 = vadd.f32 %v4876, %v3782
        %v4878 = vadd.f32 %v4877, %v3783
        %v4879 = vadd.f32 %v4878, %v3784
        %v4880 = vadd.f32 %v4879, %v3785
        %v4881 = vadd.f32 %v4880, %v3786
        %v4882 = vadd.f32 %v4881, %v3787
        %v4883 = vadd.f32 %v4882, %v3788
        %v4884 = vadd.f32 %v4883, %v3789
        %v4885 = vadd.f32 %v4884, %v3790
        %v4886 = vadd.f32 %v4885, %v3791
        %v4887 = vadd.f32 %v4886, %v3792
        %v4888 = vadd.f32 %v4887, %v3793
        %v4889 = vadd.f32 %v4888, %v3794
        %v4890 = vadd.f32 %v4889, %v3795
        %4891 = vadd.xlane.f32.xlu0 %v4890
        %v4892 = vpop.xlane.xlu0 %4891
        %v4893 = vadd.f32 %v3796, %v3797
        %v4894 = vadd.f32 %v4893, %v3798
        %v4895 = vadd.f32 %v4894, %v3799
        %v4896 = vadd.f32 %v4895, %v3800
        %v4897 = vadd.f32 %v4896, %v3801
        %v4898 = vadd.f32 %v4897, %v3802
        %v4899 = vadd.f32 %v4898, %v3803
        %v4900 = vadd.f32 %v4899, %v3804
        %v4901 = vadd.f32 %v4900, %v3805
        %v4902 = vadd.f32 %v4901, %v3806
        %v4903 = vadd.f32 %v4902, %v3807
        %v4904 = vadd.f32 %v4903, %v3808
        %v4905 = vadd.f32 %v4904, %v3809
        %v4906 = vadd.f32 %v4905, %v3810
        %v4907 = vadd.f32 %v4906, %v3811
        %4908 = vadd.xlane.f32.xlu0 %v4907
        %v4909 = vpop.xlane.xlu0 %4908
        %v4910 = vadd.f32 %v3812, %v3813
        %v4911 = vadd.f32 %v4910, %v3814
        %v4912 = vadd.f32 %v4911, %v3815
        %v4913 = vadd.f32 %v4912, %v3816
        %v4914 = vadd.f32 %v4913, %v3817
        %v4915 = vadd.f32 %v4914, %v3818
        %v4916 = vadd.f32 %v4915, %v3819
        %v4917 = vadd.f32 %v4916, %v3820
        %v4918 = vadd.f32 %v4917, %v3821
        %v4919 = vadd.f32 %v4918, %v3822
        %v4920 = vadd.f32 %v4919, %v3823
        %v4921 = vadd.f32 %v4920, %v3824
        %v4922 = vadd.f32 %v4921, %v3825
        %v4923 = vadd.f32 %v4922, %v3826
        %v4924 = vadd.f32 %v4923, %v3827
        %4925 = vadd.xlane.f32.xlu0 %v4924
        %v4926 = vpop.xlane.xlu0 %4925
        %v4927 = vadd.f32 %v3828, %v3829
        %v4928 = vadd.f32 %v4927, %v3830
        %v4929 = vadd.f32 %v4928, %v3831
        %v4930 = vadd.f32 %v4929, %v3832
        %v4931 = vadd.f32 %v4930, %v3833
        %v4932 = vadd.f32 %v4931, %v3834
        %v4933 = vadd.f32 %v4932, %v3835
        %v4934 = vadd.f32 %v4933, %v3836
        %v4935 = vadd.f32 %v4934, %v3837
        %v4936 = vadd.f32 %v4935, %v3838
        %v4937 = vadd.f32 %v4936, %v3839
        %v4938 = vadd.f32 %v4937, %v3840
        %v4939 = vadd.f32 %v4938, %v3841
        %v4940 = vadd.f32 %v4939, %v3842
        %v4941 = vadd.f32 %v4940, %v3843
        %4942 = vadd.xlane.f32.xlu0 %v4941
        %v4943 = vpop.xlane.xlu0 %4942
        %v4944 = vadd.f32 %v3844, %v3845
        %v4945 = vadd.f32 %v4944, %v3846
        %v4946 = vadd.f32 %v4945, %v3847
        %v4947 = vadd.f32 %v4946, %v3848
        %v4948 = vadd.f32 %v4947, %v3849
        %v4949 = vadd.f32 %v4948, %v3850
        %v4950 = vadd.f32 %v4949, %v3851
        %v4951 = vadd.f32 %v4950, %v3852
        %v4952 = vadd.f32 %v4951, %v3853
        %v4953 = vadd.f32 %v4952, %v3854
        %v4954 = vadd.f32 %v4953, %v3855
        %v4955 = vadd.f32 %v4954, %v3856
        %v4956 = vadd.f32 %v4955, %v3857
        %v4957 = vadd.f32 %v4956, %v3858
        %v4958 = vadd.f32 %v4957, %v3859
        %4959 = vadd.xlane.f32.xlu0 %v4958
        %v4960 = vpop.xlane.xlu0 %4959
        %v4961 = vadd.f32 %v3860, %v3861
        %v4962 = vadd.f32 %v4961, %v3862
        %v4963 = vadd.f32 %v4962, %v3863
        %v4964 = vadd.f32 %v4963, %v3864
        %v4965 = vadd.f32 %v4964, %v3865
        %v4966 = vadd.f32 %v4965, %v3866
        %v4967 = vadd.f32 %v4966, %v3867
        %v4968 = vadd.f32 %v4967, %v3868
        %v4969 = vadd.f32 %v4968, %v3869
        %v4970 = vadd.f32 %v4969, %v3870
        %v4971 = vadd.f32 %v4970, %v3871
        %v4972 = vadd.f32 %v4971, %v3872
        %v4973 = vadd.f32 %v4972, %v3873
        %v4974 = vadd.f32 %v4973, %v3874
        %v4975 = vadd.f32 %v4974, %v3875
        %4976 = vadd.xlane.f32.xlu0 %v4975
        %v4977 = vpop.xlane.xlu0 %4976
        %v4978 = vadd.f32 %v3876, %v3877
        %v4979 = vadd.f32 %v4978, %v3878
        %v4980 = vadd.f32 %v4979, %v3879
        %v4981 = vadd.f32 %v4980, %v3880
        %v4982 = vadd.f32 %v4981, %v3881
        %v4983 = vadd.f32 %v4982, %v3882
        %v4984 = vadd.f32 %v4983, %v3883
        %v4985 = vadd.f32 %v4984, %v3884
        %v4986 = vadd.f32 %v4985, %v3885
        %v4987 = vadd.f32 %v4986, %v3886
        %v4988 = vadd.f32 %v4987, %v3887
        %v4989 = vadd.f32 %v4988, %v3888
        %v4990 = vadd.f32 %v4989, %v3889
        %v4991 = vadd.f32 %v4990, %v3890
        %v4992 = vadd.f32 %v4991, %v3891
        %4993 = vadd.xlane.f32.xlu0 %v4992
        %v4994 = vpop.xlane.xlu0 %4993
        %v4995 = vadd.f32 %v3892, %v3893
        %v4996 = vadd.f32 %v4995, %v3894
        %v4997 = vadd.f32 %v4996, %v3895
        %v4998 = vadd.f32 %v4997, %v3896
        %v4999 = vadd.f32 %v4998, %v3897
        %v5000 = vadd.f32 %v4999, %v3898
        %v5001 = vadd.f32 %v5000, %v3899
        %v5002 = vadd.f32 %v5001, %v3900
        %v5003 = vadd.f32 %v5002, %v3901
        %v5004 = vadd.f32 %v5003, %v3902
        %v5005 = vadd.f32 %v5004, %v3903
        %v5006 = vadd.f32 %v5005, %v3904
        %v5007 = vadd.f32 %v5006, %v3905
        %v5008 = vadd.f32 %v5007, %v3906
        %v5009 = vadd.f32 %v5008, %v3907
        %5010 = vadd.xlane.f32.xlu0 %v5009
        %v5011 = vpop.xlane.xlu0 %5010
        %v5012 = vadd.f32 %v3908, %v3909
        %v5013 = vadd.f32 %v5012, %v3910
        %v5014 = vadd.f32 %v5013, %v3911
        %v5015 = vadd.f32 %v5014, %v3912
        %v5016 = vadd.f32 %v5015, %v3913
        %v5017 = vadd.f32 %v5016, %v3914
        %v5018 = vadd.f32 %v5017, %v3915
        %v5019 = vadd.f32 %v5018, %v3916
        %v5020 = vadd.f32 %v5019, %v3917
        %v5021 = vadd.f32 %v5020, %v3918
        %v5022 = vadd.f32 %v5021, %v3919
        %v5023 = vadd.f32 %v5022, %v3920
        %v5024 = vadd.f32 %v5023, %v3921
        %v5025 = vadd.f32 %v5024, %v3922
        %v5026 = vadd.f32 %v5025, %v3923
        %5027 = vadd.xlane.f32.xlu0 %v5026
        %v5028 = vpop.xlane.xlu0 %5027
        %v5029 = vadd.f32 %v3924, %v3925
        %v5030 = vadd.f32 %v5029, %v3926
        %v5031 = vadd.f32 %v5030, %v3927
        %v5032 = vadd.f32 %v5031, %v3928
        %v5033 = vadd.f32 %v5032, %v3929
        %v5034 = vadd.f32 %v5033, %v3930
        %v5035 = vadd.f32 %v5034, %v3931
        %v5036 = vadd.f32 %v5035, %v3932
        %v5037 = vadd.f32 %v5036, %v3933
        %v5038 = vadd.f32 %v5037, %v3934
        %v5039 = vadd.f32 %v5038, %v3935
        %v5040 = vadd.f32 %v5039, %v3936
        %v5041 = vadd.f32 %v5040, %v3937
        %v5042 = vadd.f32 %v5041, %v3938
        %v5043 = vadd.f32 %v5042, %v3939
        %5044 = vadd.xlane.f32.xlu0 %v5043
        %v5045 = vpop.xlane.xlu0 %5044
        %v5046 = vadd.f32 %v3940, %v3941
        %v5047 = vadd.f32 %v5046, %v3942
        %v5048 = vadd.f32 %v5047, %v3943
        %v5049 = vadd.f32 %v5048, %v3944
        %v5050 = vadd.f32 %v5049, %v3945
        %v5051 = vadd.f32 %v5050, %v3946
        %v5052 = vadd.f32 %v5051, %v3947
        %v5053 = vadd.f32 %v5052, %v3948
        %v5054 = vadd.f32 %v5053, %v3949
        %v5055 = vadd.f32 %v5054, %v3950
        %v5056 = vadd.f32 %v5055, %v3951
        %v5057 = vadd.f32 %v5056, %v3952
        %v5058 = vadd.f32 %v5057, %v3953
        %v5059 = vadd.f32 %v5058, %v3954
        %v5060 = vadd.f32 %v5059, %v3955
        %5061 = vadd.xlane.f32.xlu0 %v5060
        %v5062 = vpop.xlane.xlu0 %5061
        %v5063 = vadd.f32 %v3956, %v3957
        %v5064 = vadd.f32 %v5063, %v3958
        %v5065 = vadd.f32 %v5064, %v3959
        %v5066 = vadd.f32 %v5065, %v3960
        %v5067 = vadd.f32 %v5066, %v3961
        %v5068 = vadd.f32 %v5067, %v3962
        %v5069 = vadd.f32 %v5068, %v3963
        %v5070 = vadd.f32 %v5069, %v3964
        %v5071 = vadd.f32 %v5070, %v3965
        %v5072 = vadd.f32 %v5071, %v3966
        %v5073 = vadd.f32 %v5072, %v3967
        %v5074 = vadd.f32 %v5073, %v3968
        %v5075 = vadd.f32 %v5074, %v3969
        %v5076 = vadd.f32 %v5075, %v3970
        %v5077 = vadd.f32 %v5076, %v3971
        %5078 = vadd.xlane.f32.xlu0 %v5077
        %v5079 = vpop.xlane.xlu0 %5078
        %v5080 = vadd.f32 %v3972, %v3973
        %v5081 = vadd.f32 %v5080, %v3974
        %v5082 = vadd.f32 %v5081, %v3975
        %v5083 = vadd.f32 %v5082, %v3976
        %v5084 = vadd.f32 %v5083, %v3977
        %v5085 = vadd.f32 %v5084, %v3978
        %v5086 = vadd.f32 %v5085, %v3979
        %v5087 = vadd.f32 %v5086, %v3980
        %v5088 = vadd.f32 %v5087, %v3981
        %v5089 = vadd.f32 %v5088, %v3982
        %v5090 = vadd.f32 %v5089, %v3983
        %v5091 = vadd.f32 %v5090, %v3984
        %v5092 = vadd.f32 %v5091, %v3985
        %v5093 = vadd.f32 %v5092, %v3986
        %v5094 = vadd.f32 %v5093, %v3987
        %5095 = vadd.xlane.f32.xlu0 %v5094
        %v5096 = vpop.xlane.xlu0 %5095
        %v5097 = vadd.f32 %v3988, %v3989
        %v5098 = vadd.f32 %v5097, %v3990
        %v5099 = vadd.f32 %v5098, %v3991
        %v5100 = vadd.f32 %v5099, %v3992
        %v5101 = vadd.f32 %v5100, %v3993
        %v5102 = vadd.f32 %v5101, %v3994
        %v5103 = vadd.f32 %v5102, %v3995
        %v5104 = vadd.f32 %v5103, %v3996
        %v5105 = vadd.f32 %v5104, %v3997
        %v5106 = vadd.f32 %v5105, %v3998
        %v5107 = vadd.f32 %v5106, %v3999
        %v5108 = vadd.f32 %v5107, %v4000
        %v5109 = vadd.f32 %v5108, %v4001
        %v5110 = vadd.f32 %v5109, %v4002
        %v5111 = vadd.f32 %v5110, %v4003
        %5112 = vadd.xlane.f32.xlu0 %v5111
        %v5113 = vpop.xlane.xlu0 %5112
        %v5114 = vadd.f32 %v4004, %v4005
        %v5115 = vadd.f32 %v5114, %v4006
        %v5116 = vadd.f32 %v5115, %v4007
        %v5117 = vadd.f32 %v5116, %v4008
        %v5118 = vadd.f32 %v5117, %v4009
        %v5119 = vadd.f32 %v5118, %v4010
        %v5120 = vadd.f32 %v5119, %v4011
        %v5121 = vadd.f32 %v5120, %v4012
        %v5122 = vadd.f32 %v5121, %v4013
        %v5123 = vadd.f32 %v5122, %v4014
        %v5124 = vadd.f32 %v5123, %v4015
        %v5125 = vadd.f32 %v5124, %v4016
        %v5126 = vadd.f32 %v5125, %v4017
        %v5127 = vadd.f32 %v5126, %v4018
        %v5128 = vadd.f32 %v5127, %v4019
        %5129 = vadd.xlane.f32.xlu0 %v5128
        %v5130 = vpop.xlane.xlu0 %5129
        %v5131 = vadd.f32 %v4020, %v4021
        %v5132 = vadd.f32 %v5131, %v4022
        %v5133 = vadd.f32 %v5132, %v4023
        %v5134 = vadd.f32 %v5133, %v4024
        %v5135 = vadd.f32 %v5134, %v4025
        %v5136 = vadd.f32 %v5135, %v4026
        %v5137 = vadd.f32 %v5136, %v4027
        %v5138 = vadd.f32 %v5137, %v4028
        %v5139 = vadd.f32 %v5138, %v4029
        %v5140 = vadd.f32 %v5139, %v4030
        %v5141 = vadd.f32 %v5140, %v4031
        %v5142 = vadd.f32 %v5141, %v4032
        %v5143 = vadd.f32 %v5142, %v4033
        %v5144 = vadd.f32 %v5143, %v4034
        %v5145 = vadd.f32 %v5144, %v4035
        %5146 = vadd.xlane.f32.xlu0 %v5145
        %v5147 = vpop.xlane.xlu0 %5146
        %v5148 = vadd.f32 %v4036, %v4037
        %v5149 = vadd.f32 %v5148, %v4038
        %v5150 = vadd.f32 %v5149, %v4039
        %v5151 = vadd.f32 %v5150, %v4040
        %v5152 = vadd.f32 %v5151, %v4041
        %v5153 = vadd.f32 %v5152, %v4042
        %v5154 = vadd.f32 %v5153, %v4043
        %v5155 = vadd.f32 %v5154, %v4044
        %v5156 = vadd.f32 %v5155, %v4045
        %v5157 = vadd.f32 %v5156, %v4046
        %v5158 = vadd.f32 %v5157, %v4047
        %v5159 = vadd.f32 %v5158, %v4048
        %v5160 = vadd.f32 %v5159, %v4049
        %v5161 = vadd.f32 %v5160, %v4050
        %v5162 = vadd.f32 %v5161, %v4051
        %5163 = vadd.xlane.f32.xlu0 %v5162
        %v5164 = vpop.xlane.xlu0 %5163
        %v5165 = vadd.f32 %v4052, %v4053
        %v5166 = vadd.f32 %v5165, %v4054
        %v5167 = vadd.f32 %v5166, %v4055
        %v5168 = vadd.f32 %v5167, %v4056
        %v5169 = vadd.f32 %v5168, %v4057
        %v5170 = vadd.f32 %v5169, %v4058
        %v5171 = vadd.f32 %v5170, %v4059
        %v5172 = vadd.f32 %v5171, %v4060
        %v5173 = vadd.f32 %v5172, %v4061
        %v5174 = vadd.f32 %v5173, %v4062
        %v5175 = vadd.f32 %v5174, %v4063
        %v5176 = vadd.f32 %v5175, %v4064
        %v5177 = vadd.f32 %v5176, %v4065
        %v5178 = vadd.f32 %v5177, %v4066
        %v5179 = vadd.f32 %v5178, %v4067
        %5180 = vadd.xlane.f32.xlu0 %v5179
        %v5181 = vpop.xlane.xlu0 %5180
        %v5182 = vadd.f32 %v4068, %v4069
        %v5183 = vadd.f32 %v5182, %v4070
        %v5184 = vadd.f32 %v5183, %v4071
        %v5185 = vadd.f32 %v5184, %v4072
        %v5186 = vadd.f32 %v5185, %v4073
        %v5187 = vadd.f32 %v5186, %v4074
        %v5188 = vadd.f32 %v5187, %v4075
        %v5189 = vadd.f32 %v5188, %v4076
        %v5190 = vadd.f32 %v5189, %v4077
        %v5191 = vadd.f32 %v5190, %v4078
        %v5192 = vadd.f32 %v5191, %v4079
        %v5193 = vadd.f32 %v5192, %v4080
        %v5194 = vadd.f32 %v5193, %v4081
        %v5195 = vadd.f32 %v5194, %v4082
        %v5196 = vadd.f32 %v5195, %v4083
        %5197 = vadd.xlane.f32.xlu0 %v5196
        %v5198 = vpop.xlane.xlu0 %5197
        %v5199 = vadd.f32 %v4084, %v4085
        %v5200 = vadd.f32 %v5199, %v4086
        %v5201 = vadd.f32 %v5200, %v4087
        %v5202 = vadd.f32 %v5201, %v4088
        %v5203 = vadd.f32 %v5202, %v4089
        %v5204 = vadd.f32 %v5203, %v4090
        %v5205 = vadd.f32 %v5204, %v4091
        %v5206 = vadd.f32 %v5205, %v4092
        %v5207 = vadd.f32 %v5206, %v4093
        %v5208 = vadd.f32 %v5207, %v4094
        %v5209 = vadd.f32 %v5208, %v4095
        %v5210 = vadd.f32 %v5209, %v4096
        %v5211 = vadd.f32 %v5210, %v4097
        %v5212 = vadd.f32 %v5211, %v4098
        %v5213 = vadd.f32 %v5212, %v4099
        %5214 = vadd.xlane.f32.xlu0 %v5213
        %v5215 = vpop.xlane.xlu0 %5214
        %v5216 = vadd.f32 %v4100, %v4101
        %v5217 = vadd.f32 %v5216, %v4102
        %v5218 = vadd.f32 %v5217, %v4103
        %v5219 = vadd.f32 %v5218, %v4104
        %v5220 = vadd.f32 %v5219, %v4105
        %v5221 = vadd.f32 %v5220, %v4106
        %v5222 = vadd.f32 %v5221, %v4107
        %v5223 = vadd.f32 %v5222, %v4108
        %v5224 = vadd.f32 %v5223, %v4109
        %v5225 = vadd.f32 %v5224, %v4110
        %v5226 = vadd.f32 %v5225, %v4111
        %v5227 = vadd.f32 %v5226, %v4112
        %v5228 = vadd.f32 %v5227, %v4113
        %v5229 = vadd.f32 %v5228, %v4114
        %v5230 = vadd.f32 %v5229, %v4115
        %5231 = vadd.xlane.f32.xlu0 %v5230
        %v5232 = vpop.xlane.xlu0 %5231
        %v5233 = vadd.f32 %v4116, %v4117
        %v5234 = vadd.f32 %v5233, %v4118
        %v5235 = vadd.f32 %v5234, %v4119
        %v5236 = vadd.f32 %v5235, %v4120
        %v5237 = vadd.f32 %v5236, %v4121
        %v5238 = vadd.f32 %v5237, %v4122
        %v5239 = vadd.f32 %v5238, %v4123
        %v5240 = vadd.f32 %v5239, %v4124
        %v5241 = vadd.f32 %v5240, %v4125
        %v5242 = vadd.f32 %v5241, %v4126
        %v5243 = vadd.f32 %v5242, %v4127
        %v5244 = vadd.f32 %v5243, %v4128
        %v5245 = vadd.f32 %v5244, %v4129
        %v5246 = vadd.f32 %v5245, %v4130
        %v5247 = vadd.f32 %v5246, %v4131
        %5248 = vadd.xlane.f32.xlu0 %v5247
        %v5249 = vpop.xlane.xlu0 %5248
        %v5250 = vadd.f32 %v4132, %v4133
        %v5251 = vadd.f32 %v5250, %v4134
        %v5252 = vadd.f32 %v5251, %v4135
        %v5253 = vadd.f32 %v5252, %v4136
        %v5254 = vadd.f32 %v5253, %v4137
        %v5255 = vadd.f32 %v5254, %v4138
        %v5256 = vadd.f32 %v5255, %v4139
        %v5257 = vadd.f32 %v5256, %v4140
        %v5258 = vadd.f32 %v5257, %v4141
        %v5259 = vadd.f32 %v5258, %v4142
        %v5260 = vadd.f32 %v5259, %v4143
        %v5261 = vadd.f32 %v5260, %v4144
        %v5262 = vadd.f32 %v5261, %v4145
        %v5263 = vadd.f32 %v5262, %v4146
        %v5264 = vadd.f32 %v5263, %v4147
        %5265 = vadd.xlane.f32.xlu0 %v5264
        %v5266 = vpop.xlane.xlu0 %5265
        %v5267 = vadd.f32 %v4148, %v4149
        %v5268 = vadd.f32 %v5267, %v4150
        %v5269 = vadd.f32 %v5268, %v4151
        %v5270 = vadd.f32 %v5269, %v4152
        %v5271 = vadd.f32 %v5270, %v4153
        %v5272 = vadd.f32 %v5271, %v4154
        %v5273 = vadd.f32 %v5272, %v4155
        %v5274 = vadd.f32 %v5273, %v4156
        %v5275 = vadd.f32 %v5274, %v4157
        %v5276 = vadd.f32 %v5275, %v4158
        %v5277 = vadd.f32 %v5276, %v4159
        %v5278 = vadd.f32 %v5277, %v4160
        %v5279 = vadd.f32 %v5278, %v4161
        %v5280 = vadd.f32 %v5279, %v4162
        %v5281 = vadd.f32 %v5280, %v4163
        %5282 = vadd.xlane.f32.xlu0 %v5281
        %v5283 = vpop.xlane.xlu0 %5282
        %v5284 = vadd.f32 %v4164, %v4165
        %v5285 = vadd.f32 %v5284, %v4166
        %v5286 = vadd.f32 %v5285, %v4167
        %v5287 = vadd.f32 %v5286, %v4168
        %v5288 = vadd.f32 %v5287, %v4169
        %v5289 = vadd.f32 %v5288, %v4170
        %v5290 = vadd.f32 %v5289, %v4171
        %v5291 = vadd.f32 %v5290, %v4172
        %v5292 = vadd.f32 %v5291, %v4173
        %v5293 = vadd.f32 %v5292, %v4174
        %v5294 = vadd.f32 %v5293, %v4175
        %v5295 = vadd.f32 %v5294, %v4176
        %v5296 = vadd.f32 %v5295, %v4177
        %v5297 = vadd.f32 %v5296, %v4178
        %v5298 = vadd.f32 %v5297, %v4179
        %5299 = vadd.xlane.f32.xlu0 %v5298
        %v5300 = vpop.xlane.xlu0 %5299
        %v5301 = vadd.f32 %v4180, %v4181
        %v5302 = vadd.f32 %v5301, %v4182
        %v5303 = vadd.f32 %v5302, %v4183
        %v5304 = vadd.f32 %v5303, %v4184
        %v5305 = vadd.f32 %v5304, %v4185
        %v5306 = vadd.f32 %v5305, %v4186
        %v5307 = vadd.f32 %v5306, %v4187
        %v5308 = vadd.f32 %v5307, %v4188
        %v5309 = vadd.f32 %v5308, %v4189
        %v5310 = vadd.f32 %v5309, %v4190
        %v5311 = vadd.f32 %v5310, %v4191
        %v5312 = vadd.f32 %v5311, %v4192
        %v5313 = vadd.f32 %v5312, %v4193
        %v5314 = vadd.f32 %v5313, %v4194
        %v5315 = vadd.f32 %v5314, %v4195
        %5316 = vadd.xlane.f32.xlu0 %v5315
        %v5317 = vpop.xlane.xlu0 %5316
        %v5318 = vadd.f32 %v4196, %v4197
        %v5319 = vadd.f32 %v5318, %v4198
        %v5320 = vadd.f32 %v5319, %v4199
        %v5321 = vadd.f32 %v5320, %v4200
        %v5322 = vadd.f32 %v5321, %v4201
        %v5323 = vadd.f32 %v5322, %v4202
        %v5324 = vadd.f32 %v5323, %v4203
        %v5325 = vadd.f32 %v5324, %v4204
        %v5326 = vadd.f32 %v5325, %v4205
        %v5327 = vadd.f32 %v5326, %v4206
        %v5328 = vadd.f32 %v5327, %v4207
        %v5329 = vadd.f32 %v5328, %v4208
        %v5330 = vadd.f32 %v5329, %v4209
        %v5331 = vadd.f32 %v5330, %v4210
        %v5332 = vadd.f32 %v5331, %v4211
        %5333 = vadd.xlane.f32.xlu0 %v5332
        %v5334 = vpop.xlane.xlu0 %5333
        %v5335 = vadd.f32 %v4212, %v4213
        %v5336 = vadd.f32 %v5335, %v4214
        %v5337 = vadd.f32 %v5336, %v4215
        %v5338 = vadd.f32 %v5337, %v4216
        %v5339 = vadd.f32 %v5338, %v4217
        %v5340 = vadd.f32 %v5339, %v4218
        %v5341 = vadd.f32 %v5340, %v4219
        %v5342 = vadd.f32 %v5341, %v4220
        %v5343 = vadd.f32 %v5342, %v4221
        %v5344 = vadd.f32 %v5343, %v4222
        %v5345 = vadd.f32 %v5344, %v4223
        %v5346 = vadd.f32 %v5345, %v4224
        %v5347 = vadd.f32 %v5346, %v4225
        %v5348 = vadd.f32 %v5347, %v4226
        %v5349 = vadd.f32 %v5348, %v4227
        %5350 = vadd.xlane.f32.xlu0 %v5349
        %v5351 = vpop.xlane.xlu0 %5350
        %v5352 = vadd.f32 %v4228, %v4229
        %v5353 = vadd.f32 %v5352, %v4230
        %v5354 = vadd.f32 %v5353, %v4231
        %v5355 = vadd.f32 %v5354, %v4232
        %v5356 = vadd.f32 %v5355, %v4233
        %v5357 = vadd.f32 %v5356, %v4234
        %v5358 = vadd.f32 %v5357, %v4235
        %v5359 = vadd.f32 %v5358, %v4236
        %v5360 = vadd.f32 %v5359, %v4237
        %v5361 = vadd.f32 %v5360, %v4238
        %v5362 = vadd.f32 %v5361, %v4239
        %v5363 = vadd.f32 %v5362, %v4240
        %v5364 = vadd.f32 %v5363, %v4241
        %v5365 = vadd.f32 %v5364, %v4242
        %v5366 = vadd.f32 %v5365, %v4243
        %5367 = vadd.xlane.f32.xlu0 %v5366
        %v5368 = vpop.xlane.xlu0 %5367
        %v5369 = vadd.f32 %v4244, %v4245
        %v5370 = vadd.f32 %v5369, %v4246
        %v5371 = vadd.f32 %v5370, %v4247
        %v5372 = vadd.f32 %v5371, %v4248
        %v5373 = vadd.f32 %v5372, %v4249
        %v5374 = vadd.f32 %v5373, %v4250
        %v5375 = vadd.f32 %v5374, %v4251
        %v5376 = vadd.f32 %v5375, %v4252
        %v5377 = vadd.f32 %v5376, %v4253
        %v5378 = vadd.f32 %v5377, %v4254
        %v5379 = vadd.f32 %v5378, %v4255
        %v5380 = vadd.f32 %v5379, %v4256
        %v5381 = vadd.f32 %v5380, %v4257
        %v5382 = vadd.f32 %v5381, %v4258
        %v5383 = vadd.f32 %v5382, %v4259
        %5384 = vadd.xlane.f32.xlu0 %v5383
        %v5385 = vpop.xlane.xlu0 %5384
        %v5386 = vadd.f32 %v4260, %v4261
        %v5387 = vadd.f32 %v5386, %v4262
        %v5388 = vadd.f32 %v5387, %v4263
        %v5389 = vadd.f32 %v5388, %v4264
        %v5390 = vadd.f32 %v5389, %v4265
        %v5391 = vadd.f32 %v5390, %v4266
        %v5392 = vadd.f32 %v5391, %v4267
        %v5393 = vadd.f32 %v5392, %v4268
        %v5394 = vadd.f32 %v5393, %v4269
        %v5395 = vadd.f32 %v5394, %v4270
        %v5396 = vadd.f32 %v5395, %v4271
        %v5397 = vadd.f32 %v5396, %v4272
        %v5398 = vadd.f32 %v5397, %v4273
        %v5399 = vadd.f32 %v5398, %v4274
        %v5400 = vadd.f32 %v5399, %v4275
        %5401 = vadd.xlane.f32.xlu0 %v5400
        %v5402 = vpop.xlane.xlu0 %5401
        %v5403 = vadd.f32 %v4276, %v4277
        %v5404 = vadd.f32 %v5403, %v4278
        %v5405 = vadd.f32 %v5404, %v4279
        %v5406 = vadd.f32 %v5405, %v4280
        %v5407 = vadd.f32 %v5406, %v4281
        %v5408 = vadd.f32 %v5407, %v4282
        %v5409 = vadd.f32 %v5408, %v4283
        %v5410 = vadd.f32 %v5409, %v4284
        %v5411 = vadd.f32 %v5410, %v4285
        %v5412 = vadd.f32 %v5411, %v4286
        %v5413 = vadd.f32 %v5412, %v4287
        %v5414 = vadd.f32 %v5413, %v4288
        %v5415 = vadd.f32 %v5414, %v4289
        %v5416 = vadd.f32 %v5415, %v4290
        %v5417 = vadd.f32 %v5416, %v4291
        %5418 = vadd.xlane.f32.xlu0 %v5417
        %v5419 = vpop.xlane.xlu0 %5418
        %v5420 = vadd.f32 %v4292, %v4293
        %v5421 = vadd.f32 %v5420, %v4294
        %v5422 = vadd.f32 %v5421, %v4295
        %v5423 = vadd.f32 %v5422, %v4296
        %v5424 = vadd.f32 %v5423, %v4297
        %v5425 = vadd.f32 %v5424, %v4298
        %v5426 = vadd.f32 %v5425, %v4299
        %v5427 = vadd.f32 %v5426, %v4300
        %v5428 = vadd.f32 %v5427, %v4301
        %v5429 = vadd.f32 %v5428, %v4302
        %v5430 = vadd.f32 %v5429, %v4303
        %v5431 = vadd.f32 %v5430, %v4304
        %v5432 = vadd.f32 %v5431, %v4305
        %v5433 = vadd.f32 %v5432, %v4306
        %v5434 = vadd.f32 %v5433, %v4307
        %5435 = vadd.xlane.f32.xlu0 %v5434
        %v5436 = vpop.xlane.xlu0 %5435
        %v5437 = vadd.f32 %v4308, %v4309
        %v5438 = vadd.f32 %v5437, %v4310
        %v5439 = vadd.f32 %v5438, %v4311
        %v5440 = vadd.f32 %v5439, %v4312
        %v5441 = vadd.f32 %v5440, %v4313
        %v5442 = vadd.f32 %v5441, %v4314
        %v5443 = vadd.f32 %v5442, %v4315
        %v5444 = vadd.f32 %v5443, %v4316
        %v5445 = vadd.f32 %v5444, %v4317
        %v5446 = vadd.f32 %v5445, %v4318
        %v5447 = vadd.f32 %v5446, %v4319
        %v5448 = vadd.f32 %v5447, %v4320
        %v5449 = vadd.f32 %v5448, %v4321
        %v5450 = vadd.f32 %v5449, %v4322
        %v5451 = vadd.f32 %v5450, %v4323
        %5452 = vadd.xlane.f32.xlu0 %v5451
        %v5453 = vpop.xlane.xlu0 %5452
        %v5454 = vadd.f32 %v4324, %v4325
        %v5455 = vadd.f32 %v5454, %v4326
        %v5456 = vadd.f32 %v5455, %v4327
        %v5457 = vadd.f32 %v5456, %v4328
        %v5458 = vadd.f32 %v5457, %v4329
        %v5459 = vadd.f32 %v5458, %v4330
        %v5460 = vadd.f32 %v5459, %v4331
        %v5461 = vadd.f32 %v5460, %v4332
        %v5462 = vadd.f32 %v5461, %v4333
        %v5463 = vadd.f32 %v5462, %v4334
        %v5464 = vadd.f32 %v5463, %v4335
        %v5465 = vadd.f32 %v5464, %v4336
        %v5466 = vadd.f32 %v5465, %v4337
        %v5467 = vadd.f32 %v5466, %v4338
        %v5468 = vadd.f32 %v5467, %v4339
        %5469 = vadd.xlane.f32.xlu0 %v5468
        %v5470 = vpop.xlane.xlu0 %5469
        %v5471 = vadd.f32 %v4340, %v4341
        %v5472 = vadd.f32 %v5471, %v4342
        %v5473 = vadd.f32 %v5472, %v4343
        %v5474 = vadd.f32 %v5473, %v4344
        %v5475 = vadd.f32 %v5474, %v4345
        %v5476 = vadd.f32 %v5475, %v4346
        %v5477 = vadd.f32 %v5476, %v4347
        %v5478 = vadd.f32 %v5477, %v4348
        %v5479 = vadd.f32 %v5478, %v4349
        %v5480 = vadd.f32 %v5479, %v4350
        %v5481 = vadd.f32 %v5480, %v4351
        %v5482 = vadd.f32 %v5481, %v4352
        %v5483 = vadd.f32 %v5482, %v4353
        %v5484 = vadd.f32 %v5483, %v4354
        %v5485 = vadd.f32 %v5484, %v4355
        %5486 = vadd.xlane.f32.xlu0 %v5485
        %v5487 = vpop.xlane.xlu0 %5486
        %v5488 = vadd.f32 %v4356, %v4357
        %v5489 = vadd.f32 %v5488, %v4358
        %v5490 = vadd.f32 %v5489, %v4359
        %v5491 = vadd.f32 %v5490, %v4360
        %v5492 = vadd.f32 %v5491, %v4361
        %v5493 = vadd.f32 %v5492, %v4362
        %v5494 = vadd.f32 %v5493, %v4363
        %v5495 = vadd.f32 %v5494, %v4364
        %v5496 = vadd.f32 %v5495, %v4365
        %v5497 = vadd.f32 %v5496, %v4366
        %v5498 = vadd.f32 %v5497, %v4367
        %v5499 = vadd.f32 %v5498, %v4368
        %v5500 = vadd.f32 %v5499, %v4369
        %v5501 = vadd.f32 %v5500, %v4370
        %v5502 = vadd.f32 %v5501, %v4371
        %5503 = vadd.xlane.f32.xlu0 %v5502
        %v5504 = vpop.xlane.xlu0 %5503
        %v5505 = vadd.f32 %v4372, %v4373
        %v5506 = vadd.f32 %v5505, %v4374
        %v5507 = vadd.f32 %v5506, %v4375
        %v5508 = vadd.f32 %v5507, %v4376
        %v5509 = vadd.f32 %v5508, %v4377
        %v5510 = vadd.f32 %v5509, %v4378
        %v5511 = vadd.f32 %v5510, %v4379
        %v5512 = vadd.f32 %v5511, %v4380
        %v5513 = vadd.f32 %v5512, %v4381
        %v5514 = vadd.f32 %v5513, %v4382
        %v5515 = vadd.f32 %v5514, %v4383
        %v5516 = vadd.f32 %v5515, %v4384
        %v5517 = vadd.f32 %v5516, %v4385
        %v5518 = vadd.f32 %v5517, %v4386
        %v5519 = vadd.f32 %v5518, %v4387
        %5520 = vadd.xlane.f32.xlu0 %v5519
        %v5521 = vpop.xlane.xlu0 %5520
        %v5522 = vadd.f32 %v4388, %v4389
        %v5523 = vadd.f32 %v5522, %v4390
        %v5524 = vadd.f32 %v5523, %v4391
        %v5525 = vadd.f32 %v5524, %v4392
        %v5526 = vadd.f32 %v5525, %v4393
        %v5527 = vadd.f32 %v5526, %v4394
        %v5528 = vadd.f32 %v5527, %v4395
        %v5529 = vadd.f32 %v5528, %v4396
        %v5530 = vadd.f32 %v5529, %v4397
        %v5531 = vadd.f32 %v5530, %v4398
        %v5532 = vadd.f32 %v5531, %v4399
        %v5533 = vadd.f32 %v5532, %v4400
        %v5534 = vadd.f32 %v5533, %v4401
        %v5535 = vadd.f32 %v5534, %v4402
        %v5536 = vadd.f32 %v5535, %v4403
        %5537 = vadd.xlane.f32.xlu0 %v5536
        %v5538 = vpop.xlane.xlu0 %5537
        %v5539 = vadd.f32 %v4404, %v4405
        %v5540 = vadd.f32 %v5539, %v4406
        %v5541 = vadd.f32 %v5540, %v4407
        %v5542 = vadd.f32 %v5541, %v4408
        %v5543 = vadd.f32 %v5542, %v4409
        %v5544 = vadd.f32 %v5543, %v4410
        %v5545 = vadd.f32 %v5544, %v4411
        %v5546 = vadd.f32 %v5545, %v4412
        %v5547 = vadd.f32 %v5546, %v4413
        %v5548 = vadd.f32 %v5547, %v4414
        %v5549 = vadd.f32 %v5548, %v4415
        %v5550 = vadd.f32 %v5549, %v4416
        %v5551 = vadd.f32 %v5550, %v4417
        %v5552 = vadd.f32 %v5551, %v4418
        %v5553 = vadd.f32 %v5552, %v4419
        %5554 = vadd.xlane.f32.xlu0 %v5553
        %v5555 = vpop.xlane.xlu0 %5554
        %v5556 = vadd.f32 %v4420, %v4421
        %v5557 = vadd.f32 %v5556, %v4422
        %v5558 = vadd.f32 %v5557, %v4423
        %v5559 = vadd.f32 %v5558, %v4424
        %v5560 = vadd.f32 %v5559, %v4425
        %v5561 = vadd.f32 %v5560, %v4426
        %v5562 = vadd.f32 %v5561, %v4427
        %v5563 = vadd.f32 %v5562, %v4428
        %v5564 = vadd.f32 %v5563, %v4429
        %v5565 = vadd.f32 %v5564, %v4430
        %v5566 = vadd.f32 %v5565, %v4431
        %v5567 = vadd.f32 %v5566, %v4432
        %v5568 = vadd.f32 %v5567, %v4433
        %v5569 = vadd.f32 %v5568, %v4434
        %v5570 = vadd.f32 %v5569, %v4435
        %5571 = vadd.xlane.f32.xlu0 %v5570
        %v5572 = vpop.xlane.xlu0 %5571
        %v5573 = vadd.f32 %v4436, %v4437
        %v5574 = vadd.f32 %v5573, %v4438
        %v5575 = vadd.f32 %v5574, %v4439
        %v5576 = vadd.f32 %v5575, %v4440
        %v5577 = vadd.f32 %v5576, %v4441
        %v5578 = vadd.f32 %v5577, %v4442
        %v5579 = vadd.f32 %v5578, %v4443
        %v5580 = vadd.f32 %v5579, %v4444
        %v5581 = vadd.f32 %v5580, %v4445
        %v5582 = vadd.f32 %v5581, %v4446
        %v5583 = vadd.f32 %v5582, %v4447
        %v5584 = vadd.f32 %v5583, %v4448
        %v5585 = vadd.f32 %v5584, %v4449
        %v5586 = vadd.f32 %v5585, %v4450
        %v5587 = vadd.f32 %v5586, %v4451
        %5588 = vadd.xlane.f32.xlu0 %v5587
        %v5589 = vpop.xlane.xlu0 %5588
        %v5590 = vadd.f32 %v4452, %v4453
        %v5591 = vadd.f32 %v5590, %v4454
        %v5592 = vadd.f32 %v5591, %v4455
        %v5593 = vadd.f32 %v5592, %v4456
        %v5594 = vadd.f32 %v5593, %v4457
        %v5595 = vadd.f32 %v5594, %v4458
        %v5596 = vadd.f32 %v5595, %v4459
        %v5597 = vadd.f32 %v5596, %v4460
        %v5598 = vadd.f32 %v5597, %v4461
        %v5599 = vadd.f32 %v5598, %v4462
        %v5600 = vadd.f32 %v5599, %v4463
        %v5601 = vadd.f32 %v5600, %v4464
        %v5602 = vadd.f32 %v5601, %v4465
        %v5603 = vadd.f32 %v5602, %v4466
        %v5604 = vadd.f32 %v5603, %v4467
        %5605 = vadd.xlane.f32.xlu0 %v5604
        %v5606 = vpop.xlane.xlu0 %5605
        %v5607 = vadd.f32 %v4468, %v4469
        %v5608 = vadd.f32 %v5607, %v4470
        %v5609 = vadd.f32 %v5608, %v4471
        %v5610 = vadd.f32 %v5609, %v4472
        %v5611 = vadd.f32 %v5610, %v4473
        %v5612 = vadd.f32 %v5611, %v4474
        %v5613 = vadd.f32 %v5612, %v4475
        %v5614 = vadd.f32 %v5613, %v4476
        %v5615 = vadd.f32 %v5614, %v4477
        %v5616 = vadd.f32 %v5615, %v4478
        %v5617 = vadd.f32 %v5616, %v4479
        %v5618 = vadd.f32 %v5617, %v4480
        %v5619 = vadd.f32 %v5618, %v4481
        %v5620 = vadd.f32 %v5619, %v4482
        %v5621 = vadd.f32 %v5620, %v4483
        %5622 = vadd.xlane.f32.xlu0 %v5621
        %v5623 = vpop.xlane.xlu0 %5622
        %v5624 = vadd.f32 %v4484, %v4485
        %v5625 = vadd.f32 %v5624, %v4486
        %v5626 = vadd.f32 %v5625, %v4487
        %v5627 = vadd.f32 %v5626, %v4488
        %v5628 = vadd.f32 %v5627, %v4489
        %v5629 = vadd.f32 %v5628, %v4490
        %v5630 = vadd.f32 %v5629, %v4491
        %v5631 = vadd.f32 %v5630, %v4492
        %v5632 = vadd.f32 %v5631, %v4493
        %v5633 = vadd.f32 %v5632, %v4494
        %v5634 = vadd.f32 %v5633, %v4495
        %v5635 = vadd.f32 %v5634, %v4496
        %v5636 = vadd.f32 %v5635, %v4497
        %v5637 = vadd.f32 %v5636, %v4498
        %v5638 = vadd.f32 %v5637, %v4499
        %5639 = vadd.xlane.f32.xlu0 %v5638
        %v5640 = vpop.xlane.xlu0 %5639
        %v5641 = vadd.f32 %v4500, %v4501
        %v5642 = vadd.f32 %v5641, %v4502
        %v5643 = vadd.f32 %v5642, %v4503
        %v5644 = vadd.f32 %v5643, %v4504
        %v5645 = vadd.f32 %v5644, %v4505
        %v5646 = vadd.f32 %v5645, %v4506
        %v5647 = vadd.f32 %v5646, %v4507
        %v5648 = vadd.f32 %v5647, %v4508
        %v5649 = vadd.f32 %v5648, %v4509
        %v5650 = vadd.f32 %v5649, %v4510
        %v5651 = vadd.f32 %v5650, %v4511
        %v5652 = vadd.f32 %v5651, %v4512
        %v5653 = vadd.f32 %v5652, %v4513
        %v5654 = vadd.f32 %v5653, %v4514
        %v5655 = vadd.f32 %v5654, %v4515
        %5656 = vadd.xlane.f32.xlu0 %v5655
        %v5657 = vpop.xlane.xlu0 %5656
        %v5658 = vadd.f32 %v4516, %v4517
        %v5659 = vadd.f32 %v5658, %v4518
        %v5660 = vadd.f32 %v5659, %v4519
        %v5661 = vadd.f32 %v5660, %v4520
        %v5662 = vadd.f32 %v5661, %v4521
        %v5663 = vadd.f32 %v5662, %v4522
        %v5664 = vadd.f32 %v5663, %v4523
        %v5665 = vadd.f32 %v5664, %v4524
        %v5666 = vadd.f32 %v5665, %v4525
        %v5667 = vadd.f32 %v5666, %v4526
        %v5668 = vadd.f32 %v5667, %v4527
        %v5669 = vadd.f32 %v5668, %v4528
        %v5670 = vadd.f32 %v5669, %v4529
        %v5671 = vadd.f32 %v5670, %v4530
        %v5672 = vadd.f32 %v5671, %v4531
        %5673 = vadd.xlane.f32.xlu0 %v5672
        %v5674 = vpop.xlane.xlu0 %5673
        %v5675 = vadd.f32 %v4532, %v4533
        %v5676 = vadd.f32 %v5675, %v4534
        %v5677 = vadd.f32 %v5676, %v4535
        %v5678 = vadd.f32 %v5677, %v4536
        %v5679 = vadd.f32 %v5678, %v4537
        %v5680 = vadd.f32 %v5679, %v4538
        %v5681 = vadd.f32 %v5680, %v4539
        %v5682 = vadd.f32 %v5681, %v4540
        %v5683 = vadd.f32 %v5682, %v4541
        %v5684 = vadd.f32 %v5683, %v4542
        %v5685 = vadd.f32 %v5684, %v4543
        %v5686 = vadd.f32 %v5685, %v4544
        %v5687 = vadd.f32 %v5686, %v4545
        %v5688 = vadd.f32 %v5687, %v4546
        %v5689 = vadd.f32 %v5688, %v4547
        %5690 = vadd.xlane.f32.xlu0 %v5689
        %v5691 = vpop.xlane.xlu0 %5690
        %v5692 = vadd.f32 %v4548, %v4549
        %v5693 = vadd.f32 %v5692, %v4550
        %v5694 = vadd.f32 %v5693, %v4551
        %v5695 = vadd.f32 %v5694, %v4552
        %v5696 = vadd.f32 %v5695, %v4553
        %v5697 = vadd.f32 %v5696, %v4554
        %v5698 = vadd.f32 %v5697, %v4555
        %v5699 = vadd.f32 %v5698, %v4556
        %v5700 = vadd.f32 %v5699, %v4557
        %v5701 = vadd.f32 %v5700, %v4558
        %v5702 = vadd.f32 %v5701, %v4559
        %v5703 = vadd.f32 %v5702, %v4560
        %v5704 = vadd.f32 %v5703, %v4561
        %v5705 = vadd.f32 %v5704, %v4562
        %v5706 = vadd.f32 %v5705, %v4563
        %5707 = vadd.xlane.f32.xlu0 %v5706
        %v5708 = vpop.xlane.xlu0 %5707
        %v5709 = vadd.f32 %v4564, %v4565
        %v5710 = vadd.f32 %v5709, %v4566
        %v5711 = vadd.f32 %v5710, %v4567
        %v5712 = vadd.f32 %v5711, %v4568
        %v5713 = vadd.f32 %v5712, %v4569
        %v5714 = vadd.f32 %v5713, %v4570
        %v5715 = vadd.f32 %v5714, %v4571
        %v5716 = vadd.f32 %v5715, %v4572
        %v5717 = vadd.f32 %v5716, %v4573
        %v5718 = vadd.f32 %v5717, %v4574
        %v5719 = vadd.f32 %v5718, %v4575
        %v5720 = vadd.f32 %v5719, %v4576
        %v5721 = vadd.f32 %v5720, %v4577
        %v5722 = vadd.f32 %v5721, %v4578
        %v5723 = vadd.f32 %v5722, %v4579
        %5724 = vadd.xlane.f32.xlu0 %v5723
        %v5725 = vpop.xlane.xlu0 %5724
        %v5726 = vadd.f32 %v4580, %v4581
        %v5727 = vadd.f32 %v5726, %v4582
        %v5728 = vadd.f32 %v5727, %v4583
        %v5729 = vadd.f32 %v5728, %v4584
        %v5730 = vadd.f32 %v5729, %v4585
        %v5731 = vadd.f32 %v5730, %v4586
        %v5732 = vadd.f32 %v5731, %v4587
        %v5733 = vadd.f32 %v5732, %v4588
        %v5734 = vadd.f32 %v5733, %v4589
        %v5735 = vadd.f32 %v5734, %v4590
        %v5736 = vadd.f32 %v5735, %v4591
        %v5737 = vadd.f32 %v5736, %v4592
        %v5738 = vadd.f32 %v5737, %v4593
        %v5739 = vadd.f32 %v5738, %v4594
        %v5740 = vadd.f32 %v5739, %v4595
        %5741 = vadd.xlane.f32.xlu0 %v5740
        %v5742 = vpop.xlane.xlu0 %5741
        %v5743 = vadd.f32 %v4596, %v4597
        %v5744 = vadd.f32 %v5743, %v4598
        %v5745 = vadd.f32 %v5744, %v4599
        %v5746 = vadd.f32 %v5745, %v4600
        %v5747 = vadd.f32 %v5746, %v4601
        %v5748 = vadd.f32 %v5747, %v4602
        %v5749 = vadd.f32 %v5748, %v4603
        %v5750 = vadd.f32 %v5749, %v4604
        %v5751 = vadd.f32 %v5750, %v4605
        %v5752 = vadd.f32 %v5751, %v4606
        %v5753 = vadd.f32 %v5752, %v4607
        %v5754 = vadd.f32 %v5753, %v4608
        %v5755 = vadd.f32 %v5754, %v4609
        %v5756 = vadd.f32 %v5755, %v4610
        %v5757 = vadd.f32 %v5756, %v4611
        %5758 = vadd.xlane.f32.xlu0 %v5757
        %v5759 = vpop.xlane.xlu0 %5758
        %v5760 = vadd.f32 %v4612, %v4613
        %v5761 = vadd.f32 %v5760, %v4614
        %v5762 = vadd.f32 %v5761, %v4615
        %v5763 = vadd.f32 %v5762, %v4616
        %v5764 = vadd.f32 %v5763, %v4617
        %v5765 = vadd.f32 %v5764, %v4618
        %v5766 = vadd.f32 %v5765, %v4619
        %v5767 = vadd.f32 %v5766, %v4620
        %v5768 = vadd.f32 %v5767, %v4621
        %v5769 = vadd.f32 %v5768, %v4622
        %v5770 = vadd.f32 %v5769, %v4623
        %v5771 = vadd.f32 %v5770, %v4624
        %v5772 = vadd.f32 %v5771, %v4625
        %v5773 = vadd.f32 %v5772, %v4626
        %v5774 = vadd.f32 %v5773, %v4627
        %5775 = vadd.xlane.f32.xlu0 %v5774
        %v5776 = vpop.xlane.xlu0 %5775
        %v5777 = vadd.f32 %v4628, %v4629
        %v5778 = vadd.f32 %v5777, %v4630
        %v5779 = vadd.f32 %v5778, %v4631
        %v5780 = vadd.f32 %v5779, %v4632
        %v5781 = vadd.f32 %v5780, %v4633
        %v5782 = vadd.f32 %v5781, %v4634
        %v5783 = vadd.f32 %v5782, %v4635
        %v5784 = vadd.f32 %v5783, %v4636
        %v5785 = vadd.f32 %v5784, %v4637
        %v5786 = vadd.f32 %v5785, %v4638
        %v5787 = vadd.f32 %v5786, %v4639
        %v5788 = vadd.f32 %v5787, %v4640
        %v5789 = vadd.f32 %v5788, %v4641
        %v5790 = vadd.f32 %v5789, %v4642
        %v5791 = vadd.f32 %v5790, %v4643
        %5792 = vadd.xlane.f32.xlu0 %v5791
        %v5793 = vpop.xlane.xlu0 %5792
        %v5794 = vadd.f32 %v4644, %v4645
        %v5795 = vadd.f32 %v5794, %v4646
        %v5796 = vadd.f32 %v5795, %v4647
        %v5797 = vadd.f32 %v5796, %v4648
        %v5798 = vadd.f32 %v5797, %v4649
        %v5799 = vadd.f32 %v5798, %v4650
        %v5800 = vadd.f32 %v5799, %v4651
        %v5801 = vadd.f32 %v5800, %v4652
        %v5802 = vadd.f32 %v5801, %v4653
        %v5803 = vadd.f32 %v5802, %v4654
        %v5804 = vadd.f32 %v5803, %v4655
        %v5805 = vadd.f32 %v5804, %v4656
        %v5806 = vadd.f32 %v5805, %v4657
        %v5807 = vadd.f32 %v5806, %v4658
        %v5808 = vadd.f32 %v5807, %v4659
        %5809 = vadd.xlane.f32.xlu0 %v5808
        %v5810 = vpop.xlane.xlu0 %5809
        %v5811 = vadd.f32 %v4660, %v4661
        %v5812 = vadd.f32 %v5811, %v4662
        %v5813 = vadd.f32 %v5812, %v4663
        %v5814 = vadd.f32 %v5813, %v4664
        %v5815 = vadd.f32 %v5814, %v4665
        %v5816 = vadd.f32 %v5815, %v4666
        %v5817 = vadd.f32 %v5816, %v4667
        %v5818 = vadd.f32 %v5817, %v4668
        %v5819 = vadd.f32 %v5818, %v4669
        %v5820 = vadd.f32 %v5819, %v4670
        %v5821 = vadd.f32 %v5820, %v4671
        %v5822 = vadd.f32 %v5821, %v4672
        %v5823 = vadd.f32 %v5822, %v4673
        %v5824 = vadd.f32 %v5823, %v4674
        %v5825 = vadd.f32 %v5824, %v4675
        %5826 = vadd.xlane.f32.xlu0 %v5825
        %v5827 = vpop.xlane.xlu0 %5826
        %v5828 = vadd.f32 %v4676, %v4756
        %v5829 = vadd.f32 %v4677, %v4773
        %v5830 = vadd.f32 %v4678, %v4790
        %v5831 = vadd.f32 %v4679, %v4807
        %v5832 = vadd.f32 %v4680, %v4824
        %v5833 = vadd.f32 %v4681, %v4841
        %v5834 = vadd.f32 %v4682, %v4858
        %v5835 = vadd.f32 %v4683, %v4875
        %v5836 = vadd.f32 %v4684, %v4892
        %v5837 = vadd.f32 %v4685, %v4909
        %v5838 = vadd.f32 %v4686, %v4926
        %v5839 = vadd.f32 %v4687, %v4943
        %v5840 = vadd.f32 %v4688, %v4960
        %v5841 = vadd.f32 %v4689, %v4977
        %v5842 = vadd.f32 %v4690, %v4994
        %v5843 = vadd.f32 %v4691, %v5011
        %v5844 = vadd.f32 %v4692, %v5028
        %v5845 = vadd.f32 %v4693, %v5045
        %v5846 = vadd.f32 %v4694, %v5062
        %v5847 = vadd.f32 %v4695, %v5079
        %v5848 = vadd.f32 %v4696, %v5096
        %v5849 = vadd.f32 %v4697, %v5113
        %v5850 = vadd.f32 %v4698, %v5130
        %v5851 = vadd.f32 %v4699, %v5147
        %v5852 = vadd.f32 %v4700, %v5164
        %v5853 = vadd.f32 %v4701, %v5181
        %v5854 = vadd.f32 %v4702, %v5198
        %v5855 = vadd.f32 %v4703, %v5215
        %v5856 = vadd.f32 %v4704, %v5232
        %v5857 = vadd.f32 %v4705, %v5249
        %v5858 = vadd.f32 %v4706, %v5266
        %v5859 = vadd.f32 %v4707, %v5283
        %v5860 = vadd.f32 %v4708, %v5300
        %v5861 = vadd.f32 %v4709, %v5317
        %v5862 = vadd.f32 %v4710, %v5334
        %v5863 = vadd.f32 %v4711, %v5351
        %v5864 = vadd.f32 %v4712, %v5368
        %v5865 = vadd.f32 %v4713, %v5385
        %v5866 = vadd.f32 %v4714, %v5402
        %v5867 = vadd.f32 %v4715, %v5419
        %v5868 = vadd.f32 %v4716, %v5436
        %v5869 = vadd.f32 %v4717, %v5453
        %v5870 = vadd.f32 %v4718, %v5470
        %v5871 = vadd.f32 %v4719, %v5487
        %v5872 = vadd.f32 %v4720, %v5504
        %v5873 = vadd.f32 %v4721, %v5521
        %v5874 = vadd.f32 %v4722, %v5538
        %v5875 = vadd.f32 %v4723, %v5555
        %v5876 = vadd.f32 %v4724, %v5572
        %v5877 = vadd.f32 %v4725, %v5589
        %v5878 = vadd.f32 %v4726, %v5606
        %v5879 = vadd.f32 %v4727, %v5623
        %v5880 = vadd.f32 %v4728, %v5640
        %v5881 = vadd.f32 %v4729, %v5657
        %v5882 = vadd.f32 %v4730, %v5674
        %v5883 = vadd.f32 %v4731, %v5691
        %v5884 = vadd.f32 %v4732, %v5708
        %v5885 = vadd.f32 %v4733, %v5725
        %v5886 = vadd.f32 %v4734, %v5742
        %v5887 = vadd.f32 %v4735, %v5759
        %v5888 = vadd.f32 %v4736, %v5776
        %v5889 = vadd.f32 %v4737, %v5793
        %v5890 = vadd.f32 %v4738, %v5810
        %v5891 = vadd.f32 %v4739, %v5827
        %vm5892 = vcmask 7168
        %5893 = vst.msk [vmem:[%s213] sm:$0xff] %vm5892, %v5828
        %5894 = vst.msk [vmem:[%s213 + $0x8] sm:$0xff] %vm5892, %v5829
        %5895 = vst.msk [vmem:[%s213 + $0x10] sm:$0xff] %vm5892, %v5830
        %5896 = vst.msk [vmem:[%s213 + $0x18] sm:$0xff] %vm5892, %v5831
        %5897 = vst.msk [vmem:[%s213 + $0x20] sm:$0xff] %vm5892, %v5832
        %5898 = vst.msk [vmem:[%s213 + $0x28] sm:$0xff] %vm5892, %v5833
        %5899 = vst.msk [vmem:[%s213 + $0x30] sm:$0xff] %vm5892, %v5834
        %5900 = vst.msk [vmem:[%s213 + $0x38] sm:$0xff] %vm5892, %v5835
        %5901 = vst.msk [vmem:[%s213 + $0x40] sm:$0xff] %vm5892, %v5836
        %5902 = vst.msk [vmem:[%s213 + $0x48] sm:$0xff] %vm5892, %v5837
        %5903 = vst.msk [vmem:[%s213 + $0x50] sm:$0xff] %vm5892, %v5838
        %5904 = vst.msk [vmem:[%s213 + $0x58] sm:$0xff] %vm5892, %v5839
        %5905 = vst.msk [vmem:[%s213 + $0x60] sm:$0xff] %vm5892, %v5840
        %5906 = vst.msk [vmem:[%s213 + $0x68] sm:$0xff] %vm5892, %v5841
        %5907 = vst.msk [vmem:[%s213 + $0x70] sm:$0xff] %vm5892, %v5842
        %5908 = vst.msk [vmem:[%s213 + $0x78] sm:$0xff] %vm5892, %v5843
        %5909 = vst.msk [vmem:[%s213 + $0x80] sm:$0xff] %vm5892, %v5844
        %5910 = vst.msk [vmem:[%s213 + $0x88] sm:$0xff] %vm5892, %v5845
        %5911 = vst.msk [vmem:[%s213 + $0x90] sm:$0xff] %vm5892, %v5846
        %5912 = vst.msk [vmem:[%s213 + $0x98] sm:$0xff] %vm5892, %v5847
        %5913 = vst.msk [vmem:[%s213 + $0xa0] sm:$0xff] %vm5892, %v5848
        %5914 = vst.msk [vmem:[%s213 + $0xa8] sm:$0xff] %vm5892, %v5849
        %5915 = vst.msk [vmem:[%s213 + $0xb0] sm:$0xff] %vm5892, %v5850
        %5916 = vst.msk [vmem:[%s213 + $0xb8] sm:$0xff] %vm5892, %v5851
        %5917 = vst.msk [vmem:[%s213 + $0xc0] sm:$0xff] %vm5892, %v5852
        %5918 = vst.msk [vmem:[%s213 + $0xc8] sm:$0xff] %vm5892, %v5853
        %5919 = vst.msk [vmem:[%s213 + $0xd0] sm:$0xff] %vm5892, %v5854
        %5920 = vst.msk [vmem:[%s213 + $0xd8] sm:$0xff] %vm5892, %v5855
        %5921 = vst.msk [vmem:[%s213 + $0xe0] sm:$0xff] %vm5892, %v5856
        %5922 = vst.msk [vmem:[%s213 + $0xe8] sm:$0xff] %vm5892, %v5857
        %5923 = vst.msk [vmem:[%s213 + $0xf0] sm:$0xff] %vm5892, %v5858
        %5924 = vst.msk [vmem:[%s213 + $0xf8] sm:$0xff] %vm5892, %v5859
        %5925 = vst.msk [vmem:[%s213 + $0x100] sm:$0xff] %vm5892, %v5860
        %5926 = vst.msk [vmem:[%s213 + $0x108] sm:$0xff] %vm5892, %v5861
        %5927 = vst.msk [vmem:[%s213 + $0x110] sm:$0xff] %vm5892, %v5862
        %5928 = vst.msk [vmem:[%s213 + $0x118] sm:$0xff] %vm5892, %v5863
        %5929 = vst.msk [vmem:[%s213 + $0x120] sm:$0xff] %vm5892, %v5864
        %5930 = vst.msk [vmem:[%s213 + $0x128] sm:$0xff] %vm5892, %v5865
        %5931 = vst.msk [vmem:[%s213 + $0x130] sm:$0xff] %vm5892, %v5866
        %5932 = vst.msk [vmem:[%s213 + $0x138] sm:$0xff] %vm5892, %v5867
        %5933 = vst.msk [vmem:[%s213 + $0x140] sm:$0xff] %vm5892, %v5868
        %5934 = vst.msk [vmem:[%s213 + $0x148] sm:$0xff] %vm5892, %v5869
        %5935 = vst.msk [vmem:[%s213 + $0x150] sm:$0xff] %vm5892, %v5870
        %5936 = vst.msk [vmem:[%s213 + $0x158] sm:$0xff] %vm5892, %v5871
        %5937 = vst.msk [vmem:[%s213 + $0x160] sm:$0xff] %vm5892, %v5872
        %5938 = vst.msk [vmem:[%s213 + $0x168] sm:$0xff] %vm5892, %v5873
        %5939 = vst.msk [vmem:[%s213 + $0x170] sm:$0xff] %vm5892, %v5874
        %5940 = vst.msk [vmem:[%s213 + $0x178] sm:$0xff] %vm5892, %v5875
        %5941 = vst.msk [vmem:[%s213 + $0x180] sm:$0xff] %vm5892, %v5876
        %5942 = vst.msk [vmem:[%s213 + $0x188] sm:$0xff] %vm5892, %v5877
        %5943 = vst.msk [vmem:[%s213 + $0x190] sm:$0xff] %vm5892, %v5878
        %5944 = vst.msk [vmem:[%s213 + $0x198] sm:$0xff] %vm5892, %v5879
        %5945 = vst.msk [vmem:[%s213 + $0x1a0] sm:$0xff] %vm5892, %v5880
        %5946 = vst.msk [vmem:[%s213 + $0x1a8] sm:$0xff] %vm5892, %v5881
        %5947 = vst.msk [vmem:[%s213 + $0x1b0] sm:$0xff] %vm5892, %v5882
        %5948 = vst.msk [vmem:[%s213 + $0x1b8] sm:$0xff] %vm5892, %v5883
        %5949 = vst.msk [vmem:[%s213 + $0x1c0] sm:$0xff] %vm5892, %v5884
        %5950 = vst.msk [vmem:[%s213 + $0x1c8] sm:$0xff] %vm5892, %v5885
        %5951 = vst.msk [vmem:[%s213 + $0x1d0] sm:$0xff] %vm5892, %v5886
        %5952 = vst.msk [vmem:[%s213 + $0x1d8] sm:$0xff] %vm5892, %v5887
        %5953 = vst.msk [vmem:[%s213 + $0x1e0] sm:$0xff] %vm5892, %v5888
        %5954 = vst.msk [vmem:[%s213 + $0x1e8] sm:$0xff] %vm5892, %v5889
        %5955 = vst.msk [vmem:[%s213 + $0x1f0] sm:$0xff] %vm5892, %v5890
        %5956 = vst.msk [vmem:[%s213 + $0x1f8] sm:$0xff] %vm5892, %v5891
        %s5957 = smul.u32 64, %s23
        %p5958 = scmp.lt.s32.totalorder %s5957, 127
        %s5959 = scalar_select %p5958, %s5957, 127
        %s5960 = smul.addr %s5959, 8
        %s5961 = scalar_lea.vmem %s2, %s5960
        // Predicated region
        $region41: #{tpu_custom_call.1} parent=27 // pred_check
          %p5962 = pneg %p101
        $region42: #{tpu_custom_call.1} parent=27 // pred_check_branch
          %5964 = sbr.rel (%p5962) target = $region44
        $region43: #{tpu_custom_call.1} parent=27 // pred_region
          %s5965 = smul.u32 64, %s23
        $region44: #{tpu_custom_call.1} parent=27 // pred_fallthru
          _
      $region28: #{tpu_custom_call.1} parent=5 // pred_fallthru
        _
      %p5966 = scmp.le.s32.totalorder 2, %s14
      // Predicated region
      $region45: #{tpu_custom_call.1} parent=5 // pred_check
        %p5967 = pneg %p5966
      $region46: #{tpu_custom_call.1} parent=5 // pred_check_branch
        %5969 = sbr.rel (%p5967) target = $region48
      $region47: #{tpu_custom_call.1} parent=5 // pred_region
        %s5970 = ssub.s32 %s14, 2
        // Predicated region
        $region49: #{tpu_custom_call.1} parent=47 // pred_check
          %p5971 = pneg %p107
        $region50: #{tpu_custom_call.1} parent=47 // pred_check_branch
          %5973 = sbr.rel (%p5971) target = $region52
        $region51: #{tpu_custom_call.1} parent=47 // pred_region
          %s5974 = smul.u32 64, %s25
          %p5975 = scmp.lt.s32.totalorder %s5974, 127
          %s5976 = scalar_select %p5975, %s5974, 127
          %s5977 = smul.addr %s5976, 8
          %s5978 = scalar_lea.vmem %s2, %s5977
        $region52: #{tpu_custom_call.1} parent=47 // pred_fallthru
          _
      $region48: #{tpu_custom_call.1} parent=5 // pred_fallthru
        _
    $region6: #{tpu_custom_call.1} parent=1 // loop_footer
      %s18 = sadd.s32 1, %s14
    $region7: #{tpu_custom_call.1} parent=1 // loop_footer_branch
      %13 = sbr.rel target = $region3
    $region8: #{tpu_custom_call.1} parent=1 // loop_exit
      _
    %5979 = vsyncpa [#allocation4], 1
    %s5980 = scalar_lea.sflag [#allocation4], 1
    %5981 = vsyncpa %s5980, 1
    %5982 = vsyncpa [#allocation6], 1
    %s5983 = scalar_lea.sflag [#allocation6], 1
    %5984 = vsyncpa %s5983, 1

</llo_original>
